<compile_context>
chip_gen: v6e
topology: v6e:2x2x1
jax: 0.10.0
libtpu: 0.0.40
codegen_flags: <defaults>
</compile_context>

<pallas_src>
import functools

import jax
import jax.numpy as jnp
from jax.experimental import pallas as pl
from jax.experimental.pallas import tpu as pltpu


_FC1_OUT = 1024          # nn.Linear(V, 1024)
_GOOGLE_FEATS = 1000     # GoogLeNet output width (fc2 rows 0..999)
_FC1_BLOCK_V = 2048      # vocab tile streamed per grid step (bf16 tile = 4 MiB)


def _round_up(x, m):
    return ((x + m - 1) // m) * m


def _pad_to(x, shape):
    return jnp.pad(x, [(0, t - s) for s, t in zip(x.shape, shape)])


# ---------------------------------------------------------------------------
# Fused kernel
# ---------------------------------------------------------------------------
def _fused_vqa_kernel(bow_ref, w1_ref, b1_ref,
                      patch_ref, cw_ref, cb_ref, pool_ref,
                      w2i_ref, w2q_ref, b2_ref,
                      out_ref, q_acc):
    # Grid axis 0 streams vocab tiles of the bag-of-words and fc1 weights.
    k = pl.program_id(0)
    nk = pl.num_programs(0)

    @pl.when(k == 0)
    def _():
        q_acc[...] = jnp.zeros_like(q_acc)

        # ---- image branch at step 0: overlaps the remaining fc1 weight DMA ----
        # im2col conv as a bf16 matmul, f32 accumulate.
        conv = jnp.dot(patch_ref[...], cw_ref[...],
                       preferred_element_type=jnp.float32)            # (BHW, KP)
        conv = jnp.maximum(conv + cb_ref[...], 0.0)
        # Global average pool via the precomputed block-diagonal pool matrix.
        pooled = jnp.dot(pool_ref[...], conv.astype(pool_ref.dtype),
                         preferred_element_type=jnp.float32)          # (B, KP)
        # gfc has been folded into w2i/b2 offline; write the image half of fc2.
        out_ref[...] = (jnp.dot(pooled.astype(w2i_ref.dtype), w2i_ref[...],
                                preferred_element_type=jnp.float32)
                        + b2_ref[...])

    # ---- question branch: streamed fc1 accumulate (bf16 x bf16 -> f32) ----
    q_acc[...] += jnp.dot(bow_ref[...], w1_ref[...],
                          preferred_element_type=jnp.float32)

    @pl.when(k == nk - 1)
    def _():
        q_feat = q_acc[...] + b1_ref[...]                              # (B, 1024)
        # fc2 over the implicit concat([img_feat, q_feat]): add the question half.
        out_ref[...] += jnp.dot(q_feat.astype(w2q_ref.dtype), w2q_ref[...],
                                preferred_element_type=jnp.float32)


# ---------------------------------------------------------------------------
# Parameter construction / packing
# ---------------------------------------------------------------------------
def init_params(key, question_word_list_length, answer_list_length,
                img_channels=3, conv_channels=16):
    """Logical (unpadded, f32) parameters. Linear weights stored as (in, out)."""
    ks = jax.random.split(key, 4)

    def init(k, shape, fan_in):
        return jax.random.normal(k, shape, jnp.float32) / jnp.sqrt(float(fan_in))

    return {
        # GoogLeNet stand-in: 3x3 conv -> ReLU -> GAP -> linear to 1000 feats.
        "conv_w": init(ks[0], (3, 3, img_channels, conv_channels), 9 * img_channels),
        "conv_b": jnp.zeros((1, conv_channels), jnp.float32),
        "gfc_w": init(ks[1], (conv_channels, _GOOGLE_FEATS), conv_channels),
        "gfc_b": jnp.zeros((1, _GOOGLE_FEATS), jnp.float32),
        # fc1: V -> 1024 (x @ W + b, equivalent to nn.Linear's x @ W.T + b).
        "fc1_w": init(ks[2], (question_word_list_length, _FC1_OUT),
                      question_word_list_length),
        "fc1_b": jnp.zeros((1, _FC1_OUT), jnp.float32),
        # fc2: 2024 -> A.
        "fc2_w": init(ks[3], (_GOOGLE_FEATS + _FC1_OUT, answer_list_length),
                      _GOOGLE_FEATS + _FC1_OUT),
        "fc2_b": jnp.zeros((1, answer_list_length), jnp.float32),
    }


def pack_params(params):
    """Pad / split / fold / cast parameters into kernel-ready arrays (offline).

    Weights -> bfloat16 (these layers are HBM-bandwidth bound), biases stay f32.
    fc2 is pre-split into its image half (rows :1000) and question half
    (rows 1000:), and the stand-in gfc layer is folded into the image half
    (there is no nonlinearity between them; dropout is identity at eval):
        (pooled @ Wg + bg) @ W2i + b2 == pooled @ (Wg @ W2i) + (bg @ W2i + b2)
    """
    V, h1 = params["fc1_w"].shape
    assert h1 == _FC1_OUT
    kh, kw, C, K = params["conv_w"].shape
    A = params["fc2_w"].shape[1]

    VP = _round_up(V, _FC1_BLOCK_V)
    CP = _round_up(kh * kw * C, 128)
    KP = _round_up(K, 128)
    AP = _round_up(A, 128)
    bf16 = jnp.bfloat16

    fc2_img = params["fc2_w"][:_GOOGLE_FEATS]          # (1000, A)
    fc2_q = params["fc2_w"][_GOOGLE_FEATS:]            # (1024, A)
    w2i_fused = params["gfc_w"] @ fc2_img              # (K, A)   f32 fold
    b2_fused = params["gfc_b"] @ fc2_img + params["fc2_b"]          # (1, A)

    return {
        "fc1_w": _pad_to(params["fc1_w"], (VP, _FC1_OUT)).astype(bf16),
        "fc1_b": params["fc1_b"].astype(jnp.float32),
        "conv_w": _pad_to(params["conv_w"].reshape(kh * kw * C, K), (CP, KP)).astype(bf16),
        "conv_b": _pad_to(params["conv_b"], (1, KP)).astype(jnp.float32),
        "fc2_w_img": _pad_to(w2i_fused, (KP, AP)).astype(bf16),     # gfc folded in
        "fc2_w_q": _pad_to(fc2_q, (_FC1_OUT, AP)).astype(bf16),
        "fc2_b": _pad_to(b2_fused, (1, AP)).astype(jnp.float32),    # gfc_b folded in
    }


# ---------------------------------------------------------------------------
# Wrapper
# ---------------------------------------------------------------------------
def _im2col_3x3(image_nchw):
    """(B, C, H, W) -> (B*H*W, 9*C) patches for a 3x3 / stride-1 / pad-1 conv."""
    B, C, H, W = image_nchw.shape
    xp = jnp.pad(image_nchw, ((0, 0), (0, 0), (1, 1), (1, 1)))
    taps = [xp[:, :, dy:dy + H, dx:dx + W] for dy in range(3) for dx in range(3)]
    patches = jnp.stack(taps, axis=1)                   # (B, 9, C, H, W)
    patches = jnp.transpose(patches, (0, 3, 4, 1, 2))   # (B, H, W, 9, C)
    return patches.reshape(B * H * W, 9 * C)            # tap-major, channel-minor


def _pool_matrix(B, hw, dtype=jnp.bfloat16):
    """(B, B*hw) block-diagonal average-pool matrix (1/hw exact for pow2 hw)."""
    b_idx = jnp.arange(B, dtype=jnp.int32)[:, None]
    r_idx = jnp.arange(B * hw, dtype=jnp.int32)[None, :]
    lo = b_idx * hw
    return jnp.where((r_idx >= lo) & (r_idx < lo + hw),
                     1.0 / hw, 0.0).astype(dtype)


@functools.partial(jax.jit, static_argnames=("num_answers",))
def simple_baseline_forward(image_nchw, question_encoding, packed, *, num_answers):
    B = image_nchw.shape[0]

    VP, H1 = packed["fc1_w"].shape
    CP, KP = packed["conv_w"].shape
    AP = packed["fc2_b"].shape[1]
    tk = _FC1_BLOCK_V
    assert VP % tk == 0
    n_k = VP // tk

    # Bag-of-words (max over seq) computed once here; zero-pad the vocab axis to
    # the fc1 tiling (max of the zero pad is 0 and the padded fc1 rows are 0).
    bow = jnp.max(question_encoding.astype(jnp.float32), axis=1)     # (B, V)
    bow = jnp.pad(bow, ((0, 0), (0, VP - bow.shape[1]))).astype(jnp.bfloat16)

    # Lane-dense im2col patches for the stand-in conv (contraction padded to 128).
    patches = _im2col_3x3(image_nchw.astype(jnp.float32))
    patches = _pad_to(patches, (patches.shape[0], CP)).astype(jnp.bfloat16)
    BHW = patches.shape[0]
    hw = BHW // B
    pool = _pool_matrix(B, hw)                                        # (B, BHW) bf16

    def const(shape):
        return pl.BlockSpec(shape, lambda k, _s=len(shape): (0,) * _s)

    grid_spec = pltpu.PrefetchScalarGridSpec(
        num_scalar_prefetch=0,
        grid=(n_k,),
        in_specs=[
            pl.BlockSpec((B, tk), lambda k: (0, k)),     # bow tiles (streamed)
            pl.BlockSpec((tk, H1), lambda k: (k, 0)),    # fc1 weight tiles (streamed)
            const((1, H1)),                              # fc1 bias (resident)
            const((BHW, CP)),                            # image patches (resident)
            const((CP, KP)),                             # conv weight
            const((1, KP)),                              # conv bias
            const((B, BHW)),                             # GAP pool matrix
            const((KP, AP)),                             # fused (gfc @ fc2_img) weight
            const((H1, AP)),                             # fc2 rows for question feats
            const((1, AP)),                              # fused fc2 bias
        ],
        out_specs=pl.BlockSpec((B, AP), lambda k: (0, 0)),   # resident, lane-dense
        scratch_shapes=[pltpu.VMEM((B, H1), jnp.float32)],   # fc1 accumulator
    )

    out = pl.pallas_call(
        _fused_vqa_kernel,
        out_shape=jax.ShapeDtypeStruct((B, AP), jnp.float32),
        grid_spec=grid_spec,
        compiler_params=pltpu.CompilerParams(
            dimension_semantics=("arbitrary",),      # vocab axis is a reduction
            vmem_limit_bytes=28 * 1024 * 1024,       # safe on v7x's 64 MiB physical
        ),
    )(bow, packed["fc1_w"], packed["fc1_b"],
      patches, packed["conv_w"], packed["conv_b"], pool,
      packed["fc2_w_img"], packed["fc2_w_q"], packed["fc2_b"])

    return out[:, :num_answers]


# ---------------------------------------------------------------------------
# Pure-JAX reference mirroring the kernel's numerics (bf16 weights, f32 accum)
# ---------------------------------------------------------------------------
def reference_forward(image_nchw, question_encoding, packed, *, num_answers):
    f32 = jnp.float32
    bf = lambda x: x.astype(jnp.bfloat16).astype(f32)

    w1 = packed["fc1_w"].astype(f32)
    VP = w1.shape[0]
    bow = jnp.max(question_encoding.astype(f32), axis=1)
    bow = jnp.pad(bow, ((0, 0), (0, VP - bow.shape[1])))
    q_feat = bf(bow) @ w1 + packed["fc1_b"]

    patches = _im2col_3x3(image_nchw.astype(f32))
    CP = packed["conv_w"].shape[0]
    patches = bf(_pad_to(patches, (patches.shape[0], CP)))
    conv = jnp.maximum(patches @ packed["conv_w"].astype(f32) + packed["conv_b"], 0.0)

    B = image_nchw.shape[0]
    hw = patches.shape[0] // B
    pool = _pool_matrix(B, hw).astype(f32)
    pooled = pool @ bf(conv)

    out = (bf(pooled) @ packed["fc2_w_img"].astype(f32) + packed["fc2_b"]
           + bf(q_feat) @ packed["fc2_w_q"].astype(f32))
    return out[:, :num_answers]


if __name__ == "__main__":
    B, C, H, W = 2, 3, 16, 16          # image (NCHW, as PyTorch)
    SEQ, VOCAB, ANSWERS = 8, 1000, 10  # question_encoding (B, seq, vocab)

    key = jax.random.PRNGKey(0)
    k_img, k_q, k_p = jax.random.split(key, 3)

    image = jax.random.normal(k_img, (B, C, H, W), jnp.float32)
    question_encoding = (
        jax.random.uniform(k_q, (B, SEQ, VOCAB)) > 0.9
    ).astype(jnp.float32)              # one-hot-ish word encodings

    params = init_params(k_p, VOCAB, ANSWERS, img_channels=C)
    packed = pack_params(params)       # offline packing: pad + split + fold + bf16

    out = simple_baseline_forward(image, question_encoding, packed,
                                  num_answers=ANSWERS)
    out = jax.block_until_ready(out)
    assert out.shape == (B, ANSWERS), out.shape
    assert out.dtype == jnp.float32

    ref = reference_forward(image, question_encoding, packed, num_answers=ANSWERS)
    max_err = float(jnp.max(jnp.abs(out - ref)))
    assert jnp.allclose(out, ref, rtol=1e-2, atol=1e-2), max_err

    print("KERNEL_OK")
</pallas_src>

<mosaic_0001>
module attributes {stable_mosaic.version = 11 : i64} {
  func.func @_fused_vqa_kernel(%arg0: i32, %arg1: memref<2x2048xbf16, #tpu.memory_space<vmem>>, %arg2: memref<2048x1024xbf16, #tpu.memory_space<vmem>>, %arg3: memref<1x1024xf32, #tpu.memory_space<vmem>>, %arg4: memref<512x128xbf16, #tpu.memory_space<vmem>>, %arg5: memref<128x128xbf16, #tpu.memory_space<vmem>>, %arg6: memref<1x128xf32, #tpu.memory_space<vmem>>, %arg7: memref<2x512xbf16, #tpu.memory_space<vmem>>, %arg8: memref<128x128xbf16, #tpu.memory_space<vmem>>, %arg9: memref<1024x128xbf16, #tpu.memory_space<vmem>>, %arg10: memref<1x128xf32, #tpu.memory_space<vmem>>, %arg11: memref<2x128xf32, #tpu.memory_space<vmem>>, %arg12: memref<2x1024xf32, #tpu.memory_space<vmem>>) attributes {dimension_semantics = [#tpu.dimension_semantics<arbitrary>], iteration_bounds = array<i64: 1>, scalar_prefetch = 0 : i64, scratch_operands = 1 : i64, tpu.core_type = #tpu.core_type<tc>, window_params = [{transform_indices = @transform_0, window_bounds = array<i64: 2, 2048>}, {transform_indices = @transform_1, window_bounds = array<i64: 2048, 1024>}, {pipeline_mode = #tpu.pipeline_mode<synchronous>, transform_indices = @transform_2, window_bounds = array<i64: 1, 1024>}, {pipeline_mode = #tpu.pipeline_mode<synchronous>, transform_indices = @transform_3, window_bounds = array<i64: 512, 128>}, {pipeline_mode = #tpu.pipeline_mode<synchronous>, transform_indices = @transform_4, window_bounds = array<i64: 128, 128>}, {pipeline_mode = #tpu.pipeline_mode<synchronous>, transform_indices = @transform_5, window_bounds = array<i64: 1, 128>}, {pipeline_mode = #tpu.pipeline_mode<synchronous>, transform_indices = @transform_6, window_bounds = array<i64: 2, 512>}, {pipeline_mode = #tpu.pipeline_mode<synchronous>, transform_indices = @transform_7, window_bounds = array<i64: 128, 128>}, {pipeline_mode = #tpu.pipeline_mode<synchronous>, transform_indices = @transform_8, window_bounds = array<i64: 1024, 128>}, {pipeline_mode = #tpu.pipeline_mode<synchronous>, transform_indices = @transform_9, window_bounds = array<i64: 1, 128>}, {pipeline_mode = #tpu.pipeline_mode<synchronous>, transform_indices = @transform_10, window_bounds = array<i64: 2, 128>}]} {
    %c0_i32 = arith.constant 0 : i32
    %0 = arith.cmpi eq, %arg0, %c0_i32 : i32
    %1 = arith.extui %0 : i1 to i32
    %c0_i32_0 = arith.constant 0 : i32
    %2 = arith.cmpi ne, %1, %c0_i32_0 : i32
    scf.if %2 {
      %cst_10 = arith.constant 0.000000e+00 : f32
      %12 = vector.broadcast %cst_10 : f32 to vector<2x1024xf32>
      %c0_11 = arith.constant 0 : index
      %c0_12 = arith.constant 0 : index
      %13 = vector.load %arg12[%c0_11, %c0_12] : memref<2x1024xf32, #tpu.memory_space<vmem>>, vector<2x1024xf32>
      tpu.vector_store %arg12[%c0_11, %c0_12], %12 {strides = array<i32>} : memref<2x1024xf32, #tpu.memory_space<vmem>>, vector<2x1024xf32>,
      %c0_13 = arith.constant 0 : index
      %c0_14 = arith.constant 0 : index
      %14 = vector.load %arg4[%c0_13, %c0_14] : memref<512x128xbf16, #tpu.memory_space<vmem>>, vector<512x128xbf16>
      %c0_15 = arith.constant 0 : index
      %c0_16 = arith.constant 0 : index
      %15 = vector.load %arg5[%c0_15, %c0_16] : memref<128x128xbf16, #tpu.memory_space<vmem>>, vector<128x128xbf16>
      %cst_17 = arith.constant dense<0.000000e+00> : vector<512x128xf32>
      %16 = tpu.matmul %14, %15, %cst_17 {dimension_numbers = #tpu.dot_dimension_numbers<[1], [0], [0], [1], [0, 0, 1, 1], [], []>} : vector<512x128xbf16>, vector<128x128xbf16>, vector<512x128xf32> -> vector<512x128xf32>
      %c0_18 = arith.constant 0 : index
      %c0_19 = arith.constant 0 : index
      %17 = vector.load %arg6[%c0_18, %c0_19] : memref<1x128xf32, #tpu.memory_space<vmem>>, vector<1x128xf32>
      %18 = vector.broadcast %17 : vector<1x128xf32> to vector<512x128xf32>
      %19 = arith.addf %16, %18 : vector<512x128xf32>
      %cst_20 = arith.constant 0.000000e+00 : f32
      %20 = vector.broadcast %cst_20 : f32 to vector<512x128xf32>
      %21 = arith.maximumf %19, %20 : vector<512x128xf32>
      %c0_21 = arith.constant 0 : index
      %c0_22 = arith.constant 0 : index
      %22 = vector.load %arg7[%c0_21, %c0_22] : memref<2x512xbf16, #tpu.memory_space<vmem>>, vector<2x512xbf16>
      %23 = arith.truncf %21 : vector<512x128xf32> to vector<512x128xbf16>
      %cst_23 = arith.constant dense<0.000000e+00> : vector<2x128xf32>
      %24 = tpu.matmul %22, %23, %cst_23 {dimension_numbers = #tpu.dot_dimension_numbers<[1], [0], [0], [1], [0, 0, 1, 1], [], []>} : vector<2x512xbf16>, vector<512x128xbf16>, vector<2x128xf32> -> vector<2x128xf32>
      %25 = arith.truncf %24 : vector<2x128xf32> to vector<2x128xbf16>
      %c0_24 = arith.constant 0 : index
      %c0_25 = arith.constant 0 : index
      %26 = vector.load %arg8[%c0_24, %c0_25] : memref<128x128xbf16, #tpu.memory_space<vmem>>, vector<128x128xbf16>
      %cst_26 = arith.constant dense<0.000000e+00> : vector<2x128xf32>
      %27 = tpu.matmul %25, %26, %cst_26 {dimension_numbers = #tpu.dot_dimension_numbers<[1], [0], [0], [1], [0, 0, 1, 1], [], []>} : vector<2x128xbf16>, vector<128x128xbf16>, vector<2x128xf32> -> vector<2x128xf32>
      %c0_27 = arith.constant 0 : index
      %c0_28 = arith.constant 0 : index
      %28 = vector.load %arg10[%c0_27, %c0_28] : memref<1x128xf32, #tpu.memory_space<vmem>>, vector<1x128xf32>
      %29 = vector.broadcast %28 : vector<1x128xf32> to vector<2x128xf32>
      %30 = arith.addf %27, %29 : vector<2x128xf32>
      %c0_29 = arith.constant 0 : index
      %c0_30 = arith.constant 0 : index
      %31 = vector.load %arg11[%c0_29, %c0_30] : memref<2x128xf32, #tpu.memory_space<vmem>>, vector<2x128xf32>
      tpu.vector_store %arg11[%c0_29, %c0_30], %30 {strides = array<i32>} : memref<2x128xf32, #tpu.memory_space<vmem>>, vector<2x128xf32>,
    } else {
    }
    %c0 = arith.constant 0 : index
    %c0_1 = arith.constant 0 : index
    %3 = vector.load %arg12[%c0, %c0_1] : memref<2x1024xf32, #tpu.memory_space<vmem>>, vector<2x1024xf32>
    %c0_2 = arith.constant 0 : index
    %c0_3 = arith.constant 0 : index
    %4 = vector.load %arg1[%c0_2, %c0_3] : memref<2x2048xbf16, #tpu.memory_space<vmem>>, vector<2x2048xbf16>
    %c0_4 = arith.constant 0 : index
    %c0_5 = arith.constant 0 : index
    %5 = vector.load %arg2[%c0_4, %c0_5] : memref<2048x1024xbf16, #tpu.memory_space<vmem>>, vector<2048x1024xbf16>
    %cst = arith.constant dense<0.000000e+00> : vector<2x1024xf32>
    %6 = tpu.matmul %4, %5, %cst {dimension_numbers = #tpu.dot_dimension_numbers<[1], [0], [0], [1], [0, 0, 1, 1], [], []>} : vector<2x2048xbf16>, vector<2048x1024xbf16>, vector<2x1024xf32> -> vector<2x1024xf32>
    %7 = arith.addf %3, %6 : vector<2x1024xf32>
    %c0_6 = arith.constant 0 : index
    %c0_7 = arith.constant 0 : index
    %8 = vector.load %arg12[%c0_6, %c0_7] : memref<2x1024xf32, #tpu.memory_space<vmem>>, vector<2x1024xf32>
    tpu.vector_store %arg12[%c0_6, %c0_7], %7 {strides = array<i32>} : memref<2x1024xf32, #tpu.memory_space<vmem>>, vector<2x1024xf32>,
    %c0_i32_8 = arith.constant 0 : i32
    %9 = arith.cmpi eq, %arg0, %c0_i32_8 : i32
    %10 = arith.extui %9 : i1 to i32
    %c0_i32_9 = arith.constant 0 : i32
    %11 = arith.cmpi ne, %10, %c0_i32_9 : i32
    scf.if %11 {
      %c0_10 = arith.constant 0 : index
      %c0_11 = arith.constant 0 : index
      %12 = vector.load %arg12[%c0_10, %c0_11] : memref<2x1024xf32, #tpu.memory_space<vmem>>, vector<2x1024xf32>
      %c0_12 = arith.constant 0 : index
      %c0_13 = arith.constant 0 : index
      %13 = vector.load %arg3[%c0_12, %c0_13] : memref<1x1024xf32, #tpu.memory_space<vmem>>, vector<1x1024xf32>
      %14 = vector.broadcast %13 : vector<1x1024xf32> to vector<2x1024xf32>
      %15 = arith.addf %12, %14 : vector<2x1024xf32>
      %c0_14 = arith.constant 0 : index
      %c0_15 = arith.constant 0 : index
      %16 = vector.load %arg11[%c0_14, %c0_15] : memref<2x128xf32, #tpu.memory_space<vmem>>, vector<2x128xf32>
      %17 = arith.truncf %15 : vector<2x1024xf32> to vector<2x1024xbf16>
      %c0_16 = arith.constant 0 : index
      %c0_17 = arith.constant 0 : index
      %18 = vector.load %arg9[%c0_16, %c0_17] : memref<1024x128xbf16, #tpu.memory_space<vmem>>, vector<1024x128xbf16>
      %cst_18 = arith.constant dense<0.000000e+00> : vector<2x128xf32>
      %19 = tpu.matmul %17, %18, %cst_18 {dimension_numbers = #tpu.dot_dimension_numbers<[1], [0], [0], [1], [0, 0, 1, 1], [], []>} : vector<2x1024xbf16>, vector<1024x128xbf16>, vector<2x128xf32> -> vector<2x128xf32>
      %20 = arith.addf %16, %19 : vector<2x128xf32>
      %c0_19 = arith.constant 0 : index
      %c0_20 = arith.constant 0 : index
      %21 = vector.load %arg11[%c0_19, %c0_20] : memref<2x128xf32, #tpu.memory_space<vmem>>, vector<2x128xf32>
      tpu.vector_store %arg11[%c0_19, %c0_20], %20 {strides = array<i32>} : memref<2x128xf32, #tpu.memory_space<vmem>>, vector<2x128xf32>,
    } else {
    }
    return
  }
  func.func @transform_0(%arg0: i32) -> (i32, i32) {
    %c0_i32 = arith.constant 0 : i32
    %c0_i32_0 = arith.constant 0 : i32
    return %c0_i32, %arg0 : i32, i32
  }
  func.func @transform_1(%arg0: i32) -> (i32, i32) {
    %c0_i32 = arith.constant 0 : i32
    %c0_i32_0 = arith.constant 0 : i32
    return %arg0, %c0_i32 : i32, i32
  }
  func.func @transform_2(%arg0: i32) -> (i32, i32) {
    %c0_i32 = arith.constant 0 : i32
    %c0_i32_0 = arith.constant 0 : i32
    %c0_i32_1 = arith.constant 0 : i32
    return %c0_i32, %c0_i32_0 : i32, i32
  }
  func.func @transform_3(%arg0: i32) -> (i32, i32) {
    %c0_i32 = arith.constant 0 : i32
    %c0_i32_0 = arith.constant 0 : i32
    %c0_i32_1 = arith.constant 0 : i32
    return %c0_i32, %c0_i32_0 : i32, i32
  }
  func.func @transform_4(%arg0: i32) -> (i32, i32) {
    %c0_i32 = arith.constant 0 : i32
    %c0_i32_0 = arith.constant 0 : i32
    %c0_i32_1 = arith.constant 0 : i32
    return %c0_i32, %c0_i32_0 : i32, i32
  }
  func.func @transform_5(%arg0: i32) -> (i32, i32) {
    %c0_i32 = arith.constant 0 : i32
    %c0_i32_0 = arith.constant 0 : i32
    %c0_i32_1 = arith.constant 0 : i32
    return %c0_i32, %c0_i32_0 : i32, i32
  }
  func.func @transform_6(%arg0: i32) -> (i32, i32) {
    %c0_i32 = arith.constant 0 : i32
    %c0_i32_0 = arith.constant 0 : i32
    %c0_i32_1 = arith.constant 0 : i32
    return %c0_i32, %c0_i32_0 : i32, i32
  }
  func.func @transform_7(%arg0: i32) -> (i32, i32) {
    %c0_i32 = arith.constant 0 : i32
    %c0_i32_0 = arith.constant 0 : i32
    %c0_i32_1 = arith.constant 0 : i32
    return %c0_i32, %c0_i32_0 : i32, i32
  }
  func.func @transform_8(%arg0: i32) -> (i32, i32) {
    %c0_i32 = arith.constant 0 : i32
    %c0_i32_0 = arith.constant 0 : i32
    %c0_i32_1 = arith.constant 0 : i32
    return %c0_i32, %c0_i32_0 : i32, i32
  }
  func.func @transform_9(%arg0: i32) -> (i32, i32) {
    %c0_i32 = arith.constant 0 : i32
    %c0_i32_0 = arith.constant 0 : i32
    %c0_i32_1 = arith.constant 0 : i32
    return %c0_i32, %c0_i32_0 : i32, i32
  }
  func.func @transform_10(%arg0: i32) -> (i32, i32) {
    %c0_i32 = arith.constant 0 : i32
    %c0_i32_0 = arith.constant 0 : i32
    %c0_i32_1 = arith.constant 0 : i32
    return %c0_i32, %c0_i32_0 : i32, i32
  }
}

</mosaic_0001>

<llo_original>
// kernel: simple_baseline_forward.1
$region0: #{simple_baseline_forward.1}
  #allocation0 [shape = 'u32[]', space=smem, size = 0x4, offset = 0x4, fixed_abs, tag = 'smem constant byte address 0x4 - core index']
  #allocation1 [shape = 'u32[144,128]{1,0:T(1,128)}', space=vmem, size = 0x12000, scoped, tag = 'internal scratch']
  #allocation2 [shape = 'f32[2,1024]{1,0:T(2,128)}', space=vmem, size = 0x2000, scoped, tag = 'scratch operand']
  %s0 = inlined_call_operand.vmem [shape: bf16[2,2048], index: 0, kind: input, shape index: {}]
  %s1 = inlined_call_operand.hbm [shape: bf16[2048,1024], index: 1, kind: input, shape index: {}]
  %s2 = inlined_call_operand.hbm [shape: f32[1,1024], index: 2, kind: input, shape index: {}]
  %s3 = inlined_call_operand.vmem [shape: bf16[512,128], index: 3, kind: input, shape index: {}]
  %s4 = inlined_call_operand.hbm [shape: bf16[128,128], index: 4, kind: input, shape index: {}]
  %s5 = inlined_call_operand.hbm [shape: f32[1,128], index: 5, kind: input, shape index: {}]
  %s6 = inlined_call_operand.vmem [shape: bf16[2,512], index: 6, kind: input, shape index: {}]
  %s7 = inlined_call_operand.hbm [shape: bf16[128,128], index: 7, kind: input, shape index: {}]
  %s8 = inlined_call_operand.hbm [shape: bf16[1024,128], index: 8, kind: input, shape index: {}]
  %s9 = inlined_call_operand.hbm [shape: f32[1,128], index: 9, kind: input, shape index: {}]
  %s10 = inlined_call_operand.hbm [shape: f32[2,128], index: 10, kind: output, shape index: {}]
  %s11 = sld [smem:[#allocation0]]
  $region86: #{simple_baseline_forward.1} parent=0
    _
  %s13 = ssub.s32 1, %s11
  %s14 = scalar_select 0, %s13, %s11
  $region1: #{simple_baseline_forward.1} parent=0
    #allocation3 [shape = 'u8[4194304]{0}', space=vmem, size = 0x400000, scoped, tag = 'input window, operand 1, single buffered']
    #allocation4 [shape = 's32[1]{0}', space=sflag, size = 0x4, scoped, tag = 'scoped memory for simple_baseline_forward.1']
    #allocation5 [shape = 's32[1]{0}', space=sflag, size = 0x4, scoped, tag = 'scoped memory for simple_baseline_forward.1']
    #allocation6 [shape = 'u8[4096]{0}', space=vmem, size = 0x1000, scoped, tag = 'input window, operand 2, single buffered']
    #allocation7 [shape = 's32[1]{0}', space=sflag, size = 0x4, scoped, tag = 'scoped memory for simple_baseline_forward.1']
    #allocation8 [shape = 'u8[32768]{0}', space=vmem, size = 0x8000, scoped, tag = 'input window, operand 4, single buffered']
    #allocation9 [shape = 'u8[512]{0}', space=vmem, size = 0x400, scoped, tag = 'input window, operand 5, single buffered']
    #allocation10 [shape = 's32[1]{0}', space=sflag, size = 0x4, scoped, tag = 'scoped memory for simple_baseline_forward.1']
    #allocation11 [shape = 'u8[32768]{0}', space=vmem, size = 0x8000, scoped, tag = 'input window, operand 7, single buffered']
    #allocation12 [shape = 'u8[262144]{0}', space=vmem, size = 0x40000, scoped, tag = 'input window, operand 8, single buffered']
    #allocation13 [shape = 's32[1]{0}', space=sflag, size = 0x4, scoped, tag = 'scoped memory for simple_baseline_forward.1']
    #allocation14 [shape = 'u8[512]{0}', space=vmem, size = 0x400, scoped, tag = 'input window, operand 9, single buffered']
    #allocation15 [shape = 'u8[1024]{0}', space=vmem, size = 0x400, scoped, tag = 'output window, operand 0, single buffered']
    %15 = vsyncpa [#allocation4], 0
    %16 = vsyncpa [#allocation7], 0
    %17 = vsyncpa [#allocation10], 0
    %18 = vsyncpa [#allocation13], 0
    %19 = vsyncpa [#allocation5], 0
    // Predicated region
    $region2: #{simple_baseline_forward.1} parent=1 // pred_check
      _
    $region3: #{simple_baseline_forward.1} parent=1 // pred_check_branch
      %21 = sbr.rel (0) target = $region5
    $region4: #{simple_baseline_forward.1} parent=1 // pred_region
      _
    $region5: #{simple_baseline_forward.1} parent=1 // pred_fallthru
      _
    // Predicated region
    $region6: #{simple_baseline_forward.1} parent=1 // pred_check
      _
    $region7: #{simple_baseline_forward.1} parent=1 // pred_check_branch
      %23 = sbr.rel (0) target = $region9
    $region8: #{simple_baseline_forward.1} parent=1 // pred_region
      %s25 = ssub.s32 131072, 131072
      %26 = vsyncadd [#allocation4], %s25
      %s27 = sshll.u32 [#allocation3], 4
      %s28 = int_to_ptr.vmem [resolvable:$true] %s27
      %33 = dma.hbm_to_vmem [thread:$0]  %s1, 131072, %s28, [#allocation4], 512, 512, 32
    $region9: #{simple_baseline_forward.1} parent=1 // pred_fallthru
      _
    // Predicated region
    $region10: #{simple_baseline_forward.1} parent=1 // pred_check
      _
    $region11: #{simple_baseline_forward.1} parent=1 // pred_check_branch
      %35 = sbr.rel (0) target = $region13
    $region12: #{simple_baseline_forward.1} parent=1 // pred_region
      %s37 = ssub.s32 128, 128
      %38 = vsyncadd [#allocation7], %s37
      %s40 = sshll.u32 [#allocation6], 4
      %s41 = int_to_ptr.vmem [resolvable:$true] %s40
      %43 = dma.hbm_to_vmem [thread:$0]  %s2, 128, %s41, [#allocation7]
    $region13: #{simple_baseline_forward.1} parent=1 // pred_fallthru
      _
    // Predicated region
    $region14: #{simple_baseline_forward.1} parent=1 // pred_check
      _
    $region15: #{simple_baseline_forward.1} parent=1 // pred_check_branch
      %45 = sbr.rel (0) target = $region17
    $region16: #{simple_baseline_forward.1} parent=1 // pred_region
      _
    $region17: #{simple_baseline_forward.1} parent=1 // pred_fallthru
      _
    // Predicated region
    $region18: #{simple_baseline_forward.1} parent=1 // pred_check
      _
    $region19: #{simple_baseline_forward.1} parent=1 // pred_check_branch
      %47 = sbr.rel (0) target = $region21
    $region20: #{simple_baseline_forward.1} parent=1 // pred_region
      %s49 = ssub.s32 1024, 1024
      %50 = vsyncadd [#allocation7], %s49
      %s51 = sshll.u32 [#allocation8], 4
      %s52 = int_to_ptr.vmem [resolvable:$true] %s51
      %57 = dma.hbm_to_vmem [thread:$0]  %s4, 1024, %s52, [#allocation7], 64, 64, 4
    $region21: #{simple_baseline_forward.1} parent=1 // pred_fallthru
      _
    // Predicated region
    $region22: #{simple_baseline_forward.1} parent=1 // pred_check
      _
    $region23: #{simple_baseline_forward.1} parent=1 // pred_check_branch
      %59 = sbr.rel (0) target = $region25
    $region24: #{simple_baseline_forward.1} parent=1 // pred_region
      %s61 = ssub.s32 16, 16
      %62 = vsyncadd [#allocation10], %s61
      %s64 = sshll.u32 [#allocation9], 4
      %s65 = int_to_ptr.vmem [resolvable:$true] %s64
      %67 = dma.hbm_to_vmem [thread:$0]  %s5, 16, %s65, [#allocation10]
    $region25: #{simple_baseline_forward.1} parent=1 // pred_fallthru
      _
    // Predicated region
    $region26: #{simple_baseline_forward.1} parent=1 // pred_check
      _
    $region27: #{simple_baseline_forward.1} parent=1 // pred_check_branch
      %69 = sbr.rel (0) target = $region29
    $region28: #{simple_baseline_forward.1} parent=1 // pred_region
      _
    $region29: #{simple_baseline_forward.1} parent=1 // pred_fallthru
      _
    // Predicated region
    $region30: #{simple_baseline_forward.1} parent=1 // pred_check
      _
    $region31: #{simple_baseline_forward.1} parent=1 // pred_check_branch
      %71 = sbr.rel (0) target = $region33
    $region32: #{simple_baseline_forward.1} parent=1 // pred_region
      %s73 = ssub.s32 1024, 1024
      %74 = vsyncadd [#allocation10], %s73
      %s75 = sshll.u32 [#allocation11], 4
      %s76 = int_to_ptr.vmem [resolvable:$true] %s75
      %81 = dma.hbm_to_vmem [thread:$0]  %s7, 1024, %s76, [#allocation10], 64, 64, 4
    $region33: #{simple_baseline_forward.1} parent=1 // pred_fallthru
      _
    // Predicated region
    $region34: #{simple_baseline_forward.1} parent=1 // pred_check
      _
    $region35: #{simple_baseline_forward.1} parent=1 // pred_check_branch
      %83 = sbr.rel (0) target = $region37
    $region36: #{simple_baseline_forward.1} parent=1 // pred_region
      %s85 = ssub.s32 8192, 8192
      %86 = vsyncadd [#allocation13], %s85
      %s87 = sshll.u32 [#allocation12], 4
      %s88 = int_to_ptr.vmem [resolvable:$true] %s87
      %93 = dma.hbm_to_vmem [thread:$0]  %s8, 8192, %s88, [#allocation13], 64, 64, 4
    $region37: #{simple_baseline_forward.1} parent=1 // pred_fallthru
      _
    // Predicated region
    $region38: #{simple_baseline_forward.1} parent=1 // pred_check
      _
    $region39: #{simple_baseline_forward.1} parent=1 // pred_check_branch
      %95 = sbr.rel (0) target = $region41
    $region40: #{simple_baseline_forward.1} parent=1 // pred_region
      %s97 = ssub.s32 16, 16
      %98 = vsyncadd [#allocation13], %s97
      %s100 = sshll.u32 [#allocation14], 4
      %s101 = int_to_ptr.vmem [resolvable:$true] %s100
      %103 = dma.hbm_to_vmem [thread:$0]  %s9, 16, %s101, [#allocation13]
    $region41: #{simple_baseline_forward.1} parent=1 // pred_fallthru
      _
    // Predicated region
    $region42: #{simple_baseline_forward.1} parent=1 // pred_check
      _
    $region43: #{simple_baseline_forward.1} parent=1 // pred_check_branch
      %105 = sbr.rel (0) target = $region45
    $region44: #{simple_baseline_forward.1} parent=1 // pred_region
      %106 = dma.done [#allocation4], 131072
    $region45: #{simple_baseline_forward.1} parent=1 // pred_fallthru
      _
    // Predicated region
    $region46: #{simple_baseline_forward.1} parent=1 // pred_check
      _
    $region47: #{simple_baseline_forward.1} parent=1 // pred_check_branch
      %108 = sbr.rel (0) target = $region49
    $region48: #{simple_baseline_forward.1} parent=1 // pred_region
      %109 = dma.done [#allocation7], 128
    $region49: #{simple_baseline_forward.1} parent=1 // pred_fallthru
      _
    // Predicated region
    $region50: #{simple_baseline_forward.1} parent=1 // pred_check
      _
    $region51: #{simple_baseline_forward.1} parent=1 // pred_check_branch
      %111 = sbr.rel (0) target = $region53
    $region52: #{simple_baseline_forward.1} parent=1 // pred_region
      %112 = dma.done [#allocation7], 1024
    $region53: #{simple_baseline_forward.1} parent=1 // pred_fallthru
      _
    // Predicated region
    $region54: #{simple_baseline_forward.1} parent=1 // pred_check
      _
    $region55: #{simple_baseline_forward.1} parent=1 // pred_check_branch
      %114 = sbr.rel (0) target = $region57
    $region56: #{simple_baseline_forward.1} parent=1 // pred_region
      %115 = dma.done [#allocation10], 16
    $region57: #{simple_baseline_forward.1} parent=1 // pred_fallthru
      _
    // Predicated region
    $region58: #{simple_baseline_forward.1} parent=1 // pred_check
      _
    $region59: #{simple_baseline_forward.1} parent=1 // pred_check_branch
      %117 = sbr.rel (0) target = $region61
    $region60: #{simple_baseline_forward.1} parent=1 // pred_region
      %118 = dma.done [#allocation10], 1024
    $region61: #{simple_baseline_forward.1} parent=1 // pred_fallthru
      _
    // Predicated region
    $region62: #{simple_baseline_forward.1} parent=1 // pred_check
      _
    $region63: #{simple_baseline_forward.1} parent=1 // pred_check_branch
      %120 = sbr.rel (0) target = $region65
    $region64: #{simple_baseline_forward.1} parent=1 // pred_region
      %121 = dma.done [#allocation13], 8192
    $region65: #{simple_baseline_forward.1} parent=1 // pred_fallthru
      _
    // Predicated region
    $region66: #{simple_baseline_forward.1} parent=1 // pred_check
      _
    $region67: #{simple_baseline_forward.1} parent=1 // pred_check_branch
      %123 = sbr.rel (0) target = $region69
    $region68: #{simple_baseline_forward.1} parent=1 // pred_region
      %124 = dma.done [#allocation13], 16
    $region69: #{simple_baseline_forward.1} parent=1 // pred_fallthru
      _
    %p126 = scmp.eq.s32.totalorder 0, 0
    // Predicated region
    $region70: #{simple_baseline_forward.1} parent=1 // pred_check
      %p127 = pneg %p126
    $region71: #{simple_baseline_forward.1} parent=1 // pred_check_branch
      %129 = sbr.rel (%p127) target = $region73
    $region72: #{simple_baseline_forward.1} parent=1 // pred_region
      %130 = vst [vmem:[#allocation2] sm:$0xff] 0.0
      %131 = vst [vmem:[#allocation2 + $0x8] sm:$0xff] 0.0
      %v132 = vld [vmem:[%s3] sm:$0xf]
      %v133 = vld [vmem:[%s3 + $0x4] sm:$0xf]
      %v134 = vld [vmem:[%s3 + $0x8] sm:$0xf]
      %v135 = vld [vmem:[%s3 + $0xc] sm:$0xf]
      %v136 = vld [vmem:[%s3 + $0x10] sm:$0xf]
      %v137 = vld [vmem:[%s3 + $0x14] sm:$0xf]
      %v138 = vld [vmem:[%s3 + $0x18] sm:$0xf]
      %v139 = vld [vmem:[%s3 + $0x1c] sm:$0xf]
      %v140 = vld [vmem:[%s3 + $0x20] sm:$0xf]
      %v141 = vld [vmem:[%s3 + $0x24] sm:$0xf]
      %v142 = vld [vmem:[%s3 + $0x28] sm:$0xf]
      %v143 = vld [vmem:[%s3 + $0x2c] sm:$0xf]
      %v144 = vld [vmem:[%s3 + $0x30] sm:$0xf]
      %v145 = vld [vmem:[%s3 + $0x34] sm:$0xf]
      %v146 = vld [vmem:[%s3 + $0x38] sm:$0xf]
      %v147 = vld [vmem:[%s3 + $0x3c] sm:$0xf]
      %v148 = vld [vmem:[%s3 + $0x40] sm:$0xf]
      %v149 = vld [vmem:[%s3 + $0x44] sm:$0xf]
      %v150 = vld [vmem:[%s3 + $0x48] sm:$0xf]
      %v151 = vld [vmem:[%s3 + $0x4c] sm:$0xf]
      %v152 = vld [vmem:[%s3 + $0x50] sm:$0xf]
      %v153 = vld [vmem:[%s3 + $0x54] sm:$0xf]
      %v154 = vld [vmem:[%s3 + $0x58] sm:$0xf]
      %v155 = vld [vmem:[%s3 + $0x5c] sm:$0xf]
      %v156 = vld [vmem:[%s3 + $0x60] sm:$0xf]
      %v157 = vld [vmem:[%s3 + $0x64] sm:$0xf]
      %v158 = vld [vmem:[%s3 + $0x68] sm:$0xf]
      %v159 = vld [vmem:[%s3 + $0x6c] sm:$0xf]
      %v160 = vld [vmem:[%s3 + $0x70] sm:$0xf]
      %v161 = vld [vmem:[%s3 + $0x74] sm:$0xf]
      %v162 = vld [vmem:[%s3 + $0x78] sm:$0xf]
      %v163 = vld [vmem:[%s3 + $0x7c] sm:$0xf]
      %v164 = vld [vmem:[%s3 + $0x80] sm:$0xf]
      %v165 = vld [vmem:[%s3 + $0x84] sm:$0xf]
      %v166 = vld [vmem:[%s3 + $0x88] sm:$0xf]
      %v167 = vld [vmem:[%s3 + $0x8c] sm:$0xf]
      %v168 = vld [vmem:[%s3 + $0x90] sm:$0xf]
      %v169 = vld [vmem:[%s3 + $0x94] sm:$0xf]
      %v170 = vld [vmem:[%s3 + $0x98] sm:$0xf]
      %v171 = vld [vmem:[%s3 + $0x9c] sm:$0xf]
      %v172 = vld [vmem:[%s3 + $0xa0] sm:$0xf]
      %v173 = vld [vmem:[%s3 + $0xa4] sm:$0xf]
      %v174 = vld [vmem:[%s3 + $0xa8] sm:$0xf]
      %v175 = vld [vmem:[%s3 + $0xac] sm:$0xf]
      %v176 = vld [vmem:[%s3 + $0xb0] sm:$0xf]
      %v177 = vld [vmem:[%s3 + $0xb4] sm:$0xf]
      %v178 = vld [vmem:[%s3 + $0xb8] sm:$0xf]
      %v179 = vld [vmem:[%s3 + $0xbc] sm:$0xf]
      %v180 = vld [vmem:[%s3 + $0xc0] sm:$0xf]
      %v181 = vld [vmem:[%s3 + $0xc4] sm:$0xf]
      %v182 = vld [vmem:[%s3 + $0xc8] sm:$0xf]
      %v183 = vld [vmem:[%s3 + $0xcc] sm:$0xf]
      %v184 = vld [vmem:[%s3 + $0xd0] sm:$0xf]
      %v185 = vld [vmem:[%s3 + $0xd4] sm:$0xf]
      %v186 = vld [vmem:[%s3 + $0xd8] sm:$0xf]
      %v187 = vld [vmem:[%s3 + $0xdc] sm:$0xf]
      %v188 = vld [vmem:[%s3 + $0xe0] sm:$0xf]
      %v189 = vld [vmem:[%s3 + $0xe4] sm:$0xf]
      %v190 = vld [vmem:[%s3 + $0xe8] sm:$0xf]
      %v191 = vld [vmem:[%s3 + $0xec] sm:$0xf]
      %v192 = vld [vmem:[%s3 + $0xf0] sm:$0xf]
      %v193 = vld [vmem:[%s3 + $0xf4] sm:$0xf]
      %v194 = vld [vmem:[%s3 + $0xf8] sm:$0xf]
      %v195 = vld [vmem:[%s3 + $0xfc] sm:$0xf]
      %v196 = vld [vmem:[#allocation8] sm:$0xf]
      %v197 = vld [vmem:[#allocation8 + $0x4] sm:$0xf]
      %v198 = vld [vmem:[#allocation8 + $0x8] sm:$0xf]
      %v199 = vld [vmem:[#allocation8 + $0xc] sm:$0xf]
      %v200 = vld [vmem:[#allocation8 + $0x10] sm:$0xf]
      %v201 = vld [vmem:[#allocation8 + $0x14] sm:$0xf]
      %v202 = vld [vmem:[#allocation8 + $0x18] sm:$0xf]
      %v203 = vld [vmem:[#allocation8 + $0x1c] sm:$0xf]
      %v204 = vld [vmem:[#allocation8 + $0x20] sm:$0xf]
      %v205 = vld [vmem:[#allocation8 + $0x24] sm:$0xf]
      %v206 = vld [vmem:[#allocation8 + $0x28] sm:$0xf]
      %v207 = vld [vmem:[#allocation8 + $0x2c] sm:$0xf]
      %v208 = vld [vmem:[#allocation8 + $0x30] sm:$0xf]
      %v209 = vld [vmem:[#allocation8 + $0x34] sm:$0xf]
      %v210 = vld [vmem:[#allocation8 + $0x38] sm:$0xf]
      %v211 = vld [vmem:[#allocation8 + $0x3c] sm:$0xf]
      %v212 = vld [vmem:[#allocation9] sm:$0x1]
      %v214 = vlaneseq
      %v215 = vshrl.u32 %v214, 7
      %v216 = vsub.s32 0, %v215
      %v217 = vrot.slane %v212, %v216
      %v283 = vunpack.c.l.b16 %v132
      %v284 = vunpack.c.l.b16 %v133
      %v285 = vunpack.c.l.b16 %v134
      %v286 = vunpack.c.l.b16 %v135
      %v287 = vunpack.c.l.b16 %v136
      %v288 = vunpack.c.l.b16 %v137
      %v289 = vunpack.c.l.b16 %v138
      %v290 = vunpack.c.l.b16 %v139
      %v291 = vunpack.c.l.b16 %v140
      %v292 = vunpack.c.l.b16 %v141
      %v293 = vunpack.c.l.b16 %v142
      %v294 = vunpack.c.l.b16 %v143
      %v295 = vunpack.c.l.b16 %v144
      %v296 = vunpack.c.l.b16 %v145
      %v297 = vunpack.c.l.b16 %v146
      %v298 = vunpack.c.l.b16 %v147
      %v299 = vunpack.c.l.b16 %v148
      %v300 = vunpack.c.l.b16 %v149
      %v301 = vunpack.c.l.b16 %v150
      %v302 = vunpack.c.l.b16 %v151
      %v303 = vunpack.c.l.b16 %v152
      %v304 = vunpack.c.l.b16 %v153
      %v305 = vunpack.c.l.b16 %v154
      %v306 = vunpack.c.l.b16 %v155
      %v307 = vunpack.c.l.b16 %v156
      %v308 = vunpack.c.l.b16 %v157
      %v309 = vunpack.c.l.b16 %v158
      %v310 = vunpack.c.l.b16 %v159
      %v311 = vunpack.c.l.b16 %v160
      %v312 = vunpack.c.l.b16 %v161
      %v313 = vunpack.c.l.b16 %v162
      %v314 = vunpack.c.l.b16 %v163
      %v315 = vunpack.c.l.b16 %v164
      %v316 = vunpack.c.l.b16 %v165
      %v317 = vunpack.c.l.b16 %v166
      %v318 = vunpack.c.l.b16 %v167
      %v319 = vunpack.c.l.b16 %v168
      %v320 = vunpack.c.l.b16 %v169
      %v321 = vunpack.c.l.b16 %v170
      %v322 = vunpack.c.l.b16 %v171
      %v323 = vunpack.c.l.b16 %v172
      %v324 = vunpack.c.l.b16 %v173
      %v325 = vunpack.c.l.b16 %v174
      %v326 = vunpack.c.l.b16 %v175
      %v327 = vunpack.c.l.b16 %v176
      %v328 = vunpack.c.l.b16 %v177
      %v329 = vunpack.c.l.b16 %v178
      %v330 = vunpack.c.l.b16 %v179
      %v331 = vunpack.c.l.b16 %v180
      %v332 = vunpack.c.l.b16 %v181
      %v333 = vunpack.c.l.b16 %v182
      %v334 = vunpack.c.l.b16 %v183
      %v335 = vunpack.c.l.b16 %v184
      %v336 = vunpack.c.l.b16 %v185
      %v337 = vunpack.c.l.b16 %v186
      %v338 = vunpack.c.l.b16 %v187
      %v339 = vunpack.c.l.b16 %v188
      %v340 = vunpack.c.l.b16 %v189
      %v341 = vunpack.c.l.b16 %v190
      %v342 = vunpack.c.l.b16 %v191
      %v343 = vunpack.c.l.b16 %v192
      %v344 = vunpack.c.l.b16 %v193
      %v345 = vunpack.c.l.b16 %v194
      %v346 = vunpack.c.l.b16 %v195
      %v347 = vpack.c.b16 %v284, %v283
      %v348 = vpack.c.b16 %v286, %v285
      %v349 = vpack.c.b16 %v288, %v287
      %v350 = vpack.c.b16 %v290, %v289
      %v351 = vpack.c.b16 %v292, %v291
      %v352 = vpack.c.b16 %v294, %v293
      %v353 = vpack.c.b16 %v296, %v295
      %v354 = vpack.c.b16 %v298, %v297
      %v355 = vpack.c.b16 %v300, %v299
      %v356 = vpack.c.b16 %v302, %v301
      %v357 = vpack.c.b16 %v304, %v303
      %v358 = vpack.c.b16 %v306, %v305
      %v359 = vpack.c.b16 %v308, %v307
      %v360 = vpack.c.b16 %v310, %v309
      %v361 = vpack.c.b16 %v312, %v311
      %v362 = vpack.c.b16 %v314, %v313
      %v363 = vpack.c.b16 %v316, %v315
      %v364 = vpack.c.b16 %v318, %v317
      %v365 = vpack.c.b16 %v320, %v319
      %v366 = vpack.c.b16 %v322, %v321
      %v367 = vpack.c.b16 %v324, %v323
      %v368 = vpack.c.b16 %v326, %v325
      %v369 = vpack.c.b16 %v328, %v327
      %v370 = vpack.c.b16 %v330, %v329
      %v371 = vpack.c.b16 %v332, %v331
      %v372 = vpack.c.b16 %v334, %v333
      %v373 = vpack.c.b16 %v336, %v335
      %v374 = vpack.c.b16 %v338, %v337
      %v375 = vpack.c.b16 %v340, %v339
      %v376 = vpack.c.b16 %v342, %v341
      %v377 = vpack.c.b16 %v344, %v343
      %v378 = vpack.c.b16 %v346, %v345
      %v427 = vunpack.c.l.b16 %v196
      %v428 = vunpack.c.l.b16 %v197
      %v429 = vunpack.c.l.b16 %v198
      %v430 = vunpack.c.l.b16 %v199
      %v431 = vunpack.c.l.b16 %v200
      %v432 = vunpack.c.l.b16 %v201
      %v433 = vunpack.c.l.b16 %v202
      %v434 = vunpack.c.l.b16 %v203
      %v435 = vunpack.c.l.b16 %v204
      %v436 = vunpack.c.l.b16 %v205
      %v437 = vunpack.c.l.b16 %v206
      %v438 = vunpack.c.l.b16 %v207
      %v439 = vunpack.c.l.b16 %v208
      %v440 = vunpack.c.l.b16 %v209
      %v441 = vunpack.c.l.b16 %v210
      %v442 = vunpack.c.l.b16 %v211
      %v443 = vpack.c.b16 %v428, %v427
      %v444 = vpack.c.b16 %v430, %v429
      %v445 = vpack.c.b16 %v432, %v431
      %v446 = vpack.c.b16 %v434, %v433
      %v447 = vpack.c.b16 %v436, %v435
      %v448 = vpack.c.b16 %v438, %v437
      %v449 = vpack.c.b16 %v440, %v439
      %v450 = vpack.c.b16 %v442, %v441
      %459 = vmatprep.subr.bf16.mxu0 0
      %460 = vmatpush1.bf16.msra.mxu0 %v450
      %461 = vmatprep.subr.bf16.mxu0 0
      %462 = vmatpush1.bf16.msra.mxu0 %v449
      %463 = vmatprep.subr.bf16.mxu0 0
      %464 = vmatpush1.bf16.msra.mxu0 %v448
      %465 = vmatprep.subr.bf16.mxu0 0
      %466 = vmatpush1.bf16.msra.mxu0 %v447
      %467 = vmatprep.subr.bf16.mxu0 0
      %468 = vmatpush1.bf16.msra.mxu0 %v446
      %469 = vmatprep.subr.bf16.mxu0 0
      %470 = vmatpush1.bf16.msra.mxu0 %v445
      %471 = vmatprep.subr.bf16.mxu0 0
      %472 = vmatpush1.bf16.msra.mxu0 %v444
      %473 = vmatprep.subr.bf16.mxu0 0
      %474 = vmatpush1.bf16.msra.mxu0 %v443
      %475 = vmatprep.subr.bf16.mxu0 0
      %476 = vmatpush2.bf16.msra.mxu0 0
      %477 = vmatprep.subr.bf16.mxu0 0
      %478 = vmatpush2.bf16.msra.mxu0 0
      %479 = vmatprep.subr.bf16.mxu0 0
      %480 = vmatpush2.bf16.msra.mxu0 0
      %481 = vmatprep.subr.bf16.mxu0 0
      %482 = vmatpush2.bf16.msra.mxu0 0
      %483 = vmatprep.subr.bf16.mxu0 0
      %484 = vmatpush2.bf16.msra.mxu0 0
      %485 = vmatprep.subr.bf16.mxu0 0
      %486 = vmatpush2.bf16.msra.mxu0 0
      %487 = vmatprep.subr.bf16.mxu0 0
      %488 = vmatpush2.bf16.msra.mxu0 0
      %489 = vmatprep.subr.bf16.mxu0 0
      %490 = vmatpush2.bf16.msra.mxu0 0
      %491 = vmatprep.mubr.bf16.mxu0 0
      %492 = vmatmul.mubr.bf16.gmra.mxu0 %v347
      %v493 = vpop.f32.mrf.mxu0
      %v494 = vadd.f32 %v217, %v493
      %v495 = vpop.f32.mrf.mxu0
      %v496 = vpop.f32.mrf.mxu0
      %v497 = vadd.f32 %v217, %v496
      %v498 = vpop.f32.mrf.mxu0
      %499 = vmatprep.mubr.bf16.mxu0 0
      %500 = vmatmul.mubr.bf16.gmra.mxu0 %v348
      %v501 = vpop.f32.mrf.mxu0
      %v502 = vadd.f32 %v217, %v501
      %v503 = vpop.f32.mrf.mxu0
      %v504 = vpop.f32.mrf.mxu0
      %v505 = vadd.f32 %v217, %v504
      %v506 = vpop.f32.mrf.mxu0
      %507 = vmatprep.mubr.bf16.mxu0 0
      %508 = vmatmul.mubr.bf16.gmra.mxu0 %v349
      %v509 = vpop.f32.mrf.mxu0
      %v510 = vadd.f32 %v217, %v509
      %v511 = vpop.f32.mrf.mxu0
      %v512 = vpop.f32.mrf.mxu0
      %v513 = vadd.f32 %v217, %v512
      %v514 = vpop.f32.mrf.mxu0
      %515 = vmatprep.mubr.bf16.mxu0 0
      %516 = vmatmul.mubr.bf16.gmra.mxu0 %v350
      %v517 = vpop.f32.mrf.mxu0
      %v518 = vadd.f32 %v217, %v517
      %v519 = vpop.f32.mrf.mxu0
      %v520 = vpop.f32.mrf.mxu0
      %v521 = vadd.f32 %v217, %v520
      %v522 = vpop.f32.mrf.mxu0
      %523 = vmatprep.mubr.bf16.mxu0 0
      %524 = vmatmul.mubr.bf16.gmra.mxu0 %v351
      %v525 = vpop.f32.mrf.mxu0
      %v526 = vadd.f32 %v217, %v525
      %v527 = vpop.f32.mrf.mxu0
      %v528 = vpop.f32.mrf.mxu0
      %v529 = vadd.f32 %v217, %v528
      %v530 = vpop.f32.mrf.mxu0
      %531 = vmatprep.mubr.bf16.mxu0 0
      %532 = vmatmul.mubr.bf16.gmra.mxu0 %v352
      %v533 = vpop.f32.mrf.mxu0
      %v534 = vadd.f32 %v217, %v533
      %v535 = vpop.f32.mrf.mxu0
      %v536 = vpop.f32.mrf.mxu0
      %v537 = vadd.f32 %v217, %v536
      %v538 = vpop.f32.mrf.mxu0
      %539 = vmatprep.mubr.bf16.mxu0 0
      %540 = vmatmul.mubr.bf16.gmra.mxu0 %v353
      %v541 = vpop.f32.mrf.mxu0
      %v542 = vadd.f32 %v217, %v541
      %v543 = vpop.f32.mrf.mxu0
      %v544 = vpop.f32.mrf.mxu0
      %v545 = vadd.f32 %v217, %v544
      %v546 = vpop.f32.mrf.mxu0
      %547 = vmatprep.mubr.bf16.mxu0 0
      %548 = vmatmul.mubr.bf16.gmra.mxu0 %v354
      %v549 = vpop.f32.mrf.mxu0
      %v550 = vadd.f32 %v217, %v549
      %v551 = vpop.f32.mrf.mxu0
      %v552 = vpop.f32.mrf.mxu0
      %v553 = vadd.f32 %v217, %v552
      %v554 = vpop.f32.mrf.mxu0
      %555 = vmatprep.mubr.bf16.mxu0 0
      %556 = vmatmul.mubr.bf16.gmra.mxu0 %v355
      %v557 = vpop.f32.mrf.mxu0
      %v558 = vadd.f32 %v217, %v557
      %v559 = vpop.f32.mrf.mxu0
      %v560 = vpop.f32.mrf.mxu0
      %v561 = vadd.f32 %v217, %v560
      %v562 = vpop.f32.mrf.mxu0
      %563 = vmatprep.mubr.bf16.mxu0 0
      %564 = vmatmul.mubr.bf16.gmra.mxu0 %v356
      %v565 = vpop.f32.mrf.mxu0
      %v566 = vadd.f32 %v217, %v565
      %v567 = vpop.f32.mrf.mxu0
      %v568 = vpop.f32.mrf.mxu0
      %v569 = vadd.f32 %v217, %v568
      %v570 = vpop.f32.mrf.mxu0
      %571 = vmatprep.mubr.bf16.mxu0 0
      %572 = vmatmul.mubr.bf16.gmra.mxu0 %v357
      %v573 = vpop.f32.mrf.mxu0
      %v574 = vadd.f32 %v217, %v573
      %v575 = vpop.f32.mrf.mxu0
      %v576 = vpop.f32.mrf.mxu0
      %v577 = vadd.f32 %v217, %v576
      %v578 = vpop.f32.mrf.mxu0
      %579 = vmatprep.mubr.bf16.mxu0 0
      %580 = vmatmul.mubr.bf16.gmra.mxu0 %v358
      %v581 = vpop.f32.mrf.mxu0
      %v582 = vadd.f32 %v217, %v581
      %v583 = vpop.f32.mrf.mxu0
      %v584 = vpop.f32.mrf.mxu0
      %v585 = vadd.f32 %v217, %v584
      %v586 = vpop.f32.mrf.mxu0
      %587 = vmatprep.mubr.bf16.mxu0 0
      %588 = vmatmul.mubr.bf16.gmra.mxu0 %v359
      %v589 = vpop.f32.mrf.mxu0
      %v590 = vadd.f32 %v217, %v589
      %v591 = vpop.f32.mrf.mxu0
      %v592 = vpop.f32.mrf.mxu0
      %v593 = vadd.f32 %v217, %v592
      %v594 = vpop.f32.mrf.mxu0
      %595 = vmatprep.mubr.bf16.mxu0 0
      %596 = vmatmul.mubr.bf16.gmra.mxu0 %v360
      %v597 = vpop.f32.mrf.mxu0
      %v598 = vadd.f32 %v217, %v597
      %v599 = vpop.f32.mrf.mxu0
      %v600 = vpop.f32.mrf.mxu0
      %v601 = vadd.f32 %v217, %v600
      %v602 = vpop.f32.mrf.mxu0
      %603 = vmatprep.mubr.bf16.mxu0 0
      %604 = vmatmul.mubr.bf16.gmra.mxu0 %v361
      %v605 = vpop.f32.mrf.mxu0
      %v606 = vadd.f32 %v217, %v605
      %v607 = vpop.f32.mrf.mxu0
      %v608 = vpop.f32.mrf.mxu0
      %v609 = vadd.f32 %v217, %v608
      %v610 = vpop.f32.mrf.mxu0
      %611 = vmatprep.mubr.bf16.mxu0 0
      %612 = vmatmul.mubr.bf16.gmra.mxu0 %v362
      %v613 = vpop.f32.mrf.mxu0
      %v614 = vadd.f32 %v217, %v613
      %v615 = vpop.f32.mrf.mxu0
      %v616 = vpop.f32.mrf.mxu0
      %v617 = vadd.f32 %v217, %v616
      %v618 = vpop.f32.mrf.mxu0
      %619 = vmatprep.mubr.bf16.mxu0 0
      %620 = vmatmul.mubr.bf16.gmra.mxu0 %v363
      %v621 = vpop.f32.mrf.mxu0
      %v622 = vadd.f32 %v217, %v621
      %v623 = vpop.f32.mrf.mxu0
      %v624 = vpop.f32.mrf.mxu0
      %v625 = vadd.f32 %v217, %v624
      %v626 = vpop.f32.mrf.mxu0
      %627 = vmatprep.mubr.bf16.mxu0 0
      %628 = vmatmul.mubr.bf16.gmra.mxu0 %v364
      %v629 = vpop.f32.mrf.mxu0
      %v630 = vadd.f32 %v217, %v629
      %v631 = vpop.f32.mrf.mxu0
      %v632 = vpop.f32.mrf.mxu0
      %v633 = vadd.f32 %v217, %v632
      %v634 = vpop.f32.mrf.mxu0
      %635 = vmatprep.mubr.bf16.mxu0 0
      %636 = vmatmul.mubr.bf16.gmra.mxu0 %v365
      %v637 = vpop.f32.mrf.mxu0
      %v638 = vadd.f32 %v217, %v637
      %v639 = vpop.f32.mrf.mxu0
      %v640 = vpop.f32.mrf.mxu0
      %v641 = vadd.f32 %v217, %v640
      %v642 = vpop.f32.mrf.mxu0
      %643 = vmatprep.mubr.bf16.mxu0 0
      %644 = vmatmul.mubr.bf16.gmra.mxu0 %v366
      %v645 = vpop.f32.mrf.mxu0
      %v646 = vadd.f32 %v217, %v645
      %v647 = vpop.f32.mrf.mxu0
      %v648 = vpop.f32.mrf.mxu0
      %v649 = vadd.f32 %v217, %v648
      %v650 = vpop.f32.mrf.mxu0
      %651 = vmatprep.mubr.bf16.mxu0 0
      %652 = vmatmul.mubr.bf16.gmra.mxu0 %v367
      %v653 = vpop.f32.mrf.mxu0
      %v654 = vadd.f32 %v217, %v653
      %v655 = vpop.f32.mrf.mxu0
      %v656 = vpop.f32.mrf.mxu0
      %v657 = vadd.f32 %v217, %v656
      %v658 = vpop.f32.mrf.mxu0
      %659 = vmatprep.mubr.bf16.mxu0 0
      %660 = vmatmul.mubr.bf16.gmra.mxu0 %v368
      %v661 = vpop.f32.mrf.mxu0
      %v662 = vadd.f32 %v217, %v661
      %v663 = vpop.f32.mrf.mxu0
      %v664 = vpop.f32.mrf.mxu0
      %v665 = vadd.f32 %v217, %v664
      %v666 = vpop.f32.mrf.mxu0
      %667 = vmatprep.mubr.bf16.mxu0 0
      %668 = vmatmul.mubr.bf16.gmra.mxu0 %v369
      %v669 = vpop.f32.mrf.mxu0
      %v670 = vadd.f32 %v217, %v669
      %v671 = vpop.f32.mrf.mxu0
      %v672 = vpop.f32.mrf.mxu0
      %v673 = vadd.f32 %v217, %v672
      %v674 = vpop.f32.mrf.mxu0
      %675 = vmatprep.mubr.bf16.mxu0 0
      %676 = vmatmul.mubr.bf16.gmra.mxu0 %v370
      %v677 = vpop.f32.mrf.mxu0
      %v678 = vadd.f32 %v217, %v677
      %v679 = vpop.f32.mrf.mxu0
      %v680 = vpop.f32.mrf.mxu0
      %v681 = vadd.f32 %v217, %v680
      %v682 = vpop.f32.mrf.mxu0
      %683 = vmatprep.mubr.bf16.mxu0 0
      %684 = vmatmul.mubr.bf16.gmra.mxu0 %v371
      %v685 = vpop.f32.mrf.mxu0
      %v686 = vadd.f32 %v217, %v685
      %v687 = vpop.f32.mrf.mxu0
      %v688 = vpop.f32.mrf.mxu0
      %v689 = vadd.f32 %v217, %v688
      %v690 = vpop.f32.mrf.mxu0
      %691 = vmatprep.mubr.bf16.mxu0 0
      %692 = vmatmul.mubr.bf16.gmra.mxu0 %v372
      %v693 = vpop.f32.mrf.mxu0
      %v694 = vadd.f32 %v217, %v693
      %v695 = vpop.f32.mrf.mxu0
      %v696 = vpop.f32.mrf.mxu0
      %v697 = vadd.f32 %v217, %v696
      %v698 = vpop.f32.mrf.mxu0
      %699 = vmatprep.mubr.bf16.mxu0 0
      %700 = vmatmul.mubr.bf16.gmra.mxu0 %v373
      %v701 = vpop.f32.mrf.mxu0
      %v702 = vadd.f32 %v217, %v701
      %v703 = vpop.f32.mrf.mxu0
      %v704 = vpop.f32.mrf.mxu0
      %v705 = vadd.f32 %v217, %v704
      %v706 = vpop.f32.mrf.mxu0
      %707 = vmatprep.mubr.bf16.mxu0 0
      %708 = vmatmul.mubr.bf16.gmra.mxu0 %v374
      %v709 = vpop.f32.mrf.mxu0
      %v710 = vadd.f32 %v217, %v709
      %v711 = vpop.f32.mrf.mxu0
      %v712 = vpop.f32.mrf.mxu0
      %v713 = vadd.f32 %v217, %v712
      %v714 = vpop.f32.mrf.mxu0
      %715 = vmatprep.mubr.bf16.mxu0 0
      %716 = vmatmul.mubr.bf16.gmra.mxu0 %v375
      %v717 = vpop.f32.mrf.mxu0
      %v718 = vadd.f32 %v217, %v717
      %v719 = vpop.f32.mrf.mxu0
      %v720 = vpop.f32.mrf.mxu0
      %v721 = vadd.f32 %v217, %v720
      %v722 = vpop.f32.mrf.mxu0
      %723 = vmatprep.mubr.bf16.mxu0 0
      %724 = vmatmul.mubr.bf16.gmra.mxu0 %v376
      %v725 = vpop.f32.mrf.mxu0
      %v726 = vadd.f32 %v217, %v725
      %v727 = vpop.f32.mrf.mxu0
      %v728 = vpop.f32.mrf.mxu0
      %v729 = vadd.f32 %v217, %v728
      %v730 = vpop.f32.mrf.mxu0
      %731 = vmatprep.mubr.bf16.mxu0 0
      %732 = vmatmul.mubr.bf16.gmra.mxu0 %v377
      %v733 = vpop.f32.mrf.mxu0
      %v734 = vadd.f32 %v217, %v733
      %v735 = vpop.f32.mrf.mxu0
      %v736 = vpop.f32.mrf.mxu0
      %v737 = vadd.f32 %v217, %v736
      %v738 = vpop.f32.mrf.mxu0
      %739 = vmatprep.mubr.bf16.mxu0 0
      %740 = vmatmul.mubr.bf16.gmra.mxu0 %v378
      %v741 = vpop.f32.mrf.mxu0
      %v742 = vadd.f32 %v217, %v741
      %v743 = vpop.f32.mrf.mxu0
      %v744 = vpop.f32.mrf.mxu0
      %v745 = vadd.f32 %v217, %v744
      %v746 = vpop.f32.mrf.mxu0
      %747 = vdwg.mxu0
      %v748 = vmax.f32 %v494, 0.0
      %v749 = vmax.f32 %v497, 0.0
      %v750 = vmax.f32 %v502, 0.0
      %v751 = vmax.f32 %v505, 0.0
      %v752 = vmax.f32 %v510, 0.0
      %v753 = vmax.f32 %v513, 0.0
      %v754 = vmax.f32 %v518, 0.0
      %v755 = vmax.f32 %v521, 0.0
      %v756 = vmax.f32 %v526, 0.0
      %v757 = vmax.f32 %v529, 0.0
      %v758 = vmax.f32 %v534, 0.0
      %v759 = vmax.f32 %v537, 0.0
      %v760 = vmax.f32 %v542, 0.0
      %v761 = vmax.f32 %v545, 0.0
      %v762 = vmax.f32 %v550, 0.0
      %v763 = vmax.f32 %v553, 0.0
      %v764 = vmax.f32 %v558, 0.0
      %v765 = vmax.f32 %v561, 0.0
      %v766 = vmax.f32 %v566, 0.0
      %v767 = vmax.f32 %v569, 0.0
      %v768 = vmax.f32 %v574, 0.0
      %v769 = vmax.f32 %v577, 0.0
      %v770 = vmax.f32 %v582, 0.0
      %v771 = vmax.f32 %v585, 0.0
      %v772 = vmax.f32 %v590, 0.0
      %v773 = vmax.f32 %v593, 0.0
      %v774 = vmax.f32 %v598, 0.0
      %v775 = vmax.f32 %v601, 0.0
      %v776 = vmax.f32 %v606, 0.0
      %v777 = vmax.f32 %v609, 0.0
      %v778 = vmax.f32 %v614, 0.0
      %v779 = vmax.f32 %v617, 0.0
      %v780 = vmax.f32 %v622, 0.0
      %v781 = vmax.f32 %v625, 0.0
      %v782 = vmax.f32 %v630, 0.0
      %v783 = vmax.f32 %v633, 0.0
      %v784 = vmax.f32 %v638, 0.0
      %v785 = vmax.f32 %v641, 0.0
      %v786 = vmax.f32 %v646, 0.0
      %v787 = vmax.f32 %v649, 0.0
      %v788 = vmax.f32 %v654, 0.0
      %v789 = vmax.f32 %v657, 0.0
      %v790 = vmax.f32 %v662, 0.0
      %v791 = vmax.f32 %v665, 0.0
      %v792 = vmax.f32 %v670, 0.0
      %v793 = vmax.f32 %v673, 0.0
      %v794 = vmax.f32 %v678, 0.0
      %v795 = vmax.f32 %v681, 0.0
      %v796 = vmax.f32 %v686, 0.0
      %v797 = vmax.f32 %v689, 0.0
      %v798 = vmax.f32 %v694, 0.0
      %v799 = vmax.f32 %v697, 0.0
      %v800 = vmax.f32 %v702, 0.0
      %v801 = vmax.f32 %v705, 0.0
      %v802 = vmax.f32 %v710, 0.0
      %v803 = vmax.f32 %v713, 0.0
      %v804 = vmax.f32 %v718, 0.0
      %v805 = vmax.f32 %v721, 0.0
      %v806 = vmax.f32 %v726, 0.0
      %v807 = vmax.f32 %v729, 0.0
      %v808 = vmax.f32 %v734, 0.0
      %v809 = vmax.f32 %v737, 0.0
      %v810 = vmax.f32 %v742, 0.0
      %v811 = vmax.f32 %v745, 0.0
      %v812 = vld [vmem:[%s6] sm:$0xf]
      %v813 = vpack.c.bf16 %v749, %v748
      %v814 = vpack.c.bf16 %v751, %v750
      %v815 = vpack.c.bf16 %v753, %v752
      %v816 = vpack.c.bf16 %v755, %v754
      %v817 = vpack.c.bf16 %v757, %v756
      %v818 = vpack.c.bf16 %v759, %v758
      %v819 = vpack.c.bf16 %v761, %v760
      %v820 = vpack.c.bf16 %v763, %v762
      %v821 = vpack.c.bf16 %v765, %v764
      %v822 = vpack.c.bf16 %v767, %v766
      %v823 = vpack.c.bf16 %v769, %v768
      %v824 = vpack.c.bf16 %v771, %v770
      %v825 = vpack.c.bf16 %v773, %v772
      %v826 = vpack.c.bf16 %v775, %v774
      %v827 = vpack.c.bf16 %v777, %v776
      %v828 = vpack.c.bf16 %v779, %v778
      %v829 = vpack.c.bf16 %v781, %v780
      %v830 = vpack.c.bf16 %v783, %v782
      %v831 = vpack.c.bf16 %v785, %v784
      %v832 = vpack.c.bf16 %v787, %v786
      %v833 = vpack.c.bf16 %v789, %v788
      %v834 = vpack.c.bf16 %v791, %v790
      %v835 = vpack.c.bf16 %v793, %v792
      %v836 = vpack.c.bf16 %v795, %v794
      %v837 = vpack.c.bf16 %v797, %v796
      %v838 = vpack.c.bf16 %v799, %v798
      %v839 = vpack.c.bf16 %v801, %v800
      %v840 = vpack.c.bf16 %v803, %v802
      %v841 = vpack.c.bf16 %v805, %v804
      %v842 = vpack.c.bf16 %v807, %v806
      %v843 = vpack.c.bf16 %v809, %v808
      %v844 = vpack.c.bf16 %v811, %v810
      %v847 = vunpack.c.l.s4 1966171168
      %v848 = vunpack.c.0.s8 %v847
      %v849 = vlaneseq
      %v850 = vshrl.u32 %v849, 7
      %v851 = vsub.s32 %v848, %v850
      %v852 = vrot.slane %v812, %v851
      %v853 = vcombine.high %v852, %v852
      %v855 = vunpack.c.l.s4 1966171168
      %v856 = vunpack.c.0.s8 %v855
      %v857 = vlaneseq
      %v858 = vshrl.u32 %v857, 7
      %v859 = vsub.s32 %v856, %v858
      %v860 = vrot.slane %v852, %v859
      %v862 = vunpack.c.l.s4 1966171168
      %v863 = vunpack.c.0.s8 %v862
      %v864 = vlaneseq
      %v865 = vshrl.u32 %v864, 7
      %v866 = vsub.s32 %v863, %v865
      %v867 = vrot.slane %v853, %v866
      %v868 = vcombine.high %v860, %v860
      %v869 = vcombine.high %v867, %v867
      %874 = vmatprep.subr.bf16.mxu0 0
      %875 = vmatpush1.bf16.msra.mxu0 %v820
      %876 = vmatprep.subr.bf16.mxu0 0
      %877 = vmatpush1.bf16.msra.mxu0 %v819
      %878 = vmatprep.subr.bf16.mxu0 0
      %879 = vmatpush1.bf16.msra.mxu0 %v818
      %880 = vmatprep.subr.bf16.mxu0 0
      %881 = vmatpush1.bf16.msra.mxu0 %v817
      %882 = vmatprep.subr.bf16.mxu0 0
      %883 = vmatpush1.bf16.msra.mxu0 %v816
      %884 = vmatprep.subr.bf16.mxu0 0
      %885 = vmatpush1.bf16.msra.mxu0 %v815
      %886 = vmatprep.subr.bf16.mxu0 0
      %887 = vmatpush1.bf16.msra.mxu0 %v814
      %888 = vmatprep.subr.bf16.mxu0 0
      %889 = vmatpush1.bf16.msra.mxu0 %v813
      %890 = vmatprep.subr.bf16.mxu0 0
      %891 = vmatpush2.bf16.msra.mxu0 %v828
      %892 = vmatprep.subr.bf16.mxu0 0
      %893 = vmatpush2.bf16.msra.mxu0 %v827
      %894 = vmatprep.subr.bf16.mxu0 0
      %895 = vmatpush2.bf16.msra.mxu0 %v826
      %896 = vmatprep.subr.bf16.mxu0 0
      %897 = vmatpush2.bf16.msra.mxu0 %v825
      %898 = vmatprep.subr.bf16.mxu0 0
      %899 = vmatpush2.bf16.msra.mxu0 %v824
      %900 = vmatprep.subr.bf16.mxu0 0
      %901 = vmatpush2.bf16.msra.mxu0 %v823
      %902 = vmatprep.subr.bf16.mxu0 0
      %903 = vmatpush2.bf16.msra.mxu0 %v822
      %904 = vmatprep.subr.bf16.mxu0 0
      %905 = vmatpush2.bf16.msra.mxu0 %v821
      %906 = vmatprep.mubr.bf16.mxu0 %v867
      %907 = vmatmul.mubr.bf16.gmra.mxu0 %v860
      %v908 = vpop.f32.mrf.mxu0
      %v909 = vadd.f32 0.0, %v908
      %v910 = vpop.f32.mrf.mxu0
      %v911 = vpop.f32.mrf.mxu0
      %v912 = vpop.f32.mrf.mxu0
      %913 = vdwg.mxu0
      %914 = vmatprep.subr.bf16.mxu0 0
      %915 = vmatpush1.bf16.msra.mxu0 %v836
      %916 = vmatprep.subr.bf16.mxu0 0
      %917 = vmatpush1.bf16.msra.mxu0 %v835
      %918 = vmatprep.subr.bf16.mxu0 0
      %919 = vmatpush1.bf16.msra.mxu0 %v834
      %920 = vmatprep.subr.bf16.mxu0 0
      %921 = vmatpush1.bf16.msra.mxu0 %v833
      %922 = vmatprep.subr.bf16.mxu0 0
      %923 = vmatpush1.bf16.msra.mxu0 %v832
      %924 = vmatprep.subr.bf16.mxu0 0
      %925 = vmatpush1.bf16.msra.mxu0 %v831
      %926 = vmatprep.subr.bf16.mxu0 0
      %927 = vmatpush1.bf16.msra.mxu0 %v830
      %928 = vmatprep.subr.bf16.mxu0 0
      %929 = vmatpush1.bf16.msra.mxu0 %v829
      %930 = vmatprep.subr.bf16.mxu0 0
      %931 = vmatpush2.bf16.msra.mxu0 %v844
      %932 = vmatprep.subr.bf16.mxu0 0
      %933 = vmatpush2.bf16.msra.mxu0 %v843
      %934 = vmatprep.subr.bf16.mxu0 0
      %935 = vmatpush2.bf16.msra.mxu0 %v842
      %936 = vmatprep.subr.bf16.mxu0 0
      %937 = vmatpush2.bf16.msra.mxu0 %v841
      %938 = vmatprep.subr.bf16.mxu0 0
      %939 = vmatpush2.bf16.msra.mxu0 %v840
      %940 = vmatprep.subr.bf16.mxu0 0
      %941 = vmatpush2.bf16.msra.mxu0 %v839
      %942 = vmatprep.subr.bf16.mxu0 0
      %943 = vmatpush2.bf16.msra.mxu0 %v838
      %944 = vmatprep.subr.bf16.mxu0 0
      %945 = vmatpush2.bf16.msra.mxu0 %v837
      %946 = vmatprep.mubr.bf16.mxu0 %v869
      %947 = vmatmul.mubr.bf16.gmra.mxu0 %v868
      %v948 = vpop.f32.mrf.mxu0
      %v949 = vadd.f32 %v909, %v948
      %v950 = vpop.f32.mrf.mxu0
      %v951 = vpop.f32.mrf.mxu0
      %v952 = vpop.f32.mrf.mxu0
      %953 = vdwg.mxu0
      %v954 = vpack.c.bf16 %v949, %v949
      %v955 = vld [vmem:[#allocation11] sm:$0xf]
      %v956 = vld [vmem:[#allocation11 + $0x4] sm:$0xf]
      %v957 = vld [vmem:[#allocation11 + $0x8] sm:$0xf]
      %v958 = vld [vmem:[#allocation11 + $0xc] sm:$0xf]
      %v959 = vld [vmem:[#allocation11 + $0x10] sm:$0xf]
      %v960 = vld [vmem:[#allocation11 + $0x14] sm:$0xf]
      %v961 = vld [vmem:[#allocation11 + $0x18] sm:$0xf]
      %v962 = vld [vmem:[#allocation11 + $0x1c] sm:$0xf]
      %v963 = vld [vmem:[#allocation11 + $0x20] sm:$0xf]
      %v964 = vld [vmem:[#allocation11 + $0x24] sm:$0xf]
      %v965 = vld [vmem:[#allocation11 + $0x28] sm:$0xf]
      %v966 = vld [vmem:[#allocation11 + $0x2c] sm:$0xf]
      %v967 = vld [vmem:[#allocation11 + $0x30] sm:$0xf]
      %v968 = vld [vmem:[#allocation11 + $0x34] sm:$0xf]
      %v969 = vld [vmem:[#allocation11 + $0x38] sm:$0xf]
      %v970 = vld [vmem:[#allocation11 + $0x3c] sm:$0xf]
      %v971 = vld [vmem:[#allocation14] sm:$0x1]
      %v973 = vlaneseq
      %v974 = vshrl.u32 %v973, 7
      %v975 = vsub.s32 0, %v974
      %v976 = vrot.slane %v971, %v975
      %v994 = vunpack.c.l.b16 %v955
      %v995 = vunpack.c.l.b16 %v956
      %v996 = vunpack.c.l.b16 %v957
      %v997 = vunpack.c.l.b16 %v958
      %v998 = vunpack.c.l.b16 %v959
      %v999 = vunpack.c.l.b16 %v960
      %v1000 = vunpack.c.l.b16 %v961
      %v1001 = vunpack.c.l.b16 %v962
      %v1002 = vunpack.c.l.b16 %v963
      %v1003 = vunpack.c.l.b16 %v964
      %v1004 = vunpack.c.l.b16 %v965
      %v1005 = vunpack.c.l.b16 %v966
      %v1006 = vunpack.c.l.b16 %v967
      %v1007 = vunpack.c.l.b16 %v968
      %v1008 = vunpack.c.l.b16 %v969
      %v1009 = vunpack.c.l.b16 %v970
      %v1010 = vpack.c.b16 %v995, %v994
      %v1011 = vpack.c.b16 %v997, %v996
      %v1012 = vpack.c.b16 %v999, %v998
      %v1013 = vpack.c.b16 %v1001, %v1000
      %v1014 = vpack.c.b16 %v1003, %v1002
      %v1015 = vpack.c.b16 %v1005, %v1004
      %v1016 = vpack.c.b16 %v1007, %v1006
      %v1017 = vpack.c.b16 %v1009, %v1008
      %1026 = vmatprep.subr.bf16.mxu0 0
      %1027 = vmatpush1.bf16.msra.mxu0 %v1017
      %1028 = vmatprep.subr.bf16.mxu0 0
      %1029 = vmatpush1.bf16.msra.mxu0 %v1016
      %1030 = vmatprep.subr.bf16.mxu0 0
      %1031 = vmatpush1.bf16.msra.mxu0 %v1015
      %1032 = vmatprep.subr.bf16.mxu0 0
      %1033 = vmatpush1.bf16.msra.mxu0 %v1014
      %1034 = vmatprep.subr.bf16.mxu0 0
      %1035 = vmatpush1.bf16.msra.mxu0 %v1013
      %1036 = vmatprep.subr.bf16.mxu0 0
      %1037 = vmatpush1.bf16.msra.mxu0 %v1012
      %1038 = vmatprep.subr.bf16.mxu0 0
      %1039 = vmatpush1.bf16.msra.mxu0 %v1011
      %1040 = vmatprep.subr.bf16.mxu0 0
      %1041 = vmatpush1.bf16.msra.mxu0 %v1010
      %1042 = vmatprep.subr.bf16.mxu0 0
      %1043 = vmatpush2.bf16.msra.mxu0 0
      %1044 = vmatprep.subr.bf16.mxu0 0
      %1045 = vmatpush2.bf16.msra.mxu0 0
      %1046 = vmatprep.subr.bf16.mxu0 0
      %1047 = vmatpush2.bf16.msra.mxu0 0
      %1048 = vmatprep.subr.bf16.mxu0 0
      %1049 = vmatpush2.bf16.msra.mxu0 0
      %1050 = vmatprep.subr.bf16.mxu0 0
      %1051 = vmatpush2.bf16.msra.mxu0 0
      %1052 = vmatprep.subr.bf16.mxu0 0
      %1053 = vmatpush2.bf16.msra.mxu0 0
      %1054 = vmatprep.subr.bf16.mxu0 0
      %1055 = vmatpush2.bf16.msra.mxu0 0
      %1056 = vmatprep.subr.bf16.mxu0 0
      %1057 = vmatpush2.bf16.msra.mxu0 0
      %1058 = vmatprep.mubr.bf16.mxu0 0
      %1059 = vmatmul.mubr.bf16.gmra.mxu0 %v954
      %v1060 = vpop.f32.mrf.mxu0
      %v1061 = vadd.f32 %v976, %v1060
      %v1062 = vpop.f32.mrf.mxu0
      %v1063 = vpop.f32.mrf.mxu0
      %v1064 = vpop.f32.mrf.mxu0
      %1065 = vdwg.mxu0
      %1066 = vst [vmem:[#allocation15] sm:$0x3] %v1061
    $region73: #{simple_baseline_forward.1} parent=1 // pred_fallthru
      _
    %v1067 = vld [vmem:[#allocation2] sm:$0xff]
    %v1068 = vld [vmem:[#allocation2 + $0x8] sm:$0xff]
    %v1069 = vld [vmem:[%s0] sm:$0xff]
    %v1070 = vld [vmem:[%s0 + $0x8] sm:$0xff]
    %v1071 = vld [vmem:[#allocation3] sm:$0xff]
    %v1072 = vld [vmem:[#allocation3 + $0x8] sm:$0xff]
    %v1073 = vld [vmem:[#allocation3 + $0x10] sm:$0xff]
    %v1074 = vld [vmem:[#allocation3 + $0x18] sm:$0xff]
    %v1075 = vld [vmem:[#allocation3 + $0x20] sm:$0xff]
    %v1076 = vld [vmem:[#allocation3 + $0x28] sm:$0xff]
    %v1077 = vld [vmem:[#allocation3 + $0x30] sm:$0xff]
    %v1078 = vld [vmem:[#allocation3 + $0x38] sm:$0xff]
    %v1079 = vld [vmem:[#allocation3 + $0x40] sm:$0xff]
    %v1080 = vld [vmem:[#allocation3 + $0x48] sm:$0xff]
    %v1081 = vld [vmem:[#allocation3 + $0x50] sm:$0xff]
    %v1082 = vld [vmem:[#allocation3 + $0x58] sm:$0xff]
    %v1083 = vld [vmem:[#allocation3 + $0x60] sm:$0xff]
    %v1084 = vld [vmem:[#allocation3 + $0x68] sm:$0xff]
    %v1085 = vld [vmem:[#allocation3 + $0x70] sm:$0xff]
    %v1086 = vld [vmem:[#allocation3 + $0x78] sm:$0xff]
    %v1087 = vld [vmem:[#allocation3 + $0x80] sm:$0xff]
    %v1088 = vld [vmem:[#allocation3 + $0x88] sm:$0xff]
    %v1089 = vld [vmem:[#allocation3 + $0x90] sm:$0xff]
    %v1090 = vld [vmem:[#allocation3 + $0x98] sm:$0xff]
    %v1091 = vld [vmem:[#allocation3 + $0xa0] sm:$0xff]
    %v1092 = vld [vmem:[#allocation3 + $0xa8] sm:$0xff]
    %v1093 = vld [vmem:[#allocation3 + $0xb0] sm:$0xff]
    %v1094 = vld [vmem:[#allocation3 + $0xb8] sm:$0xff]
    %v1095 = vld [vmem:[#allocation3 + $0xc0] sm:$0xff]
    %v1096 = vld [vmem:[#allocation3 + $0xc8] sm:$0xff]
    %v1097 = vld [vmem:[#allocation3 + $0xd0] sm:$0xff]
    %v1098 = vld [vmem:[#allocation3 + $0xd8] sm:$0xff]
    %v1099 = vld [vmem:[#allocation3 + $0xe0] sm:$0xff]
    %v1100 = vld [vmem:[#allocation3 + $0xe8] sm:$0xff]
    %v1101 = vld [vmem:[#allocation3 + $0xf0] sm:$0xff]
    %v1102 = vld [vmem:[#allocation3 + $0xf8] sm:$0xff]
    %v1103 = vld [vmem:[#allocation3 + $0x100] sm:$0xff]
    %v1104 = vld [vmem:[#allocation3 + $0x108] sm:$0xff]
    %v1105 = vld [vmem:[#allocation3 + $0x110] sm:$0xff]
    %v1106 = vld [vmem:[#allocation3 + $0x118] sm:$0xff]
    %v1107 = vld [vmem:[#allocation3 + $0x120] sm:$0xff]
    %v1108 = vld [vmem:[#allocation3 + $0x128] sm:$0xff]
    %v1109 = vld [vmem:[#allocation3 + $0x130] sm:$0xff]
    %v1110 = vld [vmem:[#allocation3 + $0x138] sm:$0xff]
    %v1111 = vld [vmem:[#allocation3 + $0x140] sm:$0xff]
    %v1112 = vld [vmem:[#allocation3 + $0x148] sm:$0xff]
    %v1113 = vld [vmem:[#allocation3 + $0x150] sm:$0xff]
    %v1114 = vld [vmem:[#allocation3 + $0x158] sm:$0xff]
    %v1115 = vld [vmem:[#allocation3 + $0x160] sm:$0xff]
    %v1116 = vld [vmem:[#allocation3 + $0x168] sm:$0xff]
    %v1117 = vld [vmem:[#allocation3 + $0x170] sm:$0xff]
    %v1118 = vld [vmem:[#allocation3 + $0x178] sm:$0xff]
    %v1119 = vld [vmem:[#allocation3 + $0x180] sm:$0xff]
    %v1120 = vld [vmem:[#allocation3 + $0x188] sm:$0xff]
    %v1121 = vld [vmem:[#allocation3 + $0x190] sm:$0xff]
    %v1122 = vld [vmem:[#allocation3 + $0x198] sm:$0xff]
    %v1123 = vld [vmem:[#allocation3 + $0x1a0] sm:$0xff]
    %v1124 = vld [vmem:[#allocation3 + $0x1a8] sm:$0xff]
    %v1125 = vld [vmem:[#allocation3 + $0x1b0] sm:$0xff]
    %v1126 = vld [vmem:[#allocation3 + $0x1b8] sm:$0xff]
    %v1127 = vld [vmem:[#allocation3 + $0x1c0] sm:$0xff]
    %v1128 = vld [vmem:[#allocation3 + $0x1c8] sm:$0xff]
    %v1129 = vld [vmem:[#allocation3 + $0x1d0] sm:$0xff]
    %v1130 = vld [vmem:[#allocation3 + $0x1d8] sm:$0xff]
    %v1131 = vld [vmem:[#allocation3 + $0x1e0] sm:$0xff]
    %v1132 = vld [vmem:[#allocation3 + $0x1e8] sm:$0xff]
    %v1133 = vld [vmem:[#allocation3 + $0x1f0] sm:$0xff]
    %v1134 = vld [vmem:[#allocation3 + $0x1f8] sm:$0xff]
    %v1135 = vld [vmem:[#allocation3 + $0x200] sm:$0xff]
    %v1136 = vld [vmem:[#allocation3 + $0x208] sm:$0xff]
    %v1137 = vld [vmem:[#allocation3 + $0x210] sm:$0xff]
    %v1138 = vld [vmem:[#allocation3 + $0x218] sm:$0xff]
    %v1139 = vld [vmem:[#allocation3 + $0x220] sm:$0xff]
    %v1140 = vld [vmem:[#allocation3 + $0x228] sm:$0xff]
    %v1141 = vld [vmem:[#allocation3 + $0x230] sm:$0xff]
    %v1142 = vld [vmem:[#allocation3 + $0x238] sm:$0xff]
    %v1143 = vld [vmem:[#allocation3 + $0x240] sm:$0xff]
    %v1144 = vld [vmem:[#allocation3 + $0x248] sm:$0xff]
    %v1145 = vld [vmem:[#allocation3 + $0x250] sm:$0xff]
    %v1146 = vld [vmem:[#allocation3 + $0x258] sm:$0xff]
    %v1147 = vld [vmem:[#allocation3 + $0x260] sm:$0xff]
    %v1148 = vld [vmem:[#allocation3 + $0x268] sm:$0xff]
    %v1149 = vld [vmem:[#allocation3 + $0x270] sm:$0xff]
    %v1150 = vld [vmem:[#allocation3 + $0x278] sm:$0xff]
    %v1151 = vld [vmem:[#allocation3 + $0x280] sm:$0xff]
    %v1152 = vld [vmem:[#allocation3 + $0x288] sm:$0xff]
    %v1153 = vld [vmem:[#allocation3 + $0x290] sm:$0xff]
    %v1154 = vld [vmem:[#allocation3 + $0x298] sm:$0xff]
    %v1155 = vld [vmem:[#allocation3 + $0x2a0] sm:$0xff]
    %v1156 = vld [vmem:[#allocation3 + $0x2a8] sm:$0xff]
    %v1157 = vld [vmem:[#allocation3 + $0x2b0] sm:$0xff]
    %v1158 = vld [vmem:[#allocation3 + $0x2b8] sm:$0xff]
    %v1159 = vld [vmem:[#allocation3 + $0x2c0] sm:$0xff]
    %v1160 = vld [vmem:[#allocation3 + $0x2c8] sm:$0xff]
    %v1161 = vld [vmem:[#allocation3 + $0x2d0] sm:$0xff]
    %v1162 = vld [vmem:[#allocation3 + $0x2d8] sm:$0xff]
    %v1163 = vld [vmem:[#allocation3 + $0x2e0] sm:$0xff]
    %v1164 = vld [vmem:[#allocation3 + $0x2e8] sm:$0xff]
    %v1165 = vld [vmem:[#allocation3 + $0x2f0] sm:$0xff]
    %v1166 = vld [vmem:[#allocation3 + $0x2f8] sm:$0xff]
    %v1167 = vld [vmem:[#allocation3 + $0x300] sm:$0xff]
    %v1168 = vld [vmem:[#allocation3 + $0x308] sm:$0xff]
    %v1169 = vld [vmem:[#allocation3 + $0x310] sm:$0xff]
    %v1170 = vld [vmem:[#allocation3 + $0x318] sm:$0xff]
    %v1171 = vld [vmem:[#allocation3 + $0x320] sm:$0xff]
    %v1172 = vld [vmem:[#allocation3 + $0x328] sm:$0xff]
    %v1173 = vld [vmem:[#allocation3 + $0x330] sm:$0xff]
    %v1174 = vld [vmem:[#allocation3 + $0x338] sm:$0xff]
    %v1175 = vld [vmem:[#allocation3 + $0x340] sm:$0xff]
    %v1176 = vld [vmem:[#allocation3 + $0x348] sm:$0xff]
    %v1177 = vld [vmem:[#allocation3 + $0x350] sm:$0xff]
    %v1178 = vld [vmem:[#allocation3 + $0x358] sm:$0xff]
    %v1179 = vld [vmem:[#allocation3 + $0x360] sm:$0xff]
    %v1180 = vld [vmem:[#allocation3 + $0x368] sm:$0xff]
    %v1181 = vld [vmem:[#allocation3 + $0x370] sm:$0xff]
    %v1182 = vld [vmem:[#allocation3 + $0x378] sm:$0xff]
    %v1183 = vld [vmem:[#allocation3 + $0x380] sm:$0xff]
    %v1184 = vld [vmem:[#allocation3 + $0x388] sm:$0xff]
    %v1185 = vld [vmem:[#allocation3 + $0x390] sm:$0xff]
    %v1186 = vld [vmem:[#allocation3 + $0x398] sm:$0xff]
    %v1187 = vld [vmem:[#allocation3 + $0x3a0] sm:$0xff]
    %v1188 = vld [vmem:[#allocation3 + $0x3a8] sm:$0xff]
    %v1189 = vld [vmem:[#allocation3 + $0x3b0] sm:$0xff]
    %v1190 = vld [vmem:[#allocation3 + $0x3b8] sm:$0xff]
    %v1191 = vld [vmem:[#allocation3 + $0x3c0] sm:$0xff]
    %v1192 = vld [vmem:[#allocation3 + $0x3c8] sm:$0xff]
    %v1193 = vld [vmem:[#allocation3 + $0x3d0] sm:$0xff]
    %v1194 = vld [vmem:[#allocation3 + $0x3d8] sm:$0xff]
    %v1195 = vld [vmem:[#allocation3 + $0x3e0] sm:$0xff]
    %v1196 = vld [vmem:[#allocation3 + $0x3e8] sm:$0xff]
    %v1197 = vld [vmem:[#allocation3 + $0x3f0] sm:$0xff]
    %v1198 = vld [vmem:[#allocation3 + $0x3f8] sm:$0xff]
    %v1199 = vld [vmem:[#allocation3 + $0x400] sm:$0xff]
    %v1200 = vld [vmem:[#allocation3 + $0x408] sm:$0xff]
    %v1201 = vld [vmem:[#allocation3 + $0x410] sm:$0xff]
    %v1202 = vld [vmem:[#allocation3 + $0x418] sm:$0xff]
    %v1203 = vld [vmem:[#allocation3 + $0x420] sm:$0xff]
    %v1204 = vld [vmem:[#allocation3 + $0x428] sm:$0xff]
    %v1205 = vld [vmem:[#allocation3 + $0x430] sm:$0xff]
    %v1206 = vld [vmem:[#allocation3 + $0x438] sm:$0xff]
    %v1207 = vld [vmem:[#allocation3 + $0x440] sm:$0xff]
    %v1208 = vld [vmem:[#allocation3 + $0x448] sm:$0xff]
    %v1209 = vld [vmem:[#allocation3 + $0x450] sm:$0xff]
    %v1210 = vld [vmem:[#allocation3 + $0x458] sm:$0xff]
    %v1211 = vld [vmem:[#allocation3 + $0x460] sm:$0xff]
    %v1212 = vld [vmem:[#allocation3 + $0x468] sm:$0xff]
    %v1213 = vld [vmem:[#allocation3 + $0x470] sm:$0xff]
    %v1214 = vld [vmem:[#allocation3 + $0x478] sm:$0xff]
    %v1215 = vld [vmem:[#allocation3 + $0x480] sm:$0xff]
    %v1216 = vld [vmem:[#allocation3 + $0x488] sm:$0xff]
    %v1217 = vld [vmem:[#allocation3 + $0x490] sm:$0xff]
    %v1218 = vld [vmem:[#allocation3 + $0x498] sm:$0xff]
    %v1219 = vld [vmem:[#allocation3 + $0x4a0] sm:$0xff]
    %v1220 = vld [vmem:[#allocation3 + $0x4a8] sm:$0xff]
    %v1221 = vld [vmem:[#allocation3 + $0x4b0] sm:$0xff]
    %v1222 = vld [vmem:[#allocation3 + $0x4b8] sm:$0xff]
    %v1223 = vld [vmem:[#allocation3 + $0x4c0] sm:$0xff]
    %v1224 = vld [vmem:[#allocation3 + $0x4c8] sm:$0xff]
    %v1225 = vld [vmem:[#allocation3 + $0x4d0] sm:$0xff]
    %v1226 = vld [vmem:[#allocation3 + $0x4d8] sm:$0xff]
    %v1227 = vld [vmem:[#allocation3 + $0x4e0] sm:$0xff]
    %v1228 = vld [vmem:[#allocation3 + $0x4e8] sm:$0xff]
    %v1229 = vld [vmem:[#allocation3 + $0x4f0] sm:$0xff]
    %v1230 = vld [vmem:[#allocation3 + $0x4f8] sm:$0xff]
    %v1231 = vld [vmem:[#allocation3 + $0x500] sm:$0xff]
    %v1232 = vld [vmem:[#allocation3 + $0x508] sm:$0xff]
    %v1233 = vld [vmem:[#allocation3 + $0x510] sm:$0xff]
    %v1234 = vld [vmem:[#allocation3 + $0x518] sm:$0xff]
    %v1235 = vld [vmem:[#allocation3 + $0x520] sm:$0xff]
    %v1236 = vld [vmem:[#allocation3 + $0x528] sm:$0xff]
    %v1237 = vld [vmem:[#allocation3 + $0x530] sm:$0xff]
    %v1238 = vld [vmem:[#allocation3 + $0x538] sm:$0xff]
    %v1239 = vld [vmem:[#allocation3 + $0x540] sm:$0xff]
    %v1240 = vld [vmem:[#allocation3 + $0x548] sm:$0xff]
    %v1241 = vld [vmem:[#allocation3 + $0x550] sm:$0xff]
    %v1242 = vld [vmem:[#allocation3 + $0x558] sm:$0xff]
    %v1243 = vld [vmem:[#allocation3 + $0x560] sm:$0xff]
    %v1244 = vld [vmem:[#allocation3 + $0x568] sm:$0xff]
    %v1245 = vld [vmem:[#allocation3 + $0x570] sm:$0xff]
    %v1246 = vld [vmem:[#allocation3 + $0x578] sm:$0xff]
    %v1247 = vld [vmem:[#allocation3 + $0x580] sm:$0xff]
    %v1248 = vld [vmem:[#allocation3 + $0x588] sm:$0xff]
    %v1249 = vld [vmem:[#allocation3 + $0x590] sm:$0xff]
    %v1250 = vld [vmem:[#allocation3 + $0x598] sm:$0xff]
    %v1251 = vld [vmem:[#allocation3 + $0x5a0] sm:$0xff]
    %v1252 = vld [vmem:[#allocation3 + $0x5a8] sm:$0xff]
    %v1253 = vld [vmem:[#allocation3 + $0x5b0] sm:$0xff]
    %v1254 = vld [vmem:[#allocation3 + $0x5b8] sm:$0xff]
    %v1255 = vld [vmem:[#allocation3 + $0x5c0] sm:$0xff]
    %v1256 = vld [vmem:[#allocation3 + $0x5c8] sm:$0xff]
    %v1257 = vld [vmem:[#allocation3 + $0x5d0] sm:$0xff]
    %v1258 = vld [vmem:[#allocation3 + $0x5d8] sm:$0xff]
    %v1259 = vld [vmem:[#allocation3 + $0x5e0] sm:$0xff]
    %v1260 = vld [vmem:[#allocation3 + $0x5e8] sm:$0xff]
    %v1261 = vld [vmem:[#allocation3 + $0x5f0] sm:$0xff]
    %v1262 = vld [vmem:[#allocation3 + $0x5f8] sm:$0xff]
    %v1263 = vld [vmem:[#allocation3 + $0x600] sm:$0xff]
    %v1264 = vld [vmem:[#allocation3 + $0x608] sm:$0xff]
    %v1265 = vld [vmem:[#allocation3 + $0x610] sm:$0xff]
    %v1266 = vld [vmem:[#allocation3 + $0x618] sm:$0xff]
    %v1267 = vld [vmem:[#allocation3 + $0x620] sm:$0xff]
    %v1268 = vld [vmem:[#allocation3 + $0x628] sm:$0xff]
    %v1269 = vld [vmem:[#allocation3 + $0x630] sm:$0xff]
    %v1270 = vld [vmem:[#allocation3 + $0x638] sm:$0xff]
    %v1271 = vld [vmem:[#allocation3 + $0x640] sm:$0xff]
    %v1272 = vld [vmem:[#allocation3 + $0x648] sm:$0xff]
    %v1273 = vld [vmem:[#allocation3 + $0x650] sm:$0xff]
    %v1274 = vld [vmem:[#allocation3 + $0x658] sm:$0xff]
    %v1275 = vld [vmem:[#allocation3 + $0x660] sm:$0xff]
    %v1276 = vld [vmem:[#allocation3 + $0x668] sm:$0xff]
    %v1277 = vld [vmem:[#allocation3 + $0x670] sm:$0xff]
    %v1278 = vld [vmem:[#allocation3 + $0x678] sm:$0xff]
    %v1279 = vld [vmem:[#allocation3 + $0x680] sm:$0xff]
    %v1280 = vld [vmem:[#allocation3 + $0x688] sm:$0xff]
    %v1281 = vld [vmem:[#allocation3 + $0x690] sm:$0xff]
    %v1282 = vld [vmem:[#allocation3 + $0x698] sm:$0xff]
    %v1283 = vld [vmem:[#allocation3 + $0x6a0] sm:$0xff]
    %v1284 = vld [vmem:[#allocation3 + $0x6a8] sm:$0xff]
    %v1285 = vld [vmem:[#allocation3 + $0x6b0] sm:$0xff]
    %v1286 = vld [vmem:[#allocation3 + $0x6b8] sm:$0xff]
    %v1287 = vld [vmem:[#allocation3 + $0x6c0] sm:$0xff]
    %v1288 = vld [vmem:[#allocation3 + $0x6c8] sm:$0xff]
    %v1289 = vld [vmem:[#allocation3 + $0x6d0] sm:$0xff]
    %v1290 = vld [vmem:[#allocation3 + $0x6d8] sm:$0xff]
    %v1291 = vld [vmem:[#allocation3 + $0x6e0] sm:$0xff]
    %v1292 = vld [vmem:[#allocation3 + $0x6e8] sm:$0xff]
    %v1293 = vld [vmem:[#allocation3 + $0x6f0] sm:$0xff]
    %v1294 = vld [vmem:[#allocation3 + $0x6f8] sm:$0xff]
    %v1295 = vld [vmem:[#allocation3 + $0x700] sm:$0xff]
    %v1296 = vld [vmem:[#allocation3 + $0x708] sm:$0xff]
    %v1297 = vld [vmem:[#allocation3 + $0x710] sm:$0xff]
    %v1298 = vld [vmem:[#allocation3 + $0x718] sm:$0xff]
    %v1299 = vld [vmem:[#allocation3 + $0x720] sm:$0xff]
    %v1300 = vld [vmem:[#allocation3 + $0x728] sm:$0xff]
    %v1301 = vld [vmem:[#allocation3 + $0x730] sm:$0xff]
    %v1302 = vld [vmem:[#allocation3 + $0x738] sm:$0xff]
    %v1303 = vld [vmem:[#allocation3 + $0x740] sm:$0xff]
    %v1304 = vld [vmem:[#allocation3 + $0x748] sm:$0xff]
    %v1305 = vld [vmem:[#allocation3 + $0x750] sm:$0xff]
    %v1306 = vld [vmem:[#allocation3 + $0x758] sm:$0xff]
    %v1307 = vld [vmem:[#allocation3 + $0x760] sm:$0xff]
    %v1308 = vld [vmem:[#allocation3 + $0x768] sm:$0xff]
    %v1309 = vld [vmem:[#allocation3 + $0x770] sm:$0xff]
    %v1310 = vld [vmem:[#allocation3 + $0x778] sm:$0xff]
    %v1311 = vld [vmem:[#allocation3 + $0x780] sm:$0xff]
    %v1312 = vld [vmem:[#allocation3 + $0x788] sm:$0xff]
    %v1313 = vld [vmem:[#allocation3 + $0x790] sm:$0xff]
    %v1314 = vld [vmem:[#allocation3 + $0x798] sm:$0xff]
    %v1315 = vld [vmem:[#allocation3 + $0x7a0] sm:$0xff]
    %v1316 = vld [vmem:[#allocation3 + $0x7a8] sm:$0xff]
    %v1317 = vld [vmem:[#allocation3 + $0x7b0] sm:$0xff]
    %v1318 = vld [vmem:[#allocation3 + $0x7b8] sm:$0xff]
    %v1319 = vld [vmem:[#allocation3 + $0x7c0] sm:$0xff]
    %v1320 = vld [vmem:[#allocation3 + $0x7c8] sm:$0xff]
    %v1321 = vld [vmem:[#allocation3 + $0x7d0] sm:$0xff]
    %v1322 = vld [vmem:[#allocation3 + $0x7d8] sm:$0xff]
    %v1323 = vld [vmem:[#allocation3 + $0x7e0] sm:$0xff]
    %v1324 = vld [vmem:[#allocation3 + $0x7e8] sm:$0xff]
    %v1325 = vld [vmem:[#allocation3 + $0x7f0] sm:$0xff]
    %v1326 = vld [vmem:[#allocation3 + $0x7f8] sm:$0xff]
    %v1327 = vld [vmem:[#allocation3 + $0x800] sm:$0xff]
    %v1328 = vld [vmem:[#allocation3 + $0x808] sm:$0xff]
    %v1329 = vld [vmem:[#allocation3 + $0x810] sm:$0xff]
    %v1330 = vld [vmem:[#allocation3 + $0x818] sm:$0xff]
    %v1331 = vld [vmem:[#allocation3 + $0x820] sm:$0xff]
    %v1332 = vld [vmem:[#allocation3 + $0x828] sm:$0xff]
    %v1333 = vld [vmem:[#allocation3 + $0x830] sm:$0xff]
    %v1334 = vld [vmem:[#allocation3 + $0x838] sm:$0xff]
    %v1335 = vld [vmem:[#allocation3 + $0x840] sm:$0xff]
    %v1336 = vld [vmem:[#allocation3 + $0x848] sm:$0xff]
    %v1337 = vld [vmem:[#allocation3 + $0x850] sm:$0xff]
    %v1338 = vld [vmem:[#allocation3 + $0x858] sm:$0xff]
    %v1339 = vld [vmem:[#allocation3 + $0x860] sm:$0xff]
    %v1340 = vld [vmem:[#allocation3 + $0x868] sm:$0xff]
    %v1341 = vld [vmem:[#allocation3 + $0x870] sm:$0xff]
    %v1342 = vld [vmem:[#allocation3 + $0x878] sm:$0xff]
    %v1343 = vld [vmem:[#allocation3 + $0x880] sm:$0xff]
    %v1344 = vld [vmem:[#allocation3 + $0x888] sm:$0xff]
    %v1345 = vld [vmem:[#allocation3 + $0x890] sm:$0xff]
    %v1346 = vld [vmem:[#allocation3 + $0x898] sm:$0xff]
    %v1347 = vld [vmem:[#allocation3 + $0x8a0] sm:$0xff]
    %v1348 = vld [vmem:[#allocation3 + $0x8a8] sm:$0xff]
    %v1349 = vld [vmem:[#allocation3 + $0x8b0] sm:$0xff]
    %v1350 = vld [vmem:[#allocation3 + $0x8b8] sm:$0xff]
    %v1351 = vld [vmem:[#allocation3 + $0x8c0] sm:$0xff]
    %v1352 = vld [vmem:[#allocation3 + $0x8c8] sm:$0xff]
    %v1353 = vld [vmem:[#allocation3 + $0x8d0] sm:$0xff]
    %v1354 = vld [vmem:[#allocation3 + $0x8d8] sm:$0xff]
    %v1355 = vld [vmem:[#allocation3 + $0x8e0] sm:$0xff]
    %v1356 = vld [vmem:[#allocation3 + $0x8e8] sm:$0xff]
    %v1357 = vld [vmem:[#allocation3 + $0x8f0] sm:$0xff]
    %v1358 = vld [vmem:[#allocation3 + $0x8f8] sm:$0xff]
    %v1359 = vld [vmem:[#allocation3 + $0x900] sm:$0xff]
    %v1360 = vld [vmem:[#allocation3 + $0x908] sm:$0xff]
    %v1361 = vld [vmem:[#allocation3 + $0x910] sm:$0xff]
    %v1362 = vld [vmem:[#allocation3 + $0x918] sm:$0xff]
    %v1363 = vld [vmem:[#allocation3 + $0x920] sm:$0xff]
    %v1364 = vld [vmem:[#allocation3 + $0x928] sm:$0xff]
    %v1365 = vld [vmem:[#allocation3 + $0x930] sm:$0xff]
    %v1366 = vld [vmem:[#allocation3 + $0x938] sm:$0xff]
    %v1367 = vld [vmem:[#allocation3 + $0x940] sm:$0xff]
    %v1368 = vld [vmem:[#allocation3 + $0x948] sm:$0xff]
    %v1369 = vld [vmem:[#allocation3 + $0x950] sm:$0xff]
    %v1370 = vld [vmem:[#allocation3 + $0x958] sm:$0xff]
    %v1371 = vld [vmem:[#allocation3 + $0x960] sm:$0xff]
    %v1372 = vld [vmem:[#allocation3 + $0x968] sm:$0xff]
    %v1373 = vld [vmem:[#allocation3 + $0x970] sm:$0xff]
    %v1374 = vld [vmem:[#allocation3 + $0x978] sm:$0xff]
    %v1375 = vld [vmem:[#allocation3 + $0x980] sm:$0xff]
    %v1376 = vld [vmem:[#allocation3 + $0x988] sm:$0xff]
    %v1377 = vld [vmem:[#allocation3 + $0x990] sm:$0xff]
    %v1378 = vld [vmem:[#allocation3 + $0x998] sm:$0xff]
    %v1379 = vld [vmem:[#allocation3 + $0x9a0] sm:$0xff]
    %v1380 = vld [vmem:[#allocation3 + $0x9a8] sm:$0xff]
    %v1381 = vld [vmem:[#allocation3 + $0x9b0] sm:$0xff]
    %v1382 = vld [vmem:[#allocation3 + $0x9b8] sm:$0xff]
    %v1383 = vld [vmem:[#allocation3 + $0x9c0] sm:$0xff]
    %v1384 = vld [vmem:[#allocation3 + $0x9c8] sm:$0xff]
    %v1385 = vld [vmem:[#allocation3 + $0x9d0] sm:$0xff]
    %v1386 = vld [vmem:[#allocation3 + $0x9d8] sm:$0xff]
    %v1387 = vld [vmem:[#allocation3 + $0x9e0] sm:$0xff]
    %v1388 = vld [vmem:[#allocation3 + $0x9e8] sm:$0xff]
    %v1389 = vld [vmem:[#allocation3 + $0x9f0] sm:$0xff]
    %v1390 = vld [vmem:[#allocation3 + $0x9f8] sm:$0xff]
    %v1391 = vld [vmem:[#allocation3 + $0xa00] sm:$0xff]
    %v1392 = vld [vmem:[#allocation3 + $0xa08] sm:$0xff]
    %v1393 = vld [vmem:[#allocation3 + $0xa10] sm:$0xff]
    %v1394 = vld [vmem:[#allocation3 + $0xa18] sm:$0xff]
    %v1395 = vld [vmem:[#allocation3 + $0xa20] sm:$0xff]
    %v1396 = vld [vmem:[#allocation3 + $0xa28] sm:$0xff]
    %v1397 = vld [vmem:[#allocation3 + $0xa30] sm:$0xff]
    %v1398 = vld [vmem:[#allocation3 + $0xa38] sm:$0xff]
    %v1399 = vld [vmem:[#allocation3 + $0xa40] sm:$0xff]
    %v1400 = vld [vmem:[#allocation3 + $0xa48] sm:$0xff]
    %v1401 = vld [vmem:[#allocation3 + $0xa50] sm:$0xff]
    %v1402 = vld [vmem:[#allocation3 + $0xa58] sm:$0xff]
    %v1403 = vld [vmem:[#allocation3 + $0xa60] sm:$0xff]
    %v1404 = vld [vmem:[#allocation3 + $0xa68] sm:$0xff]
    %v1405 = vld [vmem:[#allocation3 + $0xa70] sm:$0xff]
    %v1406 = vld [vmem:[#allocation3 + $0xa78] sm:$0xff]
    %v1407 = vld [vmem:[#allocation3 + $0xa80] sm:$0xff]
    %v1408 = vld [vmem:[#allocation3 + $0xa88] sm:$0xff]
    %v1409 = vld [vmem:[#allocation3 + $0xa90] sm:$0xff]
    %v1410 = vld [vmem:[#allocation3 + $0xa98] sm:$0xff]
    %v1411 = vld [vmem:[#allocation3 + $0xaa0] sm:$0xff]
    %v1412 = vld [vmem:[#allocation3 + $0xaa8] sm:$0xff]
    %v1413 = vld [vmem:[#allocation3 + $0xab0] sm:$0xff]
    %v1414 = vld [vmem:[#allocation3 + $0xab8] sm:$0xff]
    %v1415 = vld [vmem:[#allocation3 + $0xac0] sm:$0xff]
    %v1416 = vld [vmem:[#allocation3 + $0xac8] sm:$0xff]
    %v1417 = vld [vmem:[#allocation3 + $0xad0] sm:$0xff]
    %v1418 = vld [vmem:[#allocation3 + $0xad8] sm:$0xff]
    %v1419 = vld [vmem:[#allocation3 + $0xae0] sm:$0xff]
    %v1420 = vld [vmem:[#allocation3 + $0xae8] sm:$0xff]
    %v1421 = vld [vmem:[#allocation3 + $0xaf0] sm:$0xff]
    %v1422 = vld [vmem:[#allocation3 + $0xaf8] sm:$0xff]
    %v1423 = vld [vmem:[#allocation3 + $0xb00] sm:$0xff]
    %v1424 = vld [vmem:[#allocation3 + $0xb08] sm:$0xff]
    %v1425 = vld [vmem:[#allocation3 + $0xb10] sm:$0xff]
    %v1426 = vld [vmem:[#allocation3 + $0xb18] sm:$0xff]
    %v1427 = vld [vmem:[#allocation3 + $0xb20] sm:$0xff]
    %v1428 = vld [vmem:[#allocation3 + $0xb28] sm:$0xff]
    %v1429 = vld [vmem:[#allocation3 + $0xb30] sm:$0xff]
    %v1430 = vld [vmem:[#allocation3 + $0xb38] sm:$0xff]
    %v1431 = vld [vmem:[#allocation3 + $0xb40] sm:$0xff]
    %v1432 = vld [vmem:[#allocation3 + $0xb48] sm:$0xff]
    %v1433 = vld [vmem:[#allocation3 + $0xb50] sm:$0xff]
    %v1434 = vld [vmem:[#allocation3 + $0xb58] sm:$0xff]
    %v1435 = vld [vmem:[#allocation3 + $0xb60] sm:$0xff]
    %v1436 = vld [vmem:[#allocation3 + $0xb68] sm:$0xff]
    %v1437 = vld [vmem:[#allocation3 + $0xb70] sm:$0xff]
    %v1438 = vld [vmem:[#allocation3 + $0xb78] sm:$0xff]
    %v1439 = vld [vmem:[#allocation3 + $0xb80] sm:$0xff]
    %v1440 = vld [vmem:[#allocation3 + $0xb88] sm:$0xff]
    %v1441 = vld [vmem:[#allocation3 + $0xb90] sm:$0xff]
    %v1442 = vld [vmem:[#allocation3 + $0xb98] sm:$0xff]
    %v1443 = vld [vmem:[#allocation3 + $0xba0] sm:$0xff]
    %v1444 = vld [vmem:[#allocation3 + $0xba8] sm:$0xff]
    %v1445 = vld [vmem:[#allocation3 + $0xbb0] sm:$0xff]
    %v1446 = vld [vmem:[#allocation3 + $0xbb8] sm:$0xff]
    %v1447 = vld [vmem:[#allocation3 + $0xbc0] sm:$0xff]
    %v1448 = vld [vmem:[#allocation3 + $0xbc8] sm:$0xff]
    %v1449 = vld [vmem:[#allocation3 + $0xbd0] sm:$0xff]
    %v1450 = vld [vmem:[#allocation3 + $0xbd8] sm:$0xff]
    %v1451 = vld [vmem:[#allocation3 + $0xbe0] sm:$0xff]
    %v1452 = vld [vmem:[#allocation3 + $0xbe8] sm:$0xff]
    %v1453 = vld [vmem:[#allocation3 + $0xbf0] sm:$0xff]
    %v1454 = vld [vmem:[#allocation3 + $0xbf8] sm:$0xff]
    %v1455 = vld [vmem:[#allocation3 + $0xc00] sm:$0xff]
    %v1456 = vld [vmem:[#allocation3 + $0xc08] sm:$0xff]
    %v1457 = vld [vmem:[#allocation3 + $0xc10] sm:$0xff]
    %v1458 = vld [vmem:[#allocation3 + $0xc18] sm:$0xff]
    %v1459 = vld [vmem:[#allocation3 + $0xc20] sm:$0xff]
    %v1460 = vld [vmem:[#allocation3 + $0xc28] sm:$0xff]
    %v1461 = vld [vmem:[#allocation3 + $0xc30] sm:$0xff]
    %v1462 = vld [vmem:[#allocation3 + $0xc38] sm:$0xff]
    %v1463 = vld [vmem:[#allocation3 + $0xc40] sm:$0xff]
    %v1464 = vld [vmem:[#allocation3 + $0xc48] sm:$0xff]
    %v1465 = vld [vmem:[#allocation3 + $0xc50] sm:$0xff]
    %v1466 = vld [vmem:[#allocation3 + $0xc58] sm:$0xff]
    %v1467 = vld [vmem:[#allocation3 + $0xc60] sm:$0xff]
    %v1468 = vld [vmem:[#allocation3 + $0xc68] sm:$0xff]
    %v1469 = vld [vmem:[#allocation3 + $0xc70] sm:$0xff]
    %v1470 = vld [vmem:[#allocation3 + $0xc78] sm:$0xff]
    %v1471 = vld [vmem:[#allocation3 + $0xc80] sm:$0xff]
    %v1472 = vld [vmem:[#allocation3 + $0xc88] sm:$0xff]
    %v1473 = vld [vmem:[#allocation3 + $0xc90] sm:$0xff]
    %v1474 = vld [vmem:[#allocation3 + $0xc98] sm:$0xff]
    %v1475 = vld [vmem:[#allocation3 + $0xca0] sm:$0xff]
    %v1476 = vld [vmem:[#allocation3 + $0xca8] sm:$0xff]
    %v1477 = vld [vmem:[#allocation3 + $0xcb0] sm:$0xff]
    %v1478 = vld [vmem:[#allocation3 + $0xcb8] sm:$0xff]
    %v1479 = vld [vmem:[#allocation3 + $0xcc0] sm:$0xff]
    %v1480 = vld [vmem:[#allocation3 + $0xcc8] sm:$0xff]
    %v1481 = vld [vmem:[#allocation3 + $0xcd0] sm:$0xff]
    %v1482 = vld [vmem:[#allocation3 + $0xcd8] sm:$0xff]
    %v1483 = vld [vmem:[#allocation3 + $0xce0] sm:$0xff]
    %v1484 = vld [vmem:[#allocation3 + $0xce8] sm:$0xff]
    %v1485 = vld [vmem:[#allocation3 + $0xcf0] sm:$0xff]
    %v1486 = vld [vmem:[#allocation3 + $0xcf8] sm:$0xff]
    %v1487 = vld [vmem:[#allocation3 + $0xd00] sm:$0xff]
    %v1488 = vld [vmem:[#allocation3 + $0xd08] sm:$0xff]
    %v1489 = vld [vmem:[#allocation3 + $0xd10] sm:$0xff]
    %v1490 = vld [vmem:[#allocation3 + $0xd18] sm:$0xff]
    %v1491 = vld [vmem:[#allocation3 + $0xd20] sm:$0xff]
    %v1492 = vld [vmem:[#allocation3 + $0xd28] sm:$0xff]
    %v1493 = vld [vmem:[#allocation3 + $0xd30] sm:$0xff]
    %v1494 = vld [vmem:[#allocation3 + $0xd38] sm:$0xff]
    %v1495 = vld [vmem:[#allocation3 + $0xd40] sm:$0xff]
    %v1496 = vld [vmem:[#allocation3 + $0xd48] sm:$0xff]
    %v1497 = vld [vmem:[#allocation3 + $0xd50] sm:$0xff]
    %v1498 = vld [vmem:[#allocation3 + $0xd58] sm:$0xff]
    %v1499 = vld [vmem:[#allocation3 + $0xd60] sm:$0xff]
    %v1500 = vld [vmem:[#allocation3 + $0xd68] sm:$0xff]
    %v1501 = vld [vmem:[#allocation3 + $0xd70] sm:$0xff]
    %v1502 = vld [vmem:[#allocation3 + $0xd78] sm:$0xff]
    %v1503 = vld [vmem:[#allocation3 + $0xd80] sm:$0xff]
    %v1504 = vld [vmem:[#allocation3 + $0xd88] sm:$0xff]
    %v1505 = vld [vmem:[#allocation3 + $0xd90] sm:$0xff]
    %v1506 = vld [vmem:[#allocation3 + $0xd98] sm:$0xff]
    %v1507 = vld [vmem:[#allocation3 + $0xda0] sm:$0xff]
    %v1508 = vld [vmem:[#allocation3 + $0xda8] sm:$0xff]
    %v1509 = vld [vmem:[#allocation3 + $0xdb0] sm:$0xff]
    %v1510 = vld [vmem:[#allocation3 + $0xdb8] sm:$0xff]
    %v1511 = vld [vmem:[#allocation3 + $0xdc0] sm:$0xff]
    %v1512 = vld [vmem:[#allocation3 + $0xdc8] sm:$0xff]
    %v1513 = vld [vmem:[#allocation3 + $0xdd0] sm:$0xff]
    %v1514 = vld [vmem:[#allocation3 + $0xdd8] sm:$0xff]
    %v1515 = vld [vmem:[#allocation3 + $0xde0] sm:$0xff]
    %v1516 = vld [vmem:[#allocation3 + $0xde8] sm:$0xff]
    %v1517 = vld [vmem:[#allocation3 + $0xdf0] sm:$0xff]
    %v1518 = vld [vmem:[#allocation3 + $0xdf8] sm:$0xff]
    %v1519 = vld [vmem:[#allocation3 + $0xe00] sm:$0xff]
    %v1520 = vld [vmem:[#allocation3 + $0xe08] sm:$0xff]
    %v1521 = vld [vmem:[#allocation3 + $0xe10] sm:$0xff]
    %v1522 = vld [vmem:[#allocation3 + $0xe18] sm:$0xff]
    %v1523 = vld [vmem:[#allocation3 + $0xe20] sm:$0xff]
    %v1524 = vld [vmem:[#allocation3 + $0xe28] sm:$0xff]
    %v1525 = vld [vmem:[#allocation3 + $0xe30] sm:$0xff]
    %v1526 = vld [vmem:[#allocation3 + $0xe38] sm:$0xff]
    %v1527 = vld [vmem:[#allocation3 + $0xe40] sm:$0xff]
    %v1528 = vld [vmem:[#allocation3 + $0xe48] sm:$0xff]
    %v1529 = vld [vmem:[#allocation3 + $0xe50] sm:$0xff]
    %v1530 = vld [vmem:[#allocation3 + $0xe58] sm:$0xff]
    %v1531 = vld [vmem:[#allocation3 + $0xe60] sm:$0xff]
    %v1532 = vld [vmem:[#allocation3 + $0xe68] sm:$0xff]
    %v1533 = vld [vmem:[#allocation3 + $0xe70] sm:$0xff]
    %v1534 = vld [vmem:[#allocation3 + $0xe78] sm:$0xff]
    %v1535 = vld [vmem:[#allocation3 + $0xe80] sm:$0xff]
    %v1536 = vld [vmem:[#allocation3 + $0xe88] sm:$0xff]
    %v1537 = vld [vmem:[#allocation3 + $0xe90] sm:$0xff]
    %v1538 = vld [vmem:[#allocation3 + $0xe98] sm:$0xff]
    %v1539 = vld [vmem:[#allocation3 + $0xea0] sm:$0xff]
    %v1540 = vld [vmem:[#allocation3 + $0xea8] sm:$0xff]
    %v1541 = vld [vmem:[#allocation3 + $0xeb0] sm:$0xff]
    %v1542 = vld [vmem:[#allocation3 + $0xeb8] sm:$0xff]
    %v1543 = vld [vmem:[#allocation3 + $0xec0] sm:$0xff]
    %v1544 = vld [vmem:[#allocation3 + $0xec8] sm:$0xff]
    %v1545 = vld [vmem:[#allocation3 + $0xed0] sm:$0xff]
    %v1546 = vld [vmem:[#allocation3 + $0xed8] sm:$0xff]
    %v1547 = vld [vmem:[#allocation3 + $0xee0] sm:$0xff]
    %v1548 = vld [vmem:[#allocation3 + $0xee8] sm:$0xff]
    %v1549 = vld [vmem:[#allocation3 + $0xef0] sm:$0xff]
    %v1550 = vld [vmem:[#allocation3 + $0xef8] sm:$0xff]
    %v1551 = vld [vmem:[#allocation3 + $0xf00] sm:$0xff]
    %v1552 = vld [vmem:[#allocation3 + $0xf08] sm:$0xff]
    %v1553 = vld [vmem:[#allocation3 + $0xf10] sm:$0xff]
    %v1554 = vld [vmem:[#allocation3 + $0xf18] sm:$0xff]
    %v1555 = vld [vmem:[#allocation3 + $0xf20] sm:$0xff]
    %v1556 = vld [vmem:[#allocation3 + $0xf28] sm:$0xff]
    %v1557 = vld [vmem:[#allocation3 + $0xf30] sm:$0xff]
    %v1558 = vld [vmem:[#allocation3 + $0xf38] sm:$0xff]
    %v1559 = vld [vmem:[#allocation3 + $0xf40] sm:$0xff]
    %v1560 = vld [vmem:[#allocation3 + $0xf48] sm:$0xff]
    %v1561 = vld [vmem:[#allocation3 + $0xf50] sm:$0xff]
    %v1562 = vld [vmem:[#allocation3 + $0xf58] sm:$0xff]
    %v1563 = vld [vmem:[#allocation3 + $0xf60] sm:$0xff]
    %v1564 = vld [vmem:[#allocation3 + $0xf68] sm:$0xff]
    %v1565 = vld [vmem:[#allocation3 + $0xf70] sm:$0xff]
    %v1566 = vld [vmem:[#allocation3 + $0xf78] sm:$0xff]
    %v1567 = vld [vmem:[#allocation3 + $0xf80] sm:$0xff]
    %v1568 = vld [vmem:[#allocation3 + $0xf88] sm:$0xff]
    %v1569 = vld [vmem:[#allocation3 + $0xf90] sm:$0xff]
    %v1570 = vld [vmem:[#allocation3 + $0xf98] sm:$0xff]
    %v1571 = vld [vmem:[#allocation3 + $0xfa0] sm:$0xff]
    %v1572 = vld [vmem:[#allocation3 + $0xfa8] sm:$0xff]
    %v1573 = vld [vmem:[#allocation3 + $0xfb0] sm:$0xff]
    %v1574 = vld [vmem:[#allocation3 + $0xfb8] sm:$0xff]
    %v1575 = vld [vmem:[#allocation3 + $0xfc0] sm:$0xff]
    %v1576 = vld [vmem:[#allocation3 + $0xfc8] sm:$0xff]
    %v1577 = vld [vmem:[#allocation3 + $0xfd0] sm:$0xff]
    %v1578 = vld [vmem:[#allocation3 + $0xfd8] sm:$0xff]
    %v1579 = vld [vmem:[#allocation3 + $0xfe0] sm:$0xff]
    %v1580 = vld [vmem:[#allocation3 + $0xfe8] sm:$0xff]
    %v1581 = vld [vmem:[#allocation3 + $0xff0] sm:$0xff]
    %v1582 = vld [vmem:[#allocation3 + $0xff8] sm:$0xff]
    %v1583 = vld [vmem:[#allocation3 + $0x1000] sm:$0xff]
    %v1584 = vld [vmem:[#allocation3 + $0x1008] sm:$0xff]
    %v1585 = vld [vmem:[#allocation3 + $0x1010] sm:$0xff]
    %v1586 = vld [vmem:[#allocation3 + $0x1018] sm:$0xff]
    %v1587 = vld [vmem:[#allocation3 + $0x1020] sm:$0xff]
    %v1588 = vld [vmem:[#allocation3 + $0x1028] sm:$0xff]
    %v1589 = vld [vmem:[#allocation3 + $0x1030] sm:$0xff]
    %v1590 = vld [vmem:[#allocation3 + $0x1038] sm:$0xff]
    %v1591 = vld [vmem:[#allocation3 + $0x1040] sm:$0xff]
    %v1592 = vld [vmem:[#allocation3 + $0x1048] sm:$0xff]
    %v1593 = vld [vmem:[#allocation3 + $0x1050] sm:$0xff]
    %v1594 = vld [vmem:[#allocation3 + $0x1058] sm:$0xff]
    %v1595 = vld [vmem:[#allocation3 + $0x1060] sm:$0xff]
    %v1596 = vld [vmem:[#allocation3 + $0x1068] sm:$0xff]
    %v1597 = vld [vmem:[#allocation3 + $0x1070] sm:$0xff]
    %v1598 = vld [vmem:[#allocation3 + $0x1078] sm:$0xff]
    %v1599 = vld [vmem:[#allocation3 + $0x1080] sm:$0xff]
    %v1600 = vld [vmem:[#allocation3 + $0x1088] sm:$0xff]
    %v1601 = vld [vmem:[#allocation3 + $0x1090] sm:$0xff]
    %v1602 = vld [vmem:[#allocation3 + $0x1098] sm:$0xff]
    %v1603 = vld [vmem:[#allocation3 + $0x10a0] sm:$0xff]
    %v1604 = vld [vmem:[#allocation3 + $0x10a8] sm:$0xff]
    %v1605 = vld [vmem:[#allocation3 + $0x10b0] sm:$0xff]
    %v1606 = vld [vmem:[#allocation3 + $0x10b8] sm:$0xff]
    %v1607 = vld [vmem:[#allocation3 + $0x10c0] sm:$0xff]
    %v1608 = vld [vmem:[#allocation3 + $0x10c8] sm:$0xff]
    %v1609 = vld [vmem:[#allocation3 + $0x10d0] sm:$0xff]
    %v1610 = vld [vmem:[#allocation3 + $0x10d8] sm:$0xff]
    %v1611 = vld [vmem:[#allocation3 + $0x10e0] sm:$0xff]
    %v1612 = vld [vmem:[#allocation3 + $0x10e8] sm:$0xff]
    %v1613 = vld [vmem:[#allocation3 + $0x10f0] sm:$0xff]
    %v1614 = vld [vmem:[#allocation3 + $0x10f8] sm:$0xff]
    %v1615 = vld [vmem:[#allocation3 + $0x1100] sm:$0xff]
    %v1616 = vld [vmem:[#allocation3 + $0x1108] sm:$0xff]
    %v1617 = vld [vmem:[#allocation3 + $0x1110] sm:$0xff]
    %v1618 = vld [vmem:[#allocation3 + $0x1118] sm:$0xff]
    %v1619 = vld [vmem:[#allocation3 + $0x1120] sm:$0xff]
    %v1620 = vld [vmem:[#allocation3 + $0x1128] sm:$0xff]
    %v1621 = vld [vmem:[#allocation3 + $0x1130] sm:$0xff]
    %v1622 = vld [vmem:[#allocation3 + $0x1138] sm:$0xff]
    %v1623 = vld [vmem:[#allocation3 + $0x1140] sm:$0xff]
    %v1624 = vld [vmem:[#allocation3 + $0x1148] sm:$0xff]
    %v1625 = vld [vmem:[#allocation3 + $0x1150] sm:$0xff]
    %v1626 = vld [vmem:[#allocation3 + $0x1158] sm:$0xff]
    %v1627 = vld [vmem:[#allocation3 + $0x1160] sm:$0xff]
    %v1628 = vld [vmem:[#allocation3 + $0x1168] sm:$0xff]
    %v1629 = vld [vmem:[#allocation3 + $0x1170] sm:$0xff]
    %v1630 = vld [vmem:[#allocation3 + $0x1178] sm:$0xff]
    %v1631 = vld [vmem:[#allocation3 + $0x1180] sm:$0xff]
    %v1632 = vld [vmem:[#allocation3 + $0x1188] sm:$0xff]
    %v1633 = vld [vmem:[#allocation3 + $0x1190] sm:$0xff]
    %v1634 = vld [vmem:[#allocation3 + $0x1198] sm:$0xff]
    %v1635 = vld [vmem:[#allocation3 + $0x11a0] sm:$0xff]
    %v1636 = vld [vmem:[#allocation3 + $0x11a8] sm:$0xff]
    %v1637 = vld [vmem:[#allocation3 + $0x11b0] sm:$0xff]
    %v1638 = vld [vmem:[#allocation3 + $0x11b8] sm:$0xff]
    %v1639 = vld [vmem:[#allocation3 + $0x11c0] sm:$0xff]
    %v1640 = vld [vmem:[#allocation3 + $0x11c8] sm:$0xff]
    %v1641 = vld [vmem:[#allocation3 + $0x11d0] sm:$0xff]
    %v1642 = vld [vmem:[#allocation3 + $0x11d8] sm:$0xff]
    %v1643 = vld [vmem:[#allocation3 + $0x11e0] sm:$0xff]
    %v1644 = vld [vmem:[#allocation3 + $0x11e8] sm:$0xff]
    %v1645 = vld [vmem:[#allocation3 + $0x11f0] sm:$0xff]
    %v1646 = vld [vmem:[#allocation3 + $0x11f8] sm:$0xff]
    %v1647 = vld [vmem:[#allocation3 + $0x1200] sm:$0xff]
    %v1648 = vld [vmem:[#allocation3 + $0x1208] sm:$0xff]
    %v1649 = vld [vmem:[#allocation3 + $0x1210] sm:$0xff]
    %v1650 = vld [vmem:[#allocation3 + $0x1218] sm:$0xff]
    %v1651 = vld [vmem:[#allocation3 + $0x1220] sm:$0xff]
    %v1652 = vld [vmem:[#allocation3 + $0x1228] sm:$0xff]
    %v1653 = vld [vmem:[#allocation3 + $0x1230] sm:$0xff]
    %v1654 = vld [vmem:[#allocation3 + $0x1238] sm:$0xff]
    %v1655 = vld [vmem:[#allocation3 + $0x1240] sm:$0xff]
    %v1656 = vld [vmem:[#allocation3 + $0x1248] sm:$0xff]
    %v1657 = vld [vmem:[#allocation3 + $0x1250] sm:$0xff]
    %v1658 = vld [vmem:[#allocation3 + $0x1258] sm:$0xff]
    %v1659 = vld [vmem:[#allocation3 + $0x1260] sm:$0xff]
    %v1660 = vld [vmem:[#allocation3 + $0x1268] sm:$0xff]
    %v1661 = vld [vmem:[#allocation3 + $0x1270] sm:$0xff]
    %v1662 = vld [vmem:[#allocation3 + $0x1278] sm:$0xff]
    %v1663 = vld [vmem:[#allocation3 + $0x1280] sm:$0xff]
    %v1664 = vld [vmem:[#allocation3 + $0x1288] sm:$0xff]
    %v1665 = vld [vmem:[#allocation3 + $0x1290] sm:$0xff]
    %v1666 = vld [vmem:[#allocation3 + $0x1298] sm:$0xff]
    %v1667 = vld [vmem:[#allocation3 + $0x12a0] sm:$0xff]
    %v1668 = vld [vmem:[#allocation3 + $0x12a8] sm:$0xff]
    %v1669 = vld [vmem:[#allocation3 + $0x12b0] sm:$0xff]
    %v1670 = vld [vmem:[#allocation3 + $0x12b8] sm:$0xff]
    %v1671 = vld [vmem:[#allocation3 + $0x12c0] sm:$0xff]
    %v1672 = vld [vmem:[#allocation3 + $0x12c8] sm:$0xff]
    %v1673 = vld [vmem:[#allocation3 + $0x12d0] sm:$0xff]
    %v1674 = vld [vmem:[#allocation3 + $0x12d8] sm:$0xff]
    %v1675 = vld [vmem:[#allocation3 + $0x12e0] sm:$0xff]
    %v1676 = vld [vmem:[#allocation3 + $0x12e8] sm:$0xff]
    %v1677 = vld [vmem:[#allocation3 + $0x12f0] sm:$0xff]
    %v1678 = vld [vmem:[#allocation3 + $0x12f8] sm:$0xff]
    %v1679 = vld [vmem:[#allocation3 + $0x1300] sm:$0xff]
    %v1680 = vld [vmem:[#allocation3 + $0x1308] sm:$0xff]
    %v1681 = vld [vmem:[#allocation3 + $0x1310] sm:$0xff]
    %v1682 = vld [vmem:[#allocation3 + $0x1318] sm:$0xff]
    %v1683 = vld [vmem:[#allocation3 + $0x1320] sm:$0xff]
    %v1684 = vld [vmem:[#allocation3 + $0x1328] sm:$0xff]
    %v1685 = vld [vmem:[#allocation3 + $0x1330] sm:$0xff]
    %v1686 = vld [vmem:[#allocation3 + $0x1338] sm:$0xff]
    %v1687 = vld [vmem:[#allocation3 + $0x1340] sm:$0xff]
    %v1688 = vld [vmem:[#allocation3 + $0x1348] sm:$0xff]
    %v1689 = vld [vmem:[#allocation3 + $0x1350] sm:$0xff]
    %v1690 = vld [vmem:[#allocation3 + $0x1358] sm:$0xff]
    %v1691 = vld [vmem:[#allocation3 + $0x1360] sm:$0xff]
    %v1692 = vld [vmem:[#allocation3 + $0x1368] sm:$0xff]
    %v1693 = vld [vmem:[#allocation3 + $0x1370] sm:$0xff]
    %v1694 = vld [vmem:[#allocation3 + $0x1378] sm:$0xff]
    %v1695 = vld [vmem:[#allocation3 + $0x1380] sm:$0xff]
    %v1696 = vld [vmem:[#allocation3 + $0x1388] sm:$0xff]
    %v1697 = vld [vmem:[#allocation3 + $0x1390] sm:$0xff]
    %v1698 = vld [vmem:[#allocation3 + $0x1398] sm:$0xff]
    %v1699 = vld [vmem:[#allocation3 + $0x13a0] sm:$0xff]
    %v1700 = vld [vmem:[#allocation3 + $0x13a8] sm:$0xff]
    %v1701 = vld [vmem:[#allocation3 + $0x13b0] sm:$0xff]
    %v1702 = vld [vmem:[#allocation3 + $0x13b8] sm:$0xff]
    %v1703 = vld [vmem:[#allocation3 + $0x13c0] sm:$0xff]
    %v1704 = vld [vmem:[#allocation3 + $0x13c8] sm:$0xff]
    %v1705 = vld [vmem:[#allocation3 + $0x13d0] sm:$0xff]
    %v1706 = vld [vmem:[#allocation3 + $0x13d8] sm:$0xff]
    %v1707 = vld [vmem:[#allocation3 + $0x13e0] sm:$0xff]
    %v1708 = vld [vmem:[#allocation3 + $0x13e8] sm:$0xff]
    %v1709 = vld [vmem:[#allocation3 + $0x13f0] sm:$0xff]
    %v1710 = vld [vmem:[#allocation3 + $0x13f8] sm:$0xff]
    %v1711 = vld [vmem:[#allocation3 + $0x1400] sm:$0xff]
    %v1712 = vld [vmem:[#allocation3 + $0x1408] sm:$0xff]
    %v1713 = vld [vmem:[#allocation3 + $0x1410] sm:$0xff]
    %v1714 = vld [vmem:[#allocation3 + $0x1418] sm:$0xff]
    %v1715 = vld [vmem:[#allocation3 + $0x1420] sm:$0xff]
    %v1716 = vld [vmem:[#allocation3 + $0x1428] sm:$0xff]
    %v1717 = vld [vmem:[#allocation3 + $0x1430] sm:$0xff]
    %v1718 = vld [vmem:[#allocation3 + $0x1438] sm:$0xff]
    %v1719 = vld [vmem:[#allocation3 + $0x1440] sm:$0xff]
    %v1720 = vld [vmem:[#allocation3 + $0x1448] sm:$0xff]
    %v1721 = vld [vmem:[#allocation3 + $0x1450] sm:$0xff]
    %v1722 = vld [vmem:[#allocation3 + $0x1458] sm:$0xff]
    %v1723 = vld [vmem:[#allocation3 + $0x1460] sm:$0xff]
    %v1724 = vld [vmem:[#allocation3 + $0x1468] sm:$0xff]
    %v1725 = vld [vmem:[#allocation3 + $0x1470] sm:$0xff]
    %v1726 = vld [vmem:[#allocation3 + $0x1478] sm:$0xff]
    %v1727 = vld [vmem:[#allocation3 + $0x1480] sm:$0xff]
    %v1728 = vld [vmem:[#allocation3 + $0x1488] sm:$0xff]
    %v1729 = vld [vmem:[#allocation3 + $0x1490] sm:$0xff]
    %v1730 = vld [vmem:[#allocation3 + $0x1498] sm:$0xff]
    %v1731 = vld [vmem:[#allocation3 + $0x14a0] sm:$0xff]
    %v1732 = vld [vmem:[#allocation3 + $0x14a8] sm:$0xff]
    %v1733 = vld [vmem:[#allocation3 + $0x14b0] sm:$0xff]
    %v1734 = vld [vmem:[#allocation3 + $0x14b8] sm:$0xff]
    %v1735 = vld [vmem:[#allocation3 + $0x14c0] sm:$0xff]
    %v1736 = vld [vmem:[#allocation3 + $0x14c8] sm:$0xff]
    %v1737 = vld [vmem:[#allocation3 + $0x14d0] sm:$0xff]
    %v1738 = vld [vmem:[#allocation3 + $0x14d8] sm:$0xff]
    %v1739 = vld [vmem:[#allocation3 + $0x14e0] sm:$0xff]
    %v1740 = vld [vmem:[#allocation3 + $0x14e8] sm:$0xff]
    %v1741 = vld [vmem:[#allocation3 + $0x14f0] sm:$0xff]
    %v1742 = vld [vmem:[#allocation3 + $0x14f8] sm:$0xff]
    %v1743 = vld [vmem:[#allocation3 + $0x1500] sm:$0xff]
    %v1744 = vld [vmem:[#allocation3 + $0x1508] sm:$0xff]
    %v1745 = vld [vmem:[#allocation3 + $0x1510] sm:$0xff]
    %v1746 = vld [vmem:[#allocation3 + $0x1518] sm:$0xff]
    %v1747 = vld [vmem:[#allocation3 + $0x1520] sm:$0xff]
    %v1748 = vld [vmem:[#allocation3 + $0x1528] sm:$0xff]
    %v1749 = vld [vmem:[#allocation3 + $0x1530] sm:$0xff]
    %v1750 = vld [vmem:[#allocation3 + $0x1538] sm:$0xff]
    %v1751 = vld [vmem:[#allocation3 + $0x1540] sm:$0xff]
    %v1752 = vld [vmem:[#allocation3 + $0x1548] sm:$0xff]
    %v1753 = vld [vmem:[#allocation3 + $0x1550] sm:$0xff]
    %v1754 = vld [vmem:[#allocation3 + $0x1558] sm:$0xff]
    %v1755 = vld [vmem:[#allocation3 + $0x1560] sm:$0xff]
    %v1756 = vld [vmem:[#allocation3 + $0x1568] sm:$0xff]
    %v1757 = vld [vmem:[#allocation3 + $0x1570] sm:$0xff]
    %v1758 = vld [vmem:[#allocation3 + $0x1578] sm:$0xff]
    %v1759 = vld [vmem:[#allocation3 + $0x1580] sm:$0xff]
    %v1760 = vld [vmem:[#allocation3 + $0x1588] sm:$0xff]
    %v1761 = vld [vmem:[#allocation3 + $0x1590] sm:$0xff]
    %v1762 = vld [vmem:[#allocation3 + $0x1598] sm:$0xff]
    %v1763 = vld [vmem:[#allocation3 + $0x15a0] sm:$0xff]
    %v1764 = vld [vmem:[#allocation3 + $0x15a8] sm:$0xff]
    %v1765 = vld [vmem:[#allocation3 + $0x15b0] sm:$0xff]
    %v1766 = vld [vmem:[#allocation3 + $0x15b8] sm:$0xff]
    %v1767 = vld [vmem:[#allocation3 + $0x15c0] sm:$0xff]
    %v1768 = vld [vmem:[#allocation3 + $0x15c8] sm:$0xff]
    %v1769 = vld [vmem:[#allocation3 + $0x15d0] sm:$0xff]
    %v1770 = vld [vmem:[#allocation3 + $0x15d8] sm:$0xff]
    %v1771 = vld [vmem:[#allocation3 + $0x15e0] sm:$0xff]
    %v1772 = vld [vmem:[#allocation3 + $0x15e8] sm:$0xff]
    %v1773 = vld [vmem:[#allocation3 + $0x15f0] sm:$0xff]
    %v1774 = vld [vmem:[#allocation3 + $0x15f8] sm:$0xff]
    %v1775 = vld [vmem:[#allocation3 + $0x1600] sm:$0xff]
    %v1776 = vld [vmem:[#allocation3 + $0x1608] sm:$0xff]
    %v1777 = vld [vmem:[#allocation3 + $0x1610] sm:$0xff]
    %v1778 = vld [vmem:[#allocation3 + $0x1618] sm:$0xff]
    %v1779 = vld [vmem:[#allocation3 + $0x1620] sm:$0xff]
    %v1780 = vld [vmem:[#allocation3 + $0x1628] sm:$0xff]
    %v1781 = vld [vmem:[#allocation3 + $0x1630] sm:$0xff]
    %v1782 = vld [vmem:[#allocation3 + $0x1638] sm:$0xff]
    %v1783 = vld [vmem:[#allocation3 + $0x1640] sm:$0xff]
    %v1784 = vld [vmem:[#allocation3 + $0x1648] sm:$0xff]
    %v1785 = vld [vmem:[#allocation3 + $0x1650] sm:$0xff]
    %v1786 = vld [vmem:[#allocation3 + $0x1658] sm:$0xff]
    %v1787 = vld [vmem:[#allocation3 + $0x1660] sm:$0xff]
    %v1788 = vld [vmem:[#allocation3 + $0x1668] sm:$0xff]
    %v1789 = vld [vmem:[#allocation3 + $0x1670] sm:$0xff]
    %v1790 = vld [vmem:[#allocation3 + $0x1678] sm:$0xff]
    %v1791 = vld [vmem:[#allocation3 + $0x1680] sm:$0xff]
    %v1792 = vld [vmem:[#allocation3 + $0x1688] sm:$0xff]
    %v1793 = vld [vmem:[#allocation3 + $0x1690] sm:$0xff]
    %v1794 = vld [vmem:[#allocation3 + $0x1698] sm:$0xff]
    %v1795 = vld [vmem:[#allocation3 + $0x16a0] sm:$0xff]
    %v1796 = vld [vmem:[#allocation3 + $0x16a8] sm:$0xff]
    %v1797 = vld [vmem:[#allocation3 + $0x16b0] sm:$0xff]
    %v1798 = vld [vmem:[#allocation3 + $0x16b8] sm:$0xff]
    %v1799 = vld [vmem:[#allocation3 + $0x16c0] sm:$0xff]
    %v1800 = vld [vmem:[#allocation3 + $0x16c8] sm:$0xff]
    %v1801 = vld [vmem:[#allocation3 + $0x16d0] sm:$0xff]
    %v1802 = vld [vmem:[#allocation3 + $0x16d8] sm:$0xff]
    %v1803 = vld [vmem:[#allocation3 + $0x16e0] sm:$0xff]
    %v1804 = vld [vmem:[#allocation3 + $0x16e8] sm:$0xff]
    %v1805 = vld [vmem:[#allocation3 + $0x16f0] sm:$0xff]
    %v1806 = vld [vmem:[#allocation3 + $0x16f8] sm:$0xff]
    %v1807 = vld [vmem:[#allocation3 + $0x1700] sm:$0xff]
    %v1808 = vld [vmem:[#allocation3 + $0x1708] sm:$0xff]
    %v1809 = vld [vmem:[#allocation3 + $0x1710] sm:$0xff]
    %v1810 = vld [vmem:[#allocation3 + $0x1718] sm:$0xff]
    %v1811 = vld [vmem:[#allocation3 + $0x1720] sm:$0xff]
    %v1812 = vld [vmem:[#allocation3 + $0x1728] sm:$0xff]
    %v1813 = vld [vmem:[#allocation3 + $0x1730] sm:$0xff]
    %v1814 = vld [vmem:[#allocation3 + $0x1738] sm:$0xff]
    %v1815 = vld [vmem:[#allocation3 + $0x1740] sm:$0xff]
    %v1816 = vld [vmem:[#allocation3 + $0x1748] sm:$0xff]
    %v1817 = vld [vmem:[#allocation3 + $0x1750] sm:$0xff]
    %v1818 = vld [vmem:[#allocation3 + $0x1758] sm:$0xff]
    %v1819 = vld [vmem:[#allocation3 + $0x1760] sm:$0xff]
    %v1820 = vld [vmem:[#allocation3 + $0x1768] sm:$0xff]
    %v1821 = vld [vmem:[#allocation3 + $0x1770] sm:$0xff]
    %v1822 = vld [vmem:[#allocation3 + $0x1778] sm:$0xff]
    %v1823 = vld [vmem:[#allocation3 + $0x1780] sm:$0xff]
    %v1824 = vld [vmem:[#allocation3 + $0x1788] sm:$0xff]
    %v1825 = vld [vmem:[#allocation3 + $0x1790] sm:$0xff]
    %v1826 = vld [vmem:[#allocation3 + $0x1798] sm:$0xff]
    %v1827 = vld [vmem:[#allocation3 + $0x17a0] sm:$0xff]
    %v1828 = vld [vmem:[#allocation3 + $0x17a8] sm:$0xff]
    %v1829 = vld [vmem:[#allocation3 + $0x17b0] sm:$0xff]
    %v1830 = vld [vmem:[#allocation3 + $0x17b8] sm:$0xff]
    %v1831 = vld [vmem:[#allocation3 + $0x17c0] sm:$0xff]
    %v1832 = vld [vmem:[#allocation3 + $0x17c8] sm:$0xff]
    %v1833 = vld [vmem:[#allocation3 + $0x17d0] sm:$0xff]
    %v1834 = vld [vmem:[#allocation3 + $0x17d8] sm:$0xff]
    %v1835 = vld [vmem:[#allocation3 + $0x17e0] sm:$0xff]
    %v1836 = vld [vmem:[#allocation3 + $0x17e8] sm:$0xff]
    %v1837 = vld [vmem:[#allocation3 + $0x17f0] sm:$0xff]
    %v1838 = vld [vmem:[#allocation3 + $0x17f8] sm:$0xff]
    %v1839 = vld [vmem:[#allocation3 + $0x1800] sm:$0xff]
    %v1840 = vld [vmem:[#allocation3 + $0x1808] sm:$0xff]
    %v1841 = vld [vmem:[#allocation3 + $0x1810] sm:$0xff]
    %v1842 = vld [vmem:[#allocation3 + $0x1818] sm:$0xff]
    %v1843 = vld [vmem:[#allocation3 + $0x1820] sm:$0xff]
    %v1844 = vld [vmem:[#allocation3 + $0x1828] sm:$0xff]
    %v1845 = vld [vmem:[#allocation3 + $0x1830] sm:$0xff]
    %v1846 = vld [vmem:[#allocation3 + $0x1838] sm:$0xff]
    %v1847 = vld [vmem:[#allocation3 + $0x1840] sm:$0xff]
    %v1848 = vld [vmem:[#allocation3 + $0x1848] sm:$0xff]
    %v1849 = vld [vmem:[#allocation3 + $0x1850] sm:$0xff]
    %v1850 = vld [vmem:[#allocation3 + $0x1858] sm:$0xff]
    %v1851 = vld [vmem:[#allocation3 + $0x1860] sm:$0xff]
    %v1852 = vld [vmem:[#allocation3 + $0x1868] sm:$0xff]
    %v1853 = vld [vmem:[#allocation3 + $0x1870] sm:$0xff]
    %v1854 = vld [vmem:[#allocation3 + $0x1878] sm:$0xff]
    %v1855 = vld [vmem:[#allocation3 + $0x1880] sm:$0xff]
    %v1856 = vld [vmem:[#allocation3 + $0x1888] sm:$0xff]
    %v1857 = vld [vmem:[#allocation3 + $0x1890] sm:$0xff]
    %v1858 = vld [vmem:[#allocation3 + $0x1898] sm:$0xff]
    %v1859 = vld [vmem:[#allocation3 + $0x18a0] sm:$0xff]
    %v1860 = vld [vmem:[#allocation3 + $0x18a8] sm:$0xff]
    %v1861 = vld [vmem:[#allocation3 + $0x18b0] sm:$0xff]
    %v1862 = vld [vmem:[#allocation3 + $0x18b8] sm:$0xff]
    %v1863 = vld [vmem:[#allocation3 + $0x18c0] sm:$0xff]
    %v1864 = vld [vmem:[#allocation3 + $0x18c8] sm:$0xff]
    %v1865 = vld [vmem:[#allocation3 + $0x18d0] sm:$0xff]
    %v1866 = vld [vmem:[#allocation3 + $0x18d8] sm:$0xff]
    %v1867 = vld [vmem:[#allocation3 + $0x18e0] sm:$0xff]
    %v1868 = vld [vmem:[#allocation3 + $0x18e8] sm:$0xff]
    %v1869 = vld [vmem:[#allocation3 + $0x18f0] sm:$0xff]
    %v1870 = vld [vmem:[#allocation3 + $0x18f8] sm:$0xff]
    %v1871 = vld [vmem:[#allocation3 + $0x1900] sm:$0xff]
    %v1872 = vld [vmem:[#allocation3 + $0x1908] sm:$0xff]
    %v1873 = vld [vmem:[#allocation3 + $0x1910] sm:$0xff]
    %v1874 = vld [vmem:[#allocation3 + $0x1918] sm:$0xff]
    %v1875 = vld [vmem:[#allocation3 + $0x1920] sm:$0xff]
    %v1876 = vld [vmem:[#allocation3 + $0x1928] sm:$0xff]
    %v1877 = vld [vmem:[#allocation3 + $0x1930] sm:$0xff]
    %v1878 = vld [vmem:[#allocation3 + $0x1938] sm:$0xff]
    %v1879 = vld [vmem:[#allocation3 + $0x1940] sm:$0xff]
    %v1880 = vld [vmem:[#allocation3 + $0x1948] sm:$0xff]
    %v1881 = vld [vmem:[#allocation3 + $0x1950] sm:$0xff]
    %v1882 = vld [vmem:[#allocation3 + $0x1958] sm:$0xff]
    %v1883 = vld [vmem:[#allocation3 + $0x1960] sm:$0xff]
    %v1884 = vld [vmem:[#allocation3 + $0x1968] sm:$0xff]
    %v1885 = vld [vmem:[#allocation3 + $0x1970] sm:$0xff]
    %v1886 = vld [vmem:[#allocation3 + $0x1978] sm:$0xff]
    %v1887 = vld [vmem:[#allocation3 + $0x1980] sm:$0xff]
    %v1888 = vld [vmem:[#allocation3 + $0x1988] sm:$0xff]
    %v1889 = vld [vmem:[#allocation3 + $0x1990] sm:$0xff]
    %v1890 = vld [vmem:[#allocation3 + $0x1998] sm:$0xff]
    %v1891 = vld [vmem:[#allocation3 + $0x19a0] sm:$0xff]
    %v1892 = vld [vmem:[#allocation3 + $0x19a8] sm:$0xff]
    %v1893 = vld [vmem:[#allocation3 + $0x19b0] sm:$0xff]
    %v1894 = vld [vmem:[#allocation3 + $0x19b8] sm:$0xff]
    %v1895 = vld [vmem:[#allocation3 + $0x19c0] sm:$0xff]
    %v1896 = vld [vmem:[#allocation3 + $0x19c8] sm:$0xff]
    %v1897 = vld [vmem:[#allocation3 + $0x19d0] sm:$0xff]
    %v1898 = vld [vmem:[#allocation3 + $0x19d8] sm:$0xff]
    %v1899 = vld [vmem:[#allocation3 + $0x19e0] sm:$0xff]
    %v1900 = vld [vmem:[#allocation3 + $0x19e8] sm:$0xff]
    %v1901 = vld [vmem:[#allocation3 + $0x19f0] sm:$0xff]
    %v1902 = vld [vmem:[#allocation3 + $0x19f8] sm:$0xff]
    %v1903 = vld [vmem:[#allocation3 + $0x1a00] sm:$0xff]
    %v1904 = vld [vmem:[#allocation3 + $0x1a08] sm:$0xff]
    %v1905 = vld [vmem:[#allocation3 + $0x1a10] sm:$0xff]
    %v1906 = vld [vmem:[#allocation3 + $0x1a18] sm:$0xff]
    %v1907 = vld [vmem:[#allocation3 + $0x1a20] sm:$0xff]
    %v1908 = vld [vmem:[#allocation3 + $0x1a28] sm:$0xff]
    %v1909 = vld [vmem:[#allocation3 + $0x1a30] sm:$0xff]
    %v1910 = vld [vmem:[#allocation3 + $0x1a38] sm:$0xff]
    %v1911 = vld [vmem:[#allocation3 + $0x1a40] sm:$0xff]
    %v1912 = vld [vmem:[#allocation3 + $0x1a48] sm:$0xff]
    %v1913 = vld [vmem:[#allocation3 + $0x1a50] sm:$0xff]
    %v1914 = vld [vmem:[#allocation3 + $0x1a58] sm:$0xff]
    %v1915 = vld [vmem:[#allocation3 + $0x1a60] sm:$0xff]
    %v1916 = vld [vmem:[#allocation3 + $0x1a68] sm:$0xff]
    %v1917 = vld [vmem:[#allocation3 + $0x1a70] sm:$0xff]
    %v1918 = vld [vmem:[#allocation3 + $0x1a78] sm:$0xff]
    %v1919 = vld [vmem:[#allocation3 + $0x1a80] sm:$0xff]
    %v1920 = vld [vmem:[#allocation3 + $0x1a88] sm:$0xff]
    %v1921 = vld [vmem:[#allocation3 + $0x1a90] sm:$0xff]
    %v1922 = vld [vmem:[#allocation3 + $0x1a98] sm:$0xff]
    %v1923 = vld [vmem:[#allocation3 + $0x1aa0] sm:$0xff]
    %v1924 = vld [vmem:[#allocation3 + $0x1aa8] sm:$0xff]
    %v1925 = vld [vmem:[#allocation3 + $0x1ab0] sm:$0xff]
    %v1926 = vld [vmem:[#allocation3 + $0x1ab8] sm:$0xff]
    %v1927 = vld [vmem:[#allocation3 + $0x1ac0] sm:$0xff]
    %v1928 = vld [vmem:[#allocation3 + $0x1ac8] sm:$0xff]
    %v1929 = vld [vmem:[#allocation3 + $0x1ad0] sm:$0xff]
    %v1930 = vld [vmem:[#allocation3 + $0x1ad8] sm:$0xff]
    %v1931 = vld [vmem:[#allocation3 + $0x1ae0] sm:$0xff]
    %v1932 = vld [vmem:[#allocation3 + $0x1ae8] sm:$0xff]
    %v1933 = vld [vmem:[#allocation3 + $0x1af0] sm:$0xff]
    %v1934 = vld [vmem:[#allocation3 + $0x1af8] sm:$0xff]
    %v1935 = vld [vmem:[#allocation3 + $0x1b00] sm:$0xff]
    %v1936 = vld [vmem:[#allocation3 + $0x1b08] sm:$0xff]
    %v1937 = vld [vmem:[#allocation3 + $0x1b10] sm:$0xff]
    %v1938 = vld [vmem:[#allocation3 + $0x1b18] sm:$0xff]
    %v1939 = vld [vmem:[#allocation3 + $0x1b20] sm:$0xff]
    %v1940 = vld [vmem:[#allocation3 + $0x1b28] sm:$0xff]
    %v1941 = vld [vmem:[#allocation3 + $0x1b30] sm:$0xff]
    %v1942 = vld [vmem:[#allocation3 + $0x1b38] sm:$0xff]
    %v1943 = vld [vmem:[#allocation3 + $0x1b40] sm:$0xff]
    %v1944 = vld [vmem:[#allocation3 + $0x1b48] sm:$0xff]
    %v1945 = vld [vmem:[#allocation3 + $0x1b50] sm:$0xff]
    %v1946 = vld [vmem:[#allocation3 + $0x1b58] sm:$0xff]
    %v1947 = vld [vmem:[#allocation3 + $0x1b60] sm:$0xff]
    %v1948 = vld [vmem:[#allocation3 + $0x1b68] sm:$0xff]
    %v1949 = vld [vmem:[#allocation3 + $0x1b70] sm:$0xff]
    %v1950 = vld [vmem:[#allocation3 + $0x1b78] sm:$0xff]
    %v1951 = vld [vmem:[#allocation3 + $0x1b80] sm:$0xff]
    %v1952 = vld [vmem:[#allocation3 + $0x1b88] sm:$0xff]
    %v1953 = vld [vmem:[#allocation3 + $0x1b90] sm:$0xff]
    %v1954 = vld [vmem:[#allocation3 + $0x1b98] sm:$0xff]
    %v1955 = vld [vmem:[#allocation3 + $0x1ba0] sm:$0xff]
    %v1956 = vld [vmem:[#allocation3 + $0x1ba8] sm:$0xff]
    %v1957 = vld [vmem:[#allocation3 + $0x1bb0] sm:$0xff]
    %v1958 = vld [vmem:[#allocation3 + $0x1bb8] sm:$0xff]
    %v1959 = vld [vmem:[#allocation3 + $0x1bc0] sm:$0xff]
    %v1960 = vld [vmem:[#allocation3 + $0x1bc8] sm:$0xff]
    %v1961 = vld [vmem:[#allocation3 + $0x1bd0] sm:$0xff]
    %v1962 = vld [vmem:[#allocation3 + $0x1bd8] sm:$0xff]
    %v1963 = vld [vmem:[#allocation3 + $0x1be0] sm:$0xff]
    %v1964 = vld [vmem:[#allocation3 + $0x1be8] sm:$0xff]
    %v1965 = vld [vmem:[#allocation3 + $0x1bf0] sm:$0xff]
    %v1966 = vld [vmem:[#allocation3 + $0x1bf8] sm:$0xff]
    %v1967 = vld [vmem:[#allocation3 + $0x1c00] sm:$0xff]
    %v1968 = vld [vmem:[#allocation3 + $0x1c08] sm:$0xff]
    %v1969 = vld [vmem:[#allocation3 + $0x1c10] sm:$0xff]
    %v1970 = vld [vmem:[#allocation3 + $0x1c18] sm:$0xff]
    %v1971 = vld [vmem:[#allocation3 + $0x1c20] sm:$0xff]
    %v1972 = vld [vmem:[#allocation3 + $0x1c28] sm:$0xff]
    %v1973 = vld [vmem:[#allocation3 + $0x1c30] sm:$0xff]
    %v1974 = vld [vmem:[#allocation3 + $0x1c38] sm:$0xff]
    %v1975 = vld [vmem:[#allocation3 + $0x1c40] sm:$0xff]
    %v1976 = vld [vmem:[#allocation3 + $0x1c48] sm:$0xff]
    %v1977 = vld [vmem:[#allocation3 + $0x1c50] sm:$0xff]
    %v1978 = vld [vmem:[#allocation3 + $0x1c58] sm:$0xff]
    %v1979 = vld [vmem:[#allocation3 + $0x1c60] sm:$0xff]
    %v1980 = vld [vmem:[#allocation3 + $0x1c68] sm:$0xff]
    %v1981 = vld [vmem:[#allocation3 + $0x1c70] sm:$0xff]
    %v1982 = vld [vmem:[#allocation3 + $0x1c78] sm:$0xff]
    %v1983 = vld [vmem:[#allocation3 + $0x1c80] sm:$0xff]
    %v1984 = vld [vmem:[#allocation3 + $0x1c88] sm:$0xff]
    %v1985 = vld [vmem:[#allocation3 + $0x1c90] sm:$0xff]
    %v1986 = vld [vmem:[#allocation3 + $0x1c98] sm:$0xff]
    %v1987 = vld [vmem:[#allocation3 + $0x1ca0] sm:$0xff]
    %v1988 = vld [vmem:[#allocation3 + $0x1ca8] sm:$0xff]
    %v1989 = vld [vmem:[#allocation3 + $0x1cb0] sm:$0xff]
    %v1990 = vld [vmem:[#allocation3 + $0x1cb8] sm:$0xff]
    %v1991 = vld [vmem:[#allocation3 + $0x1cc0] sm:$0xff]
    %v1992 = vld [vmem:[#allocation3 + $0x1cc8] sm:$0xff]
    %v1993 = vld [vmem:[#allocation3 + $0x1cd0] sm:$0xff]
    %v1994 = vld [vmem:[#allocation3 + $0x1cd8] sm:$0xff]
    %v1995 = vld [vmem:[#allocation3 + $0x1ce0] sm:$0xff]
    %v1996 = vld [vmem:[#allocation3 + $0x1ce8] sm:$0xff]
    %v1997 = vld [vmem:[#allocation3 + $0x1cf0] sm:$0xff]
    %v1998 = vld [vmem:[#allocation3 + $0x1cf8] sm:$0xff]
    %v1999 = vld [vmem:[#allocation3 + $0x1d00] sm:$0xff]
    %v2000 = vld [vmem:[#allocation3 + $0x1d08] sm:$0xff]
    %v2001 = vld [vmem:[#allocation3 + $0x1d10] sm:$0xff]
    %v2002 = vld [vmem:[#allocation3 + $0x1d18] sm:$0xff]
    %v2003 = vld [vmem:[#allocation3 + $0x1d20] sm:$0xff]
    %v2004 = vld [vmem:[#allocation3 + $0x1d28] sm:$0xff]
    %v2005 = vld [vmem:[#allocation3 + $0x1d30] sm:$0xff]
    %v2006 = vld [vmem:[#allocation3 + $0x1d38] sm:$0xff]
    %v2007 = vld [vmem:[#allocation3 + $0x1d40] sm:$0xff]
    %v2008 = vld [vmem:[#allocation3 + $0x1d48] sm:$0xff]
    %v2009 = vld [vmem:[#allocation3 + $0x1d50] sm:$0xff]
    %v2010 = vld [vmem:[#allocation3 + $0x1d58] sm:$0xff]
    %v2011 = vld [vmem:[#allocation3 + $0x1d60] sm:$0xff]
    %v2012 = vld [vmem:[#allocation3 + $0x1d68] sm:$0xff]
    %v2013 = vld [vmem:[#allocation3 + $0x1d70] sm:$0xff]
    %v2014 = vld [vmem:[#allocation3 + $0x1d78] sm:$0xff]
    %v2015 = vld [vmem:[#allocation3 + $0x1d80] sm:$0xff]
    %v2016 = vld [vmem:[#allocation3 + $0x1d88] sm:$0xff]
    %v2017 = vld [vmem:[#allocation3 + $0x1d90] sm:$0xff]
    %v2018 = vld [vmem:[#allocation3 + $0x1d98] sm:$0xff]
    %v2019 = vld [vmem:[#allocation3 + $0x1da0] sm:$0xff]
    %v2020 = vld [vmem:[#allocation3 + $0x1da8] sm:$0xff]
    %v2021 = vld [vmem:[#allocation3 + $0x1db0] sm:$0xff]
    %v2022 = vld [vmem:[#allocation3 + $0x1db8] sm:$0xff]
    %v2023 = vld [vmem:[#allocation3 + $0x1dc0] sm:$0xff]
    %v2024 = vld [vmem:[#allocation3 + $0x1dc8] sm:$0xff]
    %v2025 = vld [vmem:[#allocation3 + $0x1dd0] sm:$0xff]
    %v2026 = vld [vmem:[#allocation3 + $0x1dd8] sm:$0xff]
    %v2027 = vld [vmem:[#allocation3 + $0x1de0] sm:$0xff]
    %v2028 = vld [vmem:[#allocation3 + $0x1de8] sm:$0xff]
    %v2029 = vld [vmem:[#allocation3 + $0x1df0] sm:$0xff]
    %v2030 = vld [vmem:[#allocation3 + $0x1df8] sm:$0xff]
    %v2031 = vld [vmem:[#allocation3 + $0x1e00] sm:$0xff]
    %v2032 = vld [vmem:[#allocation3 + $0x1e08] sm:$0xff]
    %v2033 = vld [vmem:[#allocation3 + $0x1e10] sm:$0xff]
    %v2034 = vld [vmem:[#allocation3 + $0x1e18] sm:$0xff]
    %v2035 = vld [vmem:[#allocation3 + $0x1e20] sm:$0xff]
    %v2036 = vld [vmem:[#allocation3 + $0x1e28] sm:$0xff]
    %v2037 = vld [vmem:[#allocation3 + $0x1e30] sm:$0xff]
    %v2038 = vld [vmem:[#allocation3 + $0x1e38] sm:$0xff]
    %v2039 = vld [vmem:[#allocation3 + $0x1e40] sm:$0xff]
    %v2040 = vld [vmem:[#allocation3 + $0x1e48] sm:$0xff]
    %v2041 = vld [vmem:[#allocation3 + $0x1e50] sm:$0xff]
    %v2042 = vld [vmem:[#allocation3 + $0x1e58] sm:$0xff]
    %v2043 = vld [vmem:[#allocation3 + $0x1e60] sm:$0xff]
    %v2044 = vld [vmem:[#allocation3 + $0x1e68] sm:$0xff]
    %v2045 = vld [vmem:[#allocation3 + $0x1e70] sm:$0xff]
    %v2046 = vld [vmem:[#allocation3 + $0x1e78] sm:$0xff]
    %v2047 = vld [vmem:[#allocation3 + $0x1e80] sm:$0xff]
    %v2048 = vld [vmem:[#allocation3 + $0x1e88] sm:$0xff]
    %v2049 = vld [vmem:[#allocation3 + $0x1e90] sm:$0xff]
    %v2050 = vld [vmem:[#allocation3 + $0x1e98] sm:$0xff]
    %v2051 = vld [vmem:[#allocation3 + $0x1ea0] sm:$0xff]
    %v2052 = vld [vmem:[#allocation3 + $0x1ea8] sm:$0xff]
    %v2053 = vld [vmem:[#allocation3 + $0x1eb0] sm:$0xff]
    %v2054 = vld [vmem:[#allocation3 + $0x1eb8] sm:$0xff]
    %v2055 = vld [vmem:[#allocation3 + $0x1ec0] sm:$0xff]
    %v2056 = vld [vmem:[#allocation3 + $0x1ec8] sm:$0xff]
    %v2057 = vld [vmem:[#allocation3 + $0x1ed0] sm:$0xff]
    %v2058 = vld [vmem:[#allocation3 + $0x1ed8] sm:$0xff]
    %v2059 = vld [vmem:[#allocation3 + $0x1ee0] sm:$0xff]
    %v2060 = vld [vmem:[#allocation3 + $0x1ee8] sm:$0xff]
    %v2061 = vld [vmem:[#allocation3 + $0x1ef0] sm:$0xff]
    %v2062 = vld [vmem:[#allocation3 + $0x1ef8] sm:$0xff]
    %v2063 = vld [vmem:[#allocation3 + $0x1f00] sm:$0xff]
    %v2064 = vld [vmem:[#allocation3 + $0x1f08] sm:$0xff]
    %v2065 = vld [vmem:[#allocation3 + $0x1f10] sm:$0xff]
    %v2066 = vld [vmem:[#allocation3 + $0x1f18] sm:$0xff]
    %v2067 = vld [vmem:[#allocation3 + $0x1f20] sm:$0xff]
    %v2068 = vld [vmem:[#allocation3 + $0x1f28] sm:$0xff]
    %v2069 = vld [vmem:[#allocation3 + $0x1f30] sm:$0xff]
    %v2070 = vld [vmem:[#allocation3 + $0x1f38] sm:$0xff]
    %v2071 = vld [vmem:[#allocation3 + $0x1f40] sm:$0xff]
    %v2072 = vld [vmem:[#allocation3 + $0x1f48] sm:$0xff]
    %v2073 = vld [vmem:[#allocation3 + $0x1f50] sm:$0xff]
    %v2074 = vld [vmem:[#allocation3 + $0x1f58] sm:$0xff]
    %v2075 = vld [vmem:[#allocation3 + $0x1f60] sm:$0xff]
    %v2076 = vld [vmem:[#allocation3 + $0x1f68] sm:$0xff]
    %v2077 = vld [vmem:[#allocation3 + $0x1f70] sm:$0xff]
    %v2078 = vld [vmem:[#allocation3 + $0x1f78] sm:$0xff]
    %v2079 = vld [vmem:[#allocation3 + $0x1f80] sm:$0xff]
    %v2080 = vld [vmem:[#allocation3 + $0x1f88] sm:$0xff]
    %v2081 = vld [vmem:[#allocation3 + $0x1f90] sm:$0xff]
    %v2082 = vld [vmem:[#allocation3 + $0x1f98] sm:$0xff]
    %v2083 = vld [vmem:[#allocation3 + $0x1fa0] sm:$0xff]
    %v2084 = vld [vmem:[#allocation3 + $0x1fa8] sm:$0xff]
    %v2085 = vld [vmem:[#allocation3 + $0x1fb0] sm:$0xff]
    %v2086 = vld [vmem:[#allocation3 + $0x1fb8] sm:$0xff]
    %v2087 = vld [vmem:[#allocation3 + $0x1fc0] sm:$0xff]
    %v2088 = vld [vmem:[#allocation3 + $0x1fc8] sm:$0xff]
    %v2089 = vld [vmem:[#allocation3 + $0x1fd0] sm:$0xff]
    %v2090 = vld [vmem:[#allocation3 + $0x1fd8] sm:$0xff]
    %v2091 = vld [vmem:[#allocation3 + $0x1fe0] sm:$0xff]
    %v2092 = vld [vmem:[#allocation3 + $0x1fe8] sm:$0xff]
    %v2093 = vld [vmem:[#allocation3 + $0x1ff0] sm:$0xff]
    %v2094 = vld [vmem:[#allocation3 + $0x1ff8] sm:$0xff]
    %v2097 = vcombine.high %v1069, %v1069
    %v2099 = vunpack.c.l.s4 1966171168
    %v2100 = vunpack.c.0.s8 %v2099
    %v2101 = vlaneseq
    %v2102 = vshrl.u32 %v2101, 7
    %v2103 = vsub.s32 %v2100, %v2102
    %v2104 = vrot.slane %v1069, %v2103
    %v2106 = vunpack.c.l.s4 1966171168
    %v2107 = vunpack.c.0.s8 %v2106
    %v2108 = vlaneseq
    %v2109 = vshrl.u32 %v2108, 7
    %v2110 = vsub.s32 %v2107, %v2109
    %v2111 = vrot.slane %v2097, %v2110
    %v2112 = vcombine.high %v2104, %v2104
    %v2113 = vcombine.high %v2111, %v2111
    %v2115 = vunpack.c.l.s4 1966171168
    %v2116 = vunpack.c.0.s8 %v2115
    %v2117 = vlaneseq
    %v2118 = vshrl.u32 %v2117, 7
    %v2119 = vsub.s32 %v2116, %v2118
    %v2120 = vrot.slane %v2104, %v2119
    %v2122 = vunpack.c.l.s4 1966171168
    %v2123 = vunpack.c.0.s8 %v2122
    %v2124 = vlaneseq
    %v2125 = vshrl.u32 %v2124, 7
    %v2126 = vsub.s32 %v2123, %v2125
    %v2127 = vrot.slane %v2111, %v2126
    %v2129 = vunpack.c.l.s4 1966171168
    %v2130 = vunpack.c.0.s8 %v2129
    %v2131 = vlaneseq
    %v2132 = vshrl.u32 %v2131, 7
    %v2133 = vsub.s32 %v2130, %v2132
    %v2134 = vrot.slane %v2112, %v2133
    %v2136 = vunpack.c.l.s4 1966171168
    %v2137 = vunpack.c.0.s8 %v2136
    %v2138 = vlaneseq
    %v2139 = vshrl.u32 %v2138, 7
    %v2140 = vsub.s32 %v2137, %v2139
    %v2141 = vrot.slane %v2113, %v2140
    %v2142 = vcombine.high %v2120, %v2120
    %v2143 = vcombine.high %v2127, %v2127
    %v2144 = vcombine.high %v2134, %v2134
    %v2145 = vcombine.high %v2141, %v2141
    %v2146 = vcombine.high %v1070, %v1070
    %v2148 = vunpack.c.l.s4 1966171168
    %v2149 = vunpack.c.0.s8 %v2148
    %v2150 = vlaneseq
    %v2151 = vshrl.u32 %v2150, 7
    %v2152 = vsub.s32 %v2149, %v2151
    %v2153 = vrot.slane %v1070, %v2152
    %v2155 = vunpack.c.l.s4 1966171168
    %v2156 = vunpack.c.0.s8 %v2155
    %v2157 = vlaneseq
    %v2158 = vshrl.u32 %v2157, 7
    %v2159 = vsub.s32 %v2156, %v2158
    %v2160 = vrot.slane %v2146, %v2159
    %v2161 = vcombine.high %v2153, %v2153
    %v2162 = vcombine.high %v2160, %v2160
    %v2164 = vunpack.c.l.s4 1966171168
    %v2165 = vunpack.c.0.s8 %v2164
    %v2166 = vlaneseq
    %v2167 = vshrl.u32 %v2166, 7
    %v2168 = vsub.s32 %v2165, %v2167
    %v2169 = vrot.slane %v2153, %v2168
    %v2171 = vunpack.c.l.s4 1966171168
    %v2172 = vunpack.c.0.s8 %v2171
    %v2173 = vlaneseq
    %v2174 = vshrl.u32 %v2173, 7
    %v2175 = vsub.s32 %v2172, %v2174
    %v2176 = vrot.slane %v2160, %v2175
    %v2178 = vunpack.c.l.s4 1966171168
    %v2179 = vunpack.c.0.s8 %v2178
    %v2180 = vlaneseq
    %v2181 = vshrl.u32 %v2180, 7
    %v2182 = vsub.s32 %v2179, %v2181
    %v2183 = vrot.slane %v2161, %v2182
    %v2185 = vunpack.c.l.s4 1966171168
    %v2186 = vunpack.c.0.s8 %v2185
    %v2187 = vlaneseq
    %v2188 = vshrl.u32 %v2187, 7
    %v2189 = vsub.s32 %v2186, %v2188
    %v2190 = vrot.slane %v2162, %v2189
    %v2191 = vcombine.high %v2169, %v2169
    %v2192 = vcombine.high %v2176, %v2176
    %v2193 = vcombine.high %v2183, %v2183
    %v2194 = vcombine.high %v2190, %v2190
    %v3235 = vunpack.c.l.b16 %v1071
    %v3236 = vunpack.c.h.b16 %v1071
    %v3237 = vunpack.c.l.b16 %v1072
    %v3238 = vunpack.c.h.b16 %v1072
    %v3239 = vunpack.c.l.b16 %v1073
    %v3240 = vunpack.c.h.b16 %v1073
    %v3241 = vunpack.c.l.b16 %v1074
    %v3242 = vunpack.c.h.b16 %v1074
    %v3243 = vunpack.c.l.b16 %v1075
    %v3244 = vunpack.c.h.b16 %v1075
    %v3245 = vunpack.c.l.b16 %v1076
    %v3246 = vunpack.c.h.b16 %v1076
    %v3247 = vunpack.c.l.b16 %v1077
    %v3248 = vunpack.c.h.b16 %v1077
    %v3249 = vunpack.c.l.b16 %v1078
    %v3250 = vunpack.c.h.b16 %v1078
    %v3251 = vunpack.c.l.b16 %v1079
    %v3252 = vunpack.c.h.b16 %v1079
    %v3253 = vunpack.c.l.b16 %v1080
    %v3254 = vunpack.c.h.b16 %v1080
    %v3255 = vunpack.c.l.b16 %v1081
    %v3256 = vunpack.c.h.b16 %v1081
    %v3257 = vunpack.c.l.b16 %v1082
    %v3258 = vunpack.c.h.b16 %v1082
    %v3259 = vunpack.c.l.b16 %v1083
    %v3260 = vunpack.c.h.b16 %v1083
    %v3261 = vunpack.c.l.b16 %v1084
    %v3262 = vunpack.c.h.b16 %v1084
    %v3263 = vunpack.c.l.b16 %v1085
    %v3264 = vunpack.c.h.b16 %v1085
    %v3265 = vunpack.c.l.b16 %v1086
    %v3266 = vunpack.c.h.b16 %v1086
    %v3267 = vunpack.c.l.b16 %v1087
    %v3268 = vunpack.c.h.b16 %v1087
    %v3269 = vunpack.c.l.b16 %v1088
    %v3270 = vunpack.c.h.b16 %v1088
    %v3271 = vunpack.c.l.b16 %v1089
    %v3272 = vunpack.c.h.b16 %v1089
    %v3273 = vunpack.c.l.b16 %v1090
    %v3274 = vunpack.c.h.b16 %v1090
    %v3275 = vunpack.c.l.b16 %v1091
    %v3276 = vunpack.c.h.b16 %v1091
    %v3277 = vunpack.c.l.b16 %v1092
    %v3278 = vunpack.c.h.b16 %v1092
    %v3279 = vunpack.c.l.b16 %v1093
    %v3280 = vunpack.c.h.b16 %v1093
    %v3281 = vunpack.c.l.b16 %v1094
    %v3282 = vunpack.c.h.b16 %v1094
    %v3283 = vunpack.c.l.b16 %v1095
    %v3284 = vunpack.c.h.b16 %v1095
    %v3285 = vunpack.c.l.b16 %v1096
    %v3286 = vunpack.c.h.b16 %v1096
    %v3287 = vunpack.c.l.b16 %v1097
    %v3288 = vunpack.c.h.b16 %v1097
    %v3289 = vunpack.c.l.b16 %v1098
    %v3290 = vunpack.c.h.b16 %v1098
    %v3291 = vunpack.c.l.b16 %v1099
    %v3292 = vunpack.c.h.b16 %v1099
    %v3293 = vunpack.c.l.b16 %v1100
    %v3294 = vunpack.c.h.b16 %v1100
    %v3295 = vunpack.c.l.b16 %v1101
    %v3296 = vunpack.c.h.b16 %v1101
    %v3297 = vunpack.c.l.b16 %v1102
    %v3298 = vunpack.c.h.b16 %v1102
    %v3299 = vunpack.c.l.b16 %v1103
    %v3300 = vunpack.c.h.b16 %v1103
    %v3301 = vunpack.c.l.b16 %v1104
    %v3302 = vunpack.c.h.b16 %v1104
    %v3303 = vunpack.c.l.b16 %v1105
    %v3304 = vunpack.c.h.b16 %v1105
    %v3305 = vunpack.c.l.b16 %v1106
    %v3306 = vunpack.c.h.b16 %v1106
    %v3307 = vunpack.c.l.b16 %v1107
    %v3308 = vunpack.c.h.b16 %v1107
    %v3309 = vunpack.c.l.b16 %v1108
    %v3310 = vunpack.c.h.b16 %v1108
    %v3311 = vunpack.c.l.b16 %v1109
    %v3312 = vunpack.c.h.b16 %v1109
    %v3313 = vunpack.c.l.b16 %v1110
    %v3314 = vunpack.c.h.b16 %v1110
    %v3315 = vunpack.c.l.b16 %v1111
    %v3316 = vunpack.c.h.b16 %v1111
    %v3317 = vunpack.c.l.b16 %v1112
    %v3318 = vunpack.c.h.b16 %v1112
    %v3319 = vunpack.c.l.b16 %v1113
    %v3320 = vunpack.c.h.b16 %v1113
    %v3321 = vunpack.c.l.b16 %v1114
    %v3322 = vunpack.c.h.b16 %v1114
    %v3323 = vunpack.c.l.b16 %v1115
    %v3324 = vunpack.c.h.b16 %v1115
    %v3325 = vunpack.c.l.b16 %v1116
    %v3326 = vunpack.c.h.b16 %v1116
    %v3327 = vunpack.c.l.b16 %v1117
    %v3328 = vunpack.c.h.b16 %v1117
    %v3329 = vunpack.c.l.b16 %v1118
    %v3330 = vunpack.c.h.b16 %v1118
    %v3331 = vunpack.c.l.b16 %v1119
    %v3332 = vunpack.c.h.b16 %v1119
    %v3333 = vunpack.c.l.b16 %v1120
    %v3334 = vunpack.c.h.b16 %v1120
    %v3335 = vunpack.c.l.b16 %v1121
    %v3336 = vunpack.c.h.b16 %v1121
    %v3337 = vunpack.c.l.b16 %v1122
    %v3338 = vunpack.c.h.b16 %v1122
    %v3339 = vunpack.c.l.b16 %v1123
    %v3340 = vunpack.c.h.b16 %v1123
    %v3341 = vunpack.c.l.b16 %v1124
    %v3342 = vunpack.c.h.b16 %v1124
    %v3343 = vunpack.c.l.b16 %v1125
    %v3344 = vunpack.c.h.b16 %v1125
    %v3345 = vunpack.c.l.b16 %v1126
    %v3346 = vunpack.c.h.b16 %v1126
    %v3347 = vunpack.c.l.b16 %v1127
    %v3348 = vunpack.c.h.b16 %v1127
    %v3349 = vunpack.c.l.b16 %v1128
    %v3350 = vunpack.c.h.b16 %v1128
    %v3351 = vunpack.c.l.b16 %v1129
    %v3352 = vunpack.c.h.b16 %v1129
    %v3353 = vunpack.c.l.b16 %v1130
    %v3354 = vunpack.c.h.b16 %v1130
    %v3355 = vunpack.c.l.b16 %v1131
    %v3356 = vunpack.c.h.b16 %v1131
    %v3357 = vunpack.c.l.b16 %v1132
    %v3358 = vunpack.c.h.b16 %v1132
    %v3359 = vunpack.c.l.b16 %v1133
    %v3360 = vunpack.c.h.b16 %v1133
    %v3361 = vunpack.c.l.b16 %v1134
    %v3362 = vunpack.c.h.b16 %v1134
    %v3363 = vunpack.c.l.b16 %v1135
    %v3364 = vunpack.c.h.b16 %v1135
    %v3365 = vunpack.c.l.b16 %v1136
    %v3366 = vunpack.c.h.b16 %v1136
    %v3367 = vunpack.c.l.b16 %v1137
    %v3368 = vunpack.c.h.b16 %v1137
    %v3369 = vunpack.c.l.b16 %v1138
    %v3370 = vunpack.c.h.b16 %v1138
    %v3371 = vunpack.c.l.b16 %v1139
    %v3372 = vunpack.c.h.b16 %v1139
    %v3373 = vunpack.c.l.b16 %v1140
    %v3374 = vunpack.c.h.b16 %v1140
    %v3375 = vunpack.c.l.b16 %v1141
    %v3376 = vunpack.c.h.b16 %v1141
    %v3377 = vunpack.c.l.b16 %v1142
    %v3378 = vunpack.c.h.b16 %v1142
    %v3379 = vunpack.c.l.b16 %v1143
    %v3380 = vunpack.c.h.b16 %v1143
    %v3381 = vunpack.c.l.b16 %v1144
    %v3382 = vunpack.c.h.b16 %v1144
    %v3383 = vunpack.c.l.b16 %v1145
    %v3384 = vunpack.c.h.b16 %v1145
    %v3385 = vunpack.c.l.b16 %v1146
    %v3386 = vunpack.c.h.b16 %v1146
    %v3387 = vunpack.c.l.b16 %v1147
    %v3388 = vunpack.c.h.b16 %v1147
    %v3389 = vunpack.c.l.b16 %v1148
    %v3390 = vunpack.c.h.b16 %v1148
    %v3391 = vunpack.c.l.b16 %v1149
    %v3392 = vunpack.c.h.b16 %v1149
    %v3393 = vunpack.c.l.b16 %v1150
    %v3394 = vunpack.c.h.b16 %v1150
    %v3395 = vunpack.c.l.b16 %v1151
    %v3396 = vunpack.c.h.b16 %v1151
    %v3397 = vunpack.c.l.b16 %v1152
    %v3398 = vunpack.c.h.b16 %v1152
    %v3399 = vunpack.c.l.b16 %v1153
    %v3400 = vunpack.c.h.b16 %v1153
    %v3401 = vunpack.c.l.b16 %v1154
    %v3402 = vunpack.c.h.b16 %v1154
    %v3403 = vunpack.c.l.b16 %v1155
    %v3404 = vunpack.c.h.b16 %v1155
    %v3405 = vunpack.c.l.b16 %v1156
    %v3406 = vunpack.c.h.b16 %v1156
    %v3407 = vunpack.c.l.b16 %v1157
    %v3408 = vunpack.c.h.b16 %v1157
    %v3409 = vunpack.c.l.b16 %v1158
    %v3410 = vunpack.c.h.b16 %v1158
    %v3411 = vunpack.c.l.b16 %v1159
    %v3412 = vunpack.c.h.b16 %v1159
    %v3413 = vunpack.c.l.b16 %v1160
    %v3414 = vunpack.c.h.b16 %v1160
    %v3415 = vunpack.c.l.b16 %v1161
    %v3416 = vunpack.c.h.b16 %v1161
    %v3417 = vunpack.c.l.b16 %v1162
    %v3418 = vunpack.c.h.b16 %v1162
    %v3419 = vunpack.c.l.b16 %v1163
    %v3420 = vunpack.c.h.b16 %v1163
    %v3421 = vunpack.c.l.b16 %v1164
    %v3422 = vunpack.c.h.b16 %v1164
    %v3423 = vunpack.c.l.b16 %v1165
    %v3424 = vunpack.c.h.b16 %v1165
    %v3425 = vunpack.c.l.b16 %v1166
    %v3426 = vunpack.c.h.b16 %v1166
    %v3427 = vunpack.c.l.b16 %v1167
    %v3428 = vunpack.c.h.b16 %v1167
    %v3429 = vunpack.c.l.b16 %v1168
    %v3430 = vunpack.c.h.b16 %v1168
    %v3431 = vunpack.c.l.b16 %v1169
    %v3432 = vunpack.c.h.b16 %v1169
    %v3433 = vunpack.c.l.b16 %v1170
    %v3434 = vunpack.c.h.b16 %v1170
    %v3435 = vunpack.c.l.b16 %v1171
    %v3436 = vunpack.c.h.b16 %v1171
    %v3437 = vunpack.c.l.b16 %v1172
    %v3438 = vunpack.c.h.b16 %v1172
    %v3439 = vunpack.c.l.b16 %v1173
    %v3440 = vunpack.c.h.b16 %v1173
    %v3441 = vunpack.c.l.b16 %v1174
    %v3442 = vunpack.c.h.b16 %v1174
    %v3443 = vunpack.c.l.b16 %v1175
    %v3444 = vunpack.c.h.b16 %v1175
    %v3445 = vunpack.c.l.b16 %v1176
    %v3446 = vunpack.c.h.b16 %v1176
    %v3447 = vunpack.c.l.b16 %v1177
    %v3448 = vunpack.c.h.b16 %v1177
    %v3449 = vunpack.c.l.b16 %v1178
    %v3450 = vunpack.c.h.b16 %v1178
    %v3451 = vunpack.c.l.b16 %v1179
    %v3452 = vunpack.c.h.b16 %v1179
    %v3453 = vunpack.c.l.b16 %v1180
    %v3454 = vunpack.c.h.b16 %v1180
    %v3455 = vunpack.c.l.b16 %v1181
    %v3456 = vunpack.c.h.b16 %v1181
    %v3457 = vunpack.c.l.b16 %v1182
    %v3458 = vunpack.c.h.b16 %v1182
    %v3459 = vunpack.c.l.b16 %v1183
    %v3460 = vunpack.c.h.b16 %v1183
    %v3461 = vunpack.c.l.b16 %v1184
    %v3462 = vunpack.c.h.b16 %v1184
    %v3463 = vunpack.c.l.b16 %v1185
    %v3464 = vunpack.c.h.b16 %v1185
    %v3465 = vunpack.c.l.b16 %v1186
    %v3466 = vunpack.c.h.b16 %v1186
    %v3467 = vunpack.c.l.b16 %v1187
    %v3468 = vunpack.c.h.b16 %v1187
    %v3469 = vunpack.c.l.b16 %v1188
    %v3470 = vunpack.c.h.b16 %v1188
    %v3471 = vunpack.c.l.b16 %v1189
    %v3472 = vunpack.c.h.b16 %v1189
    %v3473 = vunpack.c.l.b16 %v1190
    %v3474 = vunpack.c.h.b16 %v1190
    %v3475 = vunpack.c.l.b16 %v1191
    %v3476 = vunpack.c.h.b16 %v1191
    %v3477 = vunpack.c.l.b16 %v1192
    %v3478 = vunpack.c.h.b16 %v1192
    %v3479 = vunpack.c.l.b16 %v1193
    %v3480 = vunpack.c.h.b16 %v1193
    %v3481 = vunpack.c.l.b16 %v1194
    %v3482 = vunpack.c.h.b16 %v1194
    %v3483 = vunpack.c.l.b16 %v1195
    %v3484 = vunpack.c.h.b16 %v1195
    %v3485 = vunpack.c.l.b16 %v1196
    %v3486 = vunpack.c.h.b16 %v1196
    %v3487 = vunpack.c.l.b16 %v1197
    %v3488 = vunpack.c.h.b16 %v1197
    %v3489 = vunpack.c.l.b16 %v1198
    %v3490 = vunpack.c.h.b16 %v1198
    %v3491 = vunpack.c.l.b16 %v1199
    %v3492 = vunpack.c.h.b16 %v1199
    %v3493 = vunpack.c.l.b16 %v1200
    %v3494 = vunpack.c.h.b16 %v1200
    %v3495 = vunpack.c.l.b16 %v1201
    %v3496 = vunpack.c.h.b16 %v1201
    %v3497 = vunpack.c.l.b16 %v1202
    %v3498 = vunpack.c.h.b16 %v1202
    %v3499 = vunpack.c.l.b16 %v1203
    %v3500 = vunpack.c.h.b16 %v1203
    %v3501 = vunpack.c.l.b16 %v1204
    %v3502 = vunpack.c.h.b16 %v1204
    %v3503 = vunpack.c.l.b16 %v1205
    %v3504 = vunpack.c.h.b16 %v1205
    %v3505 = vunpack.c.l.b16 %v1206
    %v3506 = vunpack.c.h.b16 %v1206
    %v3507 = vunpack.c.l.b16 %v1207
    %v3508 = vunpack.c.h.b16 %v1207
    %v3509 = vunpack.c.l.b16 %v1208
    %v3510 = vunpack.c.h.b16 %v1208
    %v3511 = vunpack.c.l.b16 %v1209
    %v3512 = vunpack.c.h.b16 %v1209
    %v3513 = vunpack.c.l.b16 %v1210
    %v3514 = vunpack.c.h.b16 %v1210
    %v3515 = vunpack.c.l.b16 %v1211
    %v3516 = vunpack.c.h.b16 %v1211
    %v3517 = vunpack.c.l.b16 %v1212
    %v3518 = vunpack.c.h.b16 %v1212
    %v3519 = vunpack.c.l.b16 %v1213
    %v3520 = vunpack.c.h.b16 %v1213
    %v3521 = vunpack.c.l.b16 %v1214
    %v3522 = vunpack.c.h.b16 %v1214
    %v3523 = vunpack.c.l.b16 %v1215
    %v3524 = vunpack.c.h.b16 %v1215
    %v3525 = vunpack.c.l.b16 %v1216
    %v3526 = vunpack.c.h.b16 %v1216
    %v3527 = vunpack.c.l.b16 %v1217
    %v3528 = vunpack.c.h.b16 %v1217
    %v3529 = vunpack.c.l.b16 %v1218
    %v3530 = vunpack.c.h.b16 %v1218
    %v3531 = vunpack.c.l.b16 %v1219
    %v3532 = vunpack.c.h.b16 %v1219
    %v3533 = vunpack.c.l.b16 %v1220
    %v3534 = vunpack.c.h.b16 %v1220
    %v3535 = vunpack.c.l.b16 %v1221
    %v3536 = vunpack.c.h.b16 %v1221
    %v3537 = vunpack.c.l.b16 %v1222
    %v3538 = vunpack.c.h.b16 %v1222
    %v3539 = vunpack.c.l.b16 %v1223
    %v3540 = vunpack.c.h.b16 %v1223
    %v3541 = vunpack.c.l.b16 %v1224
    %v3542 = vunpack.c.h.b16 %v1224
    %v3543 = vunpack.c.l.b16 %v1225
    %v3544 = vunpack.c.h.b16 %v1225
    %v3545 = vunpack.c.l.b16 %v1226
    %v3546 = vunpack.c.h.b16 %v1226
    %v3547 = vunpack.c.l.b16 %v1227
    %v3548 = vunpack.c.h.b16 %v1227
    %v3549 = vunpack.c.l.b16 %v1228
    %v3550 = vunpack.c.h.b16 %v1228
    %v3551 = vunpack.c.l.b16 %v1229
    %v3552 = vunpack.c.h.b16 %v1229
    %v3553 = vunpack.c.l.b16 %v1230
    %v3554 = vunpack.c.h.b16 %v1230
    %v3555 = vunpack.c.l.b16 %v1231
    %v3556 = vunpack.c.h.b16 %v1231
    %v3557 = vunpack.c.l.b16 %v1232
    %v3558 = vunpack.c.h.b16 %v1232
    %v3559 = vunpack.c.l.b16 %v1233
    %v3560 = vunpack.c.h.b16 %v1233
    %v3561 = vunpack.c.l.b16 %v1234
    %v3562 = vunpack.c.h.b16 %v1234
    %v3563 = vunpack.c.l.b16 %v1235
    %v3564 = vunpack.c.h.b16 %v1235
    %v3565 = vunpack.c.l.b16 %v1236
    %v3566 = vunpack.c.h.b16 %v1236
    %v3567 = vunpack.c.l.b16 %v1237
    %v3568 = vunpack.c.h.b16 %v1237
    %v3569 = vunpack.c.l.b16 %v1238
    %v3570 = vunpack.c.h.b16 %v1238
    %v3571 = vunpack.c.l.b16 %v1239
    %v3572 = vunpack.c.h.b16 %v1239
    %v3573 = vunpack.c.l.b16 %v1240
    %v3574 = vunpack.c.h.b16 %v1240
    %v3575 = vunpack.c.l.b16 %v1241
    %v3576 = vunpack.c.h.b16 %v1241
    %v3577 = vunpack.c.l.b16 %v1242
    %v3578 = vunpack.c.h.b16 %v1242
    %v3579 = vunpack.c.l.b16 %v1243
    %v3580 = vunpack.c.h.b16 %v1243
    %v3581 = vunpack.c.l.b16 %v1244
    %v3582 = vunpack.c.h.b16 %v1244
    %v3583 = vunpack.c.l.b16 %v1245
    %v3584 = vunpack.c.h.b16 %v1245
    %v3585 = vunpack.c.l.b16 %v1246
    %v3586 = vunpack.c.h.b16 %v1246
    %v3587 = vunpack.c.l.b16 %v1247
    %v3588 = vunpack.c.h.b16 %v1247
    %v3589 = vunpack.c.l.b16 %v1248
    %v3590 = vunpack.c.h.b16 %v1248
    %v3591 = vunpack.c.l.b16 %v1249
    %v3592 = vunpack.c.h.b16 %v1249
    %v3593 = vunpack.c.l.b16 %v1250
    %v3594 = vunpack.c.h.b16 %v1250
    %v3595 = vunpack.c.l.b16 %v1251
    %v3596 = vunpack.c.h.b16 %v1251
    %v3597 = vunpack.c.l.b16 %v1252
    %v3598 = vunpack.c.h.b16 %v1252
    %v3599 = vunpack.c.l.b16 %v1253
    %v3600 = vunpack.c.h.b16 %v1253
    %v3601 = vunpack.c.l.b16 %v1254
    %v3602 = vunpack.c.h.b16 %v1254
    %v3603 = vunpack.c.l.b16 %v1255
    %v3604 = vunpack.c.h.b16 %v1255
    %v3605 = vunpack.c.l.b16 %v1256
    %v3606 = vunpack.c.h.b16 %v1256
    %v3607 = vunpack.c.l.b16 %v1257
    %v3608 = vunpack.c.h.b16 %v1257
    %v3609 = vunpack.c.l.b16 %v1258
    %v3610 = vunpack.c.h.b16 %v1258
    %v3611 = vunpack.c.l.b16 %v1259
    %v3612 = vunpack.c.h.b16 %v1259
    %v3613 = vunpack.c.l.b16 %v1260
    %v3614 = vunpack.c.h.b16 %v1260
    %v3615 = vunpack.c.l.b16 %v1261
    %v3616 = vunpack.c.h.b16 %v1261
    %v3617 = vunpack.c.l.b16 %v1262
    %v3618 = vunpack.c.h.b16 %v1262
    %v3619 = vunpack.c.l.b16 %v1263
    %v3620 = vunpack.c.h.b16 %v1263
    %v3621 = vunpack.c.l.b16 %v1264
    %v3622 = vunpack.c.h.b16 %v1264
    %v3623 = vunpack.c.l.b16 %v1265
    %v3624 = vunpack.c.h.b16 %v1265
    %v3625 = vunpack.c.l.b16 %v1266
    %v3626 = vunpack.c.h.b16 %v1266
    %v3627 = vunpack.c.l.b16 %v1267
    %v3628 = vunpack.c.h.b16 %v1267
    %v3629 = vunpack.c.l.b16 %v1268
    %v3630 = vunpack.c.h.b16 %v1268
    %v3631 = vunpack.c.l.b16 %v1269
    %v3632 = vunpack.c.h.b16 %v1269
    %v3633 = vunpack.c.l.b16 %v1270
    %v3634 = vunpack.c.h.b16 %v1270
    %v3635 = vunpack.c.l.b16 %v1271
    %v3636 = vunpack.c.h.b16 %v1271
    %v3637 = vunpack.c.l.b16 %v1272
    %v3638 = vunpack.c.h.b16 %v1272
    %v3639 = vunpack.c.l.b16 %v1273
    %v3640 = vunpack.c.h.b16 %v1273
    %v3641 = vunpack.c.l.b16 %v1274
    %v3642 = vunpack.c.h.b16 %v1274
    %v3643 = vunpack.c.l.b16 %v1275
    %v3644 = vunpack.c.h.b16 %v1275
    %v3645 = vunpack.c.l.b16 %v1276
    %v3646 = vunpack.c.h.b16 %v1276
    %v3647 = vunpack.c.l.b16 %v1277
    %v3648 = vunpack.c.h.b16 %v1277
    %v3649 = vunpack.c.l.b16 %v1278
    %v3650 = vunpack.c.h.b16 %v1278
    %v3651 = vunpack.c.l.b16 %v1279
    %v3652 = vunpack.c.h.b16 %v1279
    %v3653 = vunpack.c.l.b16 %v1280
    %v3654 = vunpack.c.h.b16 %v1280
    %v3655 = vunpack.c.l.b16 %v1281
    %v3656 = vunpack.c.h.b16 %v1281
    %v3657 = vunpack.c.l.b16 %v1282
    %v3658 = vunpack.c.h.b16 %v1282
    %v3659 = vunpack.c.l.b16 %v1283
    %v3660 = vunpack.c.h.b16 %v1283
    %v3661 = vunpack.c.l.b16 %v1284
    %v3662 = vunpack.c.h.b16 %v1284
    %v3663 = vunpack.c.l.b16 %v1285
    %v3664 = vunpack.c.h.b16 %v1285
    %v3665 = vunpack.c.l.b16 %v1286
    %v3666 = vunpack.c.h.b16 %v1286
    %v3667 = vunpack.c.l.b16 %v1287
    %v3668 = vunpack.c.h.b16 %v1287
    %v3669 = vunpack.c.l.b16 %v1288
    %v3670 = vunpack.c.h.b16 %v1288
    %v3671 = vunpack.c.l.b16 %v1289
    %v3672 = vunpack.c.h.b16 %v1289
    %v3673 = vunpack.c.l.b16 %v1290
    %v3674 = vunpack.c.h.b16 %v1290
    %v3675 = vunpack.c.l.b16 %v1291
    %v3676 = vunpack.c.h.b16 %v1291
    %v3677 = vunpack.c.l.b16 %v1292
    %v3678 = vunpack.c.h.b16 %v1292
    %v3679 = vunpack.c.l.b16 %v1293
    %v3680 = vunpack.c.h.b16 %v1293
    %v3681 = vunpack.c.l.b16 %v1294
    %v3682 = vunpack.c.h.b16 %v1294
    %v3683 = vunpack.c.l.b16 %v1295
    %v3684 = vunpack.c.h.b16 %v1295
    %v3685 = vunpack.c.l.b16 %v1296
    %v3686 = vunpack.c.h.b16 %v1296
    %v3687 = vunpack.c.l.b16 %v1297
    %v3688 = vunpack.c.h.b16 %v1297
    %v3689 = vunpack.c.l.b16 %v1298
    %v3690 = vunpack.c.h.b16 %v1298
    %v3691 = vunpack.c.l.b16 %v1299
    %v3692 = vunpack.c.h.b16 %v1299
    %v3693 = vunpack.c.l.b16 %v1300
    %v3694 = vunpack.c.h.b16 %v1300
    %v3695 = vunpack.c.l.b16 %v1301
    %v3696 = vunpack.c.h.b16 %v1301
    %v3697 = vunpack.c.l.b16 %v1302
    %v3698 = vunpack.c.h.b16 %v1302
    %v3699 = vunpack.c.l.b16 %v1303
    %v3700 = vunpack.c.h.b16 %v1303
    %v3701 = vunpack.c.l.b16 %v1304
    %v3702 = vunpack.c.h.b16 %v1304
    %v3703 = vunpack.c.l.b16 %v1305
    %v3704 = vunpack.c.h.b16 %v1305
    %v3705 = vunpack.c.l.b16 %v1306
    %v3706 = vunpack.c.h.b16 %v1306
    %v3707 = vunpack.c.l.b16 %v1307
    %v3708 = vunpack.c.h.b16 %v1307
    %v3709 = vunpack.c.l.b16 %v1308
    %v3710 = vunpack.c.h.b16 %v1308
    %v3711 = vunpack.c.l.b16 %v1309
    %v3712 = vunpack.c.h.b16 %v1309
    %v3713 = vunpack.c.l.b16 %v1310
    %v3714 = vunpack.c.h.b16 %v1310
    %v3715 = vunpack.c.l.b16 %v1311
    %v3716 = vunpack.c.h.b16 %v1311
    %v3717 = vunpack.c.l.b16 %v1312
    %v3718 = vunpack.c.h.b16 %v1312
    %v3719 = vunpack.c.l.b16 %v1313
    %v3720 = vunpack.c.h.b16 %v1313
    %v3721 = vunpack.c.l.b16 %v1314
    %v3722 = vunpack.c.h.b16 %v1314
    %v3723 = vunpack.c.l.b16 %v1315
    %v3724 = vunpack.c.h.b16 %v1315
    %v3725 = vunpack.c.l.b16 %v1316
    %v3726 = vunpack.c.h.b16 %v1316
    %v3727 = vunpack.c.l.b16 %v1317
    %v3728 = vunpack.c.h.b16 %v1317
    %v3729 = vunpack.c.l.b16 %v1318
    %v3730 = vunpack.c.h.b16 %v1318
    %v3731 = vunpack.c.l.b16 %v1319
    %v3732 = vunpack.c.h.b16 %v1319
    %v3733 = vunpack.c.l.b16 %v1320
    %v3734 = vunpack.c.h.b16 %v1320
    %v3735 = vunpack.c.l.b16 %v1321
    %v3736 = vunpack.c.h.b16 %v1321
    %v3737 = vunpack.c.l.b16 %v1322
    %v3738 = vunpack.c.h.b16 %v1322
    %v3739 = vunpack.c.l.b16 %v1323
    %v3740 = vunpack.c.h.b16 %v1323
    %v3741 = vunpack.c.l.b16 %v1324
    %v3742 = vunpack.c.h.b16 %v1324
    %v3743 = vunpack.c.l.b16 %v1325
    %v3744 = vunpack.c.h.b16 %v1325
    %v3745 = vunpack.c.l.b16 %v1326
    %v3746 = vunpack.c.h.b16 %v1326
    %v3747 = vunpack.c.l.b16 %v1327
    %v3748 = vunpack.c.h.b16 %v1327
    %v3749 = vunpack.c.l.b16 %v1328
    %v3750 = vunpack.c.h.b16 %v1328
    %v3751 = vunpack.c.l.b16 %v1329
    %v3752 = vunpack.c.h.b16 %v1329
    %v3753 = vunpack.c.l.b16 %v1330
    %v3754 = vunpack.c.h.b16 %v1330
    %v3755 = vunpack.c.l.b16 %v1331
    %v3756 = vunpack.c.h.b16 %v1331
    %v3757 = vunpack.c.l.b16 %v1332
    %v3758 = vunpack.c.h.b16 %v1332
    %v3759 = vunpack.c.l.b16 %v1333
    %v3760 = vunpack.c.h.b16 %v1333
    %v3761 = vunpack.c.l.b16 %v1334
    %v3762 = vunpack.c.h.b16 %v1334
    %v3763 = vunpack.c.l.b16 %v1335
    %v3764 = vunpack.c.h.b16 %v1335
    %v3765 = vunpack.c.l.b16 %v1336
    %v3766 = vunpack.c.h.b16 %v1336
    %v3767 = vunpack.c.l.b16 %v1337
    %v3768 = vunpack.c.h.b16 %v1337
    %v3769 = vunpack.c.l.b16 %v1338
    %v3770 = vunpack.c.h.b16 %v1338
    %v3771 = vunpack.c.l.b16 %v1339
    %v3772 = vunpack.c.h.b16 %v1339
    %v3773 = vunpack.c.l.b16 %v1340
    %v3774 = vunpack.c.h.b16 %v1340
    %v3775 = vunpack.c.l.b16 %v1341
    %v3776 = vunpack.c.h.b16 %v1341
    %v3777 = vunpack.c.l.b16 %v1342
    %v3778 = vunpack.c.h.b16 %v1342
    %v3779 = vunpack.c.l.b16 %v1343
    %v3780 = vunpack.c.h.b16 %v1343
    %v3781 = vunpack.c.l.b16 %v1344
    %v3782 = vunpack.c.h.b16 %v1344
    %v3783 = vunpack.c.l.b16 %v1345
    %v3784 = vunpack.c.h.b16 %v1345
    %v3785 = vunpack.c.l.b16 %v1346
    %v3786 = vunpack.c.h.b16 %v1346
    %v3787 = vunpack.c.l.b16 %v1347
    %v3788 = vunpack.c.h.b16 %v1347
    %v3789 = vunpack.c.l.b16 %v1348
    %v3790 = vunpack.c.h.b16 %v1348
    %v3791 = vunpack.c.l.b16 %v1349
    %v3792 = vunpack.c.h.b16 %v1349
    %v3793 = vunpack.c.l.b16 %v1350
    %v3794 = vunpack.c.h.b16 %v1350
    %v3795 = vunpack.c.l.b16 %v1351
    %v3796 = vunpack.c.h.b16 %v1351
    %v3797 = vunpack.c.l.b16 %v1352
    %v3798 = vunpack.c.h.b16 %v1352
    %v3799 = vunpack.c.l.b16 %v1353
    %v3800 = vunpack.c.h.b16 %v1353
    %v3801 = vunpack.c.l.b16 %v1354
    %v3802 = vunpack.c.h.b16 %v1354
    %v3803 = vunpack.c.l.b16 %v1355
    %v3804 = vunpack.c.h.b16 %v1355
    %v3805 = vunpack.c.l.b16 %v1356
    %v3806 = vunpack.c.h.b16 %v1356
    %v3807 = vunpack.c.l.b16 %v1357
    %v3808 = vunpack.c.h.b16 %v1357
    %v3809 = vunpack.c.l.b16 %v1358
    %v3810 = vunpack.c.h.b16 %v1358
    %v3811 = vunpack.c.l.b16 %v1359
    %v3812 = vunpack.c.h.b16 %v1359
    %v3813 = vunpack.c.l.b16 %v1360
    %v3814 = vunpack.c.h.b16 %v1360
    %v3815 = vunpack.c.l.b16 %v1361
    %v3816 = vunpack.c.h.b16 %v1361
    %v3817 = vunpack.c.l.b16 %v1362
    %v3818 = vunpack.c.h.b16 %v1362
    %v3819 = vunpack.c.l.b16 %v1363
    %v3820 = vunpack.c.h.b16 %v1363
    %v3821 = vunpack.c.l.b16 %v1364
    %v3822 = vunpack.c.h.b16 %v1364
    %v3823 = vunpack.c.l.b16 %v1365
    %v3824 = vunpack.c.h.b16 %v1365
    %v3825 = vunpack.c.l.b16 %v1366
    %v3826 = vunpack.c.h.b16 %v1366
    %v3827 = vunpack.c.l.b16 %v1367
    %v3828 = vunpack.c.h.b16 %v1367
    %v3829 = vunpack.c.l.b16 %v1368
    %v3830 = vunpack.c.h.b16 %v1368
    %v3831 = vunpack.c.l.b16 %v1369
    %v3832 = vunpack.c.h.b16 %v1369
    %v3833 = vunpack.c.l.b16 %v1370
    %v3834 = vunpack.c.h.b16 %v1370
    %v3835 = vunpack.c.l.b16 %v1371
    %v3836 = vunpack.c.h.b16 %v1371
    %v3837 = vunpack.c.l.b16 %v1372
    %v3838 = vunpack.c.h.b16 %v1372
    %v3839 = vunpack.c.l.b16 %v1373
    %v3840 = vunpack.c.h.b16 %v1373
    %v3841 = vunpack.c.l.b16 %v1374
    %v3842 = vunpack.c.h.b16 %v1374
    %v3843 = vunpack.c.l.b16 %v1375
    %v3844 = vunpack.c.h.b16 %v1375
    %v3845 = vunpack.c.l.b16 %v1376
    %v3846 = vunpack.c.h.b16 %v1376
    %v3847 = vunpack.c.l.b16 %v1377
    %v3848 = vunpack.c.h.b16 %v1377
    %v3849 = vunpack.c.l.b16 %v1378
    %v3850 = vunpack.c.h.b16 %v1378
    %v3851 = vunpack.c.l.b16 %v1379
    %v3852 = vunpack.c.h.b16 %v1379
    %v3853 = vunpack.c.l.b16 %v1380
    %v3854 = vunpack.c.h.b16 %v1380
    %v3855 = vunpack.c.l.b16 %v1381
    %v3856 = vunpack.c.h.b16 %v1381
    %v3857 = vunpack.c.l.b16 %v1382
    %v3858 = vunpack.c.h.b16 %v1382
    %v3859 = vunpack.c.l.b16 %v1383
    %v3860 = vunpack.c.h.b16 %v1383
    %v3861 = vunpack.c.l.b16 %v1384
    %v3862 = vunpack.c.h.b16 %v1384
    %v3863 = vunpack.c.l.b16 %v1385
    %v3864 = vunpack.c.h.b16 %v1385
    %v3865 = vunpack.c.l.b16 %v1386
    %v3866 = vunpack.c.h.b16 %v1386
    %v3867 = vunpack.c.l.b16 %v1387
    %v3868 = vunpack.c.h.b16 %v1387
    %v3869 = vunpack.c.l.b16 %v1388
    %v3870 = vunpack.c.h.b16 %v1388
    %v3871 = vunpack.c.l.b16 %v1389
    %v3872 = vunpack.c.h.b16 %v1389
    %v3873 = vunpack.c.l.b16 %v1390
    %v3874 = vunpack.c.h.b16 %v1390
    %v3875 = vunpack.c.l.b16 %v1391
    %v3876 = vunpack.c.h.b16 %v1391
    %v3877 = vunpack.c.l.b16 %v1392
    %v3878 = vunpack.c.h.b16 %v1392
    %v3879 = vunpack.c.l.b16 %v1393
    %v3880 = vunpack.c.h.b16 %v1393
    %v3881 = vunpack.c.l.b16 %v1394
    %v3882 = vunpack.c.h.b16 %v1394
    %v3883 = vunpack.c.l.b16 %v1395
    %v3884 = vunpack.c.h.b16 %v1395
    %v3885 = vunpack.c.l.b16 %v1396
    %v3886 = vunpack.c.h.b16 %v1396
    %v3887 = vunpack.c.l.b16 %v1397
    %v3888 = vunpack.c.h.b16 %v1397
    %v3889 = vunpack.c.l.b16 %v1398
    %v3890 = vunpack.c.h.b16 %v1398
    %v3891 = vunpack.c.l.b16 %v1399
    %v3892 = vunpack.c.h.b16 %v1399
    %v3893 = vunpack.c.l.b16 %v1400
    %v3894 = vunpack.c.h.b16 %v1400
    %v3895 = vunpack.c.l.b16 %v1401
    %v3896 = vunpack.c.h.b16 %v1401
    %v3897 = vunpack.c.l.b16 %v1402
    %v3898 = vunpack.c.h.b16 %v1402
    %v3899 = vunpack.c.l.b16 %v1403
    %v3900 = vunpack.c.h.b16 %v1403
    %v3901 = vunpack.c.l.b16 %v1404
    %v3902 = vunpack.c.h.b16 %v1404
    %v3903 = vunpack.c.l.b16 %v1405
    %v3904 = vunpack.c.h.b16 %v1405
    %v3905 = vunpack.c.l.b16 %v1406
    %v3906 = vunpack.c.h.b16 %v1406
    %v3907 = vunpack.c.l.b16 %v1407
    %v3908 = vunpack.c.h.b16 %v1407
    %v3909 = vunpack.c.l.b16 %v1408
    %v3910 = vunpack.c.h.b16 %v1408
    %v3911 = vunpack.c.l.b16 %v1409
    %v3912 = vunpack.c.h.b16 %v1409
    %v3913 = vunpack.c.l.b16 %v1410
    %v3914 = vunpack.c.h.b16 %v1410
    %v3915 = vunpack.c.l.b16 %v1411
    %v3916 = vunpack.c.h.b16 %v1411
    %v3917 = vunpack.c.l.b16 %v1412
    %v3918 = vunpack.c.h.b16 %v1412
    %v3919 = vunpack.c.l.b16 %v1413
    %v3920 = vunpack.c.h.b16 %v1413
    %v3921 = vunpack.c.l.b16 %v1414
    %v3922 = vunpack.c.h.b16 %v1414
    %v3923 = vunpack.c.l.b16 %v1415
    %v3924 = vunpack.c.h.b16 %v1415
    %v3925 = vunpack.c.l.b16 %v1416
    %v3926 = vunpack.c.h.b16 %v1416
    %v3927 = vunpack.c.l.b16 %v1417
    %v3928 = vunpack.c.h.b16 %v1417
    %v3929 = vunpack.c.l.b16 %v1418
    %v3930 = vunpack.c.h.b16 %v1418
    %v3931 = vunpack.c.l.b16 %v1419
    %v3932 = vunpack.c.h.b16 %v1419
    %v3933 = vunpack.c.l.b16 %v1420
    %v3934 = vunpack.c.h.b16 %v1420
    %v3935 = vunpack.c.l.b16 %v1421
    %v3936 = vunpack.c.h.b16 %v1421
    %v3937 = vunpack.c.l.b16 %v1422
    %v3938 = vunpack.c.h.b16 %v1422
    %v3939 = vunpack.c.l.b16 %v1423
    %v3940 = vunpack.c.h.b16 %v1423
    %v3941 = vunpack.c.l.b16 %v1424
    %v3942 = vunpack.c.h.b16 %v1424
    %v3943 = vunpack.c.l.b16 %v1425
    %v3944 = vunpack.c.h.b16 %v1425
    %v3945 = vunpack.c.l.b16 %v1426
    %v3946 = vunpack.c.h.b16 %v1426
    %v3947 = vunpack.c.l.b16 %v1427
    %v3948 = vunpack.c.h.b16 %v1427
    %v3949 = vunpack.c.l.b16 %v1428
    %v3950 = vunpack.c.h.b16 %v1428
    %v3951 = vunpack.c.l.b16 %v1429
    %v3952 = vunpack.c.h.b16 %v1429
    %v3953 = vunpack.c.l.b16 %v1430
    %v3954 = vunpack.c.h.b16 %v1430
    %v3955 = vunpack.c.l.b16 %v1431
    %v3956 = vunpack.c.h.b16 %v1431
    %v3957 = vunpack.c.l.b16 %v1432
    %v3958 = vunpack.c.h.b16 %v1432
    %v3959 = vunpack.c.l.b16 %v1433
    %v3960 = vunpack.c.h.b16 %v1433
    %v3961 = vunpack.c.l.b16 %v1434
    %v3962 = vunpack.c.h.b16 %v1434
    %v3963 = vunpack.c.l.b16 %v1435
    %v3964 = vunpack.c.h.b16 %v1435
    %v3965 = vunpack.c.l.b16 %v1436
    %v3966 = vunpack.c.h.b16 %v1436
    %v3967 = vunpack.c.l.b16 %v1437
    %v3968 = vunpack.c.h.b16 %v1437
    %v3969 = vunpack.c.l.b16 %v1438
    %v3970 = vunpack.c.h.b16 %v1438
    %v3971 = vunpack.c.l.b16 %v1439
    %v3972 = vunpack.c.h.b16 %v1439
    %v3973 = vunpack.c.l.b16 %v1440
    %v3974 = vunpack.c.h.b16 %v1440
    %v3975 = vunpack.c.l.b16 %v1441
    %v3976 = vunpack.c.h.b16 %v1441
    %v3977 = vunpack.c.l.b16 %v1442
    %v3978 = vunpack.c.h.b16 %v1442
    %v3979 = vunpack.c.l.b16 %v1443
    %v3980 = vunpack.c.h.b16 %v1443
    %v3981 = vunpack.c.l.b16 %v1444
    %v3982 = vunpack.c.h.b16 %v1444
    %v3983 = vunpack.c.l.b16 %v1445
    %v3984 = vunpack.c.h.b16 %v1445
    %v3985 = vunpack.c.l.b16 %v1446
    %v3986 = vunpack.c.h.b16 %v1446
    %v3987 = vunpack.c.l.b16 %v1447
    %v3988 = vunpack.c.h.b16 %v1447
    %v3989 = vunpack.c.l.b16 %v1448
    %v3990 = vunpack.c.h.b16 %v1448
    %v3991 = vunpack.c.l.b16 %v1449
    %v3992 = vunpack.c.h.b16 %v1449
    %v3993 = vunpack.c.l.b16 %v1450
    %v3994 = vunpack.c.h.b16 %v1450
    %v3995 = vunpack.c.l.b16 %v1451
    %v3996 = vunpack.c.h.b16 %v1451
    %v3997 = vunpack.c.l.b16 %v1452
    %v3998 = vunpack.c.h.b16 %v1452
    %v3999 = vunpack.c.l.b16 %v1453
    %v4000 = vunpack.c.h.b16 %v1453
    %v4001 = vunpack.c.l.b16 %v1454
    %v4002 = vunpack.c.h.b16 %v1454
    %v4003 = vunpack.c.l.b16 %v1455
    %v4004 = vunpack.c.h.b16 %v1455
    %v4005 = vunpack.c.l.b16 %v1456
    %v4006 = vunpack.c.h.b16 %v1456
    %v4007 = vunpack.c.l.b16 %v1457
    %v4008 = vunpack.c.h.b16 %v1457
    %v4009 = vunpack.c.l.b16 %v1458
    %v4010 = vunpack.c.h.b16 %v1458
    %v4011 = vunpack.c.l.b16 %v1459
    %v4012 = vunpack.c.h.b16 %v1459
    %v4013 = vunpack.c.l.b16 %v1460
    %v4014 = vunpack.c.h.b16 %v1460
    %v4015 = vunpack.c.l.b16 %v1461
    %v4016 = vunpack.c.h.b16 %v1461
    %v4017 = vunpack.c.l.b16 %v1462
    %v4018 = vunpack.c.h.b16 %v1462
    %v4019 = vunpack.c.l.b16 %v1463
    %v4020 = vunpack.c.h.b16 %v1463
    %v4021 = vunpack.c.l.b16 %v1464
    %v4022 = vunpack.c.h.b16 %v1464
    %v4023 = vunpack.c.l.b16 %v1465
    %v4024 = vunpack.c.h.b16 %v1465
    %v4025 = vunpack.c.l.b16 %v1466
    %v4026 = vunpack.c.h.b16 %v1466
    %v4027 = vunpack.c.l.b16 %v1467
    %v4028 = vunpack.c.h.b16 %v1467
    %v4029 = vunpack.c.l.b16 %v1468
    %v4030 = vunpack.c.h.b16 %v1468
    %v4031 = vunpack.c.l.b16 %v1469
    %v4032 = vunpack.c.h.b16 %v1469
    %v4033 = vunpack.c.l.b16 %v1470
    %v4034 = vunpack.c.h.b16 %v1470
    %v4035 = vunpack.c.l.b16 %v1471
    %v4036 = vunpack.c.h.b16 %v1471
    %v4037 = vunpack.c.l.b16 %v1472
    %v4038 = vunpack.c.h.b16 %v1472
    %v4039 = vunpack.c.l.b16 %v1473
    %v4040 = vunpack.c.h.b16 %v1473
    %v4041 = vunpack.c.l.b16 %v1474
    %v4042 = vunpack.c.h.b16 %v1474
    %v4043 = vunpack.c.l.b16 %v1475
    %v4044 = vunpack.c.h.b16 %v1475
    %v4045 = vunpack.c.l.b16 %v1476
    %v4046 = vunpack.c.h.b16 %v1476
    %v4047 = vunpack.c.l.b16 %v1477
    %v4048 = vunpack.c.h.b16 %v1477
    %v4049 = vunpack.c.l.b16 %v1478
    %v4050 = vunpack.c.h.b16 %v1478
    %v4051 = vunpack.c.l.b16 %v1479
    %v4052 = vunpack.c.h.b16 %v1479
    %v4053 = vunpack.c.l.b16 %v1480
    %v4054 = vunpack.c.h.b16 %v1480
    %v4055 = vunpack.c.l.b16 %v1481
    %v4056 = vunpack.c.h.b16 %v1481
    %v4057 = vunpack.c.l.b16 %v1482
    %v4058 = vunpack.c.h.b16 %v1482
    %v4059 = vunpack.c.l.b16 %v1483
    %v4060 = vunpack.c.h.b16 %v1483
    %v4061 = vunpack.c.l.b16 %v1484
    %v4062 = vunpack.c.h.b16 %v1484
    %v4063 = vunpack.c.l.b16 %v1485
    %v4064 = vunpack.c.h.b16 %v1485
    %v4065 = vunpack.c.l.b16 %v1486
    %v4066 = vunpack.c.h.b16 %v1486
    %v4067 = vunpack.c.l.b16 %v1487
    %v4068 = vunpack.c.h.b16 %v1487
    %v4069 = vunpack.c.l.b16 %v1488
    %v4070 = vunpack.c.h.b16 %v1488
    %v4071 = vunpack.c.l.b16 %v1489
    %v4072 = vunpack.c.h.b16 %v1489
    %v4073 = vunpack.c.l.b16 %v1490
    %v4074 = vunpack.c.h.b16 %v1490
    %v4075 = vunpack.c.l.b16 %v1491
    %v4076 = vunpack.c.h.b16 %v1491
    %v4077 = vunpack.c.l.b16 %v1492
    %v4078 = vunpack.c.h.b16 %v1492
    %v4079 = vunpack.c.l.b16 %v1493
    %v4080 = vunpack.c.h.b16 %v1493
    %v4081 = vunpack.c.l.b16 %v1494
    %v4082 = vunpack.c.h.b16 %v1494
    %v4083 = vunpack.c.l.b16 %v1495
    %v4084 = vunpack.c.h.b16 %v1495
    %v4085 = vunpack.c.l.b16 %v1496
    %v4086 = vunpack.c.h.b16 %v1496
    %v4087 = vunpack.c.l.b16 %v1497
    %v4088 = vunpack.c.h.b16 %v1497
    %v4089 = vunpack.c.l.b16 %v1498
    %v4090 = vunpack.c.h.b16 %v1498
    %v4091 = vunpack.c.l.b16 %v1499
    %v4092 = vunpack.c.h.b16 %v1499
    %v4093 = vunpack.c.l.b16 %v1500
    %v4094 = vunpack.c.h.b16 %v1500
    %v4095 = vunpack.c.l.b16 %v1501
    %v4096 = vunpack.c.h.b16 %v1501
    %v4097 = vunpack.c.l.b16 %v1502
    %v4098 = vunpack.c.h.b16 %v1502
    %v4099 = vunpack.c.l.b16 %v1503
    %v4100 = vunpack.c.h.b16 %v1503
    %v4101 = vunpack.c.l.b16 %v1504
    %v4102 = vunpack.c.h.b16 %v1504
    %v4103 = vunpack.c.l.b16 %v1505
    %v4104 = vunpack.c.h.b16 %v1505
    %v4105 = vunpack.c.l.b16 %v1506
    %v4106 = vunpack.c.h.b16 %v1506
    %v4107 = vunpack.c.l.b16 %v1507
    %v4108 = vunpack.c.h.b16 %v1507
    %v4109 = vunpack.c.l.b16 %v1508
    %v4110 = vunpack.c.h.b16 %v1508
    %v4111 = vunpack.c.l.b16 %v1509
    %v4112 = vunpack.c.h.b16 %v1509
    %v4113 = vunpack.c.l.b16 %v1510
    %v4114 = vunpack.c.h.b16 %v1510
    %v4115 = vunpack.c.l.b16 %v1511
    %v4116 = vunpack.c.h.b16 %v1511
    %v4117 = vunpack.c.l.b16 %v1512
    %v4118 = vunpack.c.h.b16 %v1512
    %v4119 = vunpack.c.l.b16 %v1513
    %v4120 = vunpack.c.h.b16 %v1513
    %v4121 = vunpack.c.l.b16 %v1514
    %v4122 = vunpack.c.h.b16 %v1514
    %v4123 = vunpack.c.l.b16 %v1515
    %v4124 = vunpack.c.h.b16 %v1515
    %v4125 = vunpack.c.l.b16 %v1516
    %v4126 = vunpack.c.h.b16 %v1516
    %v4127 = vunpack.c.l.b16 %v1517
    %v4128 = vunpack.c.h.b16 %v1517
    %v4129 = vunpack.c.l.b16 %v1518
    %v4130 = vunpack.c.h.b16 %v1518
    %v4131 = vunpack.c.l.b16 %v1519
    %v4132 = vunpack.c.h.b16 %v1519
    %v4133 = vunpack.c.l.b16 %v1520
    %v4134 = vunpack.c.h.b16 %v1520
    %v4135 = vunpack.c.l.b16 %v1521
    %v4136 = vunpack.c.h.b16 %v1521
    %v4137 = vunpack.c.l.b16 %v1522
    %v4138 = vunpack.c.h.b16 %v1522
    %v4139 = vunpack.c.l.b16 %v1523
    %v4140 = vunpack.c.h.b16 %v1523
    %v4141 = vunpack.c.l.b16 %v1524
    %v4142 = vunpack.c.h.b16 %v1524
    %v4143 = vunpack.c.l.b16 %v1525
    %v4144 = vunpack.c.h.b16 %v1525
    %v4145 = vunpack.c.l.b16 %v1526
    %v4146 = vunpack.c.h.b16 %v1526
    %v4147 = vunpack.c.l.b16 %v1527
    %v4148 = vunpack.c.h.b16 %v1527
    %v4149 = vunpack.c.l.b16 %v1528
    %v4150 = vunpack.c.h.b16 %v1528
    %v4151 = vunpack.c.l.b16 %v1529
    %v4152 = vunpack.c.h.b16 %v1529
    %v4153 = vunpack.c.l.b16 %v1530
    %v4154 = vunpack.c.h.b16 %v1530
    %v4155 = vunpack.c.l.b16 %v1531
    %v4156 = vunpack.c.h.b16 %v1531
    %v4157 = vunpack.c.l.b16 %v1532
    %v4158 = vunpack.c.h.b16 %v1532
    %v4159 = vunpack.c.l.b16 %v1533
    %v4160 = vunpack.c.h.b16 %v1533
    %v4161 = vunpack.c.l.b16 %v1534
    %v4162 = vunpack.c.h.b16 %v1534
    %v4163 = vunpack.c.l.b16 %v1535
    %v4164 = vunpack.c.h.b16 %v1535
    %v4165 = vunpack.c.l.b16 %v1536
    %v4166 = vunpack.c.h.b16 %v1536
    %v4167 = vunpack.c.l.b16 %v1537
    %v4168 = vunpack.c.h.b16 %v1537
    %v4169 = vunpack.c.l.b16 %v1538
    %v4170 = vunpack.c.h.b16 %v1538
    %v4171 = vunpack.c.l.b16 %v1539
    %v4172 = vunpack.c.h.b16 %v1539
    %v4173 = vunpack.c.l.b16 %v1540
    %v4174 = vunpack.c.h.b16 %v1540
    %v4175 = vunpack.c.l.b16 %v1541
    %v4176 = vunpack.c.h.b16 %v1541
    %v4177 = vunpack.c.l.b16 %v1542
    %v4178 = vunpack.c.h.b16 %v1542
    %v4179 = vunpack.c.l.b16 %v1543
    %v4180 = vunpack.c.h.b16 %v1543
    %v4181 = vunpack.c.l.b16 %v1544
    %v4182 = vunpack.c.h.b16 %v1544
    %v4183 = vunpack.c.l.b16 %v1545
    %v4184 = vunpack.c.h.b16 %v1545
    %v4185 = vunpack.c.l.b16 %v1546
    %v4186 = vunpack.c.h.b16 %v1546
    %v4187 = vunpack.c.l.b16 %v1547
    %v4188 = vunpack.c.h.b16 %v1547
    %v4189 = vunpack.c.l.b16 %v1548
    %v4190 = vunpack.c.h.b16 %v1548
    %v4191 = vunpack.c.l.b16 %v1549
    %v4192 = vunpack.c.h.b16 %v1549
    %v4193 = vunpack.c.l.b16 %v1550
    %v4194 = vunpack.c.h.b16 %v1550
    %v4195 = vunpack.c.l.b16 %v1551
    %v4196 = vunpack.c.h.b16 %v1551
    %v4197 = vunpack.c.l.b16 %v1552
    %v4198 = vunpack.c.h.b16 %v1552
    %v4199 = vunpack.c.l.b16 %v1553
    %v4200 = vunpack.c.h.b16 %v1553
    %v4201 = vunpack.c.l.b16 %v1554
    %v4202 = vunpack.c.h.b16 %v1554
    %v4203 = vunpack.c.l.b16 %v1555
    %v4204 = vunpack.c.h.b16 %v1555
    %v4205 = vunpack.c.l.b16 %v1556
    %v4206 = vunpack.c.h.b16 %v1556
    %v4207 = vunpack.c.l.b16 %v1557
    %v4208 = vunpack.c.h.b16 %v1557
    %v4209 = vunpack.c.l.b16 %v1558
    %v4210 = vunpack.c.h.b16 %v1558
    %v4211 = vunpack.c.l.b16 %v1559
    %v4212 = vunpack.c.h.b16 %v1559
    %v4213 = vunpack.c.l.b16 %v1560
    %v4214 = vunpack.c.h.b16 %v1560
    %v4215 = vunpack.c.l.b16 %v1561
    %v4216 = vunpack.c.h.b16 %v1561
    %v4217 = vunpack.c.l.b16 %v1562
    %v4218 = vunpack.c.h.b16 %v1562
    %v4219 = vunpack.c.l.b16 %v1563
    %v4220 = vunpack.c.h.b16 %v1563
    %v4221 = vunpack.c.l.b16 %v1564
    %v4222 = vunpack.c.h.b16 %v1564
    %v4223 = vunpack.c.l.b16 %v1565
    %v4224 = vunpack.c.h.b16 %v1565
    %v4225 = vunpack.c.l.b16 %v1566
    %v4226 = vunpack.c.h.b16 %v1566
    %v4227 = vunpack.c.l.b16 %v1567
    %v4228 = vunpack.c.h.b16 %v1567
    %v4229 = vunpack.c.l.b16 %v1568
    %v4230 = vunpack.c.h.b16 %v1568
    %v4231 = vunpack.c.l.b16 %v1569
    %v4232 = vunpack.c.h.b16 %v1569
    %v4233 = vunpack.c.l.b16 %v1570
    %v4234 = vunpack.c.h.b16 %v1570
    %v4235 = vunpack.c.l.b16 %v1571
    %v4236 = vunpack.c.h.b16 %v1571
    %v4237 = vunpack.c.l.b16 %v1572
    %v4238 = vunpack.c.h.b16 %v1572
    %v4239 = vunpack.c.l.b16 %v1573
    %v4240 = vunpack.c.h.b16 %v1573
    %v4241 = vunpack.c.l.b16 %v1574
    %v4242 = vunpack.c.h.b16 %v1574
    %v4243 = vunpack.c.l.b16 %v1575
    %v4244 = vunpack.c.h.b16 %v1575
    %v4245 = vunpack.c.l.b16 %v1576
    %v4246 = vunpack.c.h.b16 %v1576
    %v4247 = vunpack.c.l.b16 %v1577
    %v4248 = vunpack.c.h.b16 %v1577
    %v4249 = vunpack.c.l.b16 %v1578
    %v4250 = vunpack.c.h.b16 %v1578
    %v4251 = vunpack.c.l.b16 %v1579
    %v4252 = vunpack.c.h.b16 %v1579
    %v4253 = vunpack.c.l.b16 %v1580
    %v4254 = vunpack.c.h.b16 %v1580
    %v4255 = vunpack.c.l.b16 %v1581
    %v4256 = vunpack.c.h.b16 %v1581
    %v4257 = vunpack.c.l.b16 %v1582
    %v4258 = vunpack.c.h.b16 %v1582
    %v4259 = vunpack.c.l.b16 %v1583
    %v4260 = vunpack.c.h.b16 %v1583
    %v4261 = vunpack.c.l.b16 %v1584
    %v4262 = vunpack.c.h.b16 %v1584
    %v4263 = vunpack.c.l.b16 %v1585
    %v4264 = vunpack.c.h.b16 %v1585
    %v4265 = vunpack.c.l.b16 %v1586
    %v4266 = vunpack.c.h.b16 %v1586
    %v4267 = vunpack.c.l.b16 %v1587
    %v4268 = vunpack.c.h.b16 %v1587
    %v4269 = vunpack.c.l.b16 %v1588
    %v4270 = vunpack.c.h.b16 %v1588
    %v4271 = vunpack.c.l.b16 %v1589
    %v4272 = vunpack.c.h.b16 %v1589
    %v4273 = vunpack.c.l.b16 %v1590
    %v4274 = vunpack.c.h.b16 %v1590
    %v4275 = vunpack.c.l.b16 %v1591
    %v4276 = vunpack.c.h.b16 %v1591
    %v4277 = vunpack.c.l.b16 %v1592
    %v4278 = vunpack.c.h.b16 %v1592
    %v4279 = vunpack.c.l.b16 %v1593
    %v4280 = vunpack.c.h.b16 %v1593
    %v4281 = vunpack.c.l.b16 %v1594
    %v4282 = vunpack.c.h.b16 %v1594
    %v4283 = vunpack.c.l.b16 %v1595
    %v4284 = vunpack.c.h.b16 %v1595
    %v4285 = vunpack.c.l.b16 %v1596
    %v4286 = vunpack.c.h.b16 %v1596
    %v4287 = vunpack.c.l.b16 %v1597
    %v4288 = vunpack.c.h.b16 %v1597
    %v4289 = vunpack.c.l.b16 %v1598
    %v4290 = vunpack.c.h.b16 %v1598
    %v4291 = vunpack.c.l.b16 %v1599
    %v4292 = vunpack.c.h.b16 %v1599
    %v4293 = vunpack.c.l.b16 %v1600
    %v4294 = vunpack.c.h.b16 %v1600
    %v4295 = vunpack.c.l.b16 %v1601
    %v4296 = vunpack.c.h.b16 %v1601
    %v4297 = vunpack.c.l.b16 %v1602
    %v4298 = vunpack.c.h.b16 %v1602
    %v4299 = vunpack.c.l.b16 %v1603
    %v4300 = vunpack.c.h.b16 %v1603
    %v4301 = vunpack.c.l.b16 %v1604
    %v4302 = vunpack.c.h.b16 %v1604
    %v4303 = vunpack.c.l.b16 %v1605
    %v4304 = vunpack.c.h.b16 %v1605
    %v4305 = vunpack.c.l.b16 %v1606
    %v4306 = vunpack.c.h.b16 %v1606
    %v4307 = vunpack.c.l.b16 %v1607
    %v4308 = vunpack.c.h.b16 %v1607
    %v4309 = vunpack.c.l.b16 %v1608
    %v4310 = vunpack.c.h.b16 %v1608
    %v4311 = vunpack.c.l.b16 %v1609
    %v4312 = vunpack.c.h.b16 %v1609
    %v4313 = vunpack.c.l.b16 %v1610
    %v4314 = vunpack.c.h.b16 %v1610
    %v4315 = vunpack.c.l.b16 %v1611
    %v4316 = vunpack.c.h.b16 %v1611
    %v4317 = vunpack.c.l.b16 %v1612
    %v4318 = vunpack.c.h.b16 %v1612
    %v4319 = vunpack.c.l.b16 %v1613
    %v4320 = vunpack.c.h.b16 %v1613
    %v4321 = vunpack.c.l.b16 %v1614
    %v4322 = vunpack.c.h.b16 %v1614
    %v4323 = vunpack.c.l.b16 %v1615
    %v4324 = vunpack.c.h.b16 %v1615
    %v4325 = vunpack.c.l.b16 %v1616
    %v4326 = vunpack.c.h.b16 %v1616
    %v4327 = vunpack.c.l.b16 %v1617
    %v4328 = vunpack.c.h.b16 %v1617
    %v4329 = vunpack.c.l.b16 %v1618
    %v4330 = vunpack.c.h.b16 %v1618
    %v4331 = vunpack.c.l.b16 %v1619
    %v4332 = vunpack.c.h.b16 %v1619
    %v4333 = vunpack.c.l.b16 %v1620
    %v4334 = vunpack.c.h.b16 %v1620
    %v4335 = vunpack.c.l.b16 %v1621
    %v4336 = vunpack.c.h.b16 %v1621
    %v4337 = vunpack.c.l.b16 %v1622
    %v4338 = vunpack.c.h.b16 %v1622
    %v4339 = vunpack.c.l.b16 %v1623
    %v4340 = vunpack.c.h.b16 %v1623
    %v4341 = vunpack.c.l.b16 %v1624
    %v4342 = vunpack.c.h.b16 %v1624
    %v4343 = vunpack.c.l.b16 %v1625
    %v4344 = vunpack.c.h.b16 %v1625
    %v4345 = vunpack.c.l.b16 %v1626
    %v4346 = vunpack.c.h.b16 %v1626
    %v4347 = vunpack.c.l.b16 %v1627
    %v4348 = vunpack.c.h.b16 %v1627
    %v4349 = vunpack.c.l.b16 %v1628
    %v4350 = vunpack.c.h.b16 %v1628
    %v4351 = vunpack.c.l.b16 %v1629
    %v4352 = vunpack.c.h.b16 %v1629
    %v4353 = vunpack.c.l.b16 %v1630
    %v4354 = vunpack.c.h.b16 %v1630
    %v4355 = vunpack.c.l.b16 %v1631
    %v4356 = vunpack.c.h.b16 %v1631
    %v4357 = vunpack.c.l.b16 %v1632
    %v4358 = vunpack.c.h.b16 %v1632
    %v4359 = vunpack.c.l.b16 %v1633
    %v4360 = vunpack.c.h.b16 %v1633
    %v4361 = vunpack.c.l.b16 %v1634
    %v4362 = vunpack.c.h.b16 %v1634
    %v4363 = vunpack.c.l.b16 %v1635
    %v4364 = vunpack.c.h.b16 %v1635
    %v4365 = vunpack.c.l.b16 %v1636
    %v4366 = vunpack.c.h.b16 %v1636
    %v4367 = vunpack.c.l.b16 %v1637
    %v4368 = vunpack.c.h.b16 %v1637
    %v4369 = vunpack.c.l.b16 %v1638
    %v4370 = vunpack.c.h.b16 %v1638
    %v4371 = vunpack.c.l.b16 %v1639
    %v4372 = vunpack.c.h.b16 %v1639
    %v4373 = vunpack.c.l.b16 %v1640
    %v4374 = vunpack.c.h.b16 %v1640
    %v4375 = vunpack.c.l.b16 %v1641
    %v4376 = vunpack.c.h.b16 %v1641
    %v4377 = vunpack.c.l.b16 %v1642
    %v4378 = vunpack.c.h.b16 %v1642
    %v4379 = vunpack.c.l.b16 %v1643
    %v4380 = vunpack.c.h.b16 %v1643
    %v4381 = vunpack.c.l.b16 %v1644
    %v4382 = vunpack.c.h.b16 %v1644
    %v4383 = vunpack.c.l.b16 %v1645
    %v4384 = vunpack.c.h.b16 %v1645
    %v4385 = vunpack.c.l.b16 %v1646
    %v4386 = vunpack.c.h.b16 %v1646
    %v4387 = vunpack.c.l.b16 %v1647
    %v4388 = vunpack.c.h.b16 %v1647
    %v4389 = vunpack.c.l.b16 %v1648
    %v4390 = vunpack.c.h.b16 %v1648
    %v4391 = vunpack.c.l.b16 %v1649
    %v4392 = vunpack.c.h.b16 %v1649
    %v4393 = vunpack.c.l.b16 %v1650
    %v4394 = vunpack.c.h.b16 %v1650
    %v4395 = vunpack.c.l.b16 %v1651
    %v4396 = vunpack.c.h.b16 %v1651
    %v4397 = vunpack.c.l.b16 %v1652
    %v4398 = vunpack.c.h.b16 %v1652
    %v4399 = vunpack.c.l.b16 %v1653
    %v4400 = vunpack.c.h.b16 %v1653
    %v4401 = vunpack.c.l.b16 %v1654
    %v4402 = vunpack.c.h.b16 %v1654
    %v4403 = vunpack.c.l.b16 %v1655
    %v4404 = vunpack.c.h.b16 %v1655
    %v4405 = vunpack.c.l.b16 %v1656
    %v4406 = vunpack.c.h.b16 %v1656
    %v4407 = vunpack.c.l.b16 %v1657
    %v4408 = vunpack.c.h.b16 %v1657
    %v4409 = vunpack.c.l.b16 %v1658
    %v4410 = vunpack.c.h.b16 %v1658
    %v4411 = vunpack.c.l.b16 %v1659
    %v4412 = vunpack.c.h.b16 %v1659
    %v4413 = vunpack.c.l.b16 %v1660
    %v4414 = vunpack.c.h.b16 %v1660
    %v4415 = vunpack.c.l.b16 %v1661
    %v4416 = vunpack.c.h.b16 %v1661
    %v4417 = vunpack.c.l.b16 %v1662
    %v4418 = vunpack.c.h.b16 %v1662
    %v4419 = vunpack.c.l.b16 %v1663
    %v4420 = vunpack.c.h.b16 %v1663
    %v4421 = vunpack.c.l.b16 %v1664
    %v4422 = vunpack.c.h.b16 %v1664
    %v4423 = vunpack.c.l.b16 %v1665
    %v4424 = vunpack.c.h.b16 %v1665
    %v4425 = vunpack.c.l.b16 %v1666
    %v4426 = vunpack.c.h.b16 %v1666
    %v4427 = vunpack.c.l.b16 %v1667
    %v4428 = vunpack.c.h.b16 %v1667
    %v4429 = vunpack.c.l.b16 %v1668
    %v4430 = vunpack.c.h.b16 %v1668
    %v4431 = vunpack.c.l.b16 %v1669
    %v4432 = vunpack.c.h.b16 %v1669
    %v4433 = vunpack.c.l.b16 %v1670
    %v4434 = vunpack.c.h.b16 %v1670
    %v4435 = vunpack.c.l.b16 %v1671
    %v4436 = vunpack.c.h.b16 %v1671
    %v4437 = vunpack.c.l.b16 %v1672
    %v4438 = vunpack.c.h.b16 %v1672
    %v4439 = vunpack.c.l.b16 %v1673
    %v4440 = vunpack.c.h.b16 %v1673
    %v4441 = vunpack.c.l.b16 %v1674
    %v4442 = vunpack.c.h.b16 %v1674
    %v4443 = vunpack.c.l.b16 %v1675
    %v4444 = vunpack.c.h.b16 %v1675
    %v4445 = vunpack.c.l.b16 %v1676
    %v4446 = vunpack.c.h.b16 %v1676
    %v4447 = vunpack.c.l.b16 %v1677
    %v4448 = vunpack.c.h.b16 %v1677
    %v4449 = vunpack.c.l.b16 %v1678
    %v4450 = vunpack.c.h.b16 %v1678
    %v4451 = vunpack.c.l.b16 %v1679
    %v4452 = vunpack.c.h.b16 %v1679
    %v4453 = vunpack.c.l.b16 %v1680
    %v4454 = vunpack.c.h.b16 %v1680
    %v4455 = vunpack.c.l.b16 %v1681
    %v4456 = vunpack.c.h.b16 %v1681
    %v4457 = vunpack.c.l.b16 %v1682
    %v4458 = vunpack.c.h.b16 %v1682
    %v4459 = vunpack.c.l.b16 %v1683
    %v4460 = vunpack.c.h.b16 %v1683
    %v4461 = vunpack.c.l.b16 %v1684
    %v4462 = vunpack.c.h.b16 %v1684
    %v4463 = vunpack.c.l.b16 %v1685
    %v4464 = vunpack.c.h.b16 %v1685
    %v4465 = vunpack.c.l.b16 %v1686
    %v4466 = vunpack.c.h.b16 %v1686
    %v4467 = vunpack.c.l.b16 %v1687
    %v4468 = vunpack.c.h.b16 %v1687
    %v4469 = vunpack.c.l.b16 %v1688
    %v4470 = vunpack.c.h.b16 %v1688
    %v4471 = vunpack.c.l.b16 %v1689
    %v4472 = vunpack.c.h.b16 %v1689
    %v4473 = vunpack.c.l.b16 %v1690
    %v4474 = vunpack.c.h.b16 %v1690
    %v4475 = vunpack.c.l.b16 %v1691
    %v4476 = vunpack.c.h.b16 %v1691
    %v4477 = vunpack.c.l.b16 %v1692
    %v4478 = vunpack.c.h.b16 %v1692
    %v4479 = vunpack.c.l.b16 %v1693
    %v4480 = vunpack.c.h.b16 %v1693
    %v4481 = vunpack.c.l.b16 %v1694
    %v4482 = vunpack.c.h.b16 %v1694
    %v4483 = vunpack.c.l.b16 %v1695
    %v4484 = vunpack.c.h.b16 %v1695
    %v4485 = vunpack.c.l.b16 %v1696
    %v4486 = vunpack.c.h.b16 %v1696
    %v4487 = vunpack.c.l.b16 %v1697
    %v4488 = vunpack.c.h.b16 %v1697
    %v4489 = vunpack.c.l.b16 %v1698
    %v4490 = vunpack.c.h.b16 %v1698
    %v4491 = vunpack.c.l.b16 %v1699
    %v4492 = vunpack.c.h.b16 %v1699
    %v4493 = vunpack.c.l.b16 %v1700
    %v4494 = vunpack.c.h.b16 %v1700
    %v4495 = vunpack.c.l.b16 %v1701
    %v4496 = vunpack.c.h.b16 %v1701
    %v4497 = vunpack.c.l.b16 %v1702
    %v4498 = vunpack.c.h.b16 %v1702
    %v4499 = vunpack.c.l.b16 %v1703
    %v4500 = vunpack.c.h.b16 %v1703
    %v4501 = vunpack.c.l.b16 %v1704
    %v4502 = vunpack.c.h.b16 %v1704
    %v4503 = vunpack.c.l.b16 %v1705
    %v4504 = vunpack.c.h.b16 %v1705
    %v4505 = vunpack.c.l.b16 %v1706
    %v4506 = vunpack.c.h.b16 %v1706
    %v4507 = vunpack.c.l.b16 %v1707
    %v4508 = vunpack.c.h.b16 %v1707
    %v4509 = vunpack.c.l.b16 %v1708
    %v4510 = vunpack.c.h.b16 %v1708
    %v4511 = vunpack.c.l.b16 %v1709
    %v4512 = vunpack.c.h.b16 %v1709
    %v4513 = vunpack.c.l.b16 %v1710
    %v4514 = vunpack.c.h.b16 %v1710
    %v4515 = vunpack.c.l.b16 %v1711
    %v4516 = vunpack.c.h.b16 %v1711
    %v4517 = vunpack.c.l.b16 %v1712
    %v4518 = vunpack.c.h.b16 %v1712
    %v4519 = vunpack.c.l.b16 %v1713
    %v4520 = vunpack.c.h.b16 %v1713
    %v4521 = vunpack.c.l.b16 %v1714
    %v4522 = vunpack.c.h.b16 %v1714
    %v4523 = vunpack.c.l.b16 %v1715
    %v4524 = vunpack.c.h.b16 %v1715
    %v4525 = vunpack.c.l.b16 %v1716
    %v4526 = vunpack.c.h.b16 %v1716
    %v4527 = vunpack.c.l.b16 %v1717
    %v4528 = vunpack.c.h.b16 %v1717
    %v4529 = vunpack.c.l.b16 %v1718
    %v4530 = vunpack.c.h.b16 %v1718
    %v4531 = vunpack.c.l.b16 %v1719
    %v4532 = vunpack.c.h.b16 %v1719
    %v4533 = vunpack.c.l.b16 %v1720
    %v4534 = vunpack.c.h.b16 %v1720
    %v4535 = vunpack.c.l.b16 %v1721
    %v4536 = vunpack.c.h.b16 %v1721
    %v4537 = vunpack.c.l.b16 %v1722
    %v4538 = vunpack.c.h.b16 %v1722
    %v4539 = vunpack.c.l.b16 %v1723
    %v4540 = vunpack.c.h.b16 %v1723
    %v4541 = vunpack.c.l.b16 %v1724
    %v4542 = vunpack.c.h.b16 %v1724
    %v4543 = vunpack.c.l.b16 %v1725
    %v4544 = vunpack.c.h.b16 %v1725
    %v4545 = vunpack.c.l.b16 %v1726
    %v4546 = vunpack.c.h.b16 %v1726
    %v4547 = vunpack.c.l.b16 %v1727
    %v4548 = vunpack.c.h.b16 %v1727
    %v4549 = vunpack.c.l.b16 %v1728
    %v4550 = vunpack.c.h.b16 %v1728
    %v4551 = vunpack.c.l.b16 %v1729
    %v4552 = vunpack.c.h.b16 %v1729
    %v4553 = vunpack.c.l.b16 %v1730
    %v4554 = vunpack.c.h.b16 %v1730
    %v4555 = vunpack.c.l.b16 %v1731
    %v4556 = vunpack.c.h.b16 %v1731
    %v4557 = vunpack.c.l.b16 %v1732
    %v4558 = vunpack.c.h.b16 %v1732
    %v4559 = vunpack.c.l.b16 %v1733
    %v4560 = vunpack.c.h.b16 %v1733
    %v4561 = vunpack.c.l.b16 %v1734
    %v4562 = vunpack.c.h.b16 %v1734
    %v4563 = vunpack.c.l.b16 %v1735
    %v4564 = vunpack.c.h.b16 %v1735
    %v4565 = vunpack.c.l.b16 %v1736
    %v4566 = vunpack.c.h.b16 %v1736
    %v4567 = vunpack.c.l.b16 %v1737
    %v4568 = vunpack.c.h.b16 %v1737
    %v4569 = vunpack.c.l.b16 %v1738
    %v4570 = vunpack.c.h.b16 %v1738
    %v4571 = vunpack.c.l.b16 %v1739
    %v4572 = vunpack.c.h.b16 %v1739
    %v4573 = vunpack.c.l.b16 %v1740
    %v4574 = vunpack.c.h.b16 %v1740
    %v4575 = vunpack.c.l.b16 %v1741
    %v4576 = vunpack.c.h.b16 %v1741
    %v4577 = vunpack.c.l.b16 %v1742
    %v4578 = vunpack.c.h.b16 %v1742
    %v4579 = vunpack.c.l.b16 %v1743
    %v4580 = vunpack.c.h.b16 %v1743
    %v4581 = vunpack.c.l.b16 %v1744
    %v4582 = vunpack.c.h.b16 %v1744
    %v4583 = vunpack.c.l.b16 %v1745
    %v4584 = vunpack.c.h.b16 %v1745
    %v4585 = vunpack.c.l.b16 %v1746
    %v4586 = vunpack.c.h.b16 %v1746
    %v4587 = vunpack.c.l.b16 %v1747
    %v4588 = vunpack.c.h.b16 %v1747
    %v4589 = vunpack.c.l.b16 %v1748
    %v4590 = vunpack.c.h.b16 %v1748
    %v4591 = vunpack.c.l.b16 %v1749
    %v4592 = vunpack.c.h.b16 %v1749
    %v4593 = vunpack.c.l.b16 %v1750
    %v4594 = vunpack.c.h.b16 %v1750
    %v4595 = vunpack.c.l.b16 %v1751
    %v4596 = vunpack.c.h.b16 %v1751
    %v4597 = vunpack.c.l.b16 %v1752
    %v4598 = vunpack.c.h.b16 %v1752
    %v4599 = vunpack.c.l.b16 %v1753
    %v4600 = vunpack.c.h.b16 %v1753
    %v4601 = vunpack.c.l.b16 %v1754
    %v4602 = vunpack.c.h.b16 %v1754
    %v4603 = vunpack.c.l.b16 %v1755
    %v4604 = vunpack.c.h.b16 %v1755
    %v4605 = vunpack.c.l.b16 %v1756
    %v4606 = vunpack.c.h.b16 %v1756
    %v4607 = vunpack.c.l.b16 %v1757
    %v4608 = vunpack.c.h.b16 %v1757
    %v4609 = vunpack.c.l.b16 %v1758
    %v4610 = vunpack.c.h.b16 %v1758
    %v4611 = vunpack.c.l.b16 %v1759
    %v4612 = vunpack.c.h.b16 %v1759
    %v4613 = vunpack.c.l.b16 %v1760
    %v4614 = vunpack.c.h.b16 %v1760
    %v4615 = vunpack.c.l.b16 %v1761
    %v4616 = vunpack.c.h.b16 %v1761
    %v4617 = vunpack.c.l.b16 %v1762
    %v4618 = vunpack.c.h.b16 %v1762
    %v4619 = vunpack.c.l.b16 %v1763
    %v4620 = vunpack.c.h.b16 %v1763
    %v4621 = vunpack.c.l.b16 %v1764
    %v4622 = vunpack.c.h.b16 %v1764
    %v4623 = vunpack.c.l.b16 %v1765
    %v4624 = vunpack.c.h.b16 %v1765
    %v4625 = vunpack.c.l.b16 %v1766
    %v4626 = vunpack.c.h.b16 %v1766
    %v4627 = vunpack.c.l.b16 %v1767
    %v4628 = vunpack.c.h.b16 %v1767
    %v4629 = vunpack.c.l.b16 %v1768
    %v4630 = vunpack.c.h.b16 %v1768
    %v4631 = vunpack.c.l.b16 %v1769
    %v4632 = vunpack.c.h.b16 %v1769
    %v4633 = vunpack.c.l.b16 %v1770
    %v4634 = vunpack.c.h.b16 %v1770
    %v4635 = vunpack.c.l.b16 %v1771
    %v4636 = vunpack.c.h.b16 %v1771
    %v4637 = vunpack.c.l.b16 %v1772
    %v4638 = vunpack.c.h.b16 %v1772
    %v4639 = vunpack.c.l.b16 %v1773
    %v4640 = vunpack.c.h.b16 %v1773
    %v4641 = vunpack.c.l.b16 %v1774
    %v4642 = vunpack.c.h.b16 %v1774
    %v4643 = vunpack.c.l.b16 %v1775
    %v4644 = vunpack.c.h.b16 %v1775
    %v4645 = vunpack.c.l.b16 %v1776
    %v4646 = vunpack.c.h.b16 %v1776
    %v4647 = vunpack.c.l.b16 %v1777
    %v4648 = vunpack.c.h.b16 %v1777
    %v4649 = vunpack.c.l.b16 %v1778
    %v4650 = vunpack.c.h.b16 %v1778
    %v4651 = vunpack.c.l.b16 %v1779
    %v4652 = vunpack.c.h.b16 %v1779
    %v4653 = vunpack.c.l.b16 %v1780
    %v4654 = vunpack.c.h.b16 %v1780
    %v4655 = vunpack.c.l.b16 %v1781
    %v4656 = vunpack.c.h.b16 %v1781
    %v4657 = vunpack.c.l.b16 %v1782
    %v4658 = vunpack.c.h.b16 %v1782
    %v4659 = vunpack.c.l.b16 %v1783
    %v4660 = vunpack.c.h.b16 %v1783
    %v4661 = vunpack.c.l.b16 %v1784
    %v4662 = vunpack.c.h.b16 %v1784
    %v4663 = vunpack.c.l.b16 %v1785
    %v4664 = vunpack.c.h.b16 %v1785
    %v4665 = vunpack.c.l.b16 %v1786
    %v4666 = vunpack.c.h.b16 %v1786
    %v4667 = vunpack.c.l.b16 %v1787
    %v4668 = vunpack.c.h.b16 %v1787
    %v4669 = vunpack.c.l.b16 %v1788
    %v4670 = vunpack.c.h.b16 %v1788
    %v4671 = vunpack.c.l.b16 %v1789
    %v4672 = vunpack.c.h.b16 %v1789
    %v4673 = vunpack.c.l.b16 %v1790
    %v4674 = vunpack.c.h.b16 %v1790
    %v4675 = vunpack.c.l.b16 %v1791
    %v4676 = vunpack.c.h.b16 %v1791
    %v4677 = vunpack.c.l.b16 %v1792
    %v4678 = vunpack.c.h.b16 %v1792
    %v4679 = vunpack.c.l.b16 %v1793
    %v4680 = vunpack.c.h.b16 %v1793
    %v4681 = vunpack.c.l.b16 %v1794
    %v4682 = vunpack.c.h.b16 %v1794
    %v4683 = vunpack.c.l.b16 %v1795
    %v4684 = vunpack.c.h.b16 %v1795
    %v4685 = vunpack.c.l.b16 %v1796
    %v4686 = vunpack.c.h.b16 %v1796
    %v4687 = vunpack.c.l.b16 %v1797
    %v4688 = vunpack.c.h.b16 %v1797
    %v4689 = vunpack.c.l.b16 %v1798
    %v4690 = vunpack.c.h.b16 %v1798
    %v4691 = vunpack.c.l.b16 %v1799
    %v4692 = vunpack.c.h.b16 %v1799
    %v4693 = vunpack.c.l.b16 %v1800
    %v4694 = vunpack.c.h.b16 %v1800
    %v4695 = vunpack.c.l.b16 %v1801
    %v4696 = vunpack.c.h.b16 %v1801
    %v4697 = vunpack.c.l.b16 %v1802
    %v4698 = vunpack.c.h.b16 %v1802
    %v4699 = vunpack.c.l.b16 %v1803
    %v4700 = vunpack.c.h.b16 %v1803
    %v4701 = vunpack.c.l.b16 %v1804
    %v4702 = vunpack.c.h.b16 %v1804
    %v4703 = vunpack.c.l.b16 %v1805
    %v4704 = vunpack.c.h.b16 %v1805
    %v4705 = vunpack.c.l.b16 %v1806
    %v4706 = vunpack.c.h.b16 %v1806
    %v4707 = vunpack.c.l.b16 %v1807
    %v4708 = vunpack.c.h.b16 %v1807
    %v4709 = vunpack.c.l.b16 %v1808
    %v4710 = vunpack.c.h.b16 %v1808
    %v4711 = vunpack.c.l.b16 %v1809
    %v4712 = vunpack.c.h.b16 %v1809
    %v4713 = vunpack.c.l.b16 %v1810
    %v4714 = vunpack.c.h.b16 %v1810
    %v4715 = vunpack.c.l.b16 %v1811
    %v4716 = vunpack.c.h.b16 %v1811
    %v4717 = vunpack.c.l.b16 %v1812
    %v4718 = vunpack.c.h.b16 %v1812
    %v4719 = vunpack.c.l.b16 %v1813
    %v4720 = vunpack.c.h.b16 %v1813
    %v4721 = vunpack.c.l.b16 %v1814
    %v4722 = vunpack.c.h.b16 %v1814
    %v4723 = vunpack.c.l.b16 %v1815
    %v4724 = vunpack.c.h.b16 %v1815
    %v4725 = vunpack.c.l.b16 %v1816
    %v4726 = vunpack.c.h.b16 %v1816
    %v4727 = vunpack.c.l.b16 %v1817
    %v4728 = vunpack.c.h.b16 %v1817
    %v4729 = vunpack.c.l.b16 %v1818
    %v4730 = vunpack.c.h.b16 %v1818
    %v4731 = vunpack.c.l.b16 %v1819
    %v4732 = vunpack.c.h.b16 %v1819
    %v4733 = vunpack.c.l.b16 %v1820
    %v4734 = vunpack.c.h.b16 %v1820
    %v4735 = vunpack.c.l.b16 %v1821
    %v4736 = vunpack.c.h.b16 %v1821
    %v4737 = vunpack.c.l.b16 %v1822
    %v4738 = vunpack.c.h.b16 %v1822
    %v4739 = vunpack.c.l.b16 %v1823
    %v4740 = vunpack.c.h.b16 %v1823
    %v4741 = vunpack.c.l.b16 %v1824
    %v4742 = vunpack.c.h.b16 %v1824
    %v4743 = vunpack.c.l.b16 %v1825
    %v4744 = vunpack.c.h.b16 %v1825
    %v4745 = vunpack.c.l.b16 %v1826
    %v4746 = vunpack.c.h.b16 %v1826
    %v4747 = vunpack.c.l.b16 %v1827
    %v4748 = vunpack.c.h.b16 %v1827
    %v4749 = vunpack.c.l.b16 %v1828
    %v4750 = vunpack.c.h.b16 %v1828
    %v4751 = vunpack.c.l.b16 %v1829
    %v4752 = vunpack.c.h.b16 %v1829
    %v4753 = vunpack.c.l.b16 %v1830
    %v4754 = vunpack.c.h.b16 %v1830
    %v4755 = vunpack.c.l.b16 %v1831
    %v4756 = vunpack.c.h.b16 %v1831
    %v4757 = vunpack.c.l.b16 %v1832
    %v4758 = vunpack.c.h.b16 %v1832
    %v4759 = vunpack.c.l.b16 %v1833
    %v4760 = vunpack.c.h.b16 %v1833
    %v4761 = vunpack.c.l.b16 %v1834
    %v4762 = vunpack.c.h.b16 %v1834
    %v4763 = vunpack.c.l.b16 %v1835
    %v4764 = vunpack.c.h.b16 %v1835
    %v4765 = vunpack.c.l.b16 %v1836
    %v4766 = vunpack.c.h.b16 %v1836
    %v4767 = vunpack.c.l.b16 %v1837
    %v4768 = vunpack.c.h.b16 %v1837
    %v4769 = vunpack.c.l.b16 %v1838
    %v4770 = vunpack.c.h.b16 %v1838
    %v4771 = vunpack.c.l.b16 %v1839
    %v4772 = vunpack.c.h.b16 %v1839
    %v4773 = vunpack.c.l.b16 %v1840
    %v4774 = vunpack.c.h.b16 %v1840
    %v4775 = vunpack.c.l.b16 %v1841
    %v4776 = vunpack.c.h.b16 %v1841
    %v4777 = vunpack.c.l.b16 %v1842
    %v4778 = vunpack.c.h.b16 %v1842
    %v4779 = vunpack.c.l.b16 %v1843
    %v4780 = vunpack.c.h.b16 %v1843
    %v4781 = vunpack.c.l.b16 %v1844
    %v4782 = vunpack.c.h.b16 %v1844
    %v4783 = vunpack.c.l.b16 %v1845
    %v4784 = vunpack.c.h.b16 %v1845
    %v4785 = vunpack.c.l.b16 %v1846
    %v4786 = vunpack.c.h.b16 %v1846
    %v4787 = vunpack.c.l.b16 %v1847
    %v4788 = vunpack.c.h.b16 %v1847
    %v4789 = vunpack.c.l.b16 %v1848
    %v4790 = vunpack.c.h.b16 %v1848
    %v4791 = vunpack.c.l.b16 %v1849
    %v4792 = vunpack.c.h.b16 %v1849
    %v4793 = vunpack.c.l.b16 %v1850
    %v4794 = vunpack.c.h.b16 %v1850
    %v4795 = vunpack.c.l.b16 %v1851
    %v4796 = vunpack.c.h.b16 %v1851
    %v4797 = vunpack.c.l.b16 %v1852
    %v4798 = vunpack.c.h.b16 %v1852
    %v4799 = vunpack.c.l.b16 %v1853
    %v4800 = vunpack.c.h.b16 %v1853
    %v4801 = vunpack.c.l.b16 %v1854
    %v4802 = vunpack.c.h.b16 %v1854
    %v4803 = vunpack.c.l.b16 %v1855
    %v4804 = vunpack.c.h.b16 %v1855
    %v4805 = vunpack.c.l.b16 %v1856
    %v4806 = vunpack.c.h.b16 %v1856
    %v4807 = vunpack.c.l.b16 %v1857
    %v4808 = vunpack.c.h.b16 %v1857
    %v4809 = vunpack.c.l.b16 %v1858
    %v4810 = vunpack.c.h.b16 %v1858
    %v4811 = vunpack.c.l.b16 %v1859
    %v4812 = vunpack.c.h.b16 %v1859
    %v4813 = vunpack.c.l.b16 %v1860
    %v4814 = vunpack.c.h.b16 %v1860
    %v4815 = vunpack.c.l.b16 %v1861
    %v4816 = vunpack.c.h.b16 %v1861
    %v4817 = vunpack.c.l.b16 %v1862
    %v4818 = vunpack.c.h.b16 %v1862
    %v4819 = vunpack.c.l.b16 %v1863
    %v4820 = vunpack.c.h.b16 %v1863
    %v4821 = vunpack.c.l.b16 %v1864
    %v4822 = vunpack.c.h.b16 %v1864
    %v4823 = vunpack.c.l.b16 %v1865
    %v4824 = vunpack.c.h.b16 %v1865
    %v4825 = vunpack.c.l.b16 %v1866
    %v4826 = vunpack.c.h.b16 %v1866
    %v4827 = vunpack.c.l.b16 %v1867
    %v4828 = vunpack.c.h.b16 %v1867
    %v4829 = vunpack.c.l.b16 %v1868
    %v4830 = vunpack.c.h.b16 %v1868
    %v4831 = vunpack.c.l.b16 %v1869
    %v4832 = vunpack.c.h.b16 %v1869
    %v4833 = vunpack.c.l.b16 %v1870
    %v4834 = vunpack.c.h.b16 %v1870
    %v4835 = vunpack.c.l.b16 %v1871
    %v4836 = vunpack.c.h.b16 %v1871
    %v4837 = vunpack.c.l.b16 %v1872
    %v4838 = vunpack.c.h.b16 %v1872
    %v4839 = vunpack.c.l.b16 %v1873
    %v4840 = vunpack.c.h.b16 %v1873
    %v4841 = vunpack.c.l.b16 %v1874
    %v4842 = vunpack.c.h.b16 %v1874
    %v4843 = vunpack.c.l.b16 %v1875
    %v4844 = vunpack.c.h.b16 %v1875
    %v4845 = vunpack.c.l.b16 %v1876
    %v4846 = vunpack.c.h.b16 %v1876
    %v4847 = vunpack.c.l.b16 %v1877
    %v4848 = vunpack.c.h.b16 %v1877
    %v4849 = vunpack.c.l.b16 %v1878
    %v4850 = vunpack.c.h.b16 %v1878
    %v4851 = vunpack.c.l.b16 %v1879
    %v4852 = vunpack.c.h.b16 %v1879
    %v4853 = vunpack.c.l.b16 %v1880
    %v4854 = vunpack.c.h.b16 %v1880
    %v4855 = vunpack.c.l.b16 %v1881
    %v4856 = vunpack.c.h.b16 %v1881
    %v4857 = vunpack.c.l.b16 %v1882
    %v4858 = vunpack.c.h.b16 %v1882
    %v4859 = vunpack.c.l.b16 %v1883
    %v4860 = vunpack.c.h.b16 %v1883
    %v4861 = vunpack.c.l.b16 %v1884
    %v4862 = vunpack.c.h.b16 %v1884
    %v4863 = vunpack.c.l.b16 %v1885
    %v4864 = vunpack.c.h.b16 %v1885
    %v4865 = vunpack.c.l.b16 %v1886
    %v4866 = vunpack.c.h.b16 %v1886
    %v4867 = vunpack.c.l.b16 %v1887
    %v4868 = vunpack.c.h.b16 %v1887
    %v4869 = vunpack.c.l.b16 %v1888
    %v4870 = vunpack.c.h.b16 %v1888
    %v4871 = vunpack.c.l.b16 %v1889
    %v4872 = vunpack.c.h.b16 %v1889
    %v4873 = vunpack.c.l.b16 %v1890
    %v4874 = vunpack.c.h.b16 %v1890
    %v4875 = vunpack.c.l.b16 %v1891
    %v4876 = vunpack.c.h.b16 %v1891
    %v4877 = vunpack.c.l.b16 %v1892
    %v4878 = vunpack.c.h.b16 %v1892
    %v4879 = vunpack.c.l.b16 %v1893
    %v4880 = vunpack.c.h.b16 %v1893
    %v4881 = vunpack.c.l.b16 %v1894
    %v4882 = vunpack.c.h.b16 %v1894
    %v4883 = vunpack.c.l.b16 %v1895
    %v4884 = vunpack.c.h.b16 %v1895
    %v4885 = vunpack.c.l.b16 %v1896
    %v4886 = vunpack.c.h.b16 %v1896
    %v4887 = vunpack.c.l.b16 %v1897
    %v4888 = vunpack.c.h.b16 %v1897
    %v4889 = vunpack.c.l.b16 %v1898
    %v4890 = vunpack.c.h.b16 %v1898
    %v4891 = vunpack.c.l.b16 %v1899
    %v4892 = vunpack.c.h.b16 %v1899
    %v4893 = vunpack.c.l.b16 %v1900
    %v4894 = vunpack.c.h.b16 %v1900
    %v4895 = vunpack.c.l.b16 %v1901
    %v4896 = vunpack.c.h.b16 %v1901
    %v4897 = vunpack.c.l.b16 %v1902
    %v4898 = vunpack.c.h.b16 %v1902
    %v4899 = vunpack.c.l.b16 %v1903
    %v4900 = vunpack.c.h.b16 %v1903
    %v4901 = vunpack.c.l.b16 %v1904
    %v4902 = vunpack.c.h.b16 %v1904
    %v4903 = vunpack.c.l.b16 %v1905
    %v4904 = vunpack.c.h.b16 %v1905
    %v4905 = vunpack.c.l.b16 %v1906
    %v4906 = vunpack.c.h.b16 %v1906
    %v4907 = vunpack.c.l.b16 %v1907
    %v4908 = vunpack.c.h.b16 %v1907
    %v4909 = vunpack.c.l.b16 %v1908
    %v4910 = vunpack.c.h.b16 %v1908
    %v4911 = vunpack.c.l.b16 %v1909
    %v4912 = vunpack.c.h.b16 %v1909
    %v4913 = vunpack.c.l.b16 %v1910
    %v4914 = vunpack.c.h.b16 %v1910
    %v4915 = vunpack.c.l.b16 %v1911
    %v4916 = vunpack.c.h.b16 %v1911
    %v4917 = vunpack.c.l.b16 %v1912
    %v4918 = vunpack.c.h.b16 %v1912
    %v4919 = vunpack.c.l.b16 %v1913
    %v4920 = vunpack.c.h.b16 %v1913
    %v4921 = vunpack.c.l.b16 %v1914
    %v4922 = vunpack.c.h.b16 %v1914
    %v4923 = vunpack.c.l.b16 %v1915
    %v4924 = vunpack.c.h.b16 %v1915
    %v4925 = vunpack.c.l.b16 %v1916
    %v4926 = vunpack.c.h.b16 %v1916
    %v4927 = vunpack.c.l.b16 %v1917
    %v4928 = vunpack.c.h.b16 %v1917
    %v4929 = vunpack.c.l.b16 %v1918
    %v4930 = vunpack.c.h.b16 %v1918
    %v4931 = vunpack.c.l.b16 %v1919
    %v4932 = vunpack.c.h.b16 %v1919
    %v4933 = vunpack.c.l.b16 %v1920
    %v4934 = vunpack.c.h.b16 %v1920
    %v4935 = vunpack.c.l.b16 %v1921
    %v4936 = vunpack.c.h.b16 %v1921
    %v4937 = vunpack.c.l.b16 %v1922
    %v4938 = vunpack.c.h.b16 %v1922
    %v4939 = vunpack.c.l.b16 %v1923
    %v4940 = vunpack.c.h.b16 %v1923
    %v4941 = vunpack.c.l.b16 %v1924
    %v4942 = vunpack.c.h.b16 %v1924
    %v4943 = vunpack.c.l.b16 %v1925
    %v4944 = vunpack.c.h.b16 %v1925
    %v4945 = vunpack.c.l.b16 %v1926
    %v4946 = vunpack.c.h.b16 %v1926
    %v4947 = vunpack.c.l.b16 %v1927
    %v4948 = vunpack.c.h.b16 %v1927
    %v4949 = vunpack.c.l.b16 %v1928
    %v4950 = vunpack.c.h.b16 %v1928
    %v4951 = vunpack.c.l.b16 %v1929
    %v4952 = vunpack.c.h.b16 %v1929
    %v4953 = vunpack.c.l.b16 %v1930
    %v4954 = vunpack.c.h.b16 %v1930
    %v4955 = vunpack.c.l.b16 %v1931
    %v4956 = vunpack.c.h.b16 %v1931
    %v4957 = vunpack.c.l.b16 %v1932
    %v4958 = vunpack.c.h.b16 %v1932
    %v4959 = vunpack.c.l.b16 %v1933
    %v4960 = vunpack.c.h.b16 %v1933
    %v4961 = vunpack.c.l.b16 %v1934
    %v4962 = vunpack.c.h.b16 %v1934
    %v4963 = vunpack.c.l.b16 %v1935
    %v4964 = vunpack.c.h.b16 %v1935
    %v4965 = vunpack.c.l.b16 %v1936
    %v4966 = vunpack.c.h.b16 %v1936
    %v4967 = vunpack.c.l.b16 %v1937
    %v4968 = vunpack.c.h.b16 %v1937
    %v4969 = vunpack.c.l.b16 %v1938
    %v4970 = vunpack.c.h.b16 %v1938
    %v4971 = vunpack.c.l.b16 %v1939
    %v4972 = vunpack.c.h.b16 %v1939
    %v4973 = vunpack.c.l.b16 %v1940
    %v4974 = vunpack.c.h.b16 %v1940
    %v4975 = vunpack.c.l.b16 %v1941
    %v4976 = vunpack.c.h.b16 %v1941
    %v4977 = vunpack.c.l.b16 %v1942
    %v4978 = vunpack.c.h.b16 %v1942
    %v4979 = vunpack.c.l.b16 %v1943
    %v4980 = vunpack.c.h.b16 %v1943
    %v4981 = vunpack.c.l.b16 %v1944
    %v4982 = vunpack.c.h.b16 %v1944
    %v4983 = vunpack.c.l.b16 %v1945
    %v4984 = vunpack.c.h.b16 %v1945
    %v4985 = vunpack.c.l.b16 %v1946
    %v4986 = vunpack.c.h.b16 %v1946
    %v4987 = vunpack.c.l.b16 %v1947
    %v4988 = vunpack.c.h.b16 %v1947
    %v4989 = vunpack.c.l.b16 %v1948
    %v4990 = vunpack.c.h.b16 %v1948
    %v4991 = vunpack.c.l.b16 %v1949
    %v4992 = vunpack.c.h.b16 %v1949
    %v4993 = vunpack.c.l.b16 %v1950
    %v4994 = vunpack.c.h.b16 %v1950
    %v4995 = vunpack.c.l.b16 %v1951
    %v4996 = vunpack.c.h.b16 %v1951
    %v4997 = vunpack.c.l.b16 %v1952
    %v4998 = vunpack.c.h.b16 %v1952
    %v4999 = vunpack.c.l.b16 %v1953
    %v5000 = vunpack.c.h.b16 %v1953
    %v5001 = vunpack.c.l.b16 %v1954
    %v5002 = vunpack.c.h.b16 %v1954
    %v5003 = vunpack.c.l.b16 %v1955
    %v5004 = vunpack.c.h.b16 %v1955
    %v5005 = vunpack.c.l.b16 %v1956
    %v5006 = vunpack.c.h.b16 %v1956
    %v5007 = vunpack.c.l.b16 %v1957
    %v5008 = vunpack.c.h.b16 %v1957
    %v5009 = vunpack.c.l.b16 %v1958
    %v5010 = vunpack.c.h.b16 %v1958
    %v5011 = vunpack.c.l.b16 %v1959
    %v5012 = vunpack.c.h.b16 %v1959
    %v5013 = vunpack.c.l.b16 %v1960
    %v5014 = vunpack.c.h.b16 %v1960
    %v5015 = vunpack.c.l.b16 %v1961
    %v5016 = vunpack.c.h.b16 %v1961
    %v5017 = vunpack.c.l.b16 %v1962
    %v5018 = vunpack.c.h.b16 %v1962
    %v5019 = vunpack.c.l.b16 %v1963
    %v5020 = vunpack.c.h.b16 %v1963
    %v5021 = vunpack.c.l.b16 %v1964
    %v5022 = vunpack.c.h.b16 %v1964
    %v5023 = vunpack.c.l.b16 %v1965
    %v5024 = vunpack.c.h.b16 %v1965
    %v5025 = vunpack.c.l.b16 %v1966
    %v5026 = vunpack.c.h.b16 %v1966
    %v5027 = vunpack.c.l.b16 %v1967
    %v5028 = vunpack.c.h.b16 %v1967
    %v5029 = vunpack.c.l.b16 %v1968
    %v5030 = vunpack.c.h.b16 %v1968
    %v5031 = vunpack.c.l.b16 %v1969
    %v5032 = vunpack.c.h.b16 %v1969
    %v5033 = vunpack.c.l.b16 %v1970
    %v5034 = vunpack.c.h.b16 %v1970
    %v5035 = vunpack.c.l.b16 %v1971
    %v5036 = vunpack.c.h.b16 %v1971
    %v5037 = vunpack.c.l.b16 %v1972
    %v5038 = vunpack.c.h.b16 %v1972
    %v5039 = vunpack.c.l.b16 %v1973
    %v5040 = vunpack.c.h.b16 %v1973
    %v5041 = vunpack.c.l.b16 %v1974
    %v5042 = vunpack.c.h.b16 %v1974
    %v5043 = vunpack.c.l.b16 %v1975
    %v5044 = vunpack.c.h.b16 %v1975
    %v5045 = vunpack.c.l.b16 %v1976
    %v5046 = vunpack.c.h.b16 %v1976
    %v5047 = vunpack.c.l.b16 %v1977
    %v5048 = vunpack.c.h.b16 %v1977
    %v5049 = vunpack.c.l.b16 %v1978
    %v5050 = vunpack.c.h.b16 %v1978
    %v5051 = vunpack.c.l.b16 %v1979
    %v5052 = vunpack.c.h.b16 %v1979
    %v5053 = vunpack.c.l.b16 %v1980
    %v5054 = vunpack.c.h.b16 %v1980
    %v5055 = vunpack.c.l.b16 %v1981
    %v5056 = vunpack.c.h.b16 %v1981
    %v5057 = vunpack.c.l.b16 %v1982
    %v5058 = vunpack.c.h.b16 %v1982
    %v5059 = vunpack.c.l.b16 %v1983
    %v5060 = vunpack.c.h.b16 %v1983
    %v5061 = vunpack.c.l.b16 %v1984
    %v5062 = vunpack.c.h.b16 %v1984
    %v5063 = vunpack.c.l.b16 %v1985
    %v5064 = vunpack.c.h.b16 %v1985
    %v5065 = vunpack.c.l.b16 %v1986
    %v5066 = vunpack.c.h.b16 %v1986
    %v5067 = vunpack.c.l.b16 %v1987
    %v5068 = vunpack.c.h.b16 %v1987
    %v5069 = vunpack.c.l.b16 %v1988
    %v5070 = vunpack.c.h.b16 %v1988
    %v5071 = vunpack.c.l.b16 %v1989
    %v5072 = vunpack.c.h.b16 %v1989
    %v5073 = vunpack.c.l.b16 %v1990
    %v5074 = vunpack.c.h.b16 %v1990
    %v5075 = vunpack.c.l.b16 %v1991
    %v5076 = vunpack.c.h.b16 %v1991
    %v5077 = vunpack.c.l.b16 %v1992
    %v5078 = vunpack.c.h.b16 %v1992
    %v5079 = vunpack.c.l.b16 %v1993
    %v5080 = vunpack.c.h.b16 %v1993
    %v5081 = vunpack.c.l.b16 %v1994
    %v5082 = vunpack.c.h.b16 %v1994
    %v5083 = vunpack.c.l.b16 %v1995
    %v5084 = vunpack.c.h.b16 %v1995
    %v5085 = vunpack.c.l.b16 %v1996
    %v5086 = vunpack.c.h.b16 %v1996
    %v5087 = vunpack.c.l.b16 %v1997
    %v5088 = vunpack.c.h.b16 %v1997
    %v5089 = vunpack.c.l.b16 %v1998
    %v5090 = vunpack.c.h.b16 %v1998
    %v5091 = vunpack.c.l.b16 %v1999
    %v5092 = vunpack.c.h.b16 %v1999
    %v5093 = vunpack.c.l.b16 %v2000
    %v5094 = vunpack.c.h.b16 %v2000
    %v5095 = vunpack.c.l.b16 %v2001
    %v5096 = vunpack.c.h.b16 %v2001
    %v5097 = vunpack.c.l.b16 %v2002
    %v5098 = vunpack.c.h.b16 %v2002
    %v5099 = vunpack.c.l.b16 %v2003
    %v5100 = vunpack.c.h.b16 %v2003
    %v5101 = vunpack.c.l.b16 %v2004
    %v5102 = vunpack.c.h.b16 %v2004
    %v5103 = vunpack.c.l.b16 %v2005
    %v5104 = vunpack.c.h.b16 %v2005
    %v5105 = vunpack.c.l.b16 %v2006
    %v5106 = vunpack.c.h.b16 %v2006
    %v5107 = vunpack.c.l.b16 %v2007
    %v5108 = vunpack.c.h.b16 %v2007
    %v5109 = vunpack.c.l.b16 %v2008
    %v5110 = vunpack.c.h.b16 %v2008
    %v5111 = vunpack.c.l.b16 %v2009
    %v5112 = vunpack.c.h.b16 %v2009
    %v5113 = vunpack.c.l.b16 %v2010
    %v5114 = vunpack.c.h.b16 %v2010
    %v5115 = vunpack.c.l.b16 %v2011
    %v5116 = vunpack.c.h.b16 %v2011
    %v5117 = vunpack.c.l.b16 %v2012
    %v5118 = vunpack.c.h.b16 %v2012
    %v5119 = vunpack.c.l.b16 %v2013
    %v5120 = vunpack.c.h.b16 %v2013
    %v5121 = vunpack.c.l.b16 %v2014
    %v5122 = vunpack.c.h.b16 %v2014
    %v5123 = vunpack.c.l.b16 %v2015
    %v5124 = vunpack.c.h.b16 %v2015
    %v5125 = vunpack.c.l.b16 %v2016
    %v5126 = vunpack.c.h.b16 %v2016
    %v5127 = vunpack.c.l.b16 %v2017
    %v5128 = vunpack.c.h.b16 %v2017
    %v5129 = vunpack.c.l.b16 %v2018
    %v5130 = vunpack.c.h.b16 %v2018
    %v5131 = vunpack.c.l.b16 %v2019
    %v5132 = vunpack.c.h.b16 %v2019
    %v5133 = vunpack.c.l.b16 %v2020
    %v5134 = vunpack.c.h.b16 %v2020
    %v5135 = vunpack.c.l.b16 %v2021
    %v5136 = vunpack.c.h.b16 %v2021
    %v5137 = vunpack.c.l.b16 %v2022
    %v5138 = vunpack.c.h.b16 %v2022
    %v5139 = vunpack.c.l.b16 %v2023
    %v5140 = vunpack.c.h.b16 %v2023
    %v5141 = vunpack.c.l.b16 %v2024
    %v5142 = vunpack.c.h.b16 %v2024
    %v5143 = vunpack.c.l.b16 %v2025
    %v5144 = vunpack.c.h.b16 %v2025
    %v5145 = vunpack.c.l.b16 %v2026
    %v5146 = vunpack.c.h.b16 %v2026
    %v5147 = vunpack.c.l.b16 %v2027
    %v5148 = vunpack.c.h.b16 %v2027
    %v5149 = vunpack.c.l.b16 %v2028
    %v5150 = vunpack.c.h.b16 %v2028
    %v5151 = vunpack.c.l.b16 %v2029
    %v5152 = vunpack.c.h.b16 %v2029
    %v5153 = vunpack.c.l.b16 %v2030
    %v5154 = vunpack.c.h.b16 %v2030
    %v5155 = vunpack.c.l.b16 %v2031
    %v5156 = vunpack.c.h.b16 %v2031
    %v5157 = vunpack.c.l.b16 %v2032
    %v5158 = vunpack.c.h.b16 %v2032
    %v5159 = vunpack.c.l.b16 %v2033
    %v5160 = vunpack.c.h.b16 %v2033
    %v5161 = vunpack.c.l.b16 %v2034
    %v5162 = vunpack.c.h.b16 %v2034
    %v5163 = vunpack.c.l.b16 %v2035
    %v5164 = vunpack.c.h.b16 %v2035
    %v5165 = vunpack.c.l.b16 %v2036
    %v5166 = vunpack.c.h.b16 %v2036
    %v5167 = vunpack.c.l.b16 %v2037
    %v5168 = vunpack.c.h.b16 %v2037
    %v5169 = vunpack.c.l.b16 %v2038
    %v5170 = vunpack.c.h.b16 %v2038
    %v5171 = vunpack.c.l.b16 %v2039
    %v5172 = vunpack.c.h.b16 %v2039
    %v5173 = vunpack.c.l.b16 %v2040
    %v5174 = vunpack.c.h.b16 %v2040
    %v5175 = vunpack.c.l.b16 %v2041
    %v5176 = vunpack.c.h.b16 %v2041
    %v5177 = vunpack.c.l.b16 %v2042
    %v5178 = vunpack.c.h.b16 %v2042
    %v5179 = vunpack.c.l.b16 %v2043
    %v5180 = vunpack.c.h.b16 %v2043
    %v5181 = vunpack.c.l.b16 %v2044
    %v5182 = vunpack.c.h.b16 %v2044
    %v5183 = vunpack.c.l.b16 %v2045
    %v5184 = vunpack.c.h.b16 %v2045
    %v5185 = vunpack.c.l.b16 %v2046
    %v5186 = vunpack.c.h.b16 %v2046
    %v5187 = vunpack.c.l.b16 %v2047
    %v5188 = vunpack.c.h.b16 %v2047
    %v5189 = vunpack.c.l.b16 %v2048
    %v5190 = vunpack.c.h.b16 %v2048
    %v5191 = vunpack.c.l.b16 %v2049
    %v5192 = vunpack.c.h.b16 %v2049
    %v5193 = vunpack.c.l.b16 %v2050
    %v5194 = vunpack.c.h.b16 %v2050
    %v5195 = vunpack.c.l.b16 %v2051
    %v5196 = vunpack.c.h.b16 %v2051
    %v5197 = vunpack.c.l.b16 %v2052
    %v5198 = vunpack.c.h.b16 %v2052
    %v5199 = vunpack.c.l.b16 %v2053
    %v5200 = vunpack.c.h.b16 %v2053
    %v5201 = vunpack.c.l.b16 %v2054
    %v5202 = vunpack.c.h.b16 %v2054
    %v5203 = vunpack.c.l.b16 %v2055
    %v5204 = vunpack.c.h.b16 %v2055
    %v5205 = vunpack.c.l.b16 %v2056
    %v5206 = vunpack.c.h.b16 %v2056
    %v5207 = vunpack.c.l.b16 %v2057
    %v5208 = vunpack.c.h.b16 %v2057
    %v5209 = vunpack.c.l.b16 %v2058
    %v5210 = vunpack.c.h.b16 %v2058
    %v5211 = vunpack.c.l.b16 %v2059
    %v5212 = vunpack.c.h.b16 %v2059
    %v5213 = vunpack.c.l.b16 %v2060
    %v5214 = vunpack.c.h.b16 %v2060
    %v5215 = vunpack.c.l.b16 %v2061
    %v5216 = vunpack.c.h.b16 %v2061
    %v5217 = vunpack.c.l.b16 %v2062
    %v5218 = vunpack.c.h.b16 %v2062
    %v5219 = vunpack.c.l.b16 %v2063
    %v5220 = vunpack.c.h.b16 %v2063
    %v5221 = vunpack.c.l.b16 %v2064
    %v5222 = vunpack.c.h.b16 %v2064
    %v5223 = vunpack.c.l.b16 %v2065
    %v5224 = vunpack.c.h.b16 %v2065
    %v5225 = vunpack.c.l.b16 %v2066
    %v5226 = vunpack.c.h.b16 %v2066
    %v5227 = vunpack.c.l.b16 %v2067
    %v5228 = vunpack.c.h.b16 %v2067
    %v5229 = vunpack.c.l.b16 %v2068
    %v5230 = vunpack.c.h.b16 %v2068
    %v5231 = vunpack.c.l.b16 %v2069
    %v5232 = vunpack.c.h.b16 %v2069
    %v5233 = vunpack.c.l.b16 %v2070
    %v5234 = vunpack.c.h.b16 %v2070
    %v5235 = vunpack.c.l.b16 %v2071
    %v5236 = vunpack.c.h.b16 %v2071
    %v5237 = vunpack.c.l.b16 %v2072
    %v5238 = vunpack.c.h.b16 %v2072
    %v5239 = vunpack.c.l.b16 %v2073
    %v5240 = vunpack.c.h.b16 %v2073
    %v5241 = vunpack.c.l.b16 %v2074
    %v5242 = vunpack.c.h.b16 %v2074
    %v5243 = vunpack.c.l.b16 %v2075
    %v5244 = vunpack.c.h.b16 %v2075
    %v5245 = vunpack.c.l.b16 %v2076
    %v5246 = vunpack.c.h.b16 %v2076
    %v5247 = vunpack.c.l.b16 %v2077
    %v5248 = vunpack.c.h.b16 %v2077
    %v5249 = vunpack.c.l.b16 %v2078
    %v5250 = vunpack.c.h.b16 %v2078
    %v5251 = vunpack.c.l.b16 %v2079
    %v5252 = vunpack.c.h.b16 %v2079
    %v5253 = vunpack.c.l.b16 %v2080
    %v5254 = vunpack.c.h.b16 %v2080
    %v5255 = vunpack.c.l.b16 %v2081
    %v5256 = vunpack.c.h.b16 %v2081
    %v5257 = vunpack.c.l.b16 %v2082
    %v5258 = vunpack.c.h.b16 %v2082
    %v5259 = vunpack.c.l.b16 %v2083
    %v5260 = vunpack.c.h.b16 %v2083
    %v5261 = vunpack.c.l.b16 %v2084
    %v5262 = vunpack.c.h.b16 %v2084
    %v5263 = vunpack.c.l.b16 %v2085
    %v5264 = vunpack.c.h.b16 %v2085
    %v5265 = vunpack.c.l.b16 %v2086
    %v5266 = vunpack.c.h.b16 %v2086
    %v5267 = vunpack.c.l.b16 %v2087
    %v5268 = vunpack.c.h.b16 %v2087
    %v5269 = vunpack.c.l.b16 %v2088
    %v5270 = vunpack.c.h.b16 %v2088
    %v5271 = vunpack.c.l.b16 %v2089
    %v5272 = vunpack.c.h.b16 %v2089
    %v5273 = vunpack.c.l.b16 %v2090
    %v5274 = vunpack.c.h.b16 %v2090
    %v5275 = vunpack.c.l.b16 %v2091
    %v5276 = vunpack.c.h.b16 %v2091
    %v5277 = vunpack.c.l.b16 %v2092
    %v5278 = vunpack.c.h.b16 %v2092
    %v5279 = vunpack.c.l.b16 %v2093
    %v5280 = vunpack.c.h.b16 %v2093
    %v5281 = vunpack.c.l.b16 %v2094
    %v5282 = vunpack.c.h.b16 %v2094
    %v5283 = vpack.c.b16 %v3243, %v3235
    %v5284 = vpack.c.b16 %v3244, %v3236
    %v5285 = vpack.c.b16 %v3245, %v3237
    %v5286 = vpack.c.b16 %v3246, %v3238
    %v5287 = vpack.c.b16 %v3247, %v3239
    %v5288 = vpack.c.b16 %v3248, %v3240
    %v5289 = vpack.c.b16 %v3249, %v3241
    %v5290 = vpack.c.b16 %v3250, %v3242
    %v5291 = vpack.c.b16 %v3259, %v3251
    %v5292 = vpack.c.b16 %v3260, %v3252
    %v5293 = vpack.c.b16 %v3261, %v3253
    %v5294 = vpack.c.b16 %v3262, %v3254
    %v5295 = vpack.c.b16 %v3263, %v3255
    %v5296 = vpack.c.b16 %v3264, %v3256
    %v5297 = vpack.c.b16 %v3265, %v3257
    %v5298 = vpack.c.b16 %v3266, %v3258
    %v5299 = vpack.c.b16 %v3275, %v3267
    %v5300 = vpack.c.b16 %v3276, %v3268
    %v5301 = vpack.c.b16 %v3277, %v3269
    %v5302 = vpack.c.b16 %v3278, %v3270
    %v5303 = vpack.c.b16 %v3279, %v3271
    %v5304 = vpack.c.b16 %v3280, %v3272
    %v5305 = vpack.c.b16 %v3281, %v3273
    %v5306 = vpack.c.b16 %v3282, %v3274
    %v5307 = vpack.c.b16 %v3291, %v3283
    %v5308 = vpack.c.b16 %v3292, %v3284
    %v5309 = vpack.c.b16 %v3293, %v3285
    %v5310 = vpack.c.b16 %v3294, %v3286
    %v5311 = vpack.c.b16 %v3295, %v3287
    %v5312 = vpack.c.b16 %v3296, %v3288
    %v5313 = vpack.c.b16 %v3297, %v3289
    %v5314 = vpack.c.b16 %v3298, %v3290
    %v5315 = vpack.c.b16 %v3307, %v3299
    %v5316 = vpack.c.b16 %v3308, %v3300
    %v5317 = vpack.c.b16 %v3309, %v3301
    %v5318 = vpack.c.b16 %v3310, %v3302
    %v5319 = vpack.c.b16 %v3311, %v3303
    %v5320 = vpack.c.b16 %v3312, %v3304
    %v5321 = vpack.c.b16 %v3313, %v3305
    %v5322 = vpack.c.b16 %v3314, %v3306
    %v5323 = vpack.c.b16 %v3323, %v3315
    %v5324 = vpack.c.b16 %v3324, %v3316
    %v5325 = vpack.c.b16 %v3325, %v3317
    %v5326 = vpack.c.b16 %v3326, %v3318
    %v5327 = vpack.c.b16 %v3327, %v3319
    %v5328 = vpack.c.b16 %v3328, %v3320
    %v5329 = vpack.c.b16 %v3329, %v3321
    %v5330 = vpack.c.b16 %v3330, %v3322
    %v5331 = vpack.c.b16 %v3339, %v3331
    %v5332 = vpack.c.b16 %v3340, %v3332
    %v5333 = vpack.c.b16 %v3341, %v3333
    %v5334 = vpack.c.b16 %v3342, %v3334
    %v5335 = vpack.c.b16 %v3343, %v3335
    %v5336 = vpack.c.b16 %v3344, %v3336
    %v5337 = vpack.c.b16 %v3345, %v3337
    %v5338 = vpack.c.b16 %v3346, %v3338
    %v5339 = vpack.c.b16 %v3355, %v3347
    %v5340 = vpack.c.b16 %v3356, %v3348
    %v5341 = vpack.c.b16 %v3357, %v3349
    %v5342 = vpack.c.b16 %v3358, %v3350
    %v5343 = vpack.c.b16 %v3359, %v3351
    %v5344 = vpack.c.b16 %v3360, %v3352
    %v5345 = vpack.c.b16 %v3361, %v3353
    %v5346 = vpack.c.b16 %v3362, %v3354
    %v5347 = vpack.c.b16 %v3371, %v3363
    %v5348 = vpack.c.b16 %v3372, %v3364
    %v5349 = vpack.c.b16 %v3373, %v3365
    %v5350 = vpack.c.b16 %v3374, %v3366
    %v5351 = vpack.c.b16 %v3375, %v3367
    %v5352 = vpack.c.b16 %v3376, %v3368
    %v5353 = vpack.c.b16 %v3377, %v3369
    %v5354 = vpack.c.b16 %v3378, %v3370
    %v5355 = vpack.c.b16 %v3387, %v3379
    %v5356 = vpack.c.b16 %v3388, %v3380
    %v5357 = vpack.c.b16 %v3389, %v3381
    %v5358 = vpack.c.b16 %v3390, %v3382
    %v5359 = vpack.c.b16 %v3391, %v3383
    %v5360 = vpack.c.b16 %v3392, %v3384
    %v5361 = vpack.c.b16 %v3393, %v3385
    %v5362 = vpack.c.b16 %v3394, %v3386
    %v5363 = vpack.c.b16 %v3403, %v3395
    %v5364 = vpack.c.b16 %v3404, %v3396
    %v5365 = vpack.c.b16 %v3405, %v3397
    %v5366 = vpack.c.b16 %v3406, %v3398
    %v5367 = vpack.c.b16 %v3407, %v3399
    %v5368 = vpack.c.b16 %v3408, %v3400
    %v5369 = vpack.c.b16 %v3409, %v3401
    %v5370 = vpack.c.b16 %v3410, %v3402
    %v5371 = vpack.c.b16 %v3419, %v3411
    %v5372 = vpack.c.b16 %v3420, %v3412
    %v5373 = vpack.c.b16 %v3421, %v3413
    %v5374 = vpack.c.b16 %v3422, %v3414
    %v5375 = vpack.c.b16 %v3423, %v3415
    %v5376 = vpack.c.b16 %v3424, %v3416
    %v5377 = vpack.c.b16 %v3425, %v3417
    %v5378 = vpack.c.b16 %v3426, %v3418
    %v5379 = vpack.c.b16 %v3435, %v3427
    %v5380 = vpack.c.b16 %v3436, %v3428
    %v5381 = vpack.c.b16 %v3437, %v3429
    %v5382 = vpack.c.b16 %v3438, %v3430
    %v5383 = vpack.c.b16 %v3439, %v3431
    %v5384 = vpack.c.b16 %v3440, %v3432
    %v5385 = vpack.c.b16 %v3441, %v3433
    %v5386 = vpack.c.b16 %v3442, %v3434
    %v5387 = vpack.c.b16 %v3451, %v3443
    %v5388 = vpack.c.b16 %v3452, %v3444
    %v5389 = vpack.c.b16 %v3453, %v3445
    %v5390 = vpack.c.b16 %v3454, %v3446
    %v5391 = vpack.c.b16 %v3455, %v3447
    %v5392 = vpack.c.b16 %v3456, %v3448
    %v5393 = vpack.c.b16 %v3457, %v3449
    %v5394 = vpack.c.b16 %v3458, %v3450
    %v5395 = vpack.c.b16 %v3467, %v3459
    %v5396 = vpack.c.b16 %v3468, %v3460
    %v5397 = vpack.c.b16 %v3469, %v3461
    %v5398 = vpack.c.b16 %v3470, %v3462
    %v5399 = vpack.c.b16 %v3471, %v3463
    %v5400 = vpack.c.b16 %v3472, %v3464
    %v5401 = vpack.c.b16 %v3473, %v3465
    %v5402 = vpack.c.b16 %v3474, %v3466
    %v5403 = vpack.c.b16 %v3483, %v3475
    %v5404 = vpack.c.b16 %v3484, %v3476
    %v5405 = vpack.c.b16 %v3485, %v3477
    %v5406 = vpack.c.b16 %v3486, %v3478
    %v5407 = vpack.c.b16 %v3487, %v3479
    %v5408 = vpack.c.b16 %v3488, %v3480
    %v5409 = vpack.c.b16 %v3489, %v3481
    %v5410 = vpack.c.b16 %v3490, %v3482
    %v5411 = vpack.c.b16 %v3499, %v3491
    %v5412 = vpack.c.b16 %v3500, %v3492
    %v5413 = vpack.c.b16 %v3501, %v3493
    %v5414 = vpack.c.b16 %v3502, %v3494
    %v5415 = vpack.c.b16 %v3503, %v3495
    %v5416 = vpack.c.b16 %v3504, %v3496
    %v5417 = vpack.c.b16 %v3505, %v3497
    %v5418 = vpack.c.b16 %v3506, %v3498
    %v5419 = vpack.c.b16 %v3515, %v3507
    %v5420 = vpack.c.b16 %v3516, %v3508
    %v5421 = vpack.c.b16 %v3517, %v3509
    %v5422 = vpack.c.b16 %v3518, %v3510
    %v5423 = vpack.c.b16 %v3519, %v3511
    %v5424 = vpack.c.b16 %v3520, %v3512
    %v5425 = vpack.c.b16 %v3521, %v3513
    %v5426 = vpack.c.b16 %v3522, %v3514
    %v5427 = vpack.c.b16 %v3531, %v3523
    %v5428 = vpack.c.b16 %v3532, %v3524
    %v5429 = vpack.c.b16 %v3533, %v3525
    %v5430 = vpack.c.b16 %v3534, %v3526
    %v5431 = vpack.c.b16 %v3535, %v3527
    %v5432 = vpack.c.b16 %v3536, %v3528
    %v5433 = vpack.c.b16 %v3537, %v3529
    %v5434 = vpack.c.b16 %v3538, %v3530
    %v5435 = vpack.c.b16 %v3547, %v3539
    %v5436 = vpack.c.b16 %v3548, %v3540
    %v5437 = vpack.c.b16 %v3549, %v3541
    %v5438 = vpack.c.b16 %v3550, %v3542
    %v5439 = vpack.c.b16 %v3551, %v3543
    %v5440 = vpack.c.b16 %v3552, %v3544
    %v5441 = vpack.c.b16 %v3553, %v3545
    %v5442 = vpack.c.b16 %v3554, %v3546
    %v5443 = vpack.c.b16 %v3563, %v3555
    %v5444 = vpack.c.b16 %v3564, %v3556
    %v5445 = vpack.c.b16 %v3565, %v3557
    %v5446 = vpack.c.b16 %v3566, %v3558
    %v5447 = vpack.c.b16 %v3567, %v3559
    %v5448 = vpack.c.b16 %v3568, %v3560
    %v5449 = vpack.c.b16 %v3569, %v3561
    %v5450 = vpack.c.b16 %v3570, %v3562
    %v5451 = vpack.c.b16 %v3579, %v3571
    %v5452 = vpack.c.b16 %v3580, %v3572
    %v5453 = vpack.c.b16 %v3581, %v3573
    %v5454 = vpack.c.b16 %v3582, %v3574
    %v5455 = vpack.c.b16 %v3583, %v3575
    %v5456 = vpack.c.b16 %v3584, %v3576
    %v5457 = vpack.c.b16 %v3585, %v3577
    %v5458 = vpack.c.b16 %v3586, %v3578
    %v5459 = vpack.c.b16 %v3595, %v3587
    %v5460 = vpack.c.b16 %v3596, %v3588
    %v5461 = vpack.c.b16 %v3597, %v3589
    %v5462 = vpack.c.b16 %v3598, %v3590
    %v5463 = vpack.c.b16 %v3599, %v3591
    %v5464 = vpack.c.b16 %v3600, %v3592
    %v5465 = vpack.c.b16 %v3601, %v3593
    %v5466 = vpack.c.b16 %v3602, %v3594
    %v5467 = vpack.c.b16 %v3611, %v3603
    %v5468 = vpack.c.b16 %v3612, %v3604
    %v5469 = vpack.c.b16 %v3613, %v3605
    %v5470 = vpack.c.b16 %v3614, %v3606
    %v5471 = vpack.c.b16 %v3615, %v3607
    %v5472 = vpack.c.b16 %v3616, %v3608
    %v5473 = vpack.c.b16 %v3617, %v3609
    %v5474 = vpack.c.b16 %v3618, %v3610
    %v5475 = vpack.c.b16 %v3627, %v3619
    %v5476 = vpack.c.b16 %v3628, %v3620
    %v5477 = vpack.c.b16 %v3629, %v3621
    %v5478 = vpack.c.b16 %v3630, %v3622
    %v5479 = vpack.c.b16 %v3631, %v3623
    %v5480 = vpack.c.b16 %v3632, %v3624
    %v5481 = vpack.c.b16 %v3633, %v3625
    %v5482 = vpack.c.b16 %v3634, %v3626
    %v5483 = vpack.c.b16 %v3643, %v3635
    %v5484 = vpack.c.b16 %v3644, %v3636
    %v5485 = vpack.c.b16 %v3645, %v3637
    %v5486 = vpack.c.b16 %v3646, %v3638
    %v5487 = vpack.c.b16 %v3647, %v3639
    %v5488 = vpack.c.b16 %v3648, %v3640
    %v5489 = vpack.c.b16 %v3649, %v3641
    %v5490 = vpack.c.b16 %v3650, %v3642
    %v5491 = vpack.c.b16 %v3659, %v3651
    %v5492 = vpack.c.b16 %v3660, %v3652
    %v5493 = vpack.c.b16 %v3661, %v3653
    %v5494 = vpack.c.b16 %v3662, %v3654
    %v5495 = vpack.c.b16 %v3663, %v3655
    %v5496 = vpack.c.b16 %v3664, %v3656
    %v5497 = vpack.c.b16 %v3665, %v3657
    %v5498 = vpack.c.b16 %v3666, %v3658
    %v5499 = vpack.c.b16 %v3675, %v3667
    %v5500 = vpack.c.b16 %v3676, %v3668
    %v5501 = vpack.c.b16 %v3677, %v3669
    %v5502 = vpack.c.b16 %v3678, %v3670
    %v5503 = vpack.c.b16 %v3679, %v3671
    %v5504 = vpack.c.b16 %v3680, %v3672
    %v5505 = vpack.c.b16 %v3681, %v3673
    %v5506 = vpack.c.b16 %v3682, %v3674
    %v5507 = vpack.c.b16 %v3691, %v3683
    %v5508 = vpack.c.b16 %v3692, %v3684
    %v5509 = vpack.c.b16 %v3693, %v3685
    %v5510 = vpack.c.b16 %v3694, %v3686
    %v5511 = vpack.c.b16 %v3695, %v3687
    %v5512 = vpack.c.b16 %v3696, %v3688
    %v5513 = vpack.c.b16 %v3697, %v3689
    %v5514 = vpack.c.b16 %v3698, %v3690
    %v5515 = vpack.c.b16 %v3707, %v3699
    %v5516 = vpack.c.b16 %v3708, %v3700
    %v5517 = vpack.c.b16 %v3709, %v3701
    %v5518 = vpack.c.b16 %v3710, %v3702
    %v5519 = vpack.c.b16 %v3711, %v3703
    %v5520 = vpack.c.b16 %v3712, %v3704
    %v5521 = vpack.c.b16 %v3713, %v3705
    %v5522 = vpack.c.b16 %v3714, %v3706
    %v5523 = vpack.c.b16 %v3723, %v3715
    %v5524 = vpack.c.b16 %v3724, %v3716
    %v5525 = vpack.c.b16 %v3725, %v3717
    %v5526 = vpack.c.b16 %v3726, %v3718
    %v5527 = vpack.c.b16 %v3727, %v3719
    %v5528 = vpack.c.b16 %v3728, %v3720
    %v5529 = vpack.c.b16 %v3729, %v3721
    %v5530 = vpack.c.b16 %v3730, %v3722
    %v5531 = vpack.c.b16 %v3739, %v3731
    %v5532 = vpack.c.b16 %v3740, %v3732
    %v5533 = vpack.c.b16 %v3741, %v3733
    %v5534 = vpack.c.b16 %v3742, %v3734
    %v5535 = vpack.c.b16 %v3743, %v3735
    %v5536 = vpack.c.b16 %v3744, %v3736
    %v5537 = vpack.c.b16 %v3745, %v3737
    %v5538 = vpack.c.b16 %v3746, %v3738
    %v5539 = vpack.c.b16 %v3755, %v3747
    %v5540 = vpack.c.b16 %v3756, %v3748
    %v5541 = vpack.c.b16 %v3757, %v3749
    %v5542 = vpack.c.b16 %v3758, %v3750
    %v5543 = vpack.c.b16 %v3759, %v3751
    %v5544 = vpack.c.b16 %v3760, %v3752
    %v5545 = vpack.c.b16 %v3761, %v3753
    %v5546 = vpack.c.b16 %v3762, %v3754
    %v5547 = vpack.c.b16 %v3771, %v3763
    %v5548 = vpack.c.b16 %v3772, %v3764
    %v5549 = vpack.c.b16 %v3773, %v3765
    %v5550 = vpack.c.b16 %v3774, %v3766
    %v5551 = vpack.c.b16 %v3775, %v3767
    %v5552 = vpack.c.b16 %v3776, %v3768
    %v5553 = vpack.c.b16 %v3777, %v3769
    %v5554 = vpack.c.b16 %v3778, %v3770
    %v5555 = vpack.c.b16 %v3787, %v3779
    %v5556 = vpack.c.b16 %v3788, %v3780
    %v5557 = vpack.c.b16 %v3789, %v3781
    %v5558 = vpack.c.b16 %v3790, %v3782
    %v5559 = vpack.c.b16 %v3791, %v3783
    %v5560 = vpack.c.b16 %v3792, %v3784
    %v5561 = vpack.c.b16 %v3793, %v3785
    %v5562 = vpack.c.b16 %v3794, %v3786
    %v5563 = vpack.c.b16 %v3803, %v3795
    %v5564 = vpack.c.b16 %v3804, %v3796
    %v5565 = vpack.c.b16 %v3805, %v3797
    %v5566 = vpack.c.b16 %v3806, %v3798
    %v5567 = vpack.c.b16 %v3807, %v3799
    %v5568 = vpack.c.b16 %v3808, %v3800
    %v5569 = vpack.c.b16 %v3809, %v3801
    %v5570 = vpack.c.b16 %v3810, %v3802
    %v5571 = vpack.c.b16 %v3819, %v3811
    %v5572 = vpack.c.b16 %v3820, %v3812
    %v5573 = vpack.c.b16 %v3821, %v3813
    %v5574 = vpack.c.b16 %v3822, %v3814
    %v5575 = vpack.c.b16 %v3823, %v3815
    %v5576 = vpack.c.b16 %v3824, %v3816
    %v5577 = vpack.c.b16 %v3825, %v3817
    %v5578 = vpack.c.b16 %v3826, %v3818
    %v5579 = vpack.c.b16 %v3835, %v3827
    %v5580 = vpack.c.b16 %v3836, %v3828
    %v5581 = vpack.c.b16 %v3837, %v3829
    %v5582 = vpack.c.b16 %v3838, %v3830
    %v5583 = vpack.c.b16 %v3839, %v3831
    %v5584 = vpack.c.b16 %v3840, %v3832
    %v5585 = vpack.c.b16 %v3841, %v3833
    %v5586 = vpack.c.b16 %v3842, %v3834
    %v5587 = vpack.c.b16 %v3851, %v3843
    %v5588 = vpack.c.b16 %v3852, %v3844
    %v5589 = vpack.c.b16 %v3853, %v3845
    %v5590 = vpack.c.b16 %v3854, %v3846
    %v5591 = vpack.c.b16 %v3855, %v3847
    %v5592 = vpack.c.b16 %v3856, %v3848
    %v5593 = vpack.c.b16 %v3857, %v3849
    %v5594 = vpack.c.b16 %v3858, %v3850
    %v5595 = vpack.c.b16 %v3867, %v3859
    %v5596 = vpack.c.b16 %v3868, %v3860
    %v5597 = vpack.c.b16 %v3869, %v3861
    %v5598 = vpack.c.b16 %v3870, %v3862
    %v5599 = vpack.c.b16 %v3871, %v3863
    %v5600 = vpack.c.b16 %v3872, %v3864
    %v5601 = vpack.c.b16 %v3873, %v3865
    %v5602 = vpack.c.b16 %v3874, %v3866
    %v5603 = vpack.c.b16 %v3883, %v3875
    %v5604 = vpack.c.b16 %v3884, %v3876
    %v5605 = vpack.c.b16 %v3885, %v3877
    %v5606 = vpack.c.b16 %v3886, %v3878
    %v5607 = vpack.c.b16 %v3887, %v3879
    %v5608 = vpack.c.b16 %v3888, %v3880
    %v5609 = vpack.c.b16 %v3889, %v3881
    %v5610 = vpack.c.b16 %v3890, %v3882
    %v5611 = vpack.c.b16 %v3899, %v3891
    %v5612 = vpack.c.b16 %v3900, %v3892
    %v5613 = vpack.c.b16 %v3901, %v3893
    %v5614 = vpack.c.b16 %v3902, %v3894
    %v5615 = vpack.c.b16 %v3903, %v3895
    %v5616 = vpack.c.b16 %v3904, %v3896
    %v5617 = vpack.c.b16 %v3905, %v3897
    %v5618 = vpack.c.b16 %v3906, %v3898
    %v5619 = vpack.c.b16 %v3915, %v3907
    %v5620 = vpack.c.b16 %v3916, %v3908
    %v5621 = vpack.c.b16 %v3917, %v3909
    %v5622 = vpack.c.b16 %v3918, %v3910
    %v5623 = vpack.c.b16 %v3919, %v3911
    %v5624 = vpack.c.b16 %v3920, %v3912
    %v5625 = vpack.c.b16 %v3921, %v3913
    %v5626 = vpack.c.b16 %v3922, %v3914
    %v5627 = vpack.c.b16 %v3931, %v3923
    %v5628 = vpack.c.b16 %v3932, %v3924
    %v5629 = vpack.c.b16 %v3933, %v3925
    %v5630 = vpack.c.b16 %v3934, %v3926
    %v5631 = vpack.c.b16 %v3935, %v3927
    %v5632 = vpack.c.b16 %v3936, %v3928
    %v5633 = vpack.c.b16 %v3937, %v3929
    %v5634 = vpack.c.b16 %v3938, %v3930
    %v5635 = vpack.c.b16 %v3947, %v3939
    %v5636 = vpack.c.b16 %v3948, %v3940
    %v5637 = vpack.c.b16 %v3949, %v3941
    %v5638 = vpack.c.b16 %v3950, %v3942
    %v5639 = vpack.c.b16 %v3951, %v3943
    %v5640 = vpack.c.b16 %v3952, %v3944
    %v5641 = vpack.c.b16 %v3953, %v3945
    %v5642 = vpack.c.b16 %v3954, %v3946
    %v5643 = vpack.c.b16 %v3963, %v3955
    %v5644 = vpack.c.b16 %v3964, %v3956
    %v5645 = vpack.c.b16 %v3965, %v3957
    %v5646 = vpack.c.b16 %v3966, %v3958
    %v5647 = vpack.c.b16 %v3967, %v3959
    %v5648 = vpack.c.b16 %v3968, %v3960
    %v5649 = vpack.c.b16 %v3969, %v3961
    %v5650 = vpack.c.b16 %v3970, %v3962
    %v5651 = vpack.c.b16 %v3979, %v3971
    %v5652 = vpack.c.b16 %v3980, %v3972
    %v5653 = vpack.c.b16 %v3981, %v3973
    %v5654 = vpack.c.b16 %v3982, %v3974
    %v5655 = vpack.c.b16 %v3983, %v3975
    %v5656 = vpack.c.b16 %v3984, %v3976
    %v5657 = vpack.c.b16 %v3985, %v3977
    %v5658 = vpack.c.b16 %v3986, %v3978
    %v5659 = vpack.c.b16 %v3995, %v3987
    %v5660 = vpack.c.b16 %v3996, %v3988
    %v5661 = vpack.c.b16 %v3997, %v3989
    %v5662 = vpack.c.b16 %v3998, %v3990
    %v5663 = vpack.c.b16 %v3999, %v3991
    %v5664 = vpack.c.b16 %v4000, %v3992
    %v5665 = vpack.c.b16 %v4001, %v3993
    %v5666 = vpack.c.b16 %v4002, %v3994
    %v5667 = vpack.c.b16 %v4011, %v4003
    %v5668 = vpack.c.b16 %v4012, %v4004
    %v5669 = vpack.c.b16 %v4013, %v4005
    %v5670 = vpack.c.b16 %v4014, %v4006
    %v5671 = vpack.c.b16 %v4015, %v4007
    %v5672 = vpack.c.b16 %v4016, %v4008
    %v5673 = vpack.c.b16 %v4017, %v4009
    %v5674 = vpack.c.b16 %v4018, %v4010
    %v5675 = vpack.c.b16 %v4027, %v4019
    %v5676 = vpack.c.b16 %v4028, %v4020
    %v5677 = vpack.c.b16 %v4029, %v4021
    %v5678 = vpack.c.b16 %v4030, %v4022
    %v5679 = vpack.c.b16 %v4031, %v4023
    %v5680 = vpack.c.b16 %v4032, %v4024
    %v5681 = vpack.c.b16 %v4033, %v4025
    %v5682 = vpack.c.b16 %v4034, %v4026
    %v5683 = vpack.c.b16 %v4043, %v4035
    %v5684 = vpack.c.b16 %v4044, %v4036
    %v5685 = vpack.c.b16 %v4045, %v4037
    %v5686 = vpack.c.b16 %v4046, %v4038
    %v5687 = vpack.c.b16 %v4047, %v4039
    %v5688 = vpack.c.b16 %v4048, %v4040
    %v5689 = vpack.c.b16 %v4049, %v4041
    %v5690 = vpack.c.b16 %v4050, %v4042
    %v5691 = vpack.c.b16 %v4059, %v4051
    %v5692 = vpack.c.b16 %v4060, %v4052
    %v5693 = vpack.c.b16 %v4061, %v4053
    %v5694 = vpack.c.b16 %v4062, %v4054
    %v5695 = vpack.c.b16 %v4063, %v4055
    %v5696 = vpack.c.b16 %v4064, %v4056
    %v5697 = vpack.c.b16 %v4065, %v4057
    %v5698 = vpack.c.b16 %v4066, %v4058
    %v5699 = vpack.c.b16 %v4075, %v4067
    %v5700 = vpack.c.b16 %v4076, %v4068
    %v5701 = vpack.c.b16 %v4077, %v4069
    %v5702 = vpack.c.b16 %v4078, %v4070
    %v5703 = vpack.c.b16 %v4079, %v4071
    %v5704 = vpack.c.b16 %v4080, %v4072
    %v5705 = vpack.c.b16 %v4081, %v4073
    %v5706 = vpack.c.b16 %v4082, %v4074
    %v5707 = vpack.c.b16 %v4091, %v4083
    %v5708 = vpack.c.b16 %v4092, %v4084
    %v5709 = vpack.c.b16 %v4093, %v4085
    %v5710 = vpack.c.b16 %v4094, %v4086
    %v5711 = vpack.c.b16 %v4095, %v4087
    %v5712 = vpack.c.b16 %v4096, %v4088
    %v5713 = vpack.c.b16 %v4097, %v4089
    %v5714 = vpack.c.b16 %v4098, %v4090
    %v5715 = vpack.c.b16 %v4107, %v4099
    %v5716 = vpack.c.b16 %v4108, %v4100
    %v5717 = vpack.c.b16 %v4109, %v4101
    %v5718 = vpack.c.b16 %v4110, %v4102
    %v5719 = vpack.c.b16 %v4111, %v4103
    %v5720 = vpack.c.b16 %v4112, %v4104
    %v5721 = vpack.c.b16 %v4113, %v4105
    %v5722 = vpack.c.b16 %v4114, %v4106
    %v5723 = vpack.c.b16 %v4123, %v4115
    %v5724 = vpack.c.b16 %v4124, %v4116
    %v5725 = vpack.c.b16 %v4125, %v4117
    %v5726 = vpack.c.b16 %v4126, %v4118
    %v5727 = vpack.c.b16 %v4127, %v4119
    %v5728 = vpack.c.b16 %v4128, %v4120
    %v5729 = vpack.c.b16 %v4129, %v4121
    %v5730 = vpack.c.b16 %v4130, %v4122
    %v5731 = vpack.c.b16 %v4139, %v4131
    %v5732 = vpack.c.b16 %v4140, %v4132
    %v5733 = vpack.c.b16 %v4141, %v4133
    %v5734 = vpack.c.b16 %v4142, %v4134
    %v5735 = vpack.c.b16 %v4143, %v4135
    %v5736 = vpack.c.b16 %v4144, %v4136
    %v5737 = vpack.c.b16 %v4145, %v4137
    %v5738 = vpack.c.b16 %v4146, %v4138
    %v5739 = vpack.c.b16 %v4155, %v4147
    %v5740 = vpack.c.b16 %v4156, %v4148
    %v5741 = vpack.c.b16 %v4157, %v4149
    %v5742 = vpack.c.b16 %v4158, %v4150
    %v5743 = vpack.c.b16 %v4159, %v4151
    %v5744 = vpack.c.b16 %v4160, %v4152
    %v5745 = vpack.c.b16 %v4161, %v4153
    %v5746 = vpack.c.b16 %v4162, %v4154
    %v5747 = vpack.c.b16 %v4171, %v4163
    %v5748 = vpack.c.b16 %v4172, %v4164
    %v5749 = vpack.c.b16 %v4173, %v4165
    %v5750 = vpack.c.b16 %v4174, %v4166
    %v5751 = vpack.c.b16 %v4175, %v4167
    %v5752 = vpack.c.b16 %v4176, %v4168
    %v5753 = vpack.c.b16 %v4177, %v4169
    %v5754 = vpack.c.b16 %v4178, %v4170
    %v5755 = vpack.c.b16 %v4187, %v4179
    %v5756 = vpack.c.b16 %v4188, %v4180
    %v5757 = vpack.c.b16 %v4189, %v4181
    %v5758 = vpack.c.b16 %v4190, %v4182
    %v5759 = vpack.c.b16 %v4191, %v4183
    %v5760 = vpack.c.b16 %v4192, %v4184
    %v5761 = vpack.c.b16 %v4193, %v4185
    %v5762 = vpack.c.b16 %v4194, %v4186
    %v5763 = vpack.c.b16 %v4203, %v4195
    %v5764 = vpack.c.b16 %v4204, %v4196
    %v5765 = vpack.c.b16 %v4205, %v4197
    %v5766 = vpack.c.b16 %v4206, %v4198
    %v5767 = vpack.c.b16 %v4207, %v4199
    %v5768 = vpack.c.b16 %v4208, %v4200
    %v5769 = vpack.c.b16 %v4209, %v4201
    %v5770 = vpack.c.b16 %v4210, %v4202
    %v5771 = vpack.c.b16 %v4219, %v4211
    %v5772 = vpack.c.b16 %v4220, %v4212
    %v5773 = vpack.c.b16 %v4221, %v4213
    %v5774 = vpack.c.b16 %v4222, %v4214
    %v5775 = vpack.c.b16 %v4223, %v4215
    %v5776 = vpack.c.b16 %v4224, %v4216
    %v5777 = vpack.c.b16 %v4225, %v4217
    %v5778 = vpack.c.b16 %v4226, %v4218
    %v5779 = vpack.c.b16 %v4235, %v4227
    %v5780 = vpack.c.b16 %v4236, %v4228
    %v5781 = vpack.c.b16 %v4237, %v4229
    %v5782 = vpack.c.b16 %v4238, %v4230
    %v5783 = vpack.c.b16 %v4239, %v4231
    %v5784 = vpack.c.b16 %v4240, %v4232
    %v5785 = vpack.c.b16 %v4241, %v4233
    %v5786 = vpack.c.b16 %v4242, %v4234
    %v5787 = vpack.c.b16 %v4251, %v4243
    %v5788 = vpack.c.b16 %v4252, %v4244
    %v5789 = vpack.c.b16 %v4253, %v4245
    %v5790 = vpack.c.b16 %v4254, %v4246
    %v5791 = vpack.c.b16 %v4255, %v4247
    %v5792 = vpack.c.b16 %v4256, %v4248
    %v5793 = vpack.c.b16 %v4257, %v4249
    %v5794 = vpack.c.b16 %v4258, %v4250
    %v5795 = vpack.c.b16 %v4267, %v4259
    %v5796 = vpack.c.b16 %v4268, %v4260
    %v5797 = vpack.c.b16 %v4269, %v4261
    %v5798 = vpack.c.b16 %v4270, %v4262
    %v5799 = vpack.c.b16 %v4271, %v4263
    %v5800 = vpack.c.b16 %v4272, %v4264
    %v5801 = vpack.c.b16 %v4273, %v4265
    %v5802 = vpack.c.b16 %v4274, %v4266
    %v5803 = vpack.c.b16 %v4283, %v4275
    %v5804 = vpack.c.b16 %v4284, %v4276
    %v5805 = vpack.c.b16 %v4285, %v4277
    %v5806 = vpack.c.b16 %v4286, %v4278
    %v5807 = vpack.c.b16 %v4287, %v4279
    %v5808 = vpack.c.b16 %v4288, %v4280
    %v5809 = vpack.c.b16 %v4289, %v4281
    %v5810 = vpack.c.b16 %v4290, %v4282
    %v5811 = vpack.c.b16 %v4299, %v4291
    %v5812 = vpack.c.b16 %v4300, %v4292
    %v5813 = vpack.c.b16 %v4301, %v4293
    %v5814 = vpack.c.b16 %v4302, %v4294
    %v5815 = vpack.c.b16 %v4303, %v4295
    %v5816 = vpack.c.b16 %v4304, %v4296
    %v5817 = vpack.c.b16 %v4305, %v4297
    %v5818 = vpack.c.b16 %v4306, %v4298
    %v5819 = vpack.c.b16 %v4315, %v4307
    %v5820 = vpack.c.b16 %v4316, %v4308
    %v5821 = vpack.c.b16 %v4317, %v4309
    %v5822 = vpack.c.b16 %v4318, %v4310
    %v5823 = vpack.c.b16 %v4319, %v4311
    %v5824 = vpack.c.b16 %v4320, %v4312
    %v5825 = vpack.c.b16 %v4321, %v4313
    %v5826 = vpack.c.b16 %v4322, %v4314
    %v5827 = vpack.c.b16 %v4331, %v4323
    %v5828 = vpack.c.b16 %v4332, %v4324
    %v5829 = vpack.c.b16 %v4333, %v4325
    %v5830 = vpack.c.b16 %v4334, %v4326
    %v5831 = vpack.c.b16 %v4335, %v4327
    %v5832 = vpack.c.b16 %v4336, %v4328
    %v5833 = vpack.c.b16 %v4337, %v4329
    %v5834 = vpack.c.b16 %v4338, %v4330
    %v5835 = vpack.c.b16 %v4347, %v4339
    %v5836 = vpack.c.b16 %v4348, %v4340
    %v5837 = vpack.c.b16 %v4349, %v4341
    %v5838 = vpack.c.b16 %v4350, %v4342
    %v5839 = vpack.c.b16 %v4351, %v4343
    %v5840 = vpack.c.b16 %v4352, %v4344
    %v5841 = vpack.c.b16 %v4353, %v4345
    %v5842 = vpack.c.b16 %v4354, %v4346
    %v5843 = vpack.c.b16 %v4363, %v4355
    %v5844 = vpack.c.b16 %v4364, %v4356
    %v5845 = vpack.c.b16 %v4365, %v4357
    %v5846 = vpack.c.b16 %v4366, %v4358
    %v5847 = vpack.c.b16 %v4367, %v4359
    %v5848 = vpack.c.b16 %v4368, %v4360
    %v5849 = vpack.c.b16 %v4369, %v4361
    %v5850 = vpack.c.b16 %v4370, %v4362
    %v5851 = vpack.c.b16 %v4379, %v4371
    %v5852 = vpack.c.b16 %v4380, %v4372
    %v5853 = vpack.c.b16 %v4381, %v4373
    %v5854 = vpack.c.b16 %v4382, %v4374
    %v5855 = vpack.c.b16 %v4383, %v4375
    %v5856 = vpack.c.b16 %v4384, %v4376
    %v5857 = vpack.c.b16 %v4385, %v4377
    %v5858 = vpack.c.b16 %v4386, %v4378
    %v5859 = vpack.c.b16 %v4395, %v4387
    %v5860 = vpack.c.b16 %v4396, %v4388
    %v5861 = vpack.c.b16 %v4397, %v4389
    %v5862 = vpack.c.b16 %v4398, %v4390
    %v5863 = vpack.c.b16 %v4399, %v4391
    %v5864 = vpack.c.b16 %v4400, %v4392
    %v5865 = vpack.c.b16 %v4401, %v4393
    %v5866 = vpack.c.b16 %v4402, %v4394
    %v5867 = vpack.c.b16 %v4411, %v4403
    %v5868 = vpack.c.b16 %v4412, %v4404
    %v5869 = vpack.c.b16 %v4413, %v4405
    %v5870 = vpack.c.b16 %v4414, %v4406
    %v5871 = vpack.c.b16 %v4415, %v4407
    %v5872 = vpack.c.b16 %v4416, %v4408
    %v5873 = vpack.c.b16 %v4417, %v4409
    %v5874 = vpack.c.b16 %v4418, %v4410
    %v5875 = vpack.c.b16 %v4427, %v4419
    %v5876 = vpack.c.b16 %v4428, %v4420
    %v5877 = vpack.c.b16 %v4429, %v4421
    %v5878 = vpack.c.b16 %v4430, %v4422
    %v5879 = vpack.c.b16 %v4431, %v4423
    %v5880 = vpack.c.b16 %v4432, %v4424
    %v5881 = vpack.c.b16 %v4433, %v4425
    %v5882 = vpack.c.b16 %v4434, %v4426
    %v5883 = vpack.c.b16 %v4443, %v4435
    %v5884 = vpack.c.b16 %v4444, %v4436
    %v5885 = vpack.c.b16 %v4445, %v4437
    %v5886 = vpack.c.b16 %v4446, %v4438
    %v5887 = vpack.c.b16 %v4447, %v4439
    %v5888 = vpack.c.b16 %v4448, %v4440
    %v5889 = vpack.c.b16 %v4449, %v4441
    %v5890 = vpack.c.b16 %v4450, %v4442
    %v5891 = vpack.c.b16 %v4459, %v4451
    %v5892 = vpack.c.b16 %v4460, %v4452
    %v5893 = vpack.c.b16 %v4461, %v4453
    %v5894 = vpack.c.b16 %v4462, %v4454
    %v5895 = vpack.c.b16 %v4463, %v4455
    %v5896 = vpack.c.b16 %v4464, %v4456
    %v5897 = vpack.c.b16 %v4465, %v4457
    %v5898 = vpack.c.b16 %v4466, %v4458
    %v5899 = vpack.c.b16 %v4475, %v4467
    %v5900 = vpack.c.b16 %v4476, %v4468
    %v5901 = vpack.c.b16 %v4477, %v4469
    %v5902 = vpack.c.b16 %v4478, %v4470
    %v5903 = vpack.c.b16 %v4479, %v4471
    %v5904 = vpack.c.b16 %v4480, %v4472
    %v5905 = vpack.c.b16 %v4481, %v4473
    %v5906 = vpack.c.b16 %v4482, %v4474
    %v5907 = vpack.c.b16 %v4491, %v4483
    %v5908 = vpack.c.b16 %v4492, %v4484
    %v5909 = vpack.c.b16 %v4493, %v4485
    %v5910 = vpack.c.b16 %v4494, %v4486
    %v5911 = vpack.c.b16 %v4495, %v4487
    %v5912 = vpack.c.b16 %v4496, %v4488
    %v5913 = vpack.c.b16 %v4497, %v4489
    %v5914 = vpack.c.b16 %v4498, %v4490
    %v5915 = vpack.c.b16 %v4507, %v4499
    %v5916 = vpack.c.b16 %v4508, %v4500
    %v5917 = vpack.c.b16 %v4509, %v4501
    %v5918 = vpack.c.b16 %v4510, %v4502
    %v5919 = vpack.c.b16 %v4511, %v4503
    %v5920 = vpack.c.b16 %v4512, %v4504
    %v5921 = vpack.c.b16 %v4513, %v4505
    %v5922 = vpack.c.b16 %v4514, %v4506
    %v5923 = vpack.c.b16 %v4523, %v4515
    %v5924 = vpack.c.b16 %v4524, %v4516
    %v5925 = vpack.c.b16 %v4525, %v4517
    %v5926 = vpack.c.b16 %v4526, %v4518
    %v5927 = vpack.c.b16 %v4527, %v4519
    %v5928 = vpack.c.b16 %v4528, %v4520
    %v5929 = vpack.c.b16 %v4529, %v4521
    %v5930 = vpack.c.b16 %v4530, %v4522
    %v5931 = vpack.c.b16 %v4539, %v4531
    %v5932 = vpack.c.b16 %v4540, %v4532
    %v5933 = vpack.c.b16 %v4541, %v4533
    %v5934 = vpack.c.b16 %v4542, %v4534
    %v5935 = vpack.c.b16 %v4543, %v4535
    %v5936 = vpack.c.b16 %v4544, %v4536
    %v5937 = vpack.c.b16 %v4545, %v4537
    %v5938 = vpack.c.b16 %v4546, %v4538
    %v5939 = vpack.c.b16 %v4555, %v4547
    %v5940 = vpack.c.b16 %v4556, %v4548
    %v5941 = vpack.c.b16 %v4557, %v4549
    %v5942 = vpack.c.b16 %v4558, %v4550
    %v5943 = vpack.c.b16 %v4559, %v4551
    %v5944 = vpack.c.b16 %v4560, %v4552
    %v5945 = vpack.c.b16 %v4561, %v4553
    %v5946 = vpack.c.b16 %v4562, %v4554
    %v5947 = vpack.c.b16 %v4571, %v4563
    %v5948 = vpack.c.b16 %v4572, %v4564
    %v5949 = vpack.c.b16 %v4573, %v4565
    %v5950 = vpack.c.b16 %v4574, %v4566
    %v5951 = vpack.c.b16 %v4575, %v4567
    %v5952 = vpack.c.b16 %v4576, %v4568
    %v5953 = vpack.c.b16 %v4577, %v4569
    %v5954 = vpack.c.b16 %v4578, %v4570
    %v5955 = vpack.c.b16 %v4587, %v4579
    %v5956 = vpack.c.b16 %v4588, %v4580
    %v5957 = vpack.c.b16 %v4589, %v4581
    %v5958 = vpack.c.b16 %v4590, %v4582
    %v5959 = vpack.c.b16 %v4591, %v4583
    %v5960 = vpack.c.b16 %v4592, %v4584
    %v5961 = vpack.c.b16 %v4593, %v4585
    %v5962 = vpack.c.b16 %v4594, %v4586
    %v5963 = vpack.c.b16 %v4603, %v4595
    %v5964 = vpack.c.b16 %v4604, %v4596
    %v5965 = vpack.c.b16 %v4605, %v4597
    %v5966 = vpack.c.b16 %v4606, %v4598
    %v5967 = vpack.c.b16 %v4607, %v4599
    %v5968 = vpack.c.b16 %v4608, %v4600
    %v5969 = vpack.c.b16 %v4609, %v4601
    %v5970 = vpack.c.b16 %v4610, %v4602
    %v5971 = vpack.c.b16 %v4619, %v4611
    %v5972 = vpack.c.b16 %v4620, %v4612
    %v5973 = vpack.c.b16 %v4621, %v4613
    %v5974 = vpack.c.b16 %v4622, %v4614
    %v5975 = vpack.c.b16 %v4623, %v4615
    %v5976 = vpack.c.b16 %v4624, %v4616
    %v5977 = vpack.c.b16 %v4625, %v4617
    %v5978 = vpack.c.b16 %v4626, %v4618
    %v5979 = vpack.c.b16 %v4635, %v4627
    %v5980 = vpack.c.b16 %v4636, %v4628
    %v5981 = vpack.c.b16 %v4637, %v4629
    %v5982 = vpack.c.b16 %v4638, %v4630
    %v5983 = vpack.c.b16 %v4639, %v4631
    %v5984 = vpack.c.b16 %v4640, %v4632
    %v5985 = vpack.c.b16 %v4641, %v4633
    %v5986 = vpack.c.b16 %v4642, %v4634
    %v5987 = vpack.c.b16 %v4651, %v4643
    %v5988 = vpack.c.b16 %v4652, %v4644
    %v5989 = vpack.c.b16 %v4653, %v4645
    %v5990 = vpack.c.b16 %v4654, %v4646
    %v5991 = vpack.c.b16 %v4655, %v4647
    %v5992 = vpack.c.b16 %v4656, %v4648
    %v5993 = vpack.c.b16 %v4657, %v4649
    %v5994 = vpack.c.b16 %v4658, %v4650
    %v5995 = vpack.c.b16 %v4667, %v4659
    %v5996 = vpack.c.b16 %v4668, %v4660
    %v5997 = vpack.c.b16 %v4669, %v4661
    %v5998 = vpack.c.b16 %v4670, %v4662
    %v5999 = vpack.c.b16 %v4671, %v4663
    %v6000 = vpack.c.b16 %v4672, %v4664
    %v6001 = vpack.c.b16 %v4673, %v4665
    %v6002 = vpack.c.b16 %v4674, %v4666
    %v6003 = vpack.c.b16 %v4683, %v4675
    %v6004 = vpack.c.b16 %v4684, %v4676
    %v6005 = vpack.c.b16 %v4685, %v4677
    %v6006 = vpack.c.b16 %v4686, %v4678
    %v6007 = vpack.c.b16 %v4687, %v4679
    %v6008 = vpack.c.b16 %v4688, %v4680
    %v6009 = vpack.c.b16 %v4689, %v4681
    %v6010 = vpack.c.b16 %v4690, %v4682
    %v6011 = vpack.c.b16 %v4699, %v4691
    %v6012 = vpack.c.b16 %v4700, %v4692
    %v6013 = vpack.c.b16 %v4701, %v4693
    %v6014 = vpack.c.b16 %v4702, %v4694
    %v6015 = vpack.c.b16 %v4703, %v4695
    %v6016 = vpack.c.b16 %v4704, %v4696
    %v6017 = vpack.c.b16 %v4705, %v4697
    %v6018 = vpack.c.b16 %v4706, %v4698
    %v6019 = vpack.c.b16 %v4715, %v4707
    %v6020 = vpack.c.b16 %v4716, %v4708
    %v6021 = vpack.c.b16 %v4717, %v4709
    %v6022 = vpack.c.b16 %v4718, %v4710
    %v6023 = vpack.c.b16 %v4719, %v4711
    %v6024 = vpack.c.b16 %v4720, %v4712
    %v6025 = vpack.c.b16 %v4721, %v4713
    %v6026 = vpack.c.b16 %v4722, %v4714
    %v6027 = vpack.c.b16 %v4731, %v4723
    %v6028 = vpack.c.b16 %v4732, %v4724
    %v6029 = vpack.c.b16 %v4733, %v4725
    %v6030 = vpack.c.b16 %v4734, %v4726
    %v6031 = vpack.c.b16 %v4735, %v4727
    %v6032 = vpack.c.b16 %v4736, %v4728
    %v6033 = vpack.c.b16 %v4737, %v4729
    %v6034 = vpack.c.b16 %v4738, %v4730
    %v6035 = vpack.c.b16 %v4747, %v4739
    %v6036 = vpack.c.b16 %v4748, %v4740
    %v6037 = vpack.c.b16 %v4749, %v4741
    %v6038 = vpack.c.b16 %v4750, %v4742
    %v6039 = vpack.c.b16 %v4751, %v4743
    %v6040 = vpack.c.b16 %v4752, %v4744
    %v6041 = vpack.c.b16 %v4753, %v4745
    %v6042 = vpack.c.b16 %v4754, %v4746
    %v6043 = vpack.c.b16 %v4763, %v4755
    %v6044 = vpack.c.b16 %v4764, %v4756
    %v6045 = vpack.c.b16 %v4765, %v4757
    %v6046 = vpack.c.b16 %v4766, %v4758
    %v6047 = vpack.c.b16 %v4767, %v4759
    %v6048 = vpack.c.b16 %v4768, %v4760
    %v6049 = vpack.c.b16 %v4769, %v4761
    %v6050 = vpack.c.b16 %v4770, %v4762
    %v6051 = vpack.c.b16 %v4779, %v4771
    %v6052 = vpack.c.b16 %v4780, %v4772
    %v6053 = vpack.c.b16 %v4781, %v4773
    %v6054 = vpack.c.b16 %v4782, %v4774
    %v6055 = vpack.c.b16 %v4783, %v4775
    %v6056 = vpack.c.b16 %v4784, %v4776
    %v6057 = vpack.c.b16 %v4785, %v4777
    %v6058 = vpack.c.b16 %v4786, %v4778
    %v6059 = vpack.c.b16 %v4795, %v4787
    %v6060 = vpack.c.b16 %v4796, %v4788
    %v6061 = vpack.c.b16 %v4797, %v4789
    %v6062 = vpack.c.b16 %v4798, %v4790
    %v6063 = vpack.c.b16 %v4799, %v4791
    %v6064 = vpack.c.b16 %v4800, %v4792
    %v6065 = vpack.c.b16 %v4801, %v4793
    %v6066 = vpack.c.b16 %v4802, %v4794
    %v6067 = vpack.c.b16 %v4811, %v4803
    %v6068 = vpack.c.b16 %v4812, %v4804
    %v6069 = vpack.c.b16 %v4813, %v4805
    %v6070 = vpack.c.b16 %v4814, %v4806
    %v6071 = vpack.c.b16 %v4815, %v4807
    %v6072 = vpack.c.b16 %v4816, %v4808
    %v6073 = vpack.c.b16 %v4817, %v4809
    %v6074 = vpack.c.b16 %v4818, %v4810
    %v6075 = vpack.c.b16 %v4827, %v4819
    %v6076 = vpack.c.b16 %v4828, %v4820
    %v6077 = vpack.c.b16 %v4829, %v4821
    %v6078 = vpack.c.b16 %v4830, %v4822
    %v6079 = vpack.c.b16 %v4831, %v4823
    %v6080 = vpack.c.b16 %v4832, %v4824
    %v6081 = vpack.c.b16 %v4833, %v4825
    %v6082 = vpack.c.b16 %v4834, %v4826
    %v6083 = vpack.c.b16 %v4843, %v4835
    %v6084 = vpack.c.b16 %v4844, %v4836
    %v6085 = vpack.c.b16 %v4845, %v4837
    %v6086 = vpack.c.b16 %v4846, %v4838
    %v6087 = vpack.c.b16 %v4847, %v4839
    %v6088 = vpack.c.b16 %v4848, %v4840
    %v6089 = vpack.c.b16 %v4849, %v4841
    %v6090 = vpack.c.b16 %v4850, %v4842
    %v6091 = vpack.c.b16 %v4859, %v4851
    %v6092 = vpack.c.b16 %v4860, %v4852
    %v6093 = vpack.c.b16 %v4861, %v4853
    %v6094 = vpack.c.b16 %v4862, %v4854
    %v6095 = vpack.c.b16 %v4863, %v4855
    %v6096 = vpack.c.b16 %v4864, %v4856
    %v6097 = vpack.c.b16 %v4865, %v4857
    %v6098 = vpack.c.b16 %v4866, %v4858
    %v6099 = vpack.c.b16 %v4875, %v4867
    %v6100 = vpack.c.b16 %v4876, %v4868
    %v6101 = vpack.c.b16 %v4877, %v4869
    %v6102 = vpack.c.b16 %v4878, %v4870
    %v6103 = vpack.c.b16 %v4879, %v4871
    %v6104 = vpack.c.b16 %v4880, %v4872
    %v6105 = vpack.c.b16 %v4881, %v4873
    %v6106 = vpack.c.b16 %v4882, %v4874
    %v6107 = vpack.c.b16 %v4891, %v4883
    %v6108 = vpack.c.b16 %v4892, %v4884
    %v6109 = vpack.c.b16 %v4893, %v4885
    %v6110 = vpack.c.b16 %v4894, %v4886
    %v6111 = vpack.c.b16 %v4895, %v4887
    %v6112 = vpack.c.b16 %v4896, %v4888
    %v6113 = vpack.c.b16 %v4897, %v4889
    %v6114 = vpack.c.b16 %v4898, %v4890
    %v6115 = vpack.c.b16 %v4907, %v4899
    %v6116 = vpack.c.b16 %v4908, %v4900
    %v6117 = vpack.c.b16 %v4909, %v4901
    %v6118 = vpack.c.b16 %v4910, %v4902
    %v6119 = vpack.c.b16 %v4911, %v4903
    %v6120 = vpack.c.b16 %v4912, %v4904
    %v6121 = vpack.c.b16 %v4913, %v4905
    %v6122 = vpack.c.b16 %v4914, %v4906
    %v6123 = vpack.c.b16 %v4923, %v4915
    %v6124 = vpack.c.b16 %v4924, %v4916
    %v6125 = vpack.c.b16 %v4925, %v4917
    %v6126 = vpack.c.b16 %v4926, %v4918
    %v6127 = vpack.c.b16 %v4927, %v4919
    %v6128 = vpack.c.b16 %v4928, %v4920
    %v6129 = vpack.c.b16 %v4929, %v4921
    %v6130 = vpack.c.b16 %v4930, %v4922
    %v6131 = vpack.c.b16 %v4939, %v4931
    %v6132 = vpack.c.b16 %v4940, %v4932
    %v6133 = vpack.c.b16 %v4941, %v4933
    %v6134 = vpack.c.b16 %v4942, %v4934
    %v6135 = vpack.c.b16 %v4943, %v4935
    %v6136 = vpack.c.b16 %v4944, %v4936
    %v6137 = vpack.c.b16 %v4945, %v4937
    %v6138 = vpack.c.b16 %v4946, %v4938
    %v6139 = vpack.c.b16 %v4955, %v4947
    %v6140 = vpack.c.b16 %v4956, %v4948
    %v6141 = vpack.c.b16 %v4957, %v4949
    %v6142 = vpack.c.b16 %v4958, %v4950
    %v6143 = vpack.c.b16 %v4959, %v4951
    %v6144 = vpack.c.b16 %v4960, %v4952
    %v6145 = vpack.c.b16 %v4961, %v4953
    %v6146 = vpack.c.b16 %v4962, %v4954
    %v6147 = vpack.c.b16 %v4971, %v4963
    %v6148 = vpack.c.b16 %v4972, %v4964
    %v6149 = vpack.c.b16 %v4973, %v4965
    %v6150 = vpack.c.b16 %v4974, %v4966
    %v6151 = vpack.c.b16 %v4975, %v4967
    %v6152 = vpack.c.b16 %v4976, %v4968
    %v6153 = vpack.c.b16 %v4977, %v4969
    %v6154 = vpack.c.b16 %v4978, %v4970
    %v6155 = vpack.c.b16 %v4987, %v4979
    %v6156 = vpack.c.b16 %v4988, %v4980
    %v6157 = vpack.c.b16 %v4989, %v4981
    %v6158 = vpack.c.b16 %v4990, %v4982
    %v6159 = vpack.c.b16 %v4991, %v4983
    %v6160 = vpack.c.b16 %v4992, %v4984
    %v6161 = vpack.c.b16 %v4993, %v4985
    %v6162 = vpack.c.b16 %v4994, %v4986
    %v6163 = vpack.c.b16 %v5003, %v4995
    %v6164 = vpack.c.b16 %v5004, %v4996
    %v6165 = vpack.c.b16 %v5005, %v4997
    %v6166 = vpack.c.b16 %v5006, %v4998
    %v6167 = vpack.c.b16 %v5007, %v4999
    %v6168 = vpack.c.b16 %v5008, %v5000
    %v6169 = vpack.c.b16 %v5009, %v5001
    %v6170 = vpack.c.b16 %v5010, %v5002
    %v6171 = vpack.c.b16 %v5019, %v5011
    %v6172 = vpack.c.b16 %v5020, %v5012
    %v6173 = vpack.c.b16 %v5021, %v5013
    %v6174 = vpack.c.b16 %v5022, %v5014
    %v6175 = vpack.c.b16 %v5023, %v5015
    %v6176 = vpack.c.b16 %v5024, %v5016
    %v6177 = vpack.c.b16 %v5025, %v5017
    %v6178 = vpack.c.b16 %v5026, %v5018
    %v6179 = vpack.c.b16 %v5035, %v5027
    %v6180 = vpack.c.b16 %v5036, %v5028
    %v6181 = vpack.c.b16 %v5037, %v5029
    %v6182 = vpack.c.b16 %v5038, %v5030
    %v6183 = vpack.c.b16 %v5039, %v5031
    %v6184 = vpack.c.b16 %v5040, %v5032
    %v6185 = vpack.c.b16 %v5041, %v5033
    %v6186 = vpack.c.b16 %v5042, %v5034
    %v6187 = vpack.c.b16 %v5051, %v5043
    %v6188 = vpack.c.b16 %v5052, %v5044
    %v6189 = vpack.c.b16 %v5053, %v5045
    %v6190 = vpack.c.b16 %v5054, %v5046
    %v6191 = vpack.c.b16 %v5055, %v5047
    %v6192 = vpack.c.b16 %v5056, %v5048
    %v6193 = vpack.c.b16 %v5057, %v5049
    %v6194 = vpack.c.b16 %v5058, %v5050
    %v6195 = vpack.c.b16 %v5067, %v5059
    %v6196 = vpack.c.b16 %v5068, %v5060
    %v6197 = vpack.c.b16 %v5069, %v5061
    %v6198 = vpack.c.b16 %v5070, %v5062
    %v6199 = vpack.c.b16 %v5071, %v5063
    %v6200 = vpack.c.b16 %v5072, %v5064
    %v6201 = vpack.c.b16 %v5073, %v5065
    %v6202 = vpack.c.b16 %v5074, %v5066
    %v6203 = vpack.c.b16 %v5083, %v5075
    %v6204 = vpack.c.b16 %v5084, %v5076
    %v6205 = vpack.c.b16 %v5085, %v5077
    %v6206 = vpack.c.b16 %v5086, %v5078
    %v6207 = vpack.c.b16 %v5087, %v5079
    %v6208 = vpack.c.b16 %v5088, %v5080
    %v6209 = vpack.c.b16 %v5089, %v5081
    %v6210 = vpack.c.b16 %v5090, %v5082
    %v6211 = vpack.c.b16 %v5099, %v5091
    %v6212 = vpack.c.b16 %v5100, %v5092
    %v6213 = vpack.c.b16 %v5101, %v5093
    %v6214 = vpack.c.b16 %v5102, %v5094
    %v6215 = vpack.c.b16 %v5103, %v5095
    %v6216 = vpack.c.b16 %v5104, %v5096
    %v6217 = vpack.c.b16 %v5105, %v5097
    %v6218 = vpack.c.b16 %v5106, %v5098
    %v6219 = vpack.c.b16 %v5115, %v5107
    %v6220 = vpack.c.b16 %v5116, %v5108
    %v6221 = vpack.c.b16 %v5117, %v5109
    %v6222 = vpack.c.b16 %v5118, %v5110
    %v6223 = vpack.c.b16 %v5119, %v5111
    %v6224 = vpack.c.b16 %v5120, %v5112
    %v6225 = vpack.c.b16 %v5121, %v5113
    %v6226 = vpack.c.b16 %v5122, %v5114
    %v6227 = vpack.c.b16 %v5131, %v5123
    %v6228 = vpack.c.b16 %v5132, %v5124
    %v6229 = vpack.c.b16 %v5133, %v5125
    %v6230 = vpack.c.b16 %v5134, %v5126
    %v6231 = vpack.c.b16 %v5135, %v5127
    %v6232 = vpack.c.b16 %v5136, %v5128
    %v6233 = vpack.c.b16 %v5137, %v5129
    %v6234 = vpack.c.b16 %v5138, %v5130
    %v6235 = vpack.c.b16 %v5147, %v5139
    %v6236 = vpack.c.b16 %v5148, %v5140
    %v6237 = vpack.c.b16 %v5149, %v5141
    %v6238 = vpack.c.b16 %v5150, %v5142
    %v6239 = vpack.c.b16 %v5151, %v5143
    %v6240 = vpack.c.b16 %v5152, %v5144
    %v6241 = vpack.c.b16 %v5153, %v5145
    %v6242 = vpack.c.b16 %v5154, %v5146
    %v6243 = vpack.c.b16 %v5163, %v5155
    %v6244 = vpack.c.b16 %v5164, %v5156
    %v6245 = vpack.c.b16 %v5165, %v5157
    %v6246 = vpack.c.b16 %v5166, %v5158
    %v6247 = vpack.c.b16 %v5167, %v5159
    %v6248 = vpack.c.b16 %v5168, %v5160
    %v6249 = vpack.c.b16 %v5169, %v5161
    %v6250 = vpack.c.b16 %v5170, %v5162
    %v6251 = vpack.c.b16 %v5179, %v5171
    %v6252 = vpack.c.b16 %v5180, %v5172
    %v6253 = vpack.c.b16 %v5181, %v5173
    %v6254 = vpack.c.b16 %v5182, %v5174
    %v6255 = vpack.c.b16 %v5183, %v5175
    %v6256 = vpack.c.b16 %v5184, %v5176
    %v6257 = vpack.c.b16 %v5185, %v5177
    %v6258 = vpack.c.b16 %v5186, %v5178
    %v6259 = vpack.c.b16 %v5195, %v5187
    %v6260 = vpack.c.b16 %v5196, %v5188
    %v6261 = vpack.c.b16 %v5197, %v5189
    %v6262 = vpack.c.b16 %v5198, %v5190
    %v6263 = vpack.c.b16 %v5199, %v5191
    %v6264 = vpack.c.b16 %v5200, %v5192
    %v6265 = vpack.c.b16 %v5201, %v5193
    %v6266 = vpack.c.b16 %v5202, %v5194
    %v6267 = vpack.c.b16 %v5211, %v5203
    %v6268 = vpack.c.b16 %v5212, %v5204
    %v6269 = vpack.c.b16 %v5213, %v5205
    %v6270 = vpack.c.b16 %v5214, %v5206
    %v6271 = vpack.c.b16 %v5215, %v5207
    %v6272 = vpack.c.b16 %v5216, %v5208
    %v6273 = vpack.c.b16 %v5217, %v5209
    %v6274 = vpack.c.b16 %v5218, %v5210
    %v6275 = vpack.c.b16 %v5227, %v5219
    %v6276 = vpack.c.b16 %v5228, %v5220
    %v6277 = vpack.c.b16 %v5229, %v5221
    %v6278 = vpack.c.b16 %v5230, %v5222
    %v6279 = vpack.c.b16 %v5231, %v5223
    %v6280 = vpack.c.b16 %v5232, %v5224
    %v6281 = vpack.c.b16 %v5233, %v5225
    %v6282 = vpack.c.b16 %v5234, %v5226
    %v6283 = vpack.c.b16 %v5243, %v5235
    %v6284 = vpack.c.b16 %v5244, %v5236
    %v6285 = vpack.c.b16 %v5245, %v5237
    %v6286 = vpack.c.b16 %v5246, %v5238
    %v6287 = vpack.c.b16 %v5247, %v5239
    %v6288 = vpack.c.b16 %v5248, %v5240
    %v6289 = vpack.c.b16 %v5249, %v5241
    %v6290 = vpack.c.b16 %v5250, %v5242
    %v6291 = vpack.c.b16 %v5259, %v5251
    %v6292 = vpack.c.b16 %v5260, %v5252
    %v6293 = vpack.c.b16 %v5261, %v5253
    %v6294 = vpack.c.b16 %v5262, %v5254
    %v6295 = vpack.c.b16 %v5263, %v5255
    %v6296 = vpack.c.b16 %v5264, %v5256
    %v6297 = vpack.c.b16 %v5265, %v5257
    %v6298 = vpack.c.b16 %v5266, %v5258
    %v6299 = vpack.c.b16 %v5275, %v5267
    %v6300 = vpack.c.b16 %v5276, %v5268
    %v6301 = vpack.c.b16 %v5277, %v5269
    %v6302 = vpack.c.b16 %v5278, %v5270
    %v6303 = vpack.c.b16 %v5279, %v5271
    %v6304 = vpack.c.b16 %v5280, %v5272
    %v6305 = vpack.c.b16 %v5281, %v5273
    %v6306 = vpack.c.b16 %v5282, %v5274
    %7331 = vmatprep.subr.bf16.mxu0 %v5340
    %7332 = vmatpush1.bf16.msra.mxu0 %v5339
    %7333 = vmatprep.subr.bf16.mxu0 %v5332
    %7334 = vmatpush1.bf16.msra.mxu0 %v5331
    %7335 = vmatprep.subr.bf16.mxu0 %v5324
    %7336 = vmatpush1.bf16.msra.mxu0 %v5323
    %7337 = vmatprep.subr.bf16.mxu0 %v5316
    %7338 = vmatpush1.bf16.msra.mxu0 %v5315
    %7339 = vmatprep.subr.bf16.mxu0 %v5308
    %7340 = vmatpush1.bf16.msra.mxu0 %v5307
    %7341 = vmatprep.subr.bf16.mxu0 %v5300
    %7342 = vmatpush1.bf16.msra.mxu0 %v5299
    %7343 = vmatprep.subr.bf16.mxu0 %v5292
    %7344 = vmatpush1.bf16.msra.mxu0 %v5291
    %7345 = vmatprep.subr.bf16.mxu0 %v5284
    %7346 = vmatpush1.bf16.msra.mxu0 %v5283
    %7347 = vmatprep.subr.bf16.mxu0 %v5404
    %7348 = vmatpush2.bf16.msra.mxu0 %v5403
    %7349 = vmatprep.subr.bf16.mxu0 %v5396
    %7350 = vmatpush2.bf16.msra.mxu0 %v5395
    %7351 = vmatprep.subr.bf16.mxu0 %v5388
    %7352 = vmatpush2.bf16.msra.mxu0 %v5387
    %7353 = vmatprep.subr.bf16.mxu0 %v5380
    %7354 = vmatpush2.bf16.msra.mxu0 %v5379
    %7355 = vmatprep.subr.bf16.mxu0 %v5372
    %7356 = vmatpush2.bf16.msra.mxu0 %v5371
    %7357 = vmatprep.subr.bf16.mxu0 %v5364
    %7358 = vmatpush2.bf16.msra.mxu0 %v5363
    %7359 = vmatprep.subr.bf16.mxu0 %v5356
    %7360 = vmatpush2.bf16.msra.mxu0 %v5355
    %7361 = vmatprep.subr.bf16.mxu0 %v5348
    %7362 = vmatpush2.bf16.msra.mxu0 %v5347
    %7363 = vmatprep.mubr.bf16.mxu0 %v2134
    %7364 = vmatmul.mubr.bf16.gmra.mxu0 %v2120
    %v7365 = vpop.f32.mrf.mxu0
    %v7366 = vadd.f32 0.0, %v7365
    %v7367 = vpop.f32.mrf.mxu0
    %v7368 = vadd.f32 0.0, %v7367
    %v7369 = vpop.f32.mrf.mxu0
    %v7370 = vpop.f32.mrf.mxu0
    %7371 = vdwg.mxu0
    %7372 = vmatprep.subr.bf16.mxu0 %v5468
    %7373 = vmatpush1.bf16.msra.mxu0 %v5467
    %7374 = vmatprep.subr.bf16.mxu0 %v5460
    %7375 = vmatpush1.bf16.msra.mxu0 %v5459
    %7376 = vmatprep.subr.bf16.mxu0 %v5452
    %7377 = vmatpush1.bf16.msra.mxu0 %v5451
    %7378 = vmatprep.subr.bf16.mxu0 %v5444
    %7379 = vmatpush1.bf16.msra.mxu0 %v5443
    %7380 = vmatprep.subr.bf16.mxu0 %v5436
    %7381 = vmatpush1.bf16.msra.mxu0 %v5435
    %7382 = vmatprep.subr.bf16.mxu0 %v5428
    %7383 = vmatpush1.bf16.msra.mxu0 %v5427
    %7384 = vmatprep.subr.bf16.mxu0 %v5420
    %7385 = vmatpush1.bf16.msra.mxu0 %v5419
    %7386 = vmatprep.subr.bf16.mxu0 %v5412
    %7387 = vmatpush1.bf16.msra.mxu0 %v5411
    %7388 = vmatprep.subr.bf16.mxu0 %v5532
    %7389 = vmatpush2.bf16.msra.mxu0 %v5531
    %7390 = vmatprep.subr.bf16.mxu0 %v5524
    %7391 = vmatpush2.bf16.msra.mxu0 %v5523
    %7392 = vmatprep.subr.bf16.mxu0 %v5516
    %7393 = vmatpush2.bf16.msra.mxu0 %v5515
    %7394 = vmatprep.subr.bf16.mxu0 %v5508
    %7395 = vmatpush2.bf16.msra.mxu0 %v5507
    %7396 = vmatprep.subr.bf16.mxu0 %v5500
    %7397 = vmatpush2.bf16.msra.mxu0 %v5499
    %7398 = vmatprep.subr.bf16.mxu0 %v5492
    %7399 = vmatpush2.bf16.msra.mxu0 %v5491
    %7400 = vmatprep.subr.bf16.mxu0 %v5484
    %7401 = vmatpush2.bf16.msra.mxu0 %v5483
    %7402 = vmatprep.subr.bf16.mxu0 %v5476
    %7403 = vmatpush2.bf16.msra.mxu0 %v5475
    %7404 = vmatprep.mubr.bf16.mxu0 %v2144
    %7405 = vmatmul.mubr.bf16.gmra.mxu0 %v2142
    %v7406 = vpop.f32.mrf.mxu0
    %v7407 = vadd.f32 %v7366, %v7406
    %v7408 = vpop.f32.mrf.mxu0
    %v7409 = vadd.f32 %v7368, %v7408
    %v7410 = vpop.f32.mrf.mxu0
    %v7411 = vpop.f32.mrf.mxu0
    %7412 = vdwg.mxu0
    %7413 = vmatprep.subr.bf16.mxu0 %v5596
    %7414 = vmatpush1.bf16.msra.mxu0 %v5595
    %7415 = vmatprep.subr.bf16.mxu0 %v5588
    %7416 = vmatpush1.bf16.msra.mxu0 %v5587
    %7417 = vmatprep.subr.bf16.mxu0 %v5580
    %7418 = vmatpush1.bf16.msra.mxu0 %v5579
    %7419 = vmatprep.subr.bf16.mxu0 %v5572
    %7420 = vmatpush1.bf16.msra.mxu0 %v5571
    %7421 = vmatprep.subr.bf16.mxu0 %v5564
    %7422 = vmatpush1.bf16.msra.mxu0 %v5563
    %7423 = vmatprep.subr.bf16.mxu0 %v5556
    %7424 = vmatpush1.bf16.msra.mxu0 %v5555
    %7425 = vmatprep.subr.bf16.mxu0 %v5548
    %7426 = vmatpush1.bf16.msra.mxu0 %v5547
    %7427 = vmatprep.subr.bf16.mxu0 %v5540
    %7428 = vmatpush1.bf16.msra.mxu0 %v5539
    %7429 = vmatprep.subr.bf16.mxu0 %v5660
    %7430 = vmatpush2.bf16.msra.mxu0 %v5659
    %7431 = vmatprep.subr.bf16.mxu0 %v5652
    %7432 = vmatpush2.bf16.msra.mxu0 %v5651
    %7433 = vmatprep.subr.bf16.mxu0 %v5644
    %7434 = vmatpush2.bf16.msra.mxu0 %v5643
    %7435 = vmatprep.subr.bf16.mxu0 %v5636
    %7436 = vmatpush2.bf16.msra.mxu0 %v5635
    %7437 = vmatprep.subr.bf16.mxu0 %v5628
    %7438 = vmatpush2.bf16.msra.mxu0 %v5627
    %7439 = vmatprep.subr.bf16.mxu0 %v5620
    %7440 = vmatpush2.bf16.msra.mxu0 %v5619
    %7441 = vmatprep.subr.bf16.mxu0 %v5612
    %7442 = vmatpush2.bf16.msra.mxu0 %v5611
    %7443 = vmatprep.subr.bf16.mxu0 %v5604
    %7444 = vmatpush2.bf16.msra.mxu0 %v5603
    %7445 = vmatprep.mubr.bf16.mxu0 %v2141
    %7446 = vmatmul.mubr.bf16.gmra.mxu0 %v2127
    %v7447 = vpop.f32.mrf.mxu0
    %v7448 = vadd.f32 %v7407, %v7447
    %v7449 = vpop.f32.mrf.mxu0
    %v7450 = vadd.f32 %v7409, %v7449
    %v7451 = vpop.f32.mrf.mxu0
    %v7452 = vpop.f32.mrf.mxu0
    %7453 = vdwg.mxu0
    %7454 = vmatprep.subr.bf16.mxu0 %v5724
    %7455 = vmatpush1.bf16.msra.mxu0 %v5723
    %7456 = vmatprep.subr.bf16.mxu0 %v5716
    %7457 = vmatpush1.bf16.msra.mxu0 %v5715
    %7458 = vmatprep.subr.bf16.mxu0 %v5708
    %7459 = vmatpush1.bf16.msra.mxu0 %v5707
    %7460 = vmatprep.subr.bf16.mxu0 %v5700
    %7461 = vmatpush1.bf16.msra.mxu0 %v5699
    %7462 = vmatprep.subr.bf16.mxu0 %v5692
    %7463 = vmatpush1.bf16.msra.mxu0 %v5691
    %7464 = vmatprep.subr.bf16.mxu0 %v5684
    %7465 = vmatpush1.bf16.msra.mxu0 %v5683
    %7466 = vmatprep.subr.bf16.mxu0 %v5676
    %7467 = vmatpush1.bf16.msra.mxu0 %v5675
    %7468 = vmatprep.subr.bf16.mxu0 %v5668
    %7469 = vmatpush1.bf16.msra.mxu0 %v5667
    %7470 = vmatprep.subr.bf16.mxu0 %v5788
    %7471 = vmatpush2.bf16.msra.mxu0 %v5787
    %7472 = vmatprep.subr.bf16.mxu0 %v5780
    %7473 = vmatpush2.bf16.msra.mxu0 %v5779
    %7474 = vmatprep.subr.bf16.mxu0 %v5772
    %7475 = vmatpush2.bf16.msra.mxu0 %v5771
    %7476 = vmatprep.subr.bf16.mxu0 %v5764
    %7477 = vmatpush2.bf16.msra.mxu0 %v5763
    %7478 = vmatprep.subr.bf16.mxu0 %v5756
    %7479 = vmatpush2.bf16.msra.mxu0 %v5755
    %7480 = vmatprep.subr.bf16.mxu0 %v5748
    %7481 = vmatpush2.bf16.msra.mxu0 %v5747
    %7482 = vmatprep.subr.bf16.mxu0 %v5740
    %7483 = vmatpush2.bf16.msra.mxu0 %v5739
    %7484 = vmatprep.subr.bf16.mxu0 %v5732
    %7485 = vmatpush2.bf16.msra.mxu0 %v5731
    %7486 = vmatprep.mubr.bf16.mxu0 %v2145
    %7487 = vmatmul.mubr.bf16.gmra.mxu0 %v2143
    %v7488 = vpop.f32.mrf.mxu0
    %v7489 = vadd.f32 %v7448, %v7488
    %v7490 = vpop.f32.mrf.mxu0
    %v7491 = vadd.f32 %v7450, %v7490
    %v7492 = vpop.f32.mrf.mxu0
    %v7493 = vpop.f32.mrf.mxu0
    %7494 = vdwg.mxu0
    %7495 = vmatprep.subr.bf16.mxu0 %v5852
    %7496 = vmatpush1.bf16.msra.mxu0 %v5851
    %7497 = vmatprep.subr.bf16.mxu0 %v5844
    %7498 = vmatpush1.bf16.msra.mxu0 %v5843
    %7499 = vmatprep.subr.bf16.mxu0 %v5836
    %7500 = vmatpush1.bf16.msra.mxu0 %v5835
    %7501 = vmatprep.subr.bf16.mxu0 %v5828
    %7502 = vmatpush1.bf16.msra.mxu0 %v5827
    %7503 = vmatprep.subr.bf16.mxu0 %v5820
    %7504 = vmatpush1.bf16.msra.mxu0 %v5819
    %7505 = vmatprep.subr.bf16.mxu0 %v5812
    %7506 = vmatpush1.bf16.msra.mxu0 %v5811
    %7507 = vmatprep.subr.bf16.mxu0 %v5804
    %7508 = vmatpush1.bf16.msra.mxu0 %v5803
    %7509 = vmatprep.subr.bf16.mxu0 %v5796
    %7510 = vmatpush1.bf16.msra.mxu0 %v5795
    %7511 = vmatprep.subr.bf16.mxu0 %v5916
    %7512 = vmatpush2.bf16.msra.mxu0 %v5915
    %7513 = vmatprep.subr.bf16.mxu0 %v5908
    %7514 = vmatpush2.bf16.msra.mxu0 %v5907
    %7515 = vmatprep.subr.bf16.mxu0 %v5900
    %7516 = vmatpush2.bf16.msra.mxu0 %v5899
    %7517 = vmatprep.subr.bf16.mxu0 %v5892
    %7518 = vmatpush2.bf16.msra.mxu0 %v5891
    %7519 = vmatprep.subr.bf16.mxu0 %v5884
    %7520 = vmatpush2.bf16.msra.mxu0 %v5883
    %7521 = vmatprep.subr.bf16.mxu0 %v5876
    %7522 = vmatpush2.bf16.msra.mxu0 %v5875
    %7523 = vmatprep.subr.bf16.mxu0 %v5868
    %7524 = vmatpush2.bf16.msra.mxu0 %v5867
    %7525 = vmatprep.subr.bf16.mxu0 %v5860
    %7526 = vmatpush2.bf16.msra.mxu0 %v5859
    %7527 = vmatprep.mubr.bf16.mxu0 %v2183
    %7528 = vmatmul.mubr.bf16.gmra.mxu0 %v2169
    %v7529 = vpop.f32.mrf.mxu0
    %v7530 = vadd.f32 %v7489, %v7529
    %v7531 = vpop.f32.mrf.mxu0
    %v7532 = vadd.f32 %v7491, %v7531
    %v7533 = vpop.f32.mrf.mxu0
    %v7534 = vpop.f32.mrf.mxu0
    %7535 = vdwg.mxu0
    %7536 = vmatprep.subr.bf16.mxu0 %v5980
    %7537 = vmatpush1.bf16.msra.mxu0 %v5979
    %7538 = vmatprep.subr.bf16.mxu0 %v5972
    %7539 = vmatpush1.bf16.msra.mxu0 %v5971
    %7540 = vmatprep.subr.bf16.mxu0 %v5964
    %7541 = vmatpush1.bf16.msra.mxu0 %v5963
    %7542 = vmatprep.subr.bf16.mxu0 %v5956
    %7543 = vmatpush1.bf16.msra.mxu0 %v5955
    %7544 = vmatprep.subr.bf16.mxu0 %v5948
    %7545 = vmatpush1.bf16.msra.mxu0 %v5947
    %7546 = vmatprep.subr.bf16.mxu0 %v5940
    %7547 = vmatpush1.bf16.msra.mxu0 %v5939
    %7548 = vmatprep.subr.bf16.mxu0 %v5932
    %7549 = vmatpush1.bf16.msra.mxu0 %v5931
    %7550 = vmatprep.subr.bf16.mxu0 %v5924
    %7551 = vmatpush1.bf16.msra.mxu0 %v5923
    %7552 = vmatprep.subr.bf16.mxu0 %v6044
    %7553 = vmatpush2.bf16.msra.mxu0 %v6043
    %7554 = vmatprep.subr.bf16.mxu0 %v6036
    %7555 = vmatpush2.bf16.msra.mxu0 %v6035
    %7556 = vmatprep.subr.bf16.mxu0 %v6028
    %7557 = vmatpush2.bf16.msra.mxu0 %v6027
    %7558 = vmatprep.subr.bf16.mxu0 %v6020
    %7559 = vmatpush2.bf16.msra.mxu0 %v6019
    %7560 = vmatprep.subr.bf16.mxu0 %v6012
    %7561 = vmatpush2.bf16.msra.mxu0 %v6011
    %7562 = vmatprep.subr.bf16.mxu0 %v6004
    %7563 = vmatpush2.bf16.msra.mxu0 %v6003
    %7564 = vmatprep.subr.bf16.mxu0 %v5996
    %7565 = vmatpush2.bf16.msra.mxu0 %v5995
    %7566 = vmatprep.subr.bf16.mxu0 %v5988
    %7567 = vmatpush2.bf16.msra.mxu0 %v5987
    %7568 = vmatprep.mubr.bf16.mxu0 %v2193
    %7569 = vmatmul.mubr.bf16.gmra.mxu0 %v2191
    %v7570 = vpop.f32.mrf.mxu0
    %v7571 = vadd.f32 %v7530, %v7570
    %v7572 = vpop.f32.mrf.mxu0
    %v7573 = vadd.f32 %v7532, %v7572
    %v7574 = vpop.f32.mrf.mxu0
    %v7575 = vpop.f32.mrf.mxu0
    %7576 = vdwg.mxu0
    %7577 = vmatprep.subr.bf16.mxu0 %v6108
    %7578 = vmatpush1.bf16.msra.mxu0 %v6107
    %7579 = vmatprep.subr.bf16.mxu0 %v6100
    %7580 = vmatpush1.bf16.msra.mxu0 %v6099
    %7581 = vmatprep.subr.bf16.mxu0 %v6092
    %7582 = vmatpush1.bf16.msra.mxu0 %v6091
    %7583 = vmatprep.subr.bf16.mxu0 %v6084
    %7584 = vmatpush1.bf16.msra.mxu0 %v6083
    %7585 = vmatprep.subr.bf16.mxu0 %v6076
    %7586 = vmatpush1.bf16.msra.mxu0 %v6075
    %7587 = vmatprep.subr.bf16.mxu0 %v6068
    %7588 = vmatpush1.bf16.msra.mxu0 %v6067
    %7589 = vmatprep.subr.bf16.mxu0 %v6060
    %7590 = vmatpush1.bf16.msra.mxu0 %v6059
    %7591 = vmatprep.subr.bf16.mxu0 %v6052
    %7592 = vmatpush1.bf16.msra.mxu0 %v6051
    %7593 = vmatprep.subr.bf16.mxu0 %v6172
    %7594 = vmatpush2.bf16.msra.mxu0 %v6171
    %7595 = vmatprep.subr.bf16.mxu0 %v6164
    %7596 = vmatpush2.bf16.msra.mxu0 %v6163
    %7597 = vmatprep.subr.bf16.mxu0 %v6156
    %7598 = vmatpush2.bf16.msra.mxu0 %v6155
    %7599 = vmatprep.subr.bf16.mxu0 %v6148
    %7600 = vmatpush2.bf16.msra.mxu0 %v6147
    %7601 = vmatprep.subr.bf16.mxu0 %v6140
    %7602 = vmatpush2.bf16.msra.mxu0 %v6139
    %7603 = vmatprep.subr.bf16.mxu0 %v6132
    %7604 = vmatpush2.bf16.msra.mxu0 %v6131
    %7605 = vmatprep.subr.bf16.mxu0 %v6124
    %7606 = vmatpush2.bf16.msra.mxu0 %v6123
    %7607 = vmatprep.subr.bf16.mxu0 %v6116
    %7608 = vmatpush2.bf16.msra.mxu0 %v6115
    %7609 = vmatprep.mubr.bf16.mxu0 %v2190
    %7610 = vmatmul.mubr.bf16.gmra.mxu0 %v2176
    %v7611 = vpop.f32.mrf.mxu0
    %v7612 = vadd.f32 %v7571, %v7611
    %v7613 = vpop.f32.mrf.mxu0
    %v7614 = vadd.f32 %v7573, %v7613
    %v7615 = vpop.f32.mrf.mxu0
    %v7616 = vpop.f32.mrf.mxu0
    %7617 = vdwg.mxu0
    %7618 = vmatprep.subr.bf16.mxu0 %v6236
    %7619 = vmatpush1.bf16.msra.mxu0 %v6235
    %7620 = vmatprep.subr.bf16.mxu0 %v6228
    %7621 = vmatpush1.bf16.msra.mxu0 %v6227
    %7622 = vmatprep.subr.bf16.mxu0 %v6220
    %7623 = vmatpush1.bf16.msra.mxu0 %v6219
    %7624 = vmatprep.subr.bf16.mxu0 %v6212
    %7625 = vmatpush1.bf16.msra.mxu0 %v6211
    %7626 = vmatprep.subr.bf16.mxu0 %v6204
    %7627 = vmatpush1.bf16.msra.mxu0 %v6203
    %7628 = vmatprep.subr.bf16.mxu0 %v6196
    %7629 = vmatpush1.bf16.msra.mxu0 %v6195
    %7630 = vmatprep.subr.bf16.mxu0 %v6188
    %7631 = vmatpush1.bf16.msra.mxu0 %v6187
    %7632 = vmatprep.subr.bf16.mxu0 %v6180
    %7633 = vmatpush1.bf16.msra.mxu0 %v6179
    %7634 = vmatprep.subr.bf16.mxu0 %v6300
    %7635 = vmatpush2.bf16.msra.mxu0 %v6299
    %7636 = vmatprep.subr.bf16.mxu0 %v6292
    %7637 = vmatpush2.bf16.msra.mxu0 %v6291
    %7638 = vmatprep.subr.bf16.mxu0 %v6284
    %7639 = vmatpush2.bf16.msra.mxu0 %v6283
    %7640 = vmatprep.subr.bf16.mxu0 %v6276
    %7641 = vmatpush2.bf16.msra.mxu0 %v6275
    %7642 = vmatprep.subr.bf16.mxu0 %v6268
    %7643 = vmatpush2.bf16.msra.mxu0 %v6267
    %7644 = vmatprep.subr.bf16.mxu0 %v6260
    %7645 = vmatpush2.bf16.msra.mxu0 %v6259
    %7646 = vmatprep.subr.bf16.mxu0 %v6252
    %7647 = vmatpush2.bf16.msra.mxu0 %v6251
    %7648 = vmatprep.subr.bf16.mxu0 %v6244
    %7649 = vmatpush2.bf16.msra.mxu0 %v6243
    %7650 = vmatprep.mubr.bf16.mxu0 %v2194
    %7651 = vmatmul.mubr.bf16.gmra.mxu0 %v2192
    %v7652 = vpop.f32.mrf.mxu0
    %v7653 = vadd.f32 %v7612, %v7652
    %v7654 = vpop.f32.mrf.mxu0
    %v7655 = vadd.f32 %v7614, %v7654
    %v7656 = vpop.f32.mrf.mxu0
    %v7657 = vpop.f32.mrf.mxu0
    %7658 = vdwg.mxu0
    %7659 = vmatprep.subr.bf16.mxu0 %v5342
    %7660 = vmatpush1.bf16.msra.mxu0 %v5341
    %7661 = vmatprep.subr.bf16.mxu0 %v5334
    %7662 = vmatpush1.bf16.msra.mxu0 %v5333
    %7663 = vmatprep.subr.bf16.mxu0 %v5326
    %7664 = vmatpush1.bf16.msra.mxu0 %v5325
    %7665 = vmatprep.subr.bf16.mxu0 %v5318
    %7666 = vmatpush1.bf16.msra.mxu0 %v5317
    %7667 = vmatprep.subr.bf16.mxu0 %v5310
    %7668 = vmatpush1.bf16.msra.mxu0 %v5309
    %7669 = vmatprep.subr.bf16.mxu0 %v5302
    %7670 = vmatpush1.bf16.msra.mxu0 %v5301
    %7671 = vmatprep.subr.bf16.mxu0 %v5294
    %7672 = vmatpush1.bf16.msra.mxu0 %v5293
    %7673 = vmatprep.subr.bf16.mxu0 %v5286
    %7674 = vmatpush1.bf16.msra.mxu0 %v5285
    %7675 = vmatprep.subr.bf16.mxu0 %v5406
    %7676 = vmatpush2.bf16.msra.mxu0 %v5405
    %7677 = vmatprep.subr.bf16.mxu0 %v5398
    %7678 = vmatpush2.bf16.msra.mxu0 %v5397
    %7679 = vmatprep.subr.bf16.mxu0 %v5390
    %7680 = vmatpush2.bf16.msra.mxu0 %v5389
    %7681 = vmatprep.subr.bf16.mxu0 %v5382
    %7682 = vmatpush2.bf16.msra.mxu0 %v5381
    %7683 = vmatprep.subr.bf16.mxu0 %v5374
    %7684 = vmatpush2.bf16.msra.mxu0 %v5373
    %7685 = vmatprep.subr.bf16.mxu0 %v5366
    %7686 = vmatpush2.bf16.msra.mxu0 %v5365
    %7687 = vmatprep.subr.bf16.mxu0 %v5358
    %7688 = vmatpush2.bf16.msra.mxu0 %v5357
    %7689 = vmatprep.subr.bf16.mxu0 %v5350
    %7690 = vmatpush2.bf16.msra.mxu0 %v5349
    %7691 = vmatprep.mubr.bf16.mxu0 %v2134
    %7692 = vmatmul.mubr.bf16.gmra.mxu0 %v2120
    %v7693 = vpop.f32.mrf.mxu0
    %v7694 = vadd.f32 0.0, %v7693
    %v7695 = vpop.f32.mrf.mxu0
    %v7696 = vadd.f32 0.0, %v7695
    %v7697 = vpop.f32.mrf.mxu0
    %v7698 = vpop.f32.mrf.mxu0
    %7699 = vdwg.mxu0
    %7700 = vmatprep.subr.bf16.mxu0 %v5470
    %7701 = vmatpush1.bf16.msra.mxu0 %v5469
    %7702 = vmatprep.subr.bf16.mxu0 %v5462
    %7703 = vmatpush1.bf16.msra.mxu0 %v5461
    %7704 = vmatprep.subr.bf16.mxu0 %v5454
    %7705 = vmatpush1.bf16.msra.mxu0 %v5453
    %7706 = vmatprep.subr.bf16.mxu0 %v5446
    %7707 = vmatpush1.bf16.msra.mxu0 %v5445
    %7708 = vmatprep.subr.bf16.mxu0 %v5438
    %7709 = vmatpush1.bf16.msra.mxu0 %v5437
    %7710 = vmatprep.subr.bf16.mxu0 %v5430
    %7711 = vmatpush1.bf16.msra.mxu0 %v5429
    %7712 = vmatprep.subr.bf16.mxu0 %v5422
    %7713 = vmatpush1.bf16.msra.mxu0 %v5421
    %7714 = vmatprep.subr.bf16.mxu0 %v5414
    %7715 = vmatpush1.bf16.msra.mxu0 %v5413
    %7716 = vmatprep.subr.bf16.mxu0 %v5534
    %7717 = vmatpush2.bf16.msra.mxu0 %v5533
    %7718 = vmatprep.subr.bf16.mxu0 %v5526
    %7719 = vmatpush2.bf16.msra.mxu0 %v5525
    %7720 = vmatprep.subr.bf16.mxu0 %v5518
    %7721 = vmatpush2.bf16.msra.mxu0 %v5517
    %7722 = vmatprep.subr.bf16.mxu0 %v5510
    %7723 = vmatpush2.bf16.msra.mxu0 %v5509
    %7724 = vmatprep.subr.bf16.mxu0 %v5502
    %7725 = vmatpush2.bf16.msra.mxu0 %v5501
    %7726 = vmatprep.subr.bf16.mxu0 %v5494
    %7727 = vmatpush2.bf16.msra.mxu0 %v5493
    %7728 = vmatprep.subr.bf16.mxu0 %v5486
    %7729 = vmatpush2.bf16.msra.mxu0 %v5485
    %7730 = vmatprep.subr.bf16.mxu0 %v5478
    %7731 = vmatpush2.bf16.msra.mxu0 %v5477
    %7732 = vmatprep.mubr.bf16.mxu0 %v2144
    %7733 = vmatmul.mubr.bf16.gmra.mxu0 %v2142
    %v7734 = vpop.f32.mrf.mxu0
    %v7735 = vadd.f32 %v7694, %v7734
    %v7736 = vpop.f32.mrf.mxu0
    %v7737 = vadd.f32 %v7696, %v7736
    %v7738 = vpop.f32.mrf.mxu0
    %v7739 = vpop.f32.mrf.mxu0
    %7740 = vdwg.mxu0
    %7741 = vmatprep.subr.bf16.mxu0 %v5598
    %7742 = vmatpush1.bf16.msra.mxu0 %v5597
    %7743 = vmatprep.subr.bf16.mxu0 %v5590
    %7744 = vmatpush1.bf16.msra.mxu0 %v5589
    %7745 = vmatprep.subr.bf16.mxu0 %v5582
    %7746 = vmatpush1.bf16.msra.mxu0 %v5581
    %7747 = vmatprep.subr.bf16.mxu0 %v5574
    %7748 = vmatpush1.bf16.msra.mxu0 %v5573
    %7749 = vmatprep.subr.bf16.mxu0 %v5566
    %7750 = vmatpush1.bf16.msra.mxu0 %v5565
    %7751 = vmatprep.subr.bf16.mxu0 %v5558
    %7752 = vmatpush1.bf16.msra.mxu0 %v5557
    %7753 = vmatprep.subr.bf16.mxu0 %v5550
    %7754 = vmatpush1.bf16.msra.mxu0 %v5549
    %7755 = vmatprep.subr.bf16.mxu0 %v5542
    %7756 = vmatpush1.bf16.msra.mxu0 %v5541
    %7757 = vmatprep.subr.bf16.mxu0 %v5662
    %7758 = vmatpush2.bf16.msra.mxu0 %v5661
    %7759 = vmatprep.subr.bf16.mxu0 %v5654
    %7760 = vmatpush2.bf16.msra.mxu0 %v5653
    %7761 = vmatprep.subr.bf16.mxu0 %v5646
    %7762 = vmatpush2.bf16.msra.mxu0 %v5645
    %7763 = vmatprep.subr.bf16.mxu0 %v5638
    %7764 = vmatpush2.bf16.msra.mxu0 %v5637
    %7765 = vmatprep.subr.bf16.mxu0 %v5630
    %7766 = vmatpush2.bf16.msra.mxu0 %v5629
    %7767 = vmatprep.subr.bf16.mxu0 %v5622
    %7768 = vmatpush2.bf16.msra.mxu0 %v5621
    %7769 = vmatprep.subr.bf16.mxu0 %v5614
    %7770 = vmatpush2.bf16.msra.mxu0 %v5613
    %7771 = vmatprep.subr.bf16.mxu0 %v5606
    %7772 = vmatpush2.bf16.msra.mxu0 %v5605
    %7773 = vmatprep.mubr.bf16.mxu0 %v2141
    %7774 = vmatmul.mubr.bf16.gmra.mxu0 %v2127
    %v7775 = vpop.f32.mrf.mxu0
    %v7776 = vadd.f32 %v7735, %v7775
    %v7777 = vpop.f32.mrf.mxu0
    %v7778 = vadd.f32 %v7737, %v7777
    %v7779 = vpop.f32.mrf.mxu0
    %v7780 = vpop.f32.mrf.mxu0
    %7781 = vdwg.mxu0
    %7782 = vmatprep.subr.bf16.mxu0 %v5726
    %7783 = vmatpush1.bf16.msra.mxu0 %v5725
    %7784 = vmatprep.subr.bf16.mxu0 %v5718
    %7785 = vmatpush1.bf16.msra.mxu0 %v5717
    %7786 = vmatprep.subr.bf16.mxu0 %v5710
    %7787 = vmatpush1.bf16.msra.mxu0 %v5709
    %7788 = vmatprep.subr.bf16.mxu0 %v5702
    %7789 = vmatpush1.bf16.msra.mxu0 %v5701
    %7790 = vmatprep.subr.bf16.mxu0 %v5694
    %7791 = vmatpush1.bf16.msra.mxu0 %v5693
    %7792 = vmatprep.subr.bf16.mxu0 %v5686
    %7793 = vmatpush1.bf16.msra.mxu0 %v5685
    %7794 = vmatprep.subr.bf16.mxu0 %v5678
    %7795 = vmatpush1.bf16.msra.mxu0 %v5677
    %7796 = vmatprep.subr.bf16.mxu0 %v5670
    %7797 = vmatpush1.bf16.msra.mxu0 %v5669
    %7798 = vmatprep.subr.bf16.mxu0 %v5790
    %7799 = vmatpush2.bf16.msra.mxu0 %v5789
    %7800 = vmatprep.subr.bf16.mxu0 %v5782
    %7801 = vmatpush2.bf16.msra.mxu0 %v5781
    %7802 = vmatprep.subr.bf16.mxu0 %v5774
    %7803 = vmatpush2.bf16.msra.mxu0 %v5773
    %7804 = vmatprep.subr.bf16.mxu0 %v5766
    %7805 = vmatpush2.bf16.msra.mxu0 %v5765
    %7806 = vmatprep.subr.bf16.mxu0 %v5758
    %7807 = vmatpush2.bf16.msra.mxu0 %v5757
    %7808 = vmatprep.subr.bf16.mxu0 %v5750
    %7809 = vmatpush2.bf16.msra.mxu0 %v5749
    %7810 = vmatprep.subr.bf16.mxu0 %v5742
    %7811 = vmatpush2.bf16.msra.mxu0 %v5741
    %7812 = vmatprep.subr.bf16.mxu0 %v5734
    %7813 = vmatpush2.bf16.msra.mxu0 %v5733
    %7814 = vmatprep.mubr.bf16.mxu0 %v2145
    %7815 = vmatmul.mubr.bf16.gmra.mxu0 %v2143
    %v7816 = vpop.f32.mrf.mxu0
    %v7817 = vadd.f32 %v7776, %v7816
    %v7818 = vpop.f32.mrf.mxu0
    %v7819 = vadd.f32 %v7778, %v7818
    %v7820 = vpop.f32.mrf.mxu0
    %v7821 = vpop.f32.mrf.mxu0
    %7822 = vdwg.mxu0
    %7823 = vmatprep.subr.bf16.mxu0 %v5854
    %7824 = vmatpush1.bf16.msra.mxu0 %v5853
    %7825 = vmatprep.subr.bf16.mxu0 %v5846
    %7826 = vmatpush1.bf16.msra.mxu0 %v5845
    %7827 = vmatprep.subr.bf16.mxu0 %v5838
    %7828 = vmatpush1.bf16.msra.mxu0 %v5837
    %7829 = vmatprep.subr.bf16.mxu0 %v5830
    %7830 = vmatpush1.bf16.msra.mxu0 %v5829
    %7831 = vmatprep.subr.bf16.mxu0 %v5822
    %7832 = vmatpush1.bf16.msra.mxu0 %v5821
    %7833 = vmatprep.subr.bf16.mxu0 %v5814
    %7834 = vmatpush1.bf16.msra.mxu0 %v5813
    %7835 = vmatprep.subr.bf16.mxu0 %v5806
    %7836 = vmatpush1.bf16.msra.mxu0 %v5805
    %7837 = vmatprep.subr.bf16.mxu0 %v5798
    %7838 = vmatpush1.bf16.msra.mxu0 %v5797
    %7839 = vmatprep.subr.bf16.mxu0 %v5918
    %7840 = vmatpush2.bf16.msra.mxu0 %v5917
    %7841 = vmatprep.subr.bf16.mxu0 %v5910
    %7842 = vmatpush2.bf16.msra.mxu0 %v5909
    %7843 = vmatprep.subr.bf16.mxu0 %v5902
    %7844 = vmatpush2.bf16.msra.mxu0 %v5901
    %7845 = vmatprep.subr.bf16.mxu0 %v5894
    %7846 = vmatpush2.bf16.msra.mxu0 %v5893
    %7847 = vmatprep.subr.bf16.mxu0 %v5886
    %7848 = vmatpush2.bf16.msra.mxu0 %v5885
    %7849 = vmatprep.subr.bf16.mxu0 %v5878
    %7850 = vmatpush2.bf16.msra.mxu0 %v5877
    %7851 = vmatprep.subr.bf16.mxu0 %v5870
    %7852 = vmatpush2.bf16.msra.mxu0 %v5869
    %7853 = vmatprep.subr.bf16.mxu0 %v5862
    %7854 = vmatpush2.bf16.msra.mxu0 %v5861
    %7855 = vmatprep.mubr.bf16.mxu0 %v2183
    %7856 = vmatmul.mubr.bf16.gmra.mxu0 %v2169
    %v7857 = vpop.f32.mrf.mxu0
    %v7858 = vadd.f32 %v7817, %v7857
    %v7859 = vpop.f32.mrf.mxu0
    %v7860 = vadd.f32 %v7819, %v7859
    %v7861 = vpop.f32.mrf.mxu0
    %v7862 = vpop.f32.mrf.mxu0
    %7863 = vdwg.mxu0
    %7864 = vmatprep.subr.bf16.mxu0 %v5982
    %7865 = vmatpush1.bf16.msra.mxu0 %v5981
    %7866 = vmatprep.subr.bf16.mxu0 %v5974
    %7867 = vmatpush1.bf16.msra.mxu0 %v5973
    %7868 = vmatprep.subr.bf16.mxu0 %v5966
    %7869 = vmatpush1.bf16.msra.mxu0 %v5965
    %7870 = vmatprep.subr.bf16.mxu0 %v5958
    %7871 = vmatpush1.bf16.msra.mxu0 %v5957
    %7872 = vmatprep.subr.bf16.mxu0 %v5950
    %7873 = vmatpush1.bf16.msra.mxu0 %v5949
    %7874 = vmatprep.subr.bf16.mxu0 %v5942
    %7875 = vmatpush1.bf16.msra.mxu0 %v5941
    %7876 = vmatprep.subr.bf16.mxu0 %v5934
    %7877 = vmatpush1.bf16.msra.mxu0 %v5933
    %7878 = vmatprep.subr.bf16.mxu0 %v5926
    %7879 = vmatpush1.bf16.msra.mxu0 %v5925
    %7880 = vmatprep.subr.bf16.mxu0 %v6046
    %7881 = vmatpush2.bf16.msra.mxu0 %v6045
    %7882 = vmatprep.subr.bf16.mxu0 %v6038
    %7883 = vmatpush2.bf16.msra.mxu0 %v6037
    %7884 = vmatprep.subr.bf16.mxu0 %v6030
    %7885 = vmatpush2.bf16.msra.mxu0 %v6029
    %7886 = vmatprep.subr.bf16.mxu0 %v6022
    %7887 = vmatpush2.bf16.msra.mxu0 %v6021
    %7888 = vmatprep.subr.bf16.mxu0 %v6014
    %7889 = vmatpush2.bf16.msra.mxu0 %v6013
    %7890 = vmatprep.subr.bf16.mxu0 %v6006
    %7891 = vmatpush2.bf16.msra.mxu0 %v6005
    %7892 = vmatprep.subr.bf16.mxu0 %v5998
    %7893 = vmatpush2.bf16.msra.mxu0 %v5997
    %7894 = vmatprep.subr.bf16.mxu0 %v5990
    %7895 = vmatpush2.bf16.msra.mxu0 %v5989
    %7896 = vmatprep.mubr.bf16.mxu0 %v2193
    %7897 = vmatmul.mubr.bf16.gmra.mxu0 %v2191
    %v7898 = vpop.f32.mrf.mxu0
    %v7899 = vadd.f32 %v7858, %v7898
    %v7900 = vpop.f32.mrf.mxu0
    %v7901 = vadd.f32 %v7860, %v7900
    %v7902 = vpop.f32.mrf.mxu0
    %v7903 = vpop.f32.mrf.mxu0
    %7904 = vdwg.mxu0
    %7905 = vmatprep.subr.bf16.mxu0 %v6110
    %7906 = vmatpush1.bf16.msra.mxu0 %v6109
    %7907 = vmatprep.subr.bf16.mxu0 %v6102
    %7908 = vmatpush1.bf16.msra.mxu0 %v6101
    %7909 = vmatprep.subr.bf16.mxu0 %v6094
    %7910 = vmatpush1.bf16.msra.mxu0 %v6093
    %7911 = vmatprep.subr.bf16.mxu0 %v6086
    %7912 = vmatpush1.bf16.msra.mxu0 %v6085
    %7913 = vmatprep.subr.bf16.mxu0 %v6078
    %7914 = vmatpush1.bf16.msra.mxu0 %v6077
    %7915 = vmatprep.subr.bf16.mxu0 %v6070
    %7916 = vmatpush1.bf16.msra.mxu0 %v6069
    %7917 = vmatprep.subr.bf16.mxu0 %v6062
    %7918 = vmatpush1.bf16.msra.mxu0 %v6061
    %7919 = vmatprep.subr.bf16.mxu0 %v6054
    %7920 = vmatpush1.bf16.msra.mxu0 %v6053
    %7921 = vmatprep.subr.bf16.mxu0 %v6174
    %7922 = vmatpush2.bf16.msra.mxu0 %v6173
    %7923 = vmatprep.subr.bf16.mxu0 %v6166
    %7924 = vmatpush2.bf16.msra.mxu0 %v6165
    %7925 = vmatprep.subr.bf16.mxu0 %v6158
    %7926 = vmatpush2.bf16.msra.mxu0 %v6157
    %7927 = vmatprep.subr.bf16.mxu0 %v6150
    %7928 = vmatpush2.bf16.msra.mxu0 %v6149
    %7929 = vmatprep.subr.bf16.mxu0 %v6142
    %7930 = vmatpush2.bf16.msra.mxu0 %v6141
    %7931 = vmatprep.subr.bf16.mxu0 %v6134
    %7932 = vmatpush2.bf16.msra.mxu0 %v6133
    %7933 = vmatprep.subr.bf16.mxu0 %v6126
    %7934 = vmatpush2.bf16.msra.mxu0 %v6125
    %7935 = vmatprep.subr.bf16.mxu0 %v6118
    %7936 = vmatpush2.bf16.msra.mxu0 %v6117
    %7937 = vmatprep.mubr.bf16.mxu0 %v2190
    %7938 = vmatmul.mubr.bf16.gmra.mxu0 %v2176
    %v7939 = vpop.f32.mrf.mxu0
    %v7940 = vadd.f32 %v7899, %v7939
    %v7941 = vpop.f32.mrf.mxu0
    %v7942 = vadd.f32 %v7901, %v7941
    %v7943 = vpop.f32.mrf.mxu0
    %v7944 = vpop.f32.mrf.mxu0
    %7945 = vdwg.mxu0
    %7946 = vmatprep.subr.bf16.mxu0 %v6238
    %7947 = vmatpush1.bf16.msra.mxu0 %v6237
    %7948 = vmatprep.subr.bf16.mxu0 %v6230
    %7949 = vmatpush1.bf16.msra.mxu0 %v6229
    %7950 = vmatprep.subr.bf16.mxu0 %v6222
    %7951 = vmatpush1.bf16.msra.mxu0 %v6221
    %7952 = vmatprep.subr.bf16.mxu0 %v6214
    %7953 = vmatpush1.bf16.msra.mxu0 %v6213
    %7954 = vmatprep.subr.bf16.mxu0 %v6206
    %7955 = vmatpush1.bf16.msra.mxu0 %v6205
    %7956 = vmatprep.subr.bf16.mxu0 %v6198
    %7957 = vmatpush1.bf16.msra.mxu0 %v6197
    %7958 = vmatprep.subr.bf16.mxu0 %v6190
    %7959 = vmatpush1.bf16.msra.mxu0 %v6189
    %7960 = vmatprep.subr.bf16.mxu0 %v6182
    %7961 = vmatpush1.bf16.msra.mxu0 %v6181
    %7962 = vmatprep.subr.bf16.mxu0 %v6302
    %7963 = vmatpush2.bf16.msra.mxu0 %v6301
    %7964 = vmatprep.subr.bf16.mxu0 %v6294
    %7965 = vmatpush2.bf16.msra.mxu0 %v6293
    %7966 = vmatprep.subr.bf16.mxu0 %v6286
    %7967 = vmatpush2.bf16.msra.mxu0 %v6285
    %7968 = vmatprep.subr.bf16.mxu0 %v6278
    %7969 = vmatpush2.bf16.msra.mxu0 %v6277
    %7970 = vmatprep.subr.bf16.mxu0 %v6270
    %7971 = vmatpush2.bf16.msra.mxu0 %v6269
    %7972 = vmatprep.subr.bf16.mxu0 %v6262
    %7973 = vmatpush2.bf16.msra.mxu0 %v6261
    %7974 = vmatprep.subr.bf16.mxu0 %v6254
    %7975 = vmatpush2.bf16.msra.mxu0 %v6253
    %7976 = vmatprep.subr.bf16.mxu0 %v6246
    %7977 = vmatpush2.bf16.msra.mxu0 %v6245
    %7978 = vmatprep.mubr.bf16.mxu0 %v2194
    %7979 = vmatmul.mubr.bf16.gmra.mxu0 %v2192
    %v7980 = vpop.f32.mrf.mxu0
    %v7981 = vadd.f32 %v7940, %v7980
    %v7982 = vpop.f32.mrf.mxu0
    %v7983 = vadd.f32 %v7942, %v7982
    %v7984 = vpop.f32.mrf.mxu0
    %v7985 = vpop.f32.mrf.mxu0
    %7986 = vdwg.mxu0
    %7987 = vmatprep.subr.bf16.mxu0 %v5344
    %7988 = vmatpush1.bf16.msra.mxu0 %v5343
    %7989 = vmatprep.subr.bf16.mxu0 %v5336
    %7990 = vmatpush1.bf16.msra.mxu0 %v5335
    %7991 = vmatprep.subr.bf16.mxu0 %v5328
    %7992 = vmatpush1.bf16.msra.mxu0 %v5327
    %7993 = vmatprep.subr.bf16.mxu0 %v5320
    %7994 = vmatpush1.bf16.msra.mxu0 %v5319
    %7995 = vmatprep.subr.bf16.mxu0 %v5312
    %7996 = vmatpush1.bf16.msra.mxu0 %v5311
    %7997 = vmatprep.subr.bf16.mxu0 %v5304
    %7998 = vmatpush1.bf16.msra.mxu0 %v5303
    %7999 = vmatprep.subr.bf16.mxu0 %v5296
    %8000 = vmatpush1.bf16.msra.mxu0 %v5295
    %8001 = vmatprep.subr.bf16.mxu0 %v5288
    %8002 = vmatpush1.bf16.msra.mxu0 %v5287
    %8003 = vmatprep.subr.bf16.mxu0 %v5408
    %8004 = vmatpush2.bf16.msra.mxu0 %v5407
    %8005 = vmatprep.subr.bf16.mxu0 %v5400
    %8006 = vmatpush2.bf16.msra.mxu0 %v5399
    %8007 = vmatprep.subr.bf16.mxu0 %v5392
    %8008 = vmatpush2.bf16.msra.mxu0 %v5391
    %8009 = vmatprep.subr.bf16.mxu0 %v5384
    %8010 = vmatpush2.bf16.msra.mxu0 %v5383
    %8011 = vmatprep.subr.bf16.mxu0 %v5376
    %8012 = vmatpush2.bf16.msra.mxu0 %v5375
    %8013 = vmatprep.subr.bf16.mxu0 %v5368
    %8014 = vmatpush2.bf16.msra.mxu0 %v5367
    %8015 = vmatprep.subr.bf16.mxu0 %v5360
    %8016 = vmatpush2.bf16.msra.mxu0 %v5359
    %8017 = vmatprep.subr.bf16.mxu0 %v5352
    %8018 = vmatpush2.bf16.msra.mxu0 %v5351
    %8019 = vmatprep.mubr.bf16.mxu0 %v2134
    %8020 = vmatmul.mubr.bf16.gmra.mxu0 %v2120
    %v8021 = vpop.f32.mrf.mxu0
    %v8022 = vadd.f32 0.0, %v8021
    %v8023 = vpop.f32.mrf.mxu0
    %v8024 = vadd.f32 0.0, %v8023
    %v8025 = vpop.f32.mrf.mxu0
    %v8026 = vpop.f32.mrf.mxu0
    %8027 = vdwg.mxu0
    %8028 = vmatprep.subr.bf16.mxu0 %v5472
    %8029 = vmatpush1.bf16.msra.mxu0 %v5471
    %8030 = vmatprep.subr.bf16.mxu0 %v5464
    %8031 = vmatpush1.bf16.msra.mxu0 %v5463
    %8032 = vmatprep.subr.bf16.mxu0 %v5456
    %8033 = vmatpush1.bf16.msra.mxu0 %v5455
    %8034 = vmatprep.subr.bf16.mxu0 %v5448
    %8035 = vmatpush1.bf16.msra.mxu0 %v5447
    %8036 = vmatprep.subr.bf16.mxu0 %v5440
    %8037 = vmatpush1.bf16.msra.mxu0 %v5439
    %8038 = vmatprep.subr.bf16.mxu0 %v5432
    %8039 = vmatpush1.bf16.msra.mxu0 %v5431
    %8040 = vmatprep.subr.bf16.mxu0 %v5424
    %8041 = vmatpush1.bf16.msra.mxu0 %v5423
    %8042 = vmatprep.subr.bf16.mxu0 %v5416
    %8043 = vmatpush1.bf16.msra.mxu0 %v5415
    %8044 = vmatprep.subr.bf16.mxu0 %v5536
    %8045 = vmatpush2.bf16.msra.mxu0 %v5535
    %8046 = vmatprep.subr.bf16.mxu0 %v5528
    %8047 = vmatpush2.bf16.msra.mxu0 %v5527
    %8048 = vmatprep.subr.bf16.mxu0 %v5520
    %8049 = vmatpush2.bf16.msra.mxu0 %v5519
    %8050 = vmatprep.subr.bf16.mxu0 %v5512
    %8051 = vmatpush2.bf16.msra.mxu0 %v5511
    %8052 = vmatprep.subr.bf16.mxu0 %v5504
    %8053 = vmatpush2.bf16.msra.mxu0 %v5503
    %8054 = vmatprep.subr.bf16.mxu0 %v5496
    %8055 = vmatpush2.bf16.msra.mxu0 %v5495
    %8056 = vmatprep.subr.bf16.mxu0 %v5488
    %8057 = vmatpush2.bf16.msra.mxu0 %v5487
    %8058 = vmatprep.subr.bf16.mxu0 %v5480
    %8059 = vmatpush2.bf16.msra.mxu0 %v5479
    %8060 = vmatprep.mubr.bf16.mxu0 %v2144
    %8061 = vmatmul.mubr.bf16.gmra.mxu0 %v2142
    %v8062 = vpop.f32.mrf.mxu0
    %v8063 = vadd.f32 %v8022, %v8062
    %v8064 = vpop.f32.mrf.mxu0
    %v8065 = vadd.f32 %v8024, %v8064
    %v8066 = vpop.f32.mrf.mxu0
    %v8067 = vpop.f32.mrf.mxu0
    %8068 = vdwg.mxu0
    %8069 = vmatprep.subr.bf16.mxu0 %v5600
    %8070 = vmatpush1.bf16.msra.mxu0 %v5599
    %8071 = vmatprep.subr.bf16.mxu0 %v5592
    %8072 = vmatpush1.bf16.msra.mxu0 %v5591
    %8073 = vmatprep.subr.bf16.mxu0 %v5584
    %8074 = vmatpush1.bf16.msra.mxu0 %v5583
    %8075 = vmatprep.subr.bf16.mxu0 %v5576
    %8076 = vmatpush1.bf16.msra.mxu0 %v5575
    %8077 = vmatprep.subr.bf16.mxu0 %v5568
    %8078 = vmatpush1.bf16.msra.mxu0 %v5567
    %8079 = vmatprep.subr.bf16.mxu0 %v5560
    %8080 = vmatpush1.bf16.msra.mxu0 %v5559
    %8081 = vmatprep.subr.bf16.mxu0 %v5552
    %8082 = vmatpush1.bf16.msra.mxu0 %v5551
    %8083 = vmatprep.subr.bf16.mxu0 %v5544
    %8084 = vmatpush1.bf16.msra.mxu0 %v5543
    %8085 = vmatprep.subr.bf16.mxu0 %v5664
    %8086 = vmatpush2.bf16.msra.mxu0 %v5663
    %8087 = vmatprep.subr.bf16.mxu0 %v5656
    %8088 = vmatpush2.bf16.msra.mxu0 %v5655
    %8089 = vmatprep.subr.bf16.mxu0 %v5648
    %8090 = vmatpush2.bf16.msra.mxu0 %v5647
    %8091 = vmatprep.subr.bf16.mxu0 %v5640
    %8092 = vmatpush2.bf16.msra.mxu0 %v5639
    %8093 = vmatprep.subr.bf16.mxu0 %v5632
    %8094 = vmatpush2.bf16.msra.mxu0 %v5631
    %8095 = vmatprep.subr.bf16.mxu0 %v5624
    %8096 = vmatpush2.bf16.msra.mxu0 %v5623
    %8097 = vmatprep.subr.bf16.mxu0 %v5616
    %8098 = vmatpush2.bf16.msra.mxu0 %v5615
    %8099 = vmatprep.subr.bf16.mxu0 %v5608
    %8100 = vmatpush2.bf16.msra.mxu0 %v5607
    %8101 = vmatprep.mubr.bf16.mxu0 %v2141
    %8102 = vmatmul.mubr.bf16.gmra.mxu0 %v2127
    %v8103 = vpop.f32.mrf.mxu0
    %v8104 = vadd.f32 %v8063, %v8103
    %v8105 = vpop.f32.mrf.mxu0
    %v8106 = vadd.f32 %v8065, %v8105
    %v8107 = vpop.f32.mrf.mxu0
    %v8108 = vpop.f32.mrf.mxu0
    %8109 = vdwg.mxu0
    %8110 = vmatprep.subr.bf16.mxu0 %v5728
    %8111 = vmatpush1.bf16.msra.mxu0 %v5727
    %8112 = vmatprep.subr.bf16.mxu0 %v5720
    %8113 = vmatpush1.bf16.msra.mxu0 %v5719
    %8114 = vmatprep.subr.bf16.mxu0 %v5712
    %8115 = vmatpush1.bf16.msra.mxu0 %v5711
    %8116 = vmatprep.subr.bf16.mxu0 %v5704
    %8117 = vmatpush1.bf16.msra.mxu0 %v5703
    %8118 = vmatprep.subr.bf16.mxu0 %v5696
    %8119 = vmatpush1.bf16.msra.mxu0 %v5695
    %8120 = vmatprep.subr.bf16.mxu0 %v5688
    %8121 = vmatpush1.bf16.msra.mxu0 %v5687
    %8122 = vmatprep.subr.bf16.mxu0 %v5680
    %8123 = vmatpush1.bf16.msra.mxu0 %v5679
    %8124 = vmatprep.subr.bf16.mxu0 %v5672
    %8125 = vmatpush1.bf16.msra.mxu0 %v5671
    %8126 = vmatprep.subr.bf16.mxu0 %v5792
    %8127 = vmatpush2.bf16.msra.mxu0 %v5791
    %8128 = vmatprep.subr.bf16.mxu0 %v5784
    %8129 = vmatpush2.bf16.msra.mxu0 %v5783
    %8130 = vmatprep.subr.bf16.mxu0 %v5776
    %8131 = vmatpush2.bf16.msra.mxu0 %v5775
    %8132 = vmatprep.subr.bf16.mxu0 %v5768
    %8133 = vmatpush2.bf16.msra.mxu0 %v5767
    %8134 = vmatprep.subr.bf16.mxu0 %v5760
    %8135 = vmatpush2.bf16.msra.mxu0 %v5759
    %8136 = vmatprep.subr.bf16.mxu0 %v5752
    %8137 = vmatpush2.bf16.msra.mxu0 %v5751
    %8138 = vmatprep.subr.bf16.mxu0 %v5744
    %8139 = vmatpush2.bf16.msra.mxu0 %v5743
    %8140 = vmatprep.subr.bf16.mxu0 %v5736
    %8141 = vmatpush2.bf16.msra.mxu0 %v5735
    %8142 = vmatprep.mubr.bf16.mxu0 %v2145
    %8143 = vmatmul.mubr.bf16.gmra.mxu0 %v2143
    %v8144 = vpop.f32.mrf.mxu0
    %v8145 = vadd.f32 %v8104, %v8144
    %v8146 = vpop.f32.mrf.mxu0
    %v8147 = vadd.f32 %v8106, %v8146
    %v8148 = vpop.f32.mrf.mxu0
    %v8149 = vpop.f32.mrf.mxu0
    %8150 = vdwg.mxu0
    %8151 = vmatprep.subr.bf16.mxu0 %v5856
    %8152 = vmatpush1.bf16.msra.mxu0 %v5855
    %8153 = vmatprep.subr.bf16.mxu0 %v5848
    %8154 = vmatpush1.bf16.msra.mxu0 %v5847
    %8155 = vmatprep.subr.bf16.mxu0 %v5840
    %8156 = vmatpush1.bf16.msra.mxu0 %v5839
    %8157 = vmatprep.subr.bf16.mxu0 %v5832
    %8158 = vmatpush1.bf16.msra.mxu0 %v5831
    %8159 = vmatprep.subr.bf16.mxu0 %v5824
    %8160 = vmatpush1.bf16.msra.mxu0 %v5823
    %8161 = vmatprep.subr.bf16.mxu0 %v5816
    %8162 = vmatpush1.bf16.msra.mxu0 %v5815
    %8163 = vmatprep.subr.bf16.mxu0 %v5808
    %8164 = vmatpush1.bf16.msra.mxu0 %v5807
    %8165 = vmatprep.subr.bf16.mxu0 %v5800
    %8166 = vmatpush1.bf16.msra.mxu0 %v5799
    %8167 = vmatprep.subr.bf16.mxu0 %v5920
    %8168 = vmatpush2.bf16.msra.mxu0 %v5919
    %8169 = vmatprep.subr.bf16.mxu0 %v5912
    %8170 = vmatpush2.bf16.msra.mxu0 %v5911
    %8171 = vmatprep.subr.bf16.mxu0 %v5904
    %8172 = vmatpush2.bf16.msra.mxu0 %v5903
    %8173 = vmatprep.subr.bf16.mxu0 %v5896
    %8174 = vmatpush2.bf16.msra.mxu0 %v5895
    %8175 = vmatprep.subr.bf16.mxu0 %v5888
    %8176 = vmatpush2.bf16.msra.mxu0 %v5887
    %8177 = vmatprep.subr.bf16.mxu0 %v5880
    %8178 = vmatpush2.bf16.msra.mxu0 %v5879
    %8179 = vmatprep.subr.bf16.mxu0 %v5872
    %8180 = vmatpush2.bf16.msra.mxu0 %v5871
    %8181 = vmatprep.subr.bf16.mxu0 %v5864
    %8182 = vmatpush2.bf16.msra.mxu0 %v5863
    %8183 = vmatprep.mubr.bf16.mxu0 %v2183
    %8184 = vmatmul.mubr.bf16.gmra.mxu0 %v2169
    %v8185 = vpop.f32.mrf.mxu0
    %v8186 = vadd.f32 %v8145, %v8185
    %v8187 = vpop.f32.mrf.mxu0
    %v8188 = vadd.f32 %v8147, %v8187
    %v8189 = vpop.f32.mrf.mxu0
    %v8190 = vpop.f32.mrf.mxu0
    %8191 = vdwg.mxu0
    %8192 = vmatprep.subr.bf16.mxu0 %v5984
    %8193 = vmatpush1.bf16.msra.mxu0 %v5983
    %8194 = vmatprep.subr.bf16.mxu0 %v5976
    %8195 = vmatpush1.bf16.msra.mxu0 %v5975
    %8196 = vmatprep.subr.bf16.mxu0 %v5968
    %8197 = vmatpush1.bf16.msra.mxu0 %v5967
    %8198 = vmatprep.subr.bf16.mxu0 %v5960
    %8199 = vmatpush1.bf16.msra.mxu0 %v5959
    %8200 = vmatprep.subr.bf16.mxu0 %v5952
    %8201 = vmatpush1.bf16.msra.mxu0 %v5951
    %8202 = vmatprep.subr.bf16.mxu0 %v5944
    %8203 = vmatpush1.bf16.msra.mxu0 %v5943
    %8204 = vmatprep.subr.bf16.mxu0 %v5936
    %8205 = vmatpush1.bf16.msra.mxu0 %v5935
    %8206 = vmatprep.subr.bf16.mxu0 %v5928
    %8207 = vmatpush1.bf16.msra.mxu0 %v5927
    %8208 = vmatprep.subr.bf16.mxu0 %v6048
    %8209 = vmatpush2.bf16.msra.mxu0 %v6047
    %8210 = vmatprep.subr.bf16.mxu0 %v6040
    %8211 = vmatpush2.bf16.msra.mxu0 %v6039
    %8212 = vmatprep.subr.bf16.mxu0 %v6032
    %8213 = vmatpush2.bf16.msra.mxu0 %v6031
    %8214 = vmatprep.subr.bf16.mxu0 %v6024
    %8215 = vmatpush2.bf16.msra.mxu0 %v6023
    %8216 = vmatprep.subr.bf16.mxu0 %v6016
    %8217 = vmatpush2.bf16.msra.mxu0 %v6015
    %8218 = vmatprep.subr.bf16.mxu0 %v6008
    %8219 = vmatpush2.bf16.msra.mxu0 %v6007
    %8220 = vmatprep.subr.bf16.mxu0 %v6000
    %8221 = vmatpush2.bf16.msra.mxu0 %v5999
    %8222 = vmatprep.subr.bf16.mxu0 %v5992
    %8223 = vmatpush2.bf16.msra.mxu0 %v5991
    %8224 = vmatprep.mubr.bf16.mxu0 %v2193
    %8225 = vmatmul.mubr.bf16.gmra.mxu0 %v2191
    %v8226 = vpop.f32.mrf.mxu0
    %v8227 = vadd.f32 %v8186, %v8226
    %v8228 = vpop.f32.mrf.mxu0
    %v8229 = vadd.f32 %v8188, %v8228
    %v8230 = vpop.f32.mrf.mxu0
    %v8231 = vpop.f32.mrf.mxu0
    %8232 = vdwg.mxu0
    %8233 = vmatprep.subr.bf16.mxu0 %v6112
    %8234 = vmatpush1.bf16.msra.mxu0 %v6111
    %8235 = vmatprep.subr.bf16.mxu0 %v6104
    %8236 = vmatpush1.bf16.msra.mxu0 %v6103
    %8237 = vmatprep.subr.bf16.mxu0 %v6096
    %8238 = vmatpush1.bf16.msra.mxu0 %v6095
    %8239 = vmatprep.subr.bf16.mxu0 %v6088
    %8240 = vmatpush1.bf16.msra.mxu0 %v6087
    %8241 = vmatprep.subr.bf16.mxu0 %v6080
    %8242 = vmatpush1.bf16.msra.mxu0 %v6079
    %8243 = vmatprep.subr.bf16.mxu0 %v6072
    %8244 = vmatpush1.bf16.msra.mxu0 %v6071
    %8245 = vmatprep.subr.bf16.mxu0 %v6064
    %8246 = vmatpush1.bf16.msra.mxu0 %v6063
    %8247 = vmatprep.subr.bf16.mxu0 %v6056
    %8248 = vmatpush1.bf16.msra.mxu0 %v6055
    %8249 = vmatprep.subr.bf16.mxu0 %v6176
    %8250 = vmatpush2.bf16.msra.mxu0 %v6175
    %8251 = vmatprep.subr.bf16.mxu0 %v6168
    %8252 = vmatpush2.bf16.msra.mxu0 %v6167
    %8253 = vmatprep.subr.bf16.mxu0 %v6160
    %8254 = vmatpush2.bf16.msra.mxu0 %v6159
    %8255 = vmatprep.subr.bf16.mxu0 %v6152
    %8256 = vmatpush2.bf16.msra.mxu0 %v6151
    %8257 = vmatprep.subr.bf16.mxu0 %v6144
    %8258 = vmatpush2.bf16.msra.mxu0 %v6143
    %8259 = vmatprep.subr.bf16.mxu0 %v6136
    %8260 = vmatpush2.bf16.msra.mxu0 %v6135
    %8261 = vmatprep.subr.bf16.mxu0 %v6128
    %8262 = vmatpush2.bf16.msra.mxu0 %v6127
    %8263 = vmatprep.subr.bf16.mxu0 %v6120
    %8264 = vmatpush2.bf16.msra.mxu0 %v6119
    %8265 = vmatprep.mubr.bf16.mxu0 %v2190
    %8266 = vmatmul.mubr.bf16.gmra.mxu0 %v2176
    %v8267 = vpop.f32.mrf.mxu0
    %v8268 = vadd.f32 %v8227, %v8267
    %v8269 = vpop.f32.mrf.mxu0
    %v8270 = vadd.f32 %v8229, %v8269
    %v8271 = vpop.f32.mrf.mxu0
    %v8272 = vpop.f32.mrf.mxu0
    %8273 = vdwg.mxu0
    %8274 = vmatprep.subr.bf16.mxu0 %v6240
    %8275 = vmatpush1.bf16.msra.mxu0 %v6239
    %8276 = vmatprep.subr.bf16.mxu0 %v6232
    %8277 = vmatpush1.bf16.msra.mxu0 %v6231
    %8278 = vmatprep.subr.bf16.mxu0 %v6224
    %8279 = vmatpush1.bf16.msra.mxu0 %v6223
    %8280 = vmatprep.subr.bf16.mxu0 %v6216
    %8281 = vmatpush1.bf16.msra.mxu0 %v6215
    %8282 = vmatprep.subr.bf16.mxu0 %v6208
    %8283 = vmatpush1.bf16.msra.mxu0 %v6207
    %8284 = vmatprep.subr.bf16.mxu0 %v6200
    %8285 = vmatpush1.bf16.msra.mxu0 %v6199
    %8286 = vmatprep.subr.bf16.mxu0 %v6192
    %8287 = vmatpush1.bf16.msra.mxu0 %v6191
    %8288 = vmatprep.subr.bf16.mxu0 %v6184
    %8289 = vmatpush1.bf16.msra.mxu0 %v6183
    %8290 = vmatprep.subr.bf16.mxu0 %v6304
    %8291 = vmatpush2.bf16.msra.mxu0 %v6303
    %8292 = vmatprep.subr.bf16.mxu0 %v6296
    %8293 = vmatpush2.bf16.msra.mxu0 %v6295
    %8294 = vmatprep.subr.bf16.mxu0 %v6288
    %8295 = vmatpush2.bf16.msra.mxu0 %v6287
    %8296 = vmatprep.subr.bf16.mxu0 %v6280
    %8297 = vmatpush2.bf16.msra.mxu0 %v6279
    %8298 = vmatprep.subr.bf16.mxu0 %v6272
    %8299 = vmatpush2.bf16.msra.mxu0 %v6271
    %8300 = vmatprep.subr.bf16.mxu0 %v6264
    %8301 = vmatpush2.bf16.msra.mxu0 %v6263
    %8302 = vmatprep.subr.bf16.mxu0 %v6256
    %8303 = vmatpush2.bf16.msra.mxu0 %v6255
    %8304 = vmatprep.subr.bf16.mxu0 %v6248
    %8305 = vmatpush2.bf16.msra.mxu0 %v6247
    %8306 = vmatprep.mubr.bf16.mxu0 %v2194
    %8307 = vmatmul.mubr.bf16.gmra.mxu0 %v2192
    %v8308 = vpop.f32.mrf.mxu0
    %v8309 = vadd.f32 %v8268, %v8308
    %v8310 = vpop.f32.mrf.mxu0
    %v8311 = vadd.f32 %v8270, %v8310
    %v8312 = vpop.f32.mrf.mxu0
    %v8313 = vpop.f32.mrf.mxu0
    %8314 = vdwg.mxu0
    %8315 = vmatprep.subr.bf16.mxu0 %v5346
    %8316 = vmatpush1.bf16.msra.mxu0 %v5345
    %8317 = vmatprep.subr.bf16.mxu0 %v5338
    %8318 = vmatpush1.bf16.msra.mxu0 %v5337
    %8319 = vmatprep.subr.bf16.mxu0 %v5330
    %8320 = vmatpush1.bf16.msra.mxu0 %v5329
    %8321 = vmatprep.subr.bf16.mxu0 %v5322
    %8322 = vmatpush1.bf16.msra.mxu0 %v5321
    %8323 = vmatprep.subr.bf16.mxu0 %v5314
    %8324 = vmatpush1.bf16.msra.mxu0 %v5313
    %8325 = vmatprep.subr.bf16.mxu0 %v5306
    %8326 = vmatpush1.bf16.msra.mxu0 %v5305
    %8327 = vmatprep.subr.bf16.mxu0 %v5298
    %8328 = vmatpush1.bf16.msra.mxu0 %v5297
    %8329 = vmatprep.subr.bf16.mxu0 %v5290
    %8330 = vmatpush1.bf16.msra.mxu0 %v5289
    %8331 = vmatprep.subr.bf16.mxu0 %v5410
    %8332 = vmatpush2.bf16.msra.mxu0 %v5409
    %8333 = vmatprep.subr.bf16.mxu0 %v5402
    %8334 = vmatpush2.bf16.msra.mxu0 %v5401
    %8335 = vmatprep.subr.bf16.mxu0 %v5394
    %8336 = vmatpush2.bf16.msra.mxu0 %v5393
    %8337 = vmatprep.subr.bf16.mxu0 %v5386
    %8338 = vmatpush2.bf16.msra.mxu0 %v5385
    %8339 = vmatprep.subr.bf16.mxu0 %v5378
    %8340 = vmatpush2.bf16.msra.mxu0 %v5377
    %8341 = vmatprep.subr.bf16.mxu0 %v5370
    %8342 = vmatpush2.bf16.msra.mxu0 %v5369
    %8343 = vmatprep.subr.bf16.mxu0 %v5362
    %8344 = vmatpush2.bf16.msra.mxu0 %v5361
    %8345 = vmatprep.subr.bf16.mxu0 %v5354
    %8346 = vmatpush2.bf16.msra.mxu0 %v5353
    %8347 = vmatprep.mubr.bf16.mxu0 %v2134
    %8348 = vmatmul.mubr.bf16.gmra.mxu0 %v2120
    %v8349 = vpop.f32.mrf.mxu0
    %v8350 = vadd.f32 0.0, %v8349
    %v8351 = vpop.f32.mrf.mxu0
    %v8352 = vadd.f32 0.0, %v8351
    %v8353 = vpop.f32.mrf.mxu0
    %v8354 = vpop.f32.mrf.mxu0
    %8355 = vdwg.mxu0
    %8356 = vmatprep.subr.bf16.mxu0 %v5474
    %8357 = vmatpush1.bf16.msra.mxu0 %v5473
    %8358 = vmatprep.subr.bf16.mxu0 %v5466
    %8359 = vmatpush1.bf16.msra.mxu0 %v5465
    %8360 = vmatprep.subr.bf16.mxu0 %v5458
    %8361 = vmatpush1.bf16.msra.mxu0 %v5457
    %8362 = vmatprep.subr.bf16.mxu0 %v5450
    %8363 = vmatpush1.bf16.msra.mxu0 %v5449
    %8364 = vmatprep.subr.bf16.mxu0 %v5442
    %8365 = vmatpush1.bf16.msra.mxu0 %v5441
    %8366 = vmatprep.subr.bf16.mxu0 %v5434
    %8367 = vmatpush1.bf16.msra.mxu0 %v5433
    %8368 = vmatprep.subr.bf16.mxu0 %v5426
    %8369 = vmatpush1.bf16.msra.mxu0 %v5425
    %8370 = vmatprep.subr.bf16.mxu0 %v5418
    %8371 = vmatpush1.bf16.msra.mxu0 %v5417
    %8372 = vmatprep.subr.bf16.mxu0 %v5538
    %8373 = vmatpush2.bf16.msra.mxu0 %v5537
    %8374 = vmatprep.subr.bf16.mxu0 %v5530
    %8375 = vmatpush2.bf16.msra.mxu0 %v5529
    %8376 = vmatprep.subr.bf16.mxu0 %v5522
    %8377 = vmatpush2.bf16.msra.mxu0 %v5521
    %8378 = vmatprep.subr.bf16.mxu0 %v5514
    %8379 = vmatpush2.bf16.msra.mxu0 %v5513
    %8380 = vmatprep.subr.bf16.mxu0 %v5506
    %8381 = vmatpush2.bf16.msra.mxu0 %v5505
    %8382 = vmatprep.subr.bf16.mxu0 %v5498
    %8383 = vmatpush2.bf16.msra.mxu0 %v5497
    %8384 = vmatprep.subr.bf16.mxu0 %v5490
    %8385 = vmatpush2.bf16.msra.mxu0 %v5489
    %8386 = vmatprep.subr.bf16.mxu0 %v5482
    %8387 = vmatpush2.bf16.msra.mxu0 %v5481
    %8388 = vmatprep.mubr.bf16.mxu0 %v2144
    %8389 = vmatmul.mubr.bf16.gmra.mxu0 %v2142
    %v8390 = vpop.f32.mrf.mxu0
    %v8391 = vadd.f32 %v8350, %v8390
    %v8392 = vpop.f32.mrf.mxu0
    %v8393 = vadd.f32 %v8352, %v8392
    %v8394 = vpop.f32.mrf.mxu0
    %v8395 = vpop.f32.mrf.mxu0
    %8396 = vdwg.mxu0
    %8397 = vmatprep.subr.bf16.mxu0 %v5602
    %8398 = vmatpush1.bf16.msra.mxu0 %v5601
    %8399 = vmatprep.subr.bf16.mxu0 %v5594
    %8400 = vmatpush1.bf16.msra.mxu0 %v5593
    %8401 = vmatprep.subr.bf16.mxu0 %v5586
    %8402 = vmatpush1.bf16.msra.mxu0 %v5585
    %8403 = vmatprep.subr.bf16.mxu0 %v5578
    %8404 = vmatpush1.bf16.msra.mxu0 %v5577
    %8405 = vmatprep.subr.bf16.mxu0 %v5570
    %8406 = vmatpush1.bf16.msra.mxu0 %v5569
    %8407 = vmatprep.subr.bf16.mxu0 %v5562
    %8408 = vmatpush1.bf16.msra.mxu0 %v5561
    %8409 = vmatprep.subr.bf16.mxu0 %v5554
    %8410 = vmatpush1.bf16.msra.mxu0 %v5553
    %8411 = vmatprep.subr.bf16.mxu0 %v5546
    %8412 = vmatpush1.bf16.msra.mxu0 %v5545
    %8413 = vmatprep.subr.bf16.mxu0 %v5666
    %8414 = vmatpush2.bf16.msra.mxu0 %v5665
    %8415 = vmatprep.subr.bf16.mxu0 %v5658
    %8416 = vmatpush2.bf16.msra.mxu0 %v5657
    %8417 = vmatprep.subr.bf16.mxu0 %v5650
    %8418 = vmatpush2.bf16.msra.mxu0 %v5649
    %8419 = vmatprep.subr.bf16.mxu0 %v5642
    %8420 = vmatpush2.bf16.msra.mxu0 %v5641
    %8421 = vmatprep.subr.bf16.mxu0 %v5634
    %8422 = vmatpush2.bf16.msra.mxu0 %v5633
    %8423 = vmatprep.subr.bf16.mxu0 %v5626
    %8424 = vmatpush2.bf16.msra.mxu0 %v5625
    %8425 = vmatprep.subr.bf16.mxu0 %v5618
    %8426 = vmatpush2.bf16.msra.mxu0 %v5617
    %8427 = vmatprep.subr.bf16.mxu0 %v5610
    %8428 = vmatpush2.bf16.msra.mxu0 %v5609
    %8429 = vmatprep.mubr.bf16.mxu0 %v2141
    %8430 = vmatmul.mubr.bf16.gmra.mxu0 %v2127
    %v8431 = vpop.f32.mrf.mxu0
    %v8432 = vadd.f32 %v8391, %v8431
    %v8433 = vpop.f32.mrf.mxu0
    %v8434 = vadd.f32 %v8393, %v8433
    %v8435 = vpop.f32.mrf.mxu0
    %v8436 = vpop.f32.mrf.mxu0
    %8437 = vdwg.mxu0
    %8438 = vmatprep.subr.bf16.mxu0 %v5730
    %8439 = vmatpush1.bf16.msra.mxu0 %v5729
    %8440 = vmatprep.subr.bf16.mxu0 %v5722
    %8441 = vmatpush1.bf16.msra.mxu0 %v5721
    %8442 = vmatprep.subr.bf16.mxu0 %v5714
    %8443 = vmatpush1.bf16.msra.mxu0 %v5713
    %8444 = vmatprep.subr.bf16.mxu0 %v5706
    %8445 = vmatpush1.bf16.msra.mxu0 %v5705
    %8446 = vmatprep.subr.bf16.mxu0 %v5698
    %8447 = vmatpush1.bf16.msra.mxu0 %v5697
    %8448 = vmatprep.subr.bf16.mxu0 %v5690
    %8449 = vmatpush1.bf16.msra.mxu0 %v5689
    %8450 = vmatprep.subr.bf16.mxu0 %v5682
    %8451 = vmatpush1.bf16.msra.mxu0 %v5681
    %8452 = vmatprep.subr.bf16.mxu0 %v5674
    %8453 = vmatpush1.bf16.msra.mxu0 %v5673
    %8454 = vmatprep.subr.bf16.mxu0 %v5794
    %8455 = vmatpush2.bf16.msra.mxu0 %v5793
    %8456 = vmatprep.subr.bf16.mxu0 %v5786
    %8457 = vmatpush2.bf16.msra.mxu0 %v5785
    %8458 = vmatprep.subr.bf16.mxu0 %v5778
    %8459 = vmatpush2.bf16.msra.mxu0 %v5777
    %8460 = vmatprep.subr.bf16.mxu0 %v5770
    %8461 = vmatpush2.bf16.msra.mxu0 %v5769
    %8462 = vmatprep.subr.bf16.mxu0 %v5762
    %8463 = vmatpush2.bf16.msra.mxu0 %v5761
    %8464 = vmatprep.subr.bf16.mxu0 %v5754
    %8465 = vmatpush2.bf16.msra.mxu0 %v5753
    %8466 = vmatprep.subr.bf16.mxu0 %v5746
    %8467 = vmatpush2.bf16.msra.mxu0 %v5745
    %8468 = vmatprep.subr.bf16.mxu0 %v5738
    %8469 = vmatpush2.bf16.msra.mxu0 %v5737
    %8470 = vmatprep.mubr.bf16.mxu0 %v2145
    %8471 = vmatmul.mubr.bf16.gmra.mxu0 %v2143
    %v8472 = vpop.f32.mrf.mxu0
    %v8473 = vadd.f32 %v8432, %v8472
    %v8474 = vpop.f32.mrf.mxu0
    %v8475 = vadd.f32 %v8434, %v8474
    %v8476 = vpop.f32.mrf.mxu0
    %v8477 = vpop.f32.mrf.mxu0
    %8478 = vdwg.mxu0
    %8479 = vmatprep.subr.bf16.mxu0 %v5858
    %8480 = vmatpush1.bf16.msra.mxu0 %v5857
    %8481 = vmatprep.subr.bf16.mxu0 %v5850
    %8482 = vmatpush1.bf16.msra.mxu0 %v5849
    %8483 = vmatprep.subr.bf16.mxu0 %v5842
    %8484 = vmatpush1.bf16.msra.mxu0 %v5841
    %8485 = vmatprep.subr.bf16.mxu0 %v5834
    %8486 = vmatpush1.bf16.msra.mxu0 %v5833
    %8487 = vmatprep.subr.bf16.mxu0 %v5826
    %8488 = vmatpush1.bf16.msra.mxu0 %v5825
    %8489 = vmatprep.subr.bf16.mxu0 %v5818
    %8490 = vmatpush1.bf16.msra.mxu0 %v5817
    %8491 = vmatprep.subr.bf16.mxu0 %v5810
    %8492 = vmatpush1.bf16.msra.mxu0 %v5809
    %8493 = vmatprep.subr.bf16.mxu0 %v5802
    %8494 = vmatpush1.bf16.msra.mxu0 %v5801
    %8495 = vmatprep.subr.bf16.mxu0 %v5922
    %8496 = vmatpush2.bf16.msra.mxu0 %v5921
    %8497 = vmatprep.subr.bf16.mxu0 %v5914
    %8498 = vmatpush2.bf16.msra.mxu0 %v5913
    %8499 = vmatprep.subr.bf16.mxu0 %v5906
    %8500 = vmatpush2.bf16.msra.mxu0 %v5905
    %8501 = vmatprep.subr.bf16.mxu0 %v5898
    %8502 = vmatpush2.bf16.msra.mxu0 %v5897
    %8503 = vmatprep.subr.bf16.mxu0 %v5890
    %8504 = vmatpush2.bf16.msra.mxu0 %v5889
    %8505 = vmatprep.subr.bf16.mxu0 %v5882
    %8506 = vmatpush2.bf16.msra.mxu0 %v5881
    %8507 = vmatprep.subr.bf16.mxu0 %v5874
    %8508 = vmatpush2.bf16.msra.mxu0 %v5873
    %8509 = vmatprep.subr.bf16.mxu0 %v5866
    %8510 = vmatpush2.bf16.msra.mxu0 %v5865
    %8511 = vmatprep.mubr.bf16.mxu0 %v2183
    %8512 = vmatmul.mubr.bf16.gmra.mxu0 %v2169
    %v8513 = vpop.f32.mrf.mxu0
    %v8514 = vadd.f32 %v8473, %v8513
    %v8515 = vpop.f32.mrf.mxu0
    %v8516 = vadd.f32 %v8475, %v8515
    %v8517 = vpop.f32.mrf.mxu0
    %v8518 = vpop.f32.mrf.mxu0
    %8519 = vdwg.mxu0
    %8520 = vmatprep.subr.bf16.mxu0 %v5986
    %8521 = vmatpush1.bf16.msra.mxu0 %v5985
    %8522 = vmatprep.subr.bf16.mxu0 %v5978
    %8523 = vmatpush1.bf16.msra.mxu0 %v5977
    %8524 = vmatprep.subr.bf16.mxu0 %v5970
    %8525 = vmatpush1.bf16.msra.mxu0 %v5969
    %8526 = vmatprep.subr.bf16.mxu0 %v5962
    %8527 = vmatpush1.bf16.msra.mxu0 %v5961
    %8528 = vmatprep.subr.bf16.mxu0 %v5954
    %8529 = vmatpush1.bf16.msra.mxu0 %v5953
    %8530 = vmatprep.subr.bf16.mxu0 %v5946
    %8531 = vmatpush1.bf16.msra.mxu0 %v5945
    %8532 = vmatprep.subr.bf16.mxu0 %v5938
    %8533 = vmatpush1.bf16.msra.mxu0 %v5937
    %8534 = vmatprep.subr.bf16.mxu0 %v5930
    %8535 = vmatpush1.bf16.msra.mxu0 %v5929
    %8536 = vmatprep.subr.bf16.mxu0 %v6050
    %8537 = vmatpush2.bf16.msra.mxu0 %v6049
    %8538 = vmatprep.subr.bf16.mxu0 %v6042
    %8539 = vmatpush2.bf16.msra.mxu0 %v6041
    %8540 = vmatprep.subr.bf16.mxu0 %v6034
    %8541 = vmatpush2.bf16.msra.mxu0 %v6033
    %8542 = vmatprep.subr.bf16.mxu0 %v6026
    %8543 = vmatpush2.bf16.msra.mxu0 %v6025
    %8544 = vmatprep.subr.bf16.mxu0 %v6018
    %8545 = vmatpush2.bf16.msra.mxu0 %v6017
    %8546 = vmatprep.subr.bf16.mxu0 %v6010
    %8547 = vmatpush2.bf16.msra.mxu0 %v6009
    %8548 = vmatprep.subr.bf16.mxu0 %v6002
    %8549 = vmatpush2.bf16.msra.mxu0 %v6001
    %8550 = vmatprep.subr.bf16.mxu0 %v5994
    %8551 = vmatpush2.bf16.msra.mxu0 %v5993
    %8552 = vmatprep.mubr.bf16.mxu0 %v2193
    %8553 = vmatmul.mubr.bf16.gmra.mxu0 %v2191
    %v8554 = vpop.f32.mrf.mxu0
    %v8555 = vadd.f32 %v8514, %v8554
    %v8556 = vpop.f32.mrf.mxu0
    %v8557 = vadd.f32 %v8516, %v8556
    %v8558 = vpop.f32.mrf.mxu0
    %v8559 = vpop.f32.mrf.mxu0
    %8560 = vdwg.mxu0
    %8561 = vmatprep.subr.bf16.mxu0 %v6114
    %8562 = vmatpush1.bf16.msra.mxu0 %v6113
    %8563 = vmatprep.subr.bf16.mxu0 %v6106
    %8564 = vmatpush1.bf16.msra.mxu0 %v6105
    %8565 = vmatprep.subr.bf16.mxu0 %v6098
    %8566 = vmatpush1.bf16.msra.mxu0 %v6097
    %8567 = vmatprep.subr.bf16.mxu0 %v6090
    %8568 = vmatpush1.bf16.msra.mxu0 %v6089
    %8569 = vmatprep.subr.bf16.mxu0 %v6082
    %8570 = vmatpush1.bf16.msra.mxu0 %v6081
    %8571 = vmatprep.subr.bf16.mxu0 %v6074
    %8572 = vmatpush1.bf16.msra.mxu0 %v6073
    %8573 = vmatprep.subr.bf16.mxu0 %v6066
    %8574 = vmatpush1.bf16.msra.mxu0 %v6065
    %8575 = vmatprep.subr.bf16.mxu0 %v6058
    %8576 = vmatpush1.bf16.msra.mxu0 %v6057
    %8577 = vmatprep.subr.bf16.mxu0 %v6178
    %8578 = vmatpush2.bf16.msra.mxu0 %v6177
    %8579 = vmatprep.subr.bf16.mxu0 %v6170
    %8580 = vmatpush2.bf16.msra.mxu0 %v6169
    %8581 = vmatprep.subr.bf16.mxu0 %v6162
    %8582 = vmatpush2.bf16.msra.mxu0 %v6161
    %8583 = vmatprep.subr.bf16.mxu0 %v6154
    %8584 = vmatpush2.bf16.msra.mxu0 %v6153
    %8585 = vmatprep.subr.bf16.mxu0 %v6146
    %8586 = vmatpush2.bf16.msra.mxu0 %v6145
    %8587 = vmatprep.subr.bf16.mxu0 %v6138
    %8588 = vmatpush2.bf16.msra.mxu0 %v6137
    %8589 = vmatprep.subr.bf16.mxu0 %v6130
    %8590 = vmatpush2.bf16.msra.mxu0 %v6129
    %8591 = vmatprep.subr.bf16.mxu0 %v6122
    %8592 = vmatpush2.bf16.msra.mxu0 %v6121
    %8593 = vmatprep.mubr.bf16.mxu0 %v2190
    %8594 = vmatmul.mubr.bf16.gmra.mxu0 %v2176
    %v8595 = vpop.f32.mrf.mxu0
    %v8596 = vadd.f32 %v8555, %v8595
    %v8597 = vpop.f32.mrf.mxu0
    %v8598 = vadd.f32 %v8557, %v8597
    %v8599 = vpop.f32.mrf.mxu0
    %v8600 = vpop.f32.mrf.mxu0
    %8601 = vdwg.mxu0
    %8602 = vmatprep.subr.bf16.mxu0 %v6242
    %8603 = vmatpush1.bf16.msra.mxu0 %v6241
    %8604 = vmatprep.subr.bf16.mxu0 %v6234
    %8605 = vmatpush1.bf16.msra.mxu0 %v6233
    %8606 = vmatprep.subr.bf16.mxu0 %v6226
    %8607 = vmatpush1.bf16.msra.mxu0 %v6225
    %8608 = vmatprep.subr.bf16.mxu0 %v6218
    %8609 = vmatpush1.bf16.msra.mxu0 %v6217
    %8610 = vmatprep.subr.bf16.mxu0 %v6210
    %8611 = vmatpush1.bf16.msra.mxu0 %v6209
    %8612 = vmatprep.subr.bf16.mxu0 %v6202
    %8613 = vmatpush1.bf16.msra.mxu0 %v6201
    %8614 = vmatprep.subr.bf16.mxu0 %v6194
    %8615 = vmatpush1.bf16.msra.mxu0 %v6193
    %8616 = vmatprep.subr.bf16.mxu0 %v6186
    %8617 = vmatpush1.bf16.msra.mxu0 %v6185
    %8618 = vmatprep.subr.bf16.mxu0 %v6306
    %8619 = vmatpush2.bf16.msra.mxu0 %v6305
    %8620 = vmatprep.subr.bf16.mxu0 %v6298
    %8621 = vmatpush2.bf16.msra.mxu0 %v6297
    %8622 = vmatprep.subr.bf16.mxu0 %v6290
    %8623 = vmatpush2.bf16.msra.mxu0 %v6289
    %8624 = vmatprep.subr.bf16.mxu0 %v6282
    %8625 = vmatpush2.bf16.msra.mxu0 %v6281
    %8626 = vmatprep.subr.bf16.mxu0 %v6274
    %8627 = vmatpush2.bf16.msra.mxu0 %v6273
    %8628 = vmatprep.subr.bf16.mxu0 %v6266
    %8629 = vmatpush2.bf16.msra.mxu0 %v6265
    %8630 = vmatprep.subr.bf16.mxu0 %v6258
    %8631 = vmatpush2.bf16.msra.mxu0 %v6257
    %8632 = vmatprep.subr.bf16.mxu0 %v6250
    %8633 = vmatpush2.bf16.msra.mxu0 %v6249
    %8634 = vmatprep.mubr.bf16.mxu0 %v2194
    %8635 = vmatmul.mubr.bf16.gmra.mxu0 %v2192
    %v8636 = vpop.f32.mrf.mxu0
    %v8637 = vadd.f32 %v8596, %v8636
    %v8638 = vpop.f32.mrf.mxu0
    %v8639 = vadd.f32 %v8598, %v8638
    %v8640 = vpop.f32.mrf.mxu0
    %v8641 = vpop.f32.mrf.mxu0
    %8642 = vdwg.mxu0
    %v8651 = vcombine.low %v7653, %v7655
    %v8652 = vcombine.low %v7981, %v7983
    %v8654 = vunpack.c.l.s4 1983009808
    %v8655 = vunpack.c.0.s8 %v8654
    %v8656 = vlaneseq
    %v8657 = vshrl.u32 %v8656, 7
    %v8658 = vsub.s32 %v8655, %v8657
    %v8659 = vrot.slane %v8651, %v8658
    %v8661 = vunpack.c.l.s4 1983009808
    %v8662 = vunpack.c.0.s8 %v8661
    %v8663 = vlaneseq
    %v8664 = vshrl.u32 %v8663, 7
    %v8665 = vsub.s32 %v8662, %v8664
    %v8666 = vrot.slane %v8652, %v8665
    %v8667 = vcombine.low %v8659, %v8666
    %v8668 = vcombine.low %v8309, %v8311
    %v8669 = vcombine.low %v8637, %v8639
    %v8671 = vunpack.c.l.s4 1983009808
    %v8672 = vunpack.c.0.s8 %v8671
    %v8673 = vlaneseq
    %v8674 = vshrl.u32 %v8673, 7
    %v8675 = vsub.s32 %v8672, %v8674
    %v8676 = vrot.slane %v8668, %v8675
    %v8678 = vunpack.c.l.s4 1983009808
    %v8679 = vunpack.c.0.s8 %v8678
    %v8680 = vlaneseq
    %v8681 = vshrl.u32 %v8680, 7
    %v8682 = vsub.s32 %v8679, %v8681
    %v8683 = vrot.slane %v8669, %v8682
    %v8684 = vcombine.low %v8676, %v8683
    %v8687 = vadd.f32 %v1067, %v8667
    %v8688 = vadd.f32 %v1068, %v8684
    %8689 = vst [vmem:[#allocation2] sm:$0xff] %v8687
    %8690 = vst [vmem:[#allocation2 + $0x8] sm:$0xff] %v8688
    // Predicated region
    $region74: #{simple_baseline_forward.1} parent=1 // pred_check
      %p8691 = pneg %p126
    $region75: #{simple_baseline_forward.1} parent=1 // pred_check_branch
      %8693 = sbr.rel (%p8691) target = $region77
    $region76: #{simple_baseline_forward.1} parent=1 // pred_region
      %v8694 = vld [vmem:[#allocation2] sm:$0xff]
      %v8695 = vld [vmem:[#allocation2 + $0x8] sm:$0xff]
      %v8696 = vld [vmem:[#allocation6] sm:$0xff]
      %v8698 = vlaneseq
      %v8699 = vshrl.u32 %v8698, 7
      %v8700 = vsub.s32 0, %v8699
      %v8701 = vrot.slane %v8696, %v8700
      %v8702 = vlaneseq
      %v8703 = vshrl.u32 %v8702, 7
      %v8704 = vsub.s32 1, %v8703
      %v8705 = vrot.slane %v8696, %v8704
      %v8706 = vlaneseq
      %v8707 = vshrl.u32 %v8706, 7
      %v8708 = vsub.s32 2, %v8707
      %v8709 = vrot.slane %v8696, %v8708
      %v8710 = vlaneseq
      %v8711 = vshrl.u32 %v8710, 7
      %v8712 = vsub.s32 3, %v8711
      %v8713 = vrot.slane %v8696, %v8712
      %v8714 = vlaneseq
      %v8715 = vshrl.u32 %v8714, 7
      %v8716 = vsub.s32 4, %v8715
      %v8717 = vrot.slane %v8696, %v8716
      %v8718 = vlaneseq
      %v8719 = vshrl.u32 %v8718, 7
      %v8720 = vsub.s32 5, %v8719
      %v8721 = vrot.slane %v8696, %v8720
      %v8722 = vlaneseq
      %v8723 = vshrl.u32 %v8722, 7
      %v8724 = vsub.s32 6, %v8723
      %v8725 = vrot.slane %v8696, %v8724
      %v8726 = vlaneseq
      %v8727 = vshrl.u32 %v8726, 7
      %v8728 = vsub.s32 7, %v8727
      %v8729 = vrot.slane %v8696, %v8728
      %v8730 = vcombine.low %v8701, %v8705
      %v8731 = vcombine.low %v8709, %v8713
      %v8733 = vunpack.c.l.s4 1983009808
      %v8734 = vunpack.c.0.s8 %v8733
      %v8735 = vlaneseq
      %v8736 = vshrl.u32 %v8735, 7
      %v8737 = vsub.s32 %v8734, %v8736
      %v8738 = vrot.slane %v8730, %v8737
      %v8740 = vunpack.c.l.s4 1983009808
      %v8741 = vunpack.c.0.s8 %v8740
      %v8742 = vlaneseq
      %v8743 = vshrl.u32 %v8742, 7
      %v8744 = vsub.s32 %v8741, %v8743
      %v8745 = vrot.slane %v8731, %v8744
      %v8746 = vcombine.low %v8738, %v8745
      %v8747 = vcombine.low %v8717, %v8721
      %v8748 = vcombine.low %v8725, %v8729
      %v8750 = vunpack.c.l.s4 1983009808
      %v8751 = vunpack.c.0.s8 %v8750
      %v8752 = vlaneseq
      %v8753 = vshrl.u32 %v8752, 7
      %v8754 = vsub.s32 %v8751, %v8753
      %v8755 = vrot.slane %v8747, %v8754
      %v8757 = vunpack.c.l.s4 1983009808
      %v8758 = vunpack.c.0.s8 %v8757
      %v8759 = vlaneseq
      %v8760 = vshrl.u32 %v8759, 7
      %v8761 = vsub.s32 %v8758, %v8760
      %v8762 = vrot.slane %v8748, %v8761
      %v8763 = vcombine.low %v8755, %v8762
      %v8766 = vadd.f32 %v8694, %v8746
      %v8767 = vadd.f32 %v8695, %v8763
      %v8768 = vld [vmem:[#allocation15] sm:$0x3]
      %v8771 = vcombine.high %v8766, %v8766
      %v8773 = vunpack.c.l.s4 1983009808
      %v8774 = vunpack.c.0.s8 %v8773
      %v8775 = vlaneseq
      %v8776 = vshrl.u32 %v8775, 7
      %v8777 = vsub.s32 %v8774, %v8776
      %v8778 = vrot.slane %v8766, %v8777
      %v8780 = vunpack.c.l.s4 1983009808
      %v8781 = vunpack.c.0.s8 %v8780
      %v8782 = vlaneseq
      %v8783 = vshrl.u32 %v8782, 7
      %v8784 = vsub.s32 %v8781, %v8783
      %v8785 = vrot.slane %v8771, %v8784
      %v8786 = vcombine.high %v8778, %v8778
      %v8787 = vcombine.high %v8785, %v8785
      %v8788 = vcombine.high %v8767, %v8767
      %v8790 = vunpack.c.l.s4 1983009808
      %v8791 = vunpack.c.0.s8 %v8790
      %v8792 = vlaneseq
      %v8793 = vshrl.u32 %v8792, 7
      %v8794 = vsub.s32 %v8791, %v8793
      %v8795 = vrot.slane %v8767, %v8794
      %v8797 = vunpack.c.l.s4 1983009808
      %v8798 = vunpack.c.0.s8 %v8797
      %v8799 = vlaneseq
      %v8800 = vshrl.u32 %v8799, 7
      %v8801 = vsub.s32 %v8798, %v8800
      %v8802 = vrot.slane %v8788, %v8801
      %v8803 = vcombine.high %v8795, %v8795
      %v8804 = vcombine.high %v8802, %v8802
      %v8813 = vpack.c.bf16 %v8778, %v8778
      %v8814 = vpack.c.bf16 %v8786, %v8786
      %v8815 = vpack.c.bf16 %v8785, %v8785
      %v8816 = vpack.c.bf16 %v8787, %v8787
      %v8817 = vpack.c.bf16 %v8795, %v8795
      %v8818 = vpack.c.bf16 %v8803, %v8803
      %v8819 = vpack.c.bf16 %v8802, %v8802
      %v8820 = vpack.c.bf16 %v8804, %v8804
      %v8821 = vld [vmem:[#allocation12] sm:$0xf]
      %v8822 = vld [vmem:[#allocation12 + $0x4] sm:$0xf]
      %v8823 = vld [vmem:[#allocation12 + $0x8] sm:$0xf]
      %v8824 = vld [vmem:[#allocation12 + $0xc] sm:$0xf]
      %v8825 = vld [vmem:[#allocation12 + $0x10] sm:$0xf]
      %v8826 = vld [vmem:[#allocation12 + $0x14] sm:$0xf]
      %v8827 = vld [vmem:[#allocation12 + $0x18] sm:$0xf]
      %v8828 = vld [vmem:[#allocation12 + $0x1c] sm:$0xf]
      %v8829 = vld [vmem:[#allocation12 + $0x20] sm:$0xf]
      %v8830 = vld [vmem:[#allocation12 + $0x24] sm:$0xf]
      %v8831 = vld [vmem:[#allocation12 + $0x28] sm:$0xf]
      %v8832 = vld [vmem:[#allocation12 + $0x2c] sm:$0xf]
      %v8833 = vld [vmem:[#allocation12 + $0x30] sm:$0xf]
      %v8834 = vld [vmem:[#allocation12 + $0x34] sm:$0xf]
      %v8835 = vld [vmem:[#allocation12 + $0x38] sm:$0xf]
      %v8836 = vld [vmem:[#allocation12 + $0x3c] sm:$0xf]
      %v8837 = vld [vmem:[#allocation12 + $0x40] sm:$0xf]
      %v8838 = vld [vmem:[#allocation12 + $0x44] sm:$0xf]
      %v8839 = vld [vmem:[#allocation12 + $0x48] sm:$0xf]
      %v8840 = vld [vmem:[#allocation12 + $0x4c] sm:$0xf]
      %v8841 = vld [vmem:[#allocation12 + $0x50] sm:$0xf]
      %v8842 = vld [vmem:[#allocation12 + $0x54] sm:$0xf]
      %v8843 = vld [vmem:[#allocation12 + $0x58] sm:$0xf]
      %v8844 = vld [vmem:[#allocation12 + $0x5c] sm:$0xf]
      %v8845 = vld [vmem:[#allocation12 + $0x60] sm:$0xf]
      %v8846 = vld [vmem:[#allocation12 + $0x64] sm:$0xf]
      %v8847 = vld [vmem:[#allocation12 + $0x68] sm:$0xf]
      %v8848 = vld [vmem:[#allocation12 + $0x6c] sm:$0xf]
      %v8849 = vld [vmem:[#allocation12 + $0x70] sm:$0xf]
      %v8850 = vld [vmem:[#allocation12 + $0x74] sm:$0xf]
      %v8851 = vld [vmem:[#allocation12 + $0x78] sm:$0xf]
      %v8852 = vld [vmem:[#allocation12 + $0x7c] sm:$0xf]
      %v8853 = vld [vmem:[#allocation12 + $0x80] sm:$0xf]
      %v8854 = vld [vmem:[#allocation12 + $0x84] sm:$0xf]
      %v8855 = vld [vmem:[#allocation12 + $0x88] sm:$0xf]
      %v8856 = vld [vmem:[#allocation12 + $0x8c] sm:$0xf]
      %v8857 = vld [vmem:[#allocation12 + $0x90] sm:$0xf]
      %v8858 = vld [vmem:[#allocation12 + $0x94] sm:$0xf]
      %v8859 = vld [vmem:[#allocation12 + $0x98] sm:$0xf]
      %v8860 = vld [vmem:[#allocation12 + $0x9c] sm:$0xf]
      %v8861 = vld [vmem:[#allocation12 + $0xa0] sm:$0xf]
      %v8862 = vld [vmem:[#allocation12 + $0xa4] sm:$0xf]
      %v8863 = vld [vmem:[#allocation12 + $0xa8] sm:$0xf]
      %v8864 = vld [vmem:[#allocation12 + $0xac] sm:$0xf]
      %v8865 = vld [vmem:[#allocation12 + $0xb0] sm:$0xf]
      %v8866 = vld [vmem:[#allocation12 + $0xb4] sm:$0xf]
      %v8867 = vld [vmem:[#allocation12 + $0xb8] sm:$0xf]
      %v8868 = vld [vmem:[#allocation12 + $0xbc] sm:$0xf]
      %v8869 = vld [vmem:[#allocation12 + $0xc0] sm:$0xf]
      %v8870 = vld [vmem:[#allocation12 + $0xc4] sm:$0xf]
      %v8871 = vld [vmem:[#allocation12 + $0xc8] sm:$0xf]
      %v8872 = vld [vmem:[#allocation12 + $0xcc] sm:$0xf]
      %v8873 = vld [vmem:[#allocation12 + $0xd0] sm:$0xf]
      %v8874 = vld [vmem:[#allocation12 + $0xd4] sm:$0xf]
      %v8875 = vld [vmem:[#allocation12 + $0xd8] sm:$0xf]
      %v8876 = vld [vmem:[#allocation12 + $0xdc] sm:$0xf]
      %v8877 = vld [vmem:[#allocation12 + $0xe0] sm:$0xf]
      %v8878 = vld [vmem:[#allocation12 + $0xe4] sm:$0xf]
      %v8879 = vld [vmem:[#allocation12 + $0xe8] sm:$0xf]
      %v8880 = vld [vmem:[#allocation12 + $0xec] sm:$0xf]
      %v8881 = vld [vmem:[#allocation12 + $0xf0] sm:$0xf]
      %v8882 = vld [vmem:[#allocation12 + $0xf4] sm:$0xf]
      %v8883 = vld [vmem:[#allocation12 + $0xf8] sm:$0xf]
      %v8884 = vld [vmem:[#allocation12 + $0xfc] sm:$0xf]
      %v8885 = vld [vmem:[#allocation12 + $0x100] sm:$0xf]
      %v8886 = vld [vmem:[#allocation12 + $0x104] sm:$0xf]
      %v8887 = vld [vmem:[#allocation12 + $0x108] sm:$0xf]
      %v8888 = vld [vmem:[#allocation12 + $0x10c] sm:$0xf]
      %v8889 = vld [vmem:[#allocation12 + $0x110] sm:$0xf]
      %v8890 = vld [vmem:[#allocation12 + $0x114] sm:$0xf]
      %v8891 = vld [vmem:[#allocation12 + $0x118] sm:$0xf]
      %v8892 = vld [vmem:[#allocation12 + $0x11c] sm:$0xf]
      %v8893 = vld [vmem:[#allocation12 + $0x120] sm:$0xf]
      %v8894 = vld [vmem:[#allocation12 + $0x124] sm:$0xf]
      %v8895 = vld [vmem:[#allocation12 + $0x128] sm:$0xf]
      %v8896 = vld [vmem:[#allocation12 + $0x12c] sm:$0xf]
      %v8897 = vld [vmem:[#allocation12 + $0x130] sm:$0xf]
      %v8898 = vld [vmem:[#allocation12 + $0x134] sm:$0xf]
      %v8899 = vld [vmem:[#allocation12 + $0x138] sm:$0xf]
      %v8900 = vld [vmem:[#allocation12 + $0x13c] sm:$0xf]
      %v8901 = vld [vmem:[#allocation12 + $0x140] sm:$0xf]
      %v8902 = vld [vmem:[#allocation12 + $0x144] sm:$0xf]
      %v8903 = vld [vmem:[#allocation12 + $0x148] sm:$0xf]
      %v8904 = vld [vmem:[#allocation12 + $0x14c] sm:$0xf]
      %v8905 = vld [vmem:[#allocation12 + $0x150] sm:$0xf]
      %v8906 = vld [vmem:[#allocation12 + $0x154] sm:$0xf]
      %v8907 = vld [vmem:[#allocation12 + $0x158] sm:$0xf]
      %v8908 = vld [vmem:[#allocation12 + $0x15c] sm:$0xf]
      %v8909 = vld [vmem:[#allocation12 + $0x160] sm:$0xf]
      %v8910 = vld [vmem:[#allocation12 + $0x164] sm:$0xf]
      %v8911 = vld [vmem:[#allocation12 + $0x168] sm:$0xf]
      %v8912 = vld [vmem:[#allocation12 + $0x16c] sm:$0xf]
      %v8913 = vld [vmem:[#allocation12 + $0x170] sm:$0xf]
      %v8914 = vld [vmem:[#allocation12 + $0x174] sm:$0xf]
      %v8915 = vld [vmem:[#allocation12 + $0x178] sm:$0xf]
      %v8916 = vld [vmem:[#allocation12 + $0x17c] sm:$0xf]
      %v8917 = vld [vmem:[#allocation12 + $0x180] sm:$0xf]
      %v8918 = vld [vmem:[#allocation12 + $0x184] sm:$0xf]
      %v8919 = vld [vmem:[#allocation12 + $0x188] sm:$0xf]
      %v8920 = vld [vmem:[#allocation12 + $0x18c] sm:$0xf]
      %v8921 = vld [vmem:[#allocation12 + $0x190] sm:$0xf]
      %v8922 = vld [vmem:[#allocation12 + $0x194] sm:$0xf]
      %v8923 = vld [vmem:[#allocation12 + $0x198] sm:$0xf]
      %v8924 = vld [vmem:[#allocation12 + $0x19c] sm:$0xf]
      %v8925 = vld [vmem:[#allocation12 + $0x1a0] sm:$0xf]
      %v8926 = vld [vmem:[#allocation12 + $0x1a4] sm:$0xf]
      %v8927 = vld [vmem:[#allocation12 + $0x1a8] sm:$0xf]
      %v8928 = vld [vmem:[#allocation12 + $0x1ac] sm:$0xf]
      %v8929 = vld [vmem:[#allocation12 + $0x1b0] sm:$0xf]
      %v8930 = vld [vmem:[#allocation12 + $0x1b4] sm:$0xf]
      %v8931 = vld [vmem:[#allocation12 + $0x1b8] sm:$0xf]
      %v8932 = vld [vmem:[#allocation12 + $0x1bc] sm:$0xf]
      %v8933 = vld [vmem:[#allocation12 + $0x1c0] sm:$0xf]
      %v8934 = vld [vmem:[#allocation12 + $0x1c4] sm:$0xf]
      %v8935 = vld [vmem:[#allocation12 + $0x1c8] sm:$0xf]
      %v8936 = vld [vmem:[#allocation12 + $0x1cc] sm:$0xf]
      %v8937 = vld [vmem:[#allocation12 + $0x1d0] sm:$0xf]
      %v8938 = vld [vmem:[#allocation12 + $0x1d4] sm:$0xf]
      %v8939 = vld [vmem:[#allocation12 + $0x1d8] sm:$0xf]
      %v8940 = vld [vmem:[#allocation12 + $0x1dc] sm:$0xf]
      %v8941 = vld [vmem:[#allocation12 + $0x1e0] sm:$0xf]
      %v8942 = vld [vmem:[#allocation12 + $0x1e4] sm:$0xf]
      %v8943 = vld [vmem:[#allocation12 + $0x1e8] sm:$0xf]
      %v8944 = vld [vmem:[#allocation12 + $0x1ec] sm:$0xf]
      %v8945 = vld [vmem:[#allocation12 + $0x1f0] sm:$0xf]
      %v8946 = vld [vmem:[#allocation12 + $0x1f4] sm:$0xf]
      %v8947 = vld [vmem:[#allocation12 + $0x1f8] sm:$0xf]
      %v8948 = vld [vmem:[#allocation12 + $0x1fc] sm:$0xf]
      %v9077 = vunpack.c.l.b16 %v8821
      %v9078 = vunpack.c.l.b16 %v8822
      %v9079 = vunpack.c.l.b16 %v8823
      %v9080 = vunpack.c.l.b16 %v8824
      %v9081 = vunpack.c.l.b16 %v8825
      %v9082 = vunpack.c.l.b16 %v8826
      %v9083 = vunpack.c.l.b16 %v8827
      %v9084 = vunpack.c.l.b16 %v8828
      %v9085 = vunpack.c.l.b16 %v8829
      %v9086 = vunpack.c.l.b16 %v8830
      %v9087 = vunpack.c.l.b16 %v8831
      %v9088 = vunpack.c.l.b16 %v8832
      %v9089 = vunpack.c.l.b16 %v8833
      %v9090 = vunpack.c.l.b16 %v8834
      %v9091 = vunpack.c.l.b16 %v8835
      %v9092 = vunpack.c.l.b16 %v8836
      %v9093 = vunpack.c.l.b16 %v8837
      %v9094 = vunpack.c.l.b16 %v8838
      %v9095 = vunpack.c.l.b16 %v8839
      %v9096 = vunpack.c.l.b16 %v8840
      %v9097 = vunpack.c.l.b16 %v8841
      %v9098 = vunpack.c.l.b16 %v8842
      %v9099 = vunpack.c.l.b16 %v8843
      %v9100 = vunpack.c.l.b16 %v8844
      %v9101 = vunpack.c.l.b16 %v8845
      %v9102 = vunpack.c.l.b16 %v8846
      %v9103 = vunpack.c.l.b16 %v8847
      %v9104 = vunpack.c.l.b16 %v8848
      %v9105 = vunpack.c.l.b16 %v8849
      %v9106 = vunpack.c.l.b16 %v8850
      %v9107 = vunpack.c.l.b16 %v8851
      %v9108 = vunpack.c.l.b16 %v8852
      %v9109 = vunpack.c.l.b16 %v8853
      %v9110 = vunpack.c.l.b16 %v8854
      %v9111 = vunpack.c.l.b16 %v8855
      %v9112 = vunpack.c.l.b16 %v8856
      %v9113 = vunpack.c.l.b16 %v8857
      %v9114 = vunpack.c.l.b16 %v8858
      %v9115 = vunpack.c.l.b16 %v8859
      %v9116 = vunpack.c.l.b16 %v8860
      %v9117 = vunpack.c.l.b16 %v8861
      %v9118 = vunpack.c.l.b16 %v8862
      %v9119 = vunpack.c.l.b16 %v8863
      %v9120 = vunpack.c.l.b16 %v8864
      %v9121 = vunpack.c.l.b16 %v8865
      %v9122 = vunpack.c.l.b16 %v8866
      %v9123 = vunpack.c.l.b16 %v8867
      %v9124 = vunpack.c.l.b16 %v8868
      %v9125 = vunpack.c.l.b16 %v8869
      %v9126 = vunpack.c.l.b16 %v8870
      %v9127 = vunpack.c.l.b16 %v8871
      %v9128 = vunpack.c.l.b16 %v8872
      %v9129 = vunpack.c.l.b16 %v8873
      %v9130 = vunpack.c.l.b16 %v8874
      %v9131 = vunpack.c.l.b16 %v8875
      %v9132 = vunpack.c.l.b16 %v8876
      %v9133 = vunpack.c.l.b16 %v8877
      %v9134 = vunpack.c.l.b16 %v8878
      %v9135 = vunpack.c.l.b16 %v8879
      %v9136 = vunpack.c.l.b16 %v8880
      %v9137 = vunpack.c.l.b16 %v8881
      %v9138 = vunpack.c.l.b16 %v8882
      %v9139 = vunpack.c.l.b16 %v8883
      %v9140 = vunpack.c.l.b16 %v8884
      %v9141 = vunpack.c.l.b16 %v8885
      %v9142 = vunpack.c.l.b16 %v8886
      %v9143 = vunpack.c.l.b16 %v8887
      %v9144 = vunpack.c.l.b16 %v8888
      %v9145 = vunpack.c.l.b16 %v8889
      %v9146 = vunpack.c.l.b16 %v8890
      %v9147 = vunpack.c.l.b16 %v8891
      %v9148 = vunpack.c.l.b16 %v8892
      %v9149 = vunpack.c.l.b16 %v8893
      %v9150 = vunpack.c.l.b16 %v8894
      %v9151 = vunpack.c.l.b16 %v8895
      %v9152 = vunpack.c.l.b16 %v8896
      %v9153 = vunpack.c.l.b16 %v8897
      %v9154 = vunpack.c.l.b16 %v8898
      %v9155 = vunpack.c.l.b16 %v8899
      %v9156 = vunpack.c.l.b16 %v8900
      %v9157 = vunpack.c.l.b16 %v8901
      %v9158 = vunpack.c.l.b16 %v8902
      %v9159 = vunpack.c.l.b16 %v8903
      %v9160 = vunpack.c.l.b16 %v8904
      %v9161 = vunpack.c.l.b16 %v8905
      %v9162 = vunpack.c.l.b16 %v8906
      %v9163 = vunpack.c.l.b16 %v8907
      %v9164 = vunpack.c.l.b16 %v8908
      %v9165 = vunpack.c.l.b16 %v8909
      %v9166 = vunpack.c.l.b16 %v8910
      %v9167 = vunpack.c.l.b16 %v8911
      %v9168 = vunpack.c.l.b16 %v8912
      %v9169 = vunpack.c.l.b16 %v8913
      %v9170 = vunpack.c.l.b16 %v8914
      %v9171 = vunpack.c.l.b16 %v8915
      %v9172 = vunpack.c.l.b16 %v8916
      %v9173 = vunpack.c.l.b16 %v8917
      %v9174 = vunpack.c.l.b16 %v8918
      %v9175 = vunpack.c.l.b16 %v8919
      %v9176 = vunpack.c.l.b16 %v8920
      %v9177 = vunpack.c.l.b16 %v8921
      %v9178 = vunpack.c.l.b16 %v8922
      %v9179 = vunpack.c.l.b16 %v8923
      %v9180 = vunpack.c.l.b16 %v8924
      %v9181 = vunpack.c.l.b16 %v8925
      %v9182 = vunpack.c.l.b16 %v8926
      %v9183 = vunpack.c.l.b16 %v8927
      %v9184 = vunpack.c.l.b16 %v8928
      %v9185 = vunpack.c.l.b16 %v8929
      %v9186 = vunpack.c.l.b16 %v8930
      %v9187 = vunpack.c.l.b16 %v8931
      %v9188 = vunpack.c.l.b16 %v8932
      %v9189 = vunpack.c.l.b16 %v8933
      %v9190 = vunpack.c.l.b16 %v8934
      %v9191 = vunpack.c.l.b16 %v8935
      %v9192 = vunpack.c.l.b16 %v8936
      %v9193 = vunpack.c.l.b16 %v8937
      %v9194 = vunpack.c.l.b16 %v8938
      %v9195 = vunpack.c.l.b16 %v8939
      %v9196 = vunpack.c.l.b16 %v8940
      %v9197 = vunpack.c.l.b16 %v8941
      %v9198 = vunpack.c.l.b16 %v8942
      %v9199 = vunpack.c.l.b16 %v8943
      %v9200 = vunpack.c.l.b16 %v8944
      %v9201 = vunpack.c.l.b16 %v8945
      %v9202 = vunpack.c.l.b16 %v8946
      %v9203 = vunpack.c.l.b16 %v8947
      %v9204 = vunpack.c.l.b16 %v8948
      %v9205 = vpack.c.b16 %v9078, %v9077
      %v9206 = vpack.c.b16 %v9080, %v9079
      %v9207 = vpack.c.b16 %v9082, %v9081
      %v9208 = vpack.c.b16 %v9084, %v9083
      %v9209 = vpack.c.b16 %v9086, %v9085
      %v9210 = vpack.c.b16 %v9088, %v9087
      %v9211 = vpack.c.b16 %v9090, %v9089
      %v9212 = vpack.c.b16 %v9092, %v9091
      %v9213 = vpack.c.b16 %v9094, %v9093
      %v9214 = vpack.c.b16 %v9096, %v9095
      %v9215 = vpack.c.b16 %v9098, %v9097
      %v9216 = vpack.c.b16 %v9100, %v9099
      %v9217 = vpack.c.b16 %v9102, %v9101
      %v9218 = vpack.c.b16 %v9104, %v9103
      %v9219 = vpack.c.b16 %v9106, %v9105
      %v9220 = vpack.c.b16 %v9108, %v9107
      %v9221 = vpack.c.b16 %v9110, %v9109
      %v9222 = vpack.c.b16 %v9112, %v9111
      %v9223 = vpack.c.b16 %v9114, %v9113
      %v9224 = vpack.c.b16 %v9116, %v9115
      %v9225 = vpack.c.b16 %v9118, %v9117
      %v9226 = vpack.c.b16 %v9120, %v9119
      %v9227 = vpack.c.b16 %v9122, %v9121
      %v9228 = vpack.c.b16 %v9124, %v9123
      %v9229 = vpack.c.b16 %v9126, %v9125
      %v9230 = vpack.c.b16 %v9128, %v9127
      %v9231 = vpack.c.b16 %v9130, %v9129
      %v9232 = vpack.c.b16 %v9132, %v9131
      %v9233 = vpack.c.b16 %v9134, %v9133
      %v9234 = vpack.c.b16 %v9136, %v9135
      %v9235 = vpack.c.b16 %v9138, %v9137
      %v9236 = vpack.c.b16 %v9140, %v9139
      %v9237 = vpack.c.b16 %v9142, %v9141
      %v9238 = vpack.c.b16 %v9144, %v9143
      %v9239 = vpack.c.b16 %v9146, %v9145
      %v9240 = vpack.c.b16 %v9148, %v9147
      %v9241 = vpack.c.b16 %v9150, %v9149
      %v9242 = vpack.c.b16 %v9152, %v9151
      %v9243 = vpack.c.b16 %v9154, %v9153
      %v9244 = vpack.c.b16 %v9156, %v9155
      %v9245 = vpack.c.b16 %v9158, %v9157
      %v9246 = vpack.c.b16 %v9160, %v9159
      %v9247 = vpack.c.b16 %v9162, %v9161
      %v9248 = vpack.c.b16 %v9164, %v9163
      %v9249 = vpack.c.b16 %v9166, %v9165
      %v9250 = vpack.c.b16 %v9168, %v9167
      %v9251 = vpack.c.b16 %v9170, %v9169
      %v9252 = vpack.c.b16 %v9172, %v9171
      %v9253 = vpack.c.b16 %v9174, %v9173
      %v9254 = vpack.c.b16 %v9176, %v9175
      %v9255 = vpack.c.b16 %v9178, %v9177
      %v9256 = vpack.c.b16 %v9180, %v9179
      %v9257 = vpack.c.b16 %v9182, %v9181
      %v9258 = vpack.c.b16 %v9184, %v9183
      %v9259 = vpack.c.b16 %v9186, %v9185
      %v9260 = vpack.c.b16 %v9188, %v9187
      %v9261 = vpack.c.b16 %v9190, %v9189
      %v9262 = vpack.c.b16 %v9192, %v9191
      %v9263 = vpack.c.b16 %v9194, %v9193
      %v9264 = vpack.c.b16 %v9196, %v9195
      %v9265 = vpack.c.b16 %v9198, %v9197
      %v9266 = vpack.c.b16 %v9200, %v9199
      %v9267 = vpack.c.b16 %v9202, %v9201
      %v9268 = vpack.c.b16 %v9204, %v9203
      %9333 = vmatprep.subr.bf16.mxu0 0
      %9334 = vmatpush1.bf16.msra.mxu0 %v9212
      %9335 = vmatprep.subr.bf16.mxu0 0
      %9336 = vmatpush1.bf16.msra.mxu0 %v9211
      %9337 = vmatprep.subr.bf16.mxu0 0
      %9338 = vmatpush1.bf16.msra.mxu0 %v9210
      %9339 = vmatprep.subr.bf16.mxu0 0
      %9340 = vmatpush1.bf16.msra.mxu0 %v9209
      %9341 = vmatprep.subr.bf16.mxu0 0
      %9342 = vmatpush1.bf16.msra.mxu0 %v9208
      %9343 = vmatprep.subr.bf16.mxu0 0
      %9344 = vmatpush1.bf16.msra.mxu0 %v9207
      %9345 = vmatprep.subr.bf16.mxu0 0
      %9346 = vmatpush1.bf16.msra.mxu0 %v9206
      %9347 = vmatprep.subr.bf16.mxu0 0
      %9348 = vmatpush1.bf16.msra.mxu0 %v9205
      %9349 = vmatprep.subr.bf16.mxu0 0
      %9350 = vmatpush2.bf16.msra.mxu0 %v9220
      %9351 = vmatprep.subr.bf16.mxu0 0
      %9352 = vmatpush2.bf16.msra.mxu0 %v9219
      %9353 = vmatprep.subr.bf16.mxu0 0
      %9354 = vmatpush2.bf16.msra.mxu0 %v9218
      %9355 = vmatprep.subr.bf16.mxu0 0
      %9356 = vmatpush2.bf16.msra.mxu0 %v9217
      %9357 = vmatprep.subr.bf16.mxu0 0
      %9358 = vmatpush2.bf16.msra.mxu0 %v9216
      %9359 = vmatprep.subr.bf16.mxu0 0
      %9360 = vmatpush2.bf16.msra.mxu0 %v9215
      %9361 = vmatprep.subr.bf16.mxu0 0
      %9362 = vmatpush2.bf16.msra.mxu0 %v9214
      %9363 = vmatprep.subr.bf16.mxu0 0
      %9364 = vmatpush2.bf16.msra.mxu0 %v9213
      %9365 = vmatprep.mubr.bf16.mxu0 %v8814
      %9366 = vmatmul.mubr.bf16.gmra.mxu0 %v8813
      %v9367 = vpop.f32.mrf.mxu0
      %v9368 = vadd.f32 0.0, %v9367
      %v9369 = vpop.f32.mrf.mxu0
      %v9370 = vpop.f32.mrf.mxu0
      %v9371 = vpop.f32.mrf.mxu0
      %9372 = vdwg.mxu0
      %9373 = vmatprep.subr.bf16.mxu0 0
      %9374 = vmatpush1.bf16.msra.mxu0 %v9228
      %9375 = vmatprep.subr.bf16.mxu0 0
      %9376 = vmatpush1.bf16.msra.mxu0 %v9227
      %9377 = vmatprep.subr.bf16.mxu0 0
      %9378 = vmatpush1.bf16.msra.mxu0 %v9226
      %9379 = vmatprep.subr.bf16.mxu0 0
      %9380 = vmatpush1.bf16.msra.mxu0 %v9225
      %9381 = vmatprep.subr.bf16.mxu0 0
      %9382 = vmatpush1.bf16.msra.mxu0 %v9224
      %9383 = vmatprep.subr.bf16.mxu0 0
      %9384 = vmatpush1.bf16.msra.mxu0 %v9223
      %9385 = vmatprep.subr.bf16.mxu0 0
      %9386 = vmatpush1.bf16.msra.mxu0 %v9222
      %9387 = vmatprep.subr.bf16.mxu0 0
      %9388 = vmatpush1.bf16.msra.mxu0 %v9221
      %9389 = vmatprep.subr.bf16.mxu0 0
      %9390 = vmatpush2.bf16.msra.mxu0 %v9236
      %9391 = vmatprep.subr.bf16.mxu0 0
      %9392 = vmatpush2.bf16.msra.mxu0 %v9235
      %9393 = vmatprep.subr.bf16.mxu0 0
      %9394 = vmatpush2.bf16.msra.mxu0 %v9234
      %9395 = vmatprep.subr.bf16.mxu0 0
      %9396 = vmatpush2.bf16.msra.mxu0 %v9233
      %9397 = vmatprep.subr.bf16.mxu0 0
      %9398 = vmatpush2.bf16.msra.mxu0 %v9232
      %9399 = vmatprep.subr.bf16.mxu0 0
      %9400 = vmatpush2.bf16.msra.mxu0 %v9231
      %9401 = vmatprep.subr.bf16.mxu0 0
      %9402 = vmatpush2.bf16.msra.mxu0 %v9230
      %9403 = vmatprep.subr.bf16.mxu0 0
      %9404 = vmatpush2.bf16.msra.mxu0 %v9229
      %9405 = vmatprep.mubr.bf16.mxu0 %v8816
      %9406 = vmatmul.mubr.bf16.gmra.mxu0 %v8815
      %v9407 = vpop.f32.mrf.mxu0
      %v9408 = vadd.f32 %v9368, %v9407
      %v9409 = vpop.f32.mrf.mxu0
      %v9410 = vpop.f32.mrf.mxu0
      %v9411 = vpop.f32.mrf.mxu0
      %9412 = vdwg.mxu0
      %9413 = vmatprep.subr.bf16.mxu0 0
      %9414 = vmatpush1.bf16.msra.mxu0 %v9244
      %9415 = vmatprep.subr.bf16.mxu0 0
      %9416 = vmatpush1.bf16.msra.mxu0 %v9243
      %9417 = vmatprep.subr.bf16.mxu0 0
      %9418 = vmatpush1.bf16.msra.mxu0 %v9242
      %9419 = vmatprep.subr.bf16.mxu0 0
      %9420 = vmatpush1.bf16.msra.mxu0 %v9241
      %9421 = vmatprep.subr.bf16.mxu0 0
      %9422 = vmatpush1.bf16.msra.mxu0 %v9240
      %9423 = vmatprep.subr.bf16.mxu0 0
      %9424 = vmatpush1.bf16.msra.mxu0 %v9239
      %9425 = vmatprep.subr.bf16.mxu0 0
      %9426 = vmatpush1.bf16.msra.mxu0 %v9238
      %9427 = vmatprep.subr.bf16.mxu0 0
      %9428 = vmatpush1.bf16.msra.mxu0 %v9237
      %9429 = vmatprep.subr.bf16.mxu0 0
      %9430 = vmatpush2.bf16.msra.mxu0 %v9252
      %9431 = vmatprep.subr.bf16.mxu0 0
      %9432 = vmatpush2.bf16.msra.mxu0 %v9251
      %9433 = vmatprep.subr.bf16.mxu0 0
      %9434 = vmatpush2.bf16.msra.mxu0 %v9250
      %9435 = vmatprep.subr.bf16.mxu0 0
      %9436 = vmatpush2.bf16.msra.mxu0 %v9249
      %9437 = vmatprep.subr.bf16.mxu0 0
      %9438 = vmatpush2.bf16.msra.mxu0 %v9248
      %9439 = vmatprep.subr.bf16.mxu0 0
      %9440 = vmatpush2.bf16.msra.mxu0 %v9247
      %9441 = vmatprep.subr.bf16.mxu0 0
      %9442 = vmatpush2.bf16.msra.mxu0 %v9246
      %9443 = vmatprep.subr.bf16.mxu0 0
      %9444 = vmatpush2.bf16.msra.mxu0 %v9245
      %9445 = vmatprep.mubr.bf16.mxu0 %v8818
      %9446 = vmatmul.mubr.bf16.gmra.mxu0 %v8817
      %v9447 = vpop.f32.mrf.mxu0
      %v9448 = vadd.f32 %v9408, %v9447
      %v9449 = vpop.f32.mrf.mxu0
      %v9450 = vpop.f32.mrf.mxu0
      %v9451 = vpop.f32.mrf.mxu0
      %9452 = vdwg.mxu0
      %9453 = vmatprep.subr.bf16.mxu0 0
      %9454 = vmatpush1.bf16.msra.mxu0 %v9260
      %9455 = vmatprep.subr.bf16.mxu0 0
      %9456 = vmatpush1.bf16.msra.mxu0 %v9259
      %9457 = vmatprep.subr.bf16.mxu0 0
      %9458 = vmatpush1.bf16.msra.mxu0 %v9258
      %9459 = vmatprep.subr.bf16.mxu0 0
      %9460 = vmatpush1.bf16.msra.mxu0 %v9257
      %9461 = vmatprep.subr.bf16.mxu0 0
      %9462 = vmatpush1.bf16.msra.mxu0 %v9256
      %9463 = vmatprep.subr.bf16.mxu0 0
      %9464 = vmatpush1.bf16.msra.mxu0 %v9255
      %9465 = vmatprep.subr.bf16.mxu0 0
      %9466 = vmatpush1.bf16.msra.mxu0 %v9254
      %9467 = vmatprep.subr.bf16.mxu0 0
      %9468 = vmatpush1.bf16.msra.mxu0 %v9253
      %9469 = vmatprep.subr.bf16.mxu0 0
      %9470 = vmatpush2.bf16.msra.mxu0 %v9268
      %9471 = vmatprep.subr.bf16.mxu0 0
      %9472 = vmatpush2.bf16.msra.mxu0 %v9267
      %9473 = vmatprep.subr.bf16.mxu0 0
      %9474 = vmatpush2.bf16.msra.mxu0 %v9266
      %9475 = vmatprep.subr.bf16.mxu0 0
      %9476 = vmatpush2.bf16.msra.mxu0 %v9265
      %9477 = vmatprep.subr.bf16.mxu0 0
      %9478 = vmatpush2.bf16.msra.mxu0 %v9264
      %9479 = vmatprep.subr.bf16.mxu0 0
      %9480 = vmatpush2.bf16.msra.mxu0 %v9263
      %9481 = vmatprep.subr.bf16.mxu0 0
      %9482 = vmatpush2.bf16.msra.mxu0 %v9262
      %9483 = vmatprep.subr.bf16.mxu0 0
      %9484 = vmatpush2.bf16.msra.mxu0 %v9261
      %9485 = vmatprep.mubr.bf16.mxu0 %v8820
      %9486 = vmatmul.mubr.bf16.gmra.mxu0 %v8819
      %v9487 = vpop.f32.mrf.mxu0
      %v9488 = vadd.f32 %v9448, %v9487
      %v9489 = vpop.f32.mrf.mxu0
      %v9490 = vpop.f32.mrf.mxu0
      %v9491 = vpop.f32.mrf.mxu0
      %9492 = vdwg.mxu0
      %v9493 = vadd.f32 %v8768, %v9488
      %9494 = vst [vmem:[#allocation15] sm:$0x3] %v9493
    $region77: #{simple_baseline_forward.1} parent=1 // pred_fallthru
      _
    // Predicated region
    $region78: #{simple_baseline_forward.1} parent=1 // pred_check
      _
    $region79: #{simple_baseline_forward.1} parent=1 // pred_check_branch
      %9496 = sbr.rel (0) target = $region81
    $region80: #{simple_baseline_forward.1} parent=1 // pred_region
      %s9498 = ssub.s32 32, 32
      %9499 = vsyncadd [#allocation5], %s9498
      %s9501 = sshll.u32 [#allocation15], 4
      %s9502 = int_to_ptr.vmem [resolvable:$true] %s9501
      %9504 = dma.vmem_to_hbm [thread:$0]  %s9502, 32, %s10, [#allocation5]
    $region81: #{simple_baseline_forward.1} parent=1 // pred_fallthru
      _
    // Predicated region
    $region82: #{simple_baseline_forward.1} parent=1 // pred_check
      _
    $region83: #{simple_baseline_forward.1} parent=1 // pred_check_branch
      %9506 = sbr.rel (0) target = $region85
    $region84: #{simple_baseline_forward.1} parent=1 // pred_region
      %9507 = dma.done [#allocation5], 32
    $region85: #{simple_baseline_forward.1} parent=1 // pred_fallthru
      _
    %9508 = vsyncpa [#allocation4], 1
    %9509 = vsyncpa [#allocation7], 1
    %9510 = vsyncpa [#allocation10], 1
    %9511 = vsyncpa [#allocation13], 1
    %9512 = vsyncpa [#allocation5], 1

</llo_original>
